<compile_context>
chip_gen: v7x
topology: tpu7x:2x2x1
jax: 0.10.0
libtpu: 0.0.40
codegen_flags: <defaults>
</compile_context>

<pallas_src>
import functools

import jax
import jax.numpy as jnp
from jax.experimental import pallas as pl
from jax.experimental.pallas import tpu as pltpu


# ----------------------------- in-kernel math helpers -----------------------------
def _mm(a, b):
    return jnp.dot(a, b, preferred_element_type=jnp.float32)


def _leaky(x):  # PyTorch LeakyReLU default negative_slope = 0.01
    return jnp.where(x >= 0.0, x, 0.01 * x)


def _elu(x):  # PyTorch ELU alpha = 1.0
    return jnp.where(x > 0.0, x, jnp.exp(jnp.minimum(x, 0.0)) - 1.0)


def _sigmoid(x):  # reciprocal on the EUP slot instead of a VALU divide
    return pl.reciprocal(1.0 + jnp.exp(-x), approx=True)


def _masked_softmax(logits, mask):
    """Softmax over axis=1 restricted to mask > 0 (clamped denominator: empty rows -> 0)."""
    ml = jnp.where(mask > 0.0, logits, -1e30)
    m = jnp.max(ml, axis=1, keepdims=True)
    e = jnp.exp(ml - m) * mask
    denom = jnp.maximum(jnp.sum(e, axis=1, keepdims=True), 1e-20)
    return e * pl.reciprocal(denom, approx=True)


def _gru_relu(x, h, wih, whh, bi, bh):
    """relu(nn.GRUCell(x, h)); weights fused as [in, 3G] / [G, 3G] with (r|z|n) column
    blocks; G is a multiple of 128 so the lane slices are tile-aligned."""
    g = bi.shape[-1] // 3
    gi = _mm(x, wih) + bi
    gh = _mm(h, whh) + bh
    r = _sigmoid(gi[:, :g] + gh[:, :g])
    z = _sigmoid(gi[:, g:2 * g] + gh[:, g:2 * g])
    n_ = jnp.tanh(gi[:, 2 * g:] + r * gh[:, 2 * g:])
    return jnp.maximum((1.0 - z) * n_ + z * h, 0.0)


# ----------------------------- the fused per-branch mega-kernel -----------------------------
_N_GC, _N_LY, _N_RO = 14, 9, 9


def _attfp_branch_kernel(*refs, n_extra_layers, n_timesteps):
    """Whole AttentiveFPPredictor (GetContext + GNN layers + readout) for ONE branch."""
    nf_ref, ef_ref, adj_ref, memb_ref = refs[:4]
    idx = 4
    gc = refs[idx:idx + _N_GC]; idx += _N_GC
    ly = ()
    if n_extra_layers > 0:
        ly = refs[idx:idx + _N_LY]; idx += _N_LY
    ro = ()
    if n_timesteps > 0:
        ro = refs[idx:idx + _N_RO]; idx += _N_RO
    out_ref = refs[idx]

    (pn_w, pn_b, pe1_wn, pe1_we, pe1_b,
     pe2_wd, pe2_we, pe2_b, et_w, et_b,
     g_wih, g_whh, g_bi, g_bh) = [r[...] for r in gc]

    nf = nf_ref[...]                                   # [N, Fn]
    adj = adj_ref[...]                                 # [N, N]
    n = adj.shape[0]
    gp = pn_w.shape[-1]

    # ---------------- GetContext (tiled over dst rows) ----------------
    hv = _leaky(_mm(nf, pn_w) + pn_b)                  # project_node              [N, G]
    src_part = _mm(nf, pe1_wn) + pe1_b                 # project_edge1 (src half)  [N, G]
    dst_all = _mm(hv, pe2_wd) + pe2_b                  # project_edge2 (dst half)  [N, 1]
    has_in = (jnp.sum(adj, axis=1, keepdims=True) > 0.0).astype(jnp.float32)   # [N, 1]

    tile_d = n if (n <= 128 or n % 128 != 0) else 128  # dst tile bounds the [tile_d,N,G] temps
    parts = []
    for d0 in range(0, n, tile_d):
        ef_t = ef_ref[pl.ds(d0 * n, tile_d * n), :]                    # [tile_d*N, Fe_pad]
        edge_part = _mm(ef_t, pe1_we).reshape(tile_d, n, gp)           # tile-preserving reshape
        he1 = _leaky(src_part[None, :, :] + edge_part)                 # [tile_d, N, G]
        e_l = jnp.sum(he1 * pe2_we[None, :, :], axis=-1)               # [tile_d, N]
        logits = _leaky(dst_all[d0:d0 + tile_d] + e_l)
        a = _masked_softmax(logits, adj[d0:d0 + tile_d, :])            # edge softmax over src
        # softmax-weighted sum over src: batched MXU contraction, bf16 operands / f32 acc
        agg = jnp.einsum('dus,dsg->dug',
                         a[:, None, :].astype(jnp.bfloat16),
                         he1.astype(jnp.bfloat16),
                         preferred_element_type=jnp.float32)[:, 0, :]  # [tile_d, G]
        # AttentiveGRU1.edge_transform moved after aggregation (linear; softmax weights sum
        # to 1).  Bias gated by has_in so isolated dst nodes reproduce the original elu(0).
        ctx = _elu(_mm(agg, et_w) + has_in[d0:d0 + tile_d] * et_b)
        parts.append(_gru_relu(ctx, hv[d0:d0 + tile_d], g_wih, g_whh, g_bi, g_bh))
    node = parts[0] if len(parts) == 1 else jnp.concatenate(parts, axis=0)      # [N, G]

    # ---------------- GNN layers (AttentiveGRU2), static unroll over stacked weights ----------------
    if n_extra_layers > 0:
        (l_wd, l_ws, l_b, l_pn_w, l_pn_b, l_wih, l_whh, l_bi, l_bh) = ly
        for i in range(n_extra_layers):
            dst_l = _mm(node, l_wd[i]) + l_b[i]                                   # [N, 1]
            src_row = jax.lax.dot_general(l_ws[i], node, (((1,), (1,)), ((), ())),
                                          preferred_element_type=jnp.float32)    # [1, N]
            lg = _leaky(dst_l + src_row)                    # concat+Linear logits, decomposed
            a = _masked_softmax(lg, adj)
            hv_p = _mm(node, l_pn_w[i]) + l_pn_b[i]
            ctx = _elu(jnp.dot(a.astype(jnp.bfloat16), hv_p.astype(jnp.bfloat16),
                               preferred_element_type=jnp.float32))
            node = _gru_relu(ctx, node, l_wih[i], l_whh[i], l_bi[i], l_bh[i])

    # ---------------- Readout (AttentiveFPReadout), static unroll ----------------
    memb = memb_ref[...]                                # [B, N]
    gf = _mm(memb, node)                                # dgl.sum_nodes            [B, G]
    if n_timesteps > 0:
        (r_wg, r_wn, r_b, r_pn_w, r_pn_b, r_wih, r_whh, r_bi, r_bh) = ro
        for t in range(n_timesteps):
            s = _mm(jnp.maximum(gf, 0.0), r_wg[t]) + r_b[t]                        # [B, 1]
            t_row = jax.lax.dot_general(r_wn[t], node, (((1,), (1,)), ((), ())),
                                        preferred_element_type=jnp.float32)       # [1, N]
            zlogit = _leaky(s + t_row)                                             # [B, N]
            a = _masked_softmax(zlogit, memb)                                      # softmax_nodes
            hv_p = _mm(node, r_pn_w[t]) + r_pn_b[t]
            ctx = _elu(_mm(a, hv_p))                                               # [B, G]
            gf = _gru_relu(ctx, gf, r_wih[t], r_whh[t], r_bi[t], r_bh[t])

    out_ref[...] = gf


# ----------------------------- pallas_call wrapper -----------------------------
def _branch_spec(a):
    """BlockSpec selecting branch b of a [K, ...]-stacked array (branch dim squeezed)."""
    nd = a.ndim
    return pl.BlockSpec((None,) + tuple(int(d) for d in a.shape[1:]),
                        lambda b: (b,) + (0,) * (nd - 1))


def attentive_fp_branches(nf_all, ef_all, adj_all, memb, bp):
    """One fused pallas_call: all 3 AttentiveFPPredictor branches -> [K, B, Gp] graph feats."""
    K, N, _ = nf_all.shape
    B = memb.shape[0]
    Gp = bp["gc"][0].shape[-1]
    n_extra_layers = bp["ly"][0].shape[1] if bp["ly"] else 0
    n_timesteps = bp["ro"][0].shape[1] if bp["ro"] else 0

    weights = list(bp["gc"]) + list(bp["ly"]) + list(bp["ro"])
    ins = [nf_all, ef_all, adj_all, memb] + weights
    in_specs = ([_branch_spec(nf_all), _branch_spec(ef_all), _branch_spec(adj_all),
                 pl.BlockSpec((B, N), lambda b: (0, 0))]
                + [_branch_spec(w) for w in weights])

    kernel = functools.partial(_attfp_branch_kernel,
                               n_extra_layers=n_extra_layers, n_timesteps=n_timesteps)
    return pl.pallas_call(
        kernel,
        grid=(K,),
        out_shape=jax.ShapeDtypeStruct((K, B, Gp), jnp.float32),
        in_specs=in_specs,
        out_specs=pl.BlockSpec((None, B, Gp), lambda b: (b, 0, 0)),
        compiler_params=pltpu.CompilerParams(
            # K=3 "parallel" steps split 2+1 across v7x's two TCs; acceptable since the whole
            # forward is a single launch.  64 MiB scoped VMEM fits every generation.
            dimension_semantics=("parallel",),
            vmem_limit_bytes=64 * 1024 * 1024),
    )(*ins)


# ----------------------------- end-to-end forward -----------------------------
@jax.jit
def forward(params, nf_all, ef_all, adj_all, memb):
    gf_all = attentive_fp_branches(nf_all, ef_all, adj_all, memb, params["branch"])
    # Head (torch.cat + Linear [+ dense stack]) in plain JAX: far below one kernel dispatch of
    # work, XLA fuses it, and we avoid lane-width-1 Pallas stores.  The concat is folded into
    # per-branch weight blocks (sum_k x_k @ W_k).
    if params["dense"]:
        w0_3, b0 = params["dense"][0]
        x = jax.nn.relu(jnp.einsum("kbg,kgu->bu", gf_all, w0_3) + b0)
        for w, b in params["dense"][1:]:
            x = jax.nn.relu(x @ w + b)
        return x @ params["pred_w"] + params["pred_b"]
    return jnp.einsum("kbg,kgt->bt", gf_all, params["pred_w3"]) + params["pred_b"]


# ----------------------------- parameter init (deterministic, synthetic) -----------------------------
def _linear_params(key, fan_in, fan_out):
    k1, k2 = jax.random.split(key)
    w = 0.1 * jax.random.normal(k1, (fan_in, fan_out), jnp.float32)
    b = 0.1 * jax.random.normal(k2, (fan_out,), jnp.float32)
    return w, b


def _gru_params(key, inp, hidden):
    # Stored as [in, 3H] with (r, z, n) column order.  Real PyTorch GRUCell checkpoints are
    # [3H, in]: transpose (keeping gate order) when loading real weights.
    k1, k2, k3, k4 = jax.random.split(key, 4)
    wih = 0.1 * jax.random.normal(k1, (inp, 3 * hidden), jnp.float32)
    whh = 0.1 * jax.random.normal(k2, (hidden, 3 * hidden), jnp.float32)
    bih = 0.1 * jax.random.normal(k3, (3 * hidden,), jnp.float32)
    bhh = 0.1 * jax.random.normal(k4, (3 * hidden,), jnp.float32)
    return (wih, whh, bih, bhh)


def init_predictor_params(key, node_feat, edge_feat, num_layers, num_timesteps, G):
    n_keys = 5 + 3 * (num_layers - 1) + 3 * num_timesteps
    it = iter(jax.random.split(key, n_keys))
    p = {}
    p["gc_pn_w"], p["gc_pn_b"] = _linear_params(next(it), node_feat, G)
    p["gc_pe1_w"], p["gc_pe1_b"] = _linear_params(next(it), node_feat + edge_feat, G)
    p["gc_pe2_w"], p["gc_pe2_b"] = _linear_params(next(it), 2 * G, 1)
    p["gc_et_w"], p["gc_et_b"] = _linear_params(next(it), G, G)
    p["gc_gru"] = _gru_params(next(it), G, G)
    p["layers"] = []
    for _ in range(num_layers - 1):
        lp = {}
        lp["pe_w"], lp["pe_b"] = _linear_params(next(it), 2 * G, 1)
        lp["pn_w"], lp["pn_b"] = _linear_params(next(it), G, G)
        lp["gru"] = _gru_params(next(it), G, G)
        p["layers"].append(lp)
    p["readouts"] = []
    for _ in range(num_timesteps):
        rp = {}
        rp["cl_w"], rp["cl_b"] = _linear_params(next(it), 2 * G, 1)
        rp["pn_w"], rp["pn_b"] = _linear_params(next(it), G, G)
        rp["gru"] = _gru_params(next(it), G, G)
        p["readouts"].append(rp)
    return p


# ----------------------------- weight prep: pad to lane-dense Gp + stack -----------------------------
def _pad2(w, rows, cols):
    return jnp.pad(w, ((0, rows - w.shape[0]), (0, cols - w.shape[1])))


def _pad_bias(b, cols):
    return jnp.pad(b, (0, cols - b.shape[0])).reshape(1, cols)


def prep_branch_params(p, Fn, Fe_pad, G, Gp):
    """Zero-pad everything to a lane-dense Gp (multiple of 128), split concat-Linear weights
    into dst/src blocks, keep GRU weights fused as [*, 3*Gp] (per-gate padded), and stack
    per-layer / per-timestep weights along a leading axis for the fused mega-kernel."""
    def pad_gru(gru):
        wih, whh, bih, bhh = gru
        pc = lambda w: jnp.concatenate(
            [_pad2(w[:, i * G:(i + 1) * G], Gp, Gp) for i in range(3)], axis=1)
        pb = lambda b: jnp.concatenate(
            [jnp.pad(b[i * G:(i + 1) * G], (0, Gp - G)) for i in range(3)]).reshape(1, 3 * Gp)
        return (pc(wih), pc(whh), pb(bih), pb(bhh))

    gc = (
        _pad2(p["gc_pn_w"], Fn, Gp), _pad_bias(p["gc_pn_b"], Gp),
        _pad2(p["gc_pe1_w"][:Fn], Fn, Gp), _pad2(p["gc_pe1_w"][Fn:], Fe_pad, Gp),
        _pad_bias(p["gc_pe1_b"], Gp),
        _pad2(p["gc_pe2_w"][:G], Gp, 1), _pad2(jnp.transpose(p["gc_pe2_w"][G:]), 1, Gp),
        p["gc_pe2_b"].reshape(1, 1),
        _pad2(p["gc_et_w"], Gp, Gp), _pad_bias(p["gc_et_b"], Gp),
    ) + pad_gru(p["gc_gru"])

    lys = []
    for lp in p["layers"]:
        lys.append((
            _pad2(lp["pe_w"][:G], Gp, 1), _pad2(jnp.transpose(lp["pe_w"][G:]), 1, Gp),
            lp["pe_b"].reshape(1, 1),
            _pad2(lp["pn_w"], Gp, Gp), _pad_bias(lp["pn_b"], Gp),
        ) + pad_gru(lp["gru"]))
    ly = tuple(jnp.stack(ws, axis=0) for ws in zip(*lys)) if lys else ()

    ros = []
    for rp in p["readouts"]:
        ros.append((
            _pad2(rp["cl_w"][:G], Gp, 1), _pad2(jnp.transpose(rp["cl_w"][G:]), 1, Gp),
            rp["cl_b"].reshape(1, 1),
            _pad2(rp["pn_w"], Gp, Gp), _pad_bias(rp["pn_b"], Gp),
        ) + pad_gru(rp["gru"]))
    ro = tuple(jnp.stack(ws, axis=0) for ws in zip(*ros)) if ros else ()

    return {"gc": gc, "ly": ly, "ro": ro}


# ----------------------------- main -----------------------------
if __name__ == "__main__":
    # Small synthetic config (module defaults scaled down; G zero-padded to lane-dense 128).
    NODE_F, EDGE_F = 8, 6
    NUM_LAYERS, NUM_TIMESTEPS = 3, 2          # -> 2 extra GNN layers, 2 readout timesteps
    GRAPH_FEAT = 48                           # true graph_feat_size
    G_PAD = 128                               # lane-dense padded width (multiple of 128)
    N_TASKS = 1
    B, N, K = 2, 16, 3                        # 2 molecules x 8 nodes; 3 AttentiveFP branches
    FE_PAD = ((EDGE_F + 7) // 8) * 8

    root = jax.random.PRNGKey(0)
    k_par, k_in = jax.random.split(root)
    kp = jax.random.split(k_par, 4)

    raw = [init_predictor_params(kp[i], NODE_F, EDGE_F, NUM_LAYERS, NUM_TIMESTEPS, GRAPH_FEAT)
           for i in range(K)]
    prepped = [prep_branch_params(p, NODE_F, FE_PAD, GRAPH_FEAT, G_PAD) for p in raw]
    branch = jax.tree_util.tree_map(lambda *xs: jnp.stack(xs, axis=0), *prepped)

    pred_w, pred_b = _linear_params(kp[3], 3 * GRAPH_FEAT, N_TASKS)
    pred_w3 = jnp.stack(                      # concat+Linear folded into per-branch blocks
        [_pad2(pred_w[i * GRAPH_FEAT:(i + 1) * GRAPH_FEAT], G_PAD, N_TASKS) for i in range(K)],
        axis=0)                               # [K, Gp, T]
    params = {"branch": branch, "dense": [],  # n_dense = 0 (module default)
              "pred_w3": pred_w3, "pred_b": pred_b.reshape(1, N_TASKS)}

    # node -> graph membership (shared by all branches): nodes 0..7 -> g0, 8..15 -> g1
    node_graph = jnp.concatenate([jnp.zeros(N // 2, jnp.int32), jnp.ones(N - N // 2, jnp.int32)])
    memb = jax.nn.one_hot(node_graph, B, dtype=jnp.float32).T                 # [B, N]
    same_graph = (node_graph[:, None] == node_graph[None, :]).astype(jnp.float32)

    def make_graph_inputs(key):
        k1, k2, k3 = jax.random.split(key, 3)
        nf = jax.random.normal(k1, (N, NODE_F), jnp.float32)
        ef = jax.random.normal(k2, (N, N, EDGE_F), jnp.float32)
        rand_adj = (jax.random.uniform(k3, (N, N)) < 0.3).astype(jnp.float32)
        # keep edges within a graph; self-loops guarantee >=1 incoming edge per node
        adj = jnp.maximum(rand_adj * same_graph, jnp.eye(N, dtype=jnp.float32))
        ef_flat = jnp.pad(ef, ((0, 0), (0, 0), (0, FE_PAD - EDGE_F))).reshape(N * N, FE_PAD)
        return nf, ef_flat, adj

    kin = jax.random.split(k_in, K)
    graphs = [make_graph_inputs(kin[i]) for i in range(K)]
    nf_all = jnp.stack([g[0] for g in graphs], axis=0)      # [K, N, Fn]
    ef_all = jnp.stack([g[1] for g in graphs], axis=0)      # [K, N*N, FE_PAD]
    adj_all = jnp.stack([g[2] for g in graphs], axis=0)     # [K, N, N]

    out = forward(params, nf_all, ef_all, adj_all, memb)
    jax.block_until_ready(out)
    assert out.shape == (B, N_TASKS) and out.dtype == jnp.float32
    print("KERNEL_OK")
</pallas_src>

<mosaic_0001>
module attributes {stable_mosaic.version = 11 : i64} {
  func.func @_attfp_branch_kernel(%arg0: i32, %arg1: memref<1x16x8xf32, #tpu.memory_space<vmem>>, %arg2: memref<1x256x8xf32, #tpu.memory_space<vmem>>, %arg3: memref<1x16x16xf32, #tpu.memory_space<vmem>>, %arg4: memref<2x16xf32, #tpu.memory_space<vmem>>, %arg5: memref<1x8x128xf32, #tpu.memory_space<vmem>>, %arg6: memref<1x1x128xf32, #tpu.memory_space<vmem>>, %arg7: memref<1x8x128xf32, #tpu.memory_space<vmem>>, %arg8: memref<1x8x128xf32, #tpu.memory_space<vmem>>, %arg9: memref<1x1x128xf32, #tpu.memory_space<vmem>>, %arg10: memref<1x128x1xf32, #tpu.memory_space<vmem>>, %arg11: memref<1x1x128xf32, #tpu.memory_space<vmem>>, %arg12: memref<1x1x1xf32, #tpu.memory_space<vmem>>, %arg13: memref<1x128x128xf32, #tpu.memory_space<vmem>>, %arg14: memref<1x1x128xf32, #tpu.memory_space<vmem>>, %arg15: memref<1x128x384xf32, #tpu.memory_space<vmem>>, %arg16: memref<1x128x384xf32, #tpu.memory_space<vmem>>, %arg17: memref<1x1x384xf32, #tpu.memory_space<vmem>>, %arg18: memref<1x1x384xf32, #tpu.memory_space<vmem>>, %arg19: memref<1x2x128x1xf32, #tpu.memory_space<vmem>>, %arg20: memref<1x2x1x128xf32, #tpu.memory_space<vmem>>, %arg21: memref<1x2x1x1xf32, #tpu.memory_space<vmem>>, %arg22: memref<1x2x128x128xf32, #tpu.memory_space<vmem>>, %arg23: memref<1x2x1x128xf32, #tpu.memory_space<vmem>>, %arg24: memref<1x2x128x384xf32, #tpu.memory_space<vmem>>, %arg25: memref<1x2x128x384xf32, #tpu.memory_space<vmem>>, %arg26: memref<1x2x1x384xf32, #tpu.memory_space<vmem>>, %arg27: memref<1x2x1x384xf32, #tpu.memory_space<vmem>>, %arg28: memref<1x2x128x1xf32, #tpu.memory_space<vmem>>, %arg29: memref<1x2x1x128xf32, #tpu.memory_space<vmem>>, %arg30: memref<1x2x1x1xf32, #tpu.memory_space<vmem>>, %arg31: memref<1x2x128x128xf32, #tpu.memory_space<vmem>>, %arg32: memref<1x2x1x128xf32, #tpu.memory_space<vmem>>, %arg33: memref<1x2x128x384xf32, #tpu.memory_space<vmem>>, %arg34: memref<1x2x128x384xf32, #tpu.memory_space<vmem>>, %arg35: memref<1x2x1x384xf32, #tpu.memory_space<vmem>>, %arg36: memref<1x2x1x384xf32, #tpu.memory_space<vmem>>, %arg37: memref<1x2x128xf32, #tpu.memory_space<vmem>>) attributes {dimension_semantics = [#tpu.dimension_semantics<parallel>], iteration_bounds = array<i64: 3>, scalar_prefetch = 0 : i64, scratch_operands = 0 : i64, tpu.core_type = #tpu.core_type<tc>, window_params = [{transform_indices = @transform_0, window_bounds = array<i64: 1, 16, 8>}, {transform_indices = @transform_1, window_bounds = array<i64: 1, 256, 8>}, {transform_indices = @transform_2, window_bounds = array<i64: 1, 16, 16>}, {pipeline_mode = #tpu.pipeline_mode<synchronous>, transform_indices = @transform_3, window_bounds = array<i64: 2, 16>}, {transform_indices = @transform_4, window_bounds = array<i64: 1, 8, 128>}, {transform_indices = @transform_5, window_bounds = array<i64: 1, 1, 128>}, {transform_indices = @transform_6, window_bounds = array<i64: 1, 8, 128>}, {transform_indices = @transform_7, window_bounds = array<i64: 1, 8, 128>}, {transform_indices = @transform_8, window_bounds = array<i64: 1, 1, 128>}, {transform_indices = @transform_9, window_bounds = array<i64: 1, 128, 1>}, {transform_indices = @transform_10, window_bounds = array<i64: 1, 1, 128>}, {transform_indices = @transform_11, window_bounds = array<i64: 1, 1, 1>}, {transform_indices = @transform_12, window_bounds = array<i64: 1, 128, 128>}, {transform_indices = @transform_13, window_bounds = array<i64: 1, 1, 128>}, {transform_indices = @transform_14, window_bounds = array<i64: 1, 128, 384>}, {transform_indices = @transform_15, window_bounds = array<i64: 1, 128, 384>}, {transform_indices = @transform_16, window_bounds = array<i64: 1, 1, 384>}, {transform_indices = @transform_17, window_bounds = array<i64: 1, 1, 384>}, {transform_indices = @transform_18, window_bounds = array<i64: 1, 2, 128, 1>}, {transform_indices = @transform_19, window_bounds = array<i64: 1, 2, 1, 128>}, {transform_indices = @transform_20, window_bounds = array<i64: 1, 2, 1, 1>}, {transform_indices = @transform_21, window_bounds = array<i64: 1, 2, 128, 128>}, {transform_indices = @transform_22, window_bounds = array<i64: 1, 2, 1, 128>}, {transform_indices = @transform_23, window_bounds = array<i64: 1, 2, 128, 384>}, {transform_indices = @transform_24, window_bounds = array<i64: 1, 2, 128, 384>}, {transform_indices = @transform_25, window_bounds = array<i64: 1, 2, 1, 384>}, {transform_indices = @transform_26, window_bounds = array<i64: 1, 2, 1, 384>}, {transform_indices = @transform_27, window_bounds = array<i64: 1, 2, 128, 1>}, {transform_indices = @transform_28, window_bounds = array<i64: 1, 2, 1, 128>}, {transform_indices = @transform_29, window_bounds = array<i64: 1, 2, 1, 1>}, {transform_indices = @transform_30, window_bounds = array<i64: 1, 2, 128, 128>}, {transform_indices = @transform_31, window_bounds = array<i64: 1, 2, 1, 128>}, {transform_indices = @transform_32, window_bounds = array<i64: 1, 2, 128, 384>}, {transform_indices = @transform_33, window_bounds = array<i64: 1, 2, 128, 384>}, {transform_indices = @transform_34, window_bounds = array<i64: 1, 2, 1, 384>}, {transform_indices = @transform_35, window_bounds = array<i64: 1, 2, 1, 384>}, {transform_indices = @transform_36, window_bounds = array<i64: 1, 2, 128>}]} {
    %c0 = arith.constant 0 : index
    %c0_0 = arith.constant 0 : index
    %c0_1 = arith.constant 0 : index
    %0 = vector.load %arg5[%c0, %c0_0, %c0_1] : memref<1x8x128xf32, #tpu.memory_space<vmem>>, vector<1x8x128xf32>
    %1 = vector.shape_cast %0 : vector<1x8x128xf32> to vector<8x128xf32>
    %c0_2 = arith.constant 0 : index
    %c0_3 = arith.constant 0 : index
    %c0_4 = arith.constant 0 : index
    %2 = vector.load %arg6[%c0_2, %c0_3, %c0_4] : memref<1x1x128xf32, #tpu.memory_space<vmem>>, vector<1x1x128xf32>
    %3 = vector.shape_cast %2 : vector<1x1x128xf32> to vector<1x128xf32>
    %c0_5 = arith.constant 0 : index
    %c0_6 = arith.constant 0 : index
    %c0_7 = arith.constant 0 : index
    %4 = vector.load %arg7[%c0_5, %c0_6, %c0_7] : memref<1x8x128xf32, #tpu.memory_space<vmem>>, vector<1x8x128xf32>
    %5 = vector.shape_cast %4 : vector<1x8x128xf32> to vector<8x128xf32>
    %c0_8 = arith.constant 0 : index
    %c0_9 = arith.constant 0 : index
    %c0_10 = arith.constant 0 : index
    %6 = vector.load %arg8[%c0_8, %c0_9, %c0_10] : memref<1x8x128xf32, #tpu.memory_space<vmem>>, vector<1x8x128xf32>
    %7 = vector.shape_cast %6 : vector<1x8x128xf32> to vector<8x128xf32>
    %c0_11 = arith.constant 0 : index
    %c0_12 = arith.constant 0 : index
    %c0_13 = arith.constant 0 : index
    %8 = vector.load %arg9[%c0_11, %c0_12, %c0_13] : memref<1x1x128xf32, #tpu.memory_space<vmem>>, vector<1x1x128xf32>
    %9 = vector.shape_cast %8 : vector<1x1x128xf32> to vector<1x128xf32>
    %c0_14 = arith.constant 0 : index
    %c0_15 = arith.constant 0 : index
    %c0_16 = arith.constant 0 : index
    %10 = vector.load %arg10[%c0_14, %c0_15, %c0_16] : memref<1x128x1xf32, #tpu.memory_space<vmem>>, vector<1x128x1xf32>
    %11 = vector.shape_cast %10 : vector<1x128x1xf32> to vector<128x1xf32>
    %c0_17 = arith.constant 0 : index
    %c0_18 = arith.constant 0 : index
    %c0_19 = arith.constant 0 : index
    %12 = vector.load %arg11[%c0_17, %c0_18, %c0_19] : memref<1x1x128xf32, #tpu.memory_space<vmem>>, vector<1x1x128xf32>
    %13 = vector.shape_cast %12 : vector<1x1x128xf32> to vector<1x128xf32>
    %c0_20 = arith.constant 0 : index
    %c0_21 = arith.constant 0 : index
    %c0_22 = arith.constant 0 : index
    %14 = vector.load %arg12[%c0_20, %c0_21, %c0_22] : memref<1x1x1xf32, #tpu.memory_space<vmem>>, vector<1x1x1xf32>
    %15 = vector.shape_cast %14 : vector<1x1x1xf32> to vector<1x1xf32>
    %c0_23 = arith.constant 0 : index
    %c0_24 = arith.constant 0 : index
    %c0_25 = arith.constant 0 : index
    %16 = vector.load %arg13[%c0_23, %c0_24, %c0_25] : memref<1x128x128xf32, #tpu.memory_space<vmem>>, vector<1x128x128xf32>
    %17 = vector.shape_cast %16 : vector<1x128x128xf32> to vector<128x128xf32>
    %c0_26 = arith.constant 0 : index
    %c0_27 = arith.constant 0 : index
    %c0_28 = arith.constant 0 : index
    %18 = vector.load %arg14[%c0_26, %c0_27, %c0_28] : memref<1x1x128xf32, #tpu.memory_space<vmem>>, vector<1x1x128xf32>
    %19 = vector.shape_cast %18 : vector<1x1x128xf32> to vector<1x128xf32>
    %c0_29 = arith.constant 0 : index
    %c0_30 = arith.constant 0 : index
    %c0_31 = arith.constant 0 : index
    %20 = vector.load %arg15[%c0_29, %c0_30, %c0_31] : memref<1x128x384xf32, #tpu.memory_space<vmem>>, vector<1x128x384xf32>
    %21 = vector.shape_cast %20 : vector<1x128x384xf32> to vector<128x384xf32>
    %c0_32 = arith.constant 0 : index
    %c0_33 = arith.constant 0 : index
    %c0_34 = arith.constant 0 : index
    %22 = vector.load %arg16[%c0_32, %c0_33, %c0_34] : memref<1x128x384xf32, #tpu.memory_space<vmem>>, vector<1x128x384xf32>
    %23 = vector.shape_cast %22 : vector<1x128x384xf32> to vector<128x384xf32>
    %c0_35 = arith.constant 0 : index
    %c0_36 = arith.constant 0 : index
    %c0_37 = arith.constant 0 : index
    %24 = vector.load %arg17[%c0_35, %c0_36, %c0_37] : memref<1x1x384xf32, #tpu.memory_space<vmem>>, vector<1x1x384xf32>
    %25 = vector.shape_cast %24 : vector<1x1x384xf32> to vector<1x384xf32>
    %c0_38 = arith.constant 0 : index
    %c0_39 = arith.constant 0 : index
    %c0_40 = arith.constant 0 : index
    %26 = vector.load %arg18[%c0_38, %c0_39, %c0_40] : memref<1x1x384xf32, #tpu.memory_space<vmem>>, vector<1x1x384xf32>
    %27 = vector.shape_cast %26 : vector<1x1x384xf32> to vector<1x384xf32>
    %c0_41 = arith.constant 0 : index
    %c0_42 = arith.constant 0 : index
    %c0_43 = arith.constant 0 : index
    %28 = vector.load %arg1[%c0_41, %c0_42, %c0_43] : memref<1x16x8xf32, #tpu.memory_space<vmem>>, vector<1x16x8xf32>
    %29 = vector.shape_cast %28 : vector<1x16x8xf32> to vector<16x8xf32>
    %c0_44 = arith.constant 0 : index
    %c0_45 = arith.constant 0 : index
    %c0_46 = arith.constant 0 : index
    %30 = vector.load %arg3[%c0_44, %c0_45, %c0_46] : memref<1x16x16xf32, #tpu.memory_space<vmem>>, vector<1x16x16xf32>
    %31 = vector.shape_cast %30 : vector<1x16x16xf32> to vector<16x16xf32>
    %cst = arith.constant dense<0.000000e+00> : vector<16x128xf32>
    %32 = tpu.matmul %29, %1, %cst {dimension_numbers = #tpu.dot_dimension_numbers<[1], [0], [0], [1], [0, 0, 1, 1], [], []>} : vector<16x8xf32>, vector<8x128xf32>, vector<16x128xf32> -> vector<16x128xf32>
    %33 = vector.broadcast %3 : vector<1x128xf32> to vector<16x128xf32>
    %34 = arith.addf %32, %33 : vector<16x128xf32>
    %cst_47 = arith.constant 0.000000e+00 : f32
    %35 = vector.broadcast %cst_47 : f32 to vector<16x128xf32>
    %36 = arith.cmpf oge, %34, %35 : vector<16x128xf32>
    %cst_48 = arith.constant 0.00999999977 : f32
    %37 = vector.broadcast %cst_48 : f32 to vector<16x128xf32>
    %38 = arith.mulf %37, %34 : vector<16x128xf32>
    %39 = arith.select %36, %34, %38 : vector<16x128xi1>, vector<16x128xf32>
    %cst_49 = arith.constant dense<0.000000e+00> : vector<16x128xf32>
    %40 = tpu.matmul %29, %5, %cst_49 {dimension_numbers = #tpu.dot_dimension_numbers<[1], [0], [0], [1], [0, 0, 1, 1], [], []>} : vector<16x8xf32>, vector<8x128xf32>, vector<16x128xf32> -> vector<16x128xf32>
    %41 = vector.broadcast %9 : vector<1x128xf32> to vector<16x128xf32>
    %42 = arith.addf %40, %41 : vector<16x128xf32>
    %cst_50 = arith.constant dense<0.000000e+00> : vector<16x1xf32>
    %43 = tpu.matmul %39, %11, %cst_50 {dimension_numbers = #tpu.dot_dimension_numbers<[1], [0], [0], [1], [0, 0, 1, 1], [], []>} : vector<16x128xf32>, vector<128x1xf32>, vector<16x1xf32> -> vector<16x1xf32>
    %44 = vector.broadcast %15 : vector<1x1xf32> to vector<16x1xf32>
    %45 = arith.addf %43, %44 : vector<16x1xf32>
    %cst_51 = arith.constant dense<0.000000e+00> : vector<16xf32>
    %46 = vector.multi_reduction <add>, %31, %cst_51 [1] : vector<16x16xf32> to vector<16xf32>
    %47 = vector.shape_cast %46 : vector<16xf32> to vector<16x1xf32>
    %cst_52 = arith.constant 0.000000e+00 : f32
    %48 = vector.broadcast %cst_52 : f32 to vector<16x1xf32>
    %49 = arith.cmpf ogt, %47, %48 : vector<16x1xf32>
    %50 = arith.extui %49 : vector<16x1xi1> to vector<16x1xi32>
    %51 = arith.sitofp %50 : vector<16x1xi32> to vector<16x1xf32>
    %c0_53 = arith.constant 0 : index
    %c0_54 = arith.constant 0 : index
    %c0_55 = arith.constant 0 : index
    %52 = vector.load %arg2[%c0_53, %c0_54, %c0_55] : memref<1x256x8xf32, #tpu.memory_space<vmem>>, vector<1x256x8xf32>
    %53 = vector.shape_cast %52 : vector<1x256x8xf32> to vector<256x8xf32>
    %cst_56 = arith.constant dense<0.000000e+00> : vector<256x128xf32>
    %54 = tpu.matmul %53, %7, %cst_56 {dimension_numbers = #tpu.dot_dimension_numbers<[1], [0], [0], [1], [0, 0, 1, 1], [], []>} : vector<256x8xf32>, vector<8x128xf32>, vector<256x128xf32> -> vector<256x128xf32>
    %55 = vector.shape_cast %54 : vector<256x128xf32> to vector<16x16x128xf32>
    %56 = vector.shape_cast %42 : vector<16x128xf32> to vector<1x16x128xf32>
    %57 = vector.broadcast %56 : vector<1x16x128xf32> to vector<16x16x128xf32>
    %58 = arith.addf %57, %55 : vector<16x16x128xf32>
    %cst_57 = arith.constant 0.000000e+00 : f32
    %59 = vector.broadcast %cst_57 : f32 to vector<16x16x128xf32>
    %60 = arith.cmpf oge, %58, %59 : vector<16x16x128xf32>
    %cst_58 = arith.constant 0.00999999977 : f32
    %61 = vector.broadcast %cst_58 : f32 to vector<16x16x128xf32>
    %62 = arith.mulf %61, %58 : vector<16x16x128xf32>
    %63 = arith.select %60, %58, %62 : vector<16x16x128xi1>, vector<16x16x128xf32>
    %64 = vector.shape_cast %13 : vector<1x128xf32> to vector<1x1x128xf32>
    %65 = vector.broadcast %64 : vector<1x1x128xf32> to vector<16x16x128xf32>
    %66 = arith.mulf %63, %65 : vector<16x16x128xf32>
    %cst_59 = arith.constant dense<0.000000e+00> : vector<16x16xf32>
    %67 = vector.multi_reduction <add>, %66, %cst_59 [2] : vector<16x16x128xf32> to vector<16x16xf32>
    %68 = vector.broadcast %45 : vector<16x1xf32> to vector<16x16xf32>
    %69 = arith.addf %68, %67 : vector<16x16xf32>
    %cst_60 = arith.constant 0.000000e+00 : f32
    %70 = vector.broadcast %cst_60 : f32 to vector<16x16xf32>
    %71 = arith.cmpf oge, %69, %70 : vector<16x16xf32>
    %cst_61 = arith.constant 0.00999999977 : f32
    %72 = vector.broadcast %cst_61 : f32 to vector<16x16xf32>
    %73 = arith.mulf %72, %69 : vector<16x16xf32>
    %74 = arith.select %71, %69, %73 : vector<16x16xi1>, vector<16x16xf32>
    %cst_62 = arith.constant 0.000000e+00 : f32
    %75 = vector.broadcast %cst_62 : f32 to vector<16x16xf32>
    %76 = arith.cmpf ogt, %31, %75 : vector<16x16xf32>
    %cst_63 = arith.constant -1.000000e+30 : f32
    %77 = vector.broadcast %cst_63 : f32 to vector<16x16xf32>
    %78 = arith.select %76, %74, %77 : vector<16x16xi1>, vector<16x16xf32>
    %cst_64 = arith.constant dense<0xFF800000> : vector<16xf32>
    %79 = vector.multi_reduction <maximumf>, %78, %cst_64 [1] : vector<16x16xf32> to vector<16xf32>
    %80 = vector.shape_cast %79 : vector<16xf32> to vector<16x1xf32>
    %81 = vector.broadcast %80 : vector<16x1xf32> to vector<16x16xf32>
    %82 = arith.subf %78, %81 : vector<16x16xf32>
    %83 = math.exp %82 : vector<16x16xf32>
    %84 = arith.mulf %83, %31 : vector<16x16xf32>
    %cst_65 = arith.constant dense<0.000000e+00> : vector<16xf32>
    %85 = vector.multi_reduction <add>, %84, %cst_65 [1] : vector<16x16xf32> to vector<16xf32>
    %86 = vector.shape_cast %85 : vector<16xf32> to vector<16x1xf32>
    %cst_66 = arith.constant 9.99999968E-21 : f32
    %87 = vector.broadcast %cst_66 : f32 to vector<16x1xf32>
    %88 = arith.maximumf %86, %87 : vector<16x1xf32>
    %89 = tpu.reciprocal %88 {approx = true} : vector<16x1xf32> -> vector<16x1xf32>
    %90 = vector.broadcast %89 : vector<16x1xf32> to vector<16x16xf32>
    %91 = arith.mulf %84, %90 : vector<16x16xf32>
    %92 = vector.shape_cast %91 : vector<16x16xf32> to vector<16x1x16xf32>
    %93 = arith.truncf %92 : vector<16x1x16xf32> to vector<16x1x16xbf16>
    %94 = arith.truncf %63 : vector<16x16x128xf32> to vector<16x16x128xbf16>
    "tpu.trace_start"() <{level = 10 : i32, message = "dus,dsg->dug"}> : () -> ()
    %cst_67 = arith.constant dense<0.000000e+00> : vector<16x1x128xf32>
    %95 = tpu.matmul %93, %94, %cst_67 {dimension_numbers = #tpu.dot_dimension_numbers<[2], [1], [1], [2], [0, 0, 0, 1, 1, 2], [0], [0]>} : vector<16x1x16xbf16>, vector<16x16x128xbf16>, vector<16x1x128xf32> -> vector<16x1x128xf32>
    "tpu.trace_stop"() : () -> ()
    %96 = vector.shape_cast %95 : vector<16x1x128xf32> to vector<16x128xf32>
    %cst_68 = arith.constant dense<0.000000e+00> : vector<16x128xf32>
    %97 = tpu.matmul %96, %17, %cst_68 {dimension_numbers = #tpu.dot_dimension_numbers<[1], [0], [0], [1], [0, 0, 1, 1], [], []>} : vector<16x128xf32>, vector<128x128xf32>, vector<16x128xf32> -> vector<16x128xf32>
    %98 = vector.broadcast %51 : vector<16x1xf32> to vector<16x128xf32>
    %99 = vector.broadcast %19 : vector<1x128xf32> to vector<16x128xf32>
    %100 = arith.mulf %98, %99 : vector<16x128xf32>
    %101 = arith.addf %97, %100 : vector<16x128xf32>
    %cst_69 = arith.constant 0.000000e+00 : f32
    %102 = vector.broadcast %cst_69 : f32 to vector<16x128xf32>
    %103 = arith.cmpf ogt, %101, %102 : vector<16x128xf32>
    %cst_70 = arith.constant 0.000000e+00 : f32
    %104 = vector.broadcast %cst_70 : f32 to vector<16x128xf32>
    %105 = arith.minimumf %101, %104 : vector<16x128xf32>
    %106 = math.exp %105 : vector<16x128xf32>
    %cst_71 = arith.constant 1.000000e+00 : f32
    %107 = vector.broadcast %cst_71 : f32 to vector<16x128xf32>
    %108 = arith.subf %106, %107 : vector<16x128xf32>
    %109 = arith.select %103, %101, %108 : vector<16x128xi1>, vector<16x128xf32>
    %cst_72 = arith.constant dense<0.000000e+00> : vector<16x384xf32>
    %110 = tpu.matmul %109, %21, %cst_72 {dimension_numbers = #tpu.dot_dimension_numbers<[1], [0], [0], [1], [0, 0, 1, 1], [], []>} : vector<16x128xf32>, vector<128x384xf32>, vector<16x384xf32> -> vector<16x384xf32>
    %111 = vector.broadcast %25 : vector<1x384xf32> to vector<16x384xf32>
    %112 = arith.addf %110, %111 : vector<16x384xf32>
    %cst_73 = arith.constant dense<0.000000e+00> : vector<16x384xf32>
    %113 = tpu.matmul %39, %23, %cst_73 {dimension_numbers = #tpu.dot_dimension_numbers<[1], [0], [0], [1], [0, 0, 1, 1], [], []>} : vector<16x128xf32>, vector<128x384xf32>, vector<16x384xf32> -> vector<16x384xf32>
    %114 = vector.broadcast %27 : vector<1x384xf32> to vector<16x384xf32>
    %115 = arith.addf %113, %114 : vector<16x384xf32>
    %116 = vector.extract_strided_slice %112 {offsets = [0, 0], sizes = [16, 128], strides = [1, 1]} : vector<16x384xf32> to vector<16x128xf32>
    %117 = vector.extract_strided_slice %115 {offsets = [0, 0], sizes = [16, 128], strides = [1, 1]} : vector<16x384xf32> to vector<16x128xf32>
    %118 = arith.addf %116, %117 : vector<16x128xf32>
    %cst_74 = arith.constant 0.000000e+00 : f32
    %119 = vector.broadcast %cst_74 : f32 to vector<16x128xf32>
    %120 = arith.subf %119, %118 : vector<16x128xf32>
    %121 = math.exp %120 : vector<16x128xf32>
    %cst_75 = arith.constant 1.000000e+00 : f32
    %122 = vector.broadcast %cst_75 : f32 to vector<16x128xf32>
    %123 = arith.addf %122, %121 : vector<16x128xf32>
    %124 = tpu.reciprocal %123 {approx = true} : vector<16x128xf32> -> vector<16x128xf32>
    %125 = vector.extract_strided_slice %112 {offsets = [0, 128], sizes = [16, 128], strides = [1, 1]} : vector<16x384xf32> to vector<16x128xf32>
    %126 = vector.extract_strided_slice %115 {offsets = [0, 128], sizes = [16, 128], strides = [1, 1]} : vector<16x384xf32> to vector<16x128xf32>
    %127 = arith.addf %125, %126 : vector<16x128xf32>
    %cst_76 = arith.constant 0.000000e+00 : f32
    %128 = vector.broadcast %cst_76 : f32 to vector<16x128xf32>
    %129 = arith.subf %128, %127 : vector<16x128xf32>
    %130 = math.exp %129 : vector<16x128xf32>
    %cst_77 = arith.constant 1.000000e+00 : f32
    %131 = vector.broadcast %cst_77 : f32 to vector<16x128xf32>
    %132 = arith.addf %131, %130 : vector<16x128xf32>
    %133 = tpu.reciprocal %132 {approx = true} : vector<16x128xf32> -> vector<16x128xf32>
    %134 = vector.extract_strided_slice %112 {offsets = [0, 256], sizes = [16, 128], strides = [1, 1]} : vector<16x384xf32> to vector<16x128xf32>
    %135 = vector.extract_strided_slice %115 {offsets = [0, 256], sizes = [16, 128], strides = [1, 1]} : vector<16x384xf32> to vector<16x128xf32>
    %136 = arith.mulf %124, %135 : vector<16x128xf32>
    %137 = arith.addf %134, %136 : vector<16x128xf32>
    %138 = math.tanh %137 : vector<16x128xf32>
    %cst_78 = arith.constant 1.000000e+00 : f32
    %139 = vector.broadcast %cst_78 : f32 to vector<16x128xf32>
    %140 = arith.subf %139, %133 : vector<16x128xf32>
    %141 = arith.mulf %140, %138 : vector<16x128xf32>
    %142 = arith.mulf %133, %39 : vector<16x128xf32>
    %143 = arith.addf %141, %142 : vector<16x128xf32>
    %cst_79 = arith.constant 0.000000e+00 : f32
    %144 = vector.broadcast %cst_79 : f32 to vector<16x128xf32>
    %145 = arith.maximumf %143, %144 : vector<16x128xf32>
    %c0_80 = arith.constant 0 : index
    %c0_81 = arith.constant 0 : index
    %c0_82 = arith.constant 0 : index
    %c0_83 = arith.constant 0 : index
    %146 = vector.load %arg19[%c0_80, %c0_81, %c0_82, %c0_83] : memref<1x2x128x1xf32, #tpu.memory_space<vmem>>, vector<1x1x128x1xf32>
    %147 = vector.shape_cast %146 : vector<1x1x128x1xf32> to vector<128x1xf32>
    %cst_84 = arith.constant dense<0.000000e+00> : vector<16x1xf32>
    %148 = tpu.matmul %145, %147, %cst_84 {dimension_numbers = #tpu.dot_dimension_numbers<[1], [0], [0], [1], [0, 0, 1, 1], [], []>} : vector<16x128xf32>, vector<128x1xf32>, vector<16x1xf32> -> vector<16x1xf32>
    %c0_85 = arith.constant 0 : index
    %c0_86 = arith.constant 0 : index
    %c0_87 = arith.constant 0 : index
    %c0_88 = arith.constant 0 : index
    %149 = vector.load %arg21[%c0_85, %c0_86, %c0_87, %c0_88] : memref<1x2x1x1xf32, #tpu.memory_space<vmem>>, vector<1x1x1x1xf32>
    %150 = vector.shape_cast %149 : vector<1x1x1x1xf32> to vector<1x1xf32>
    %151 = vector.broadcast %150 : vector<1x1xf32> to vector<16x1xf32>
    %152 = arith.addf %148, %151 : vector<16x1xf32>
    %c0_89 = arith.constant 0 : index
    %c0_90 = arith.constant 0 : index
    %c0_91 = arith.constant 0 : index
    %c0_92 = arith.constant 0 : index
    %153 = vector.load %arg20[%c0_89, %c0_90, %c0_91, %c0_92] : memref<1x2x1x128xf32, #tpu.memory_space<vmem>>, vector<1x1x1x128xf32>
    %154 = vector.shape_cast %153 : vector<1x1x1x128xf32> to vector<1x128xf32>
    %cst_93 = arith.constant dense<0.000000e+00> : vector<1x16xf32>
    %155 = tpu.matmul %154, %145, %cst_93 {dimension_numbers = #tpu.dot_dimension_numbers<[1], [1], [0], [0], [0, 0, 1, 0], [], []>} : vector<1x128xf32>, vector<16x128xf32>, vector<1x16xf32> -> vector<1x16xf32>
    %156 = vector.broadcast %152 : vector<16x1xf32> to vector<16x16xf32>
    %157 = vector.broadcast %155 : vector<1x16xf32> to vector<16x16xf32>
    %158 = arith.addf %156, %157 : vector<16x16xf32>
    %cst_94 = arith.constant 0.000000e+00 : f32
    %159 = vector.broadcast %cst_94 : f32 to vector<16x16xf32>
    %160 = arith.cmpf oge, %158, %159 : vector<16x16xf32>
    %cst_95 = arith.constant 0.00999999977 : f32
    %161 = vector.broadcast %cst_95 : f32 to vector<16x16xf32>
    %162 = arith.mulf %161, %158 : vector<16x16xf32>
    %163 = arith.select %160, %158, %162 : vector<16x16xi1>, vector<16x16xf32>
    %cst_96 = arith.constant 0.000000e+00 : f32
    %164 = vector.broadcast %cst_96 : f32 to vector<16x16xf32>
    %165 = arith.cmpf ogt, %31, %164 : vector<16x16xf32>
    %cst_97 = arith.constant -1.000000e+30 : f32
    %166 = vector.broadcast %cst_97 : f32 to vector<16x16xf32>
    %167 = arith.select %165, %163, %166 : vector<16x16xi1>, vector<16x16xf32>
    %cst_98 = arith.constant dense<0xFF800000> : vector<16xf32>
    %168 = vector.multi_reduction <maximumf>, %167, %cst_98 [1] : vector<16x16xf32> to vector<16xf32>
    %169 = vector.shape_cast %168 : vector<16xf32> to vector<16x1xf32>
    %170 = vector.broadcast %169 : vector<16x1xf32> to vector<16x16xf32>
    %171 = arith.subf %167, %170 : vector<16x16xf32>
    %172 = math.exp %171 : vector<16x16xf32>
    %173 = arith.mulf %172, %31 : vector<16x16xf32>
    %cst_99 = arith.constant dense<0.000000e+00> : vector<16xf32>
    %174 = vector.multi_reduction <add>, %173, %cst_99 [1] : vector<16x16xf32> to vector<16xf32>
    %175 = vector.shape_cast %174 : vector<16xf32> to vector<16x1xf32>
    %cst_100 = arith.constant 9.99999968E-21 : f32
    %176 = vector.broadcast %cst_100 : f32 to vector<16x1xf32>
    %177 = arith.maximumf %175, %176 : vector<16x1xf32>
    %178 = tpu.reciprocal %177 {approx = true} : vector<16x1xf32> -> vector<16x1xf32>
    %179 = vector.broadcast %178 : vector<16x1xf32> to vector<16x16xf32>
    %180 = arith.mulf %173, %179 : vector<16x16xf32>
    %c0_101 = arith.constant 0 : index
    %c0_102 = arith.constant 0 : index
    %c0_103 = arith.constant 0 : index
    %c0_104 = arith.constant 0 : index
    %181 = vector.load %arg22[%c0_101, %c0_102, %c0_103, %c0_104] : memref<1x2x128x128xf32, #tpu.memory_space<vmem>>, vector<1x1x128x128xf32>
    %182 = vector.shape_cast %181 : vector<1x1x128x128xf32> to vector<128x128xf32>
    %cst_105 = arith.constant dense<0.000000e+00> : vector<16x128xf32>
    %183 = tpu.matmul %145, %182, %cst_105 {dimension_numbers = #tpu.dot_dimension_numbers<[1], [0], [0], [1], [0, 0, 1, 1], [], []>} : vector<16x128xf32>, vector<128x128xf32>, vector<16x128xf32> -> vector<16x128xf32>
    %c0_106 = arith.constant 0 : index
    %c0_107 = arith.constant 0 : index
    %c0_108 = arith.constant 0 : index
    %c0_109 = arith.constant 0 : index
    %184 = vector.load %arg23[%c0_106, %c0_107, %c0_108, %c0_109] : memref<1x2x1x128xf32, #tpu.memory_space<vmem>>, vector<1x1x1x128xf32>
    %185 = vector.shape_cast %184 : vector<1x1x1x128xf32> to vector<1x128xf32>
    %186 = vector.broadcast %185 : vector<1x128xf32> to vector<16x128xf32>
    %187 = arith.addf %183, %186 : vector<16x128xf32>
    %188 = arith.truncf %180 : vector<16x16xf32> to vector<16x16xbf16>
    %189 = arith.truncf %187 : vector<16x128xf32> to vector<16x128xbf16>
    %cst_110 = arith.constant dense<0.000000e+00> : vector<16x128xf32>
    %190 = tpu.matmul %188, %189, %cst_110 {dimension_numbers = #tpu.dot_dimension_numbers<[1], [0], [0], [1], [0, 0, 1, 1], [], []>} : vector<16x16xbf16>, vector<16x128xbf16>, vector<16x128xf32> -> vector<16x128xf32>
    %cst_111 = arith.constant 0.000000e+00 : f32
    %191 = vector.broadcast %cst_111 : f32 to vector<16x128xf32>
    %192 = arith.cmpf ogt, %190, %191 : vector<16x128xf32>
    %cst_112 = arith.constant 0.000000e+00 : f32
    %193 = vector.broadcast %cst_112 : f32 to vector<16x128xf32>
    %194 = arith.minimumf %190, %193 : vector<16x128xf32>
    %195 = math.exp %194 : vector<16x128xf32>
    %cst_113 = arith.constant 1.000000e+00 : f32
    %196 = vector.broadcast %cst_113 : f32 to vector<16x128xf32>
    %197 = arith.subf %195, %196 : vector<16x128xf32>
    %198 = arith.select %192, %190, %197 : vector<16x128xi1>, vector<16x128xf32>
    %c0_114 = arith.constant 0 : index
    %c0_115 = arith.constant 0 : index
    %c0_116 = arith.constant 0 : index
    %c0_117 = arith.constant 0 : index
    %199 = vector.load %arg24[%c0_114, %c0_115, %c0_116, %c0_117] : memref<1x2x128x384xf32, #tpu.memory_space<vmem>>, vector<1x1x128x384xf32>
    %200 = vector.shape_cast %199 : vector<1x1x128x384xf32> to vector<128x384xf32>
    %c0_118 = arith.constant 0 : index
    %c0_119 = arith.constant 0 : index
    %c0_120 = arith.constant 0 : index
    %c0_121 = arith.constant 0 : index
    %201 = vector.load %arg25[%c0_118, %c0_119, %c0_120, %c0_121] : memref<1x2x128x384xf32, #tpu.memory_space<vmem>>, vector<1x1x128x384xf32>
    %202 = vector.shape_cast %201 : vector<1x1x128x384xf32> to vector<128x384xf32>
    %c0_122 = arith.constant 0 : index
    %c0_123 = arith.constant 0 : index
    %c0_124 = arith.constant 0 : index
    %c0_125 = arith.constant 0 : index
    %203 = vector.load %arg26[%c0_122, %c0_123, %c0_124, %c0_125] : memref<1x2x1x384xf32, #tpu.memory_space<vmem>>, vector<1x1x1x384xf32>
    %204 = vector.shape_cast %203 : vector<1x1x1x384xf32> to vector<1x384xf32>
    %c0_126 = arith.constant 0 : index
    %c0_127 = arith.constant 0 : index
    %c0_128 = arith.constant 0 : index
    %c0_129 = arith.constant 0 : index
    %205 = vector.load %arg27[%c0_126, %c0_127, %c0_128, %c0_129] : memref<1x2x1x384xf32, #tpu.memory_space<vmem>>, vector<1x1x1x384xf32>
    %206 = vector.shape_cast %205 : vector<1x1x1x384xf32> to vector<1x384xf32>
    %cst_130 = arith.constant dense<0.000000e+00> : vector<16x384xf32>
    %207 = tpu.matmul %198, %200, %cst_130 {dimension_numbers = #tpu.dot_dimension_numbers<[1], [0], [0], [1], [0, 0, 1, 1], [], []>} : vector<16x128xf32>, vector<128x384xf32>, vector<16x384xf32> -> vector<16x384xf32>
    %208 = vector.broadcast %204 : vector<1x384xf32> to vector<16x384xf32>
    %209 = arith.addf %207, %208 : vector<16x384xf32>
    %cst_131 = arith.constant dense<0.000000e+00> : vector<16x384xf32>
    %210 = tpu.matmul %145, %202, %cst_131 {dimension_numbers = #tpu.dot_dimension_numbers<[1], [0], [0], [1], [0, 0, 1, 1], [], []>} : vector<16x128xf32>, vector<128x384xf32>, vector<16x384xf32> -> vector<16x384xf32>
    %211 = vector.broadcast %206 : vector<1x384xf32> to vector<16x384xf32>
    %212 = arith.addf %210, %211 : vector<16x384xf32>
    %213 = vector.extract_strided_slice %209 {offsets = [0, 0], sizes = [16, 128], strides = [1, 1]} : vector<16x384xf32> to vector<16x128xf32>
    %214 = vector.extract_strided_slice %212 {offsets = [0, 0], sizes = [16, 128], strides = [1, 1]} : vector<16x384xf32> to vector<16x128xf32>
    %215 = arith.addf %213, %214 : vector<16x128xf32>
    %cst_132 = arith.constant 0.000000e+00 : f32
    %216 = vector.broadcast %cst_132 : f32 to vector<16x128xf32>
    %217 = arith.subf %216, %215 : vector<16x128xf32>
    %218 = math.exp %217 : vector<16x128xf32>
    %cst_133 = arith.constant 1.000000e+00 : f32
    %219 = vector.broadcast %cst_133 : f32 to vector<16x128xf32>
    %220 = arith.addf %219, %218 : vector<16x128xf32>
    %221 = tpu.reciprocal %220 {approx = true} : vector<16x128xf32> -> vector<16x128xf32>
    %222 = vector.extract_strided_slice %209 {offsets = [0, 128], sizes = [16, 128], strides = [1, 1]} : vector<16x384xf32> to vector<16x128xf32>
    %223 = vector.extract_strided_slice %212 {offsets = [0, 128], sizes = [16, 128], strides = [1, 1]} : vector<16x384xf32> to vector<16x128xf32>
    %224 = arith.addf %222, %223 : vector<16x128xf32>
    %cst_134 = arith.constant 0.000000e+00 : f32
    %225 = vector.broadcast %cst_134 : f32 to vector<16x128xf32>
    %226 = arith.subf %225, %224 : vector<16x128xf32>
    %227 = math.exp %226 : vector<16x128xf32>
    %cst_135 = arith.constant 1.000000e+00 : f32
    %228 = vector.broadcast %cst_135 : f32 to vector<16x128xf32>
    %229 = arith.addf %228, %227 : vector<16x128xf32>
    %230 = tpu.reciprocal %229 {approx = true} : vector<16x128xf32> -> vector<16x128xf32>
    %231 = vector.extract_strided_slice %209 {offsets = [0, 256], sizes = [16, 128], strides = [1, 1]} : vector<16x384xf32> to vector<16x128xf32>
    %232 = vector.extract_strided_slice %212 {offsets = [0, 256], sizes = [16, 128], strides = [1, 1]} : vector<16x384xf32> to vector<16x128xf32>
    %233 = arith.mulf %221, %232 : vector<16x128xf32>
    %234 = arith.addf %231, %233 : vector<16x128xf32>
    %235 = math.tanh %234 : vector<16x128xf32>
    %cst_136 = arith.constant 1.000000e+00 : f32
    %236 = vector.broadcast %cst_136 : f32 to vector<16x128xf32>
    %237 = arith.subf %236, %230 : vector<16x128xf32>
    %238 = arith.mulf %237, %235 : vector<16x128xf32>
    %239 = arith.mulf %230, %145 : vector<16x128xf32>
    %240 = arith.addf %238, %239 : vector<16x128xf32>
    %cst_137 = arith.constant 0.000000e+00 : f32
    %241 = vector.broadcast %cst_137 : f32 to vector<16x128xf32>
    %242 = arith.maximumf %240, %241 : vector<16x128xf32>
    %c0_138 = arith.constant 0 : index
    %c1 = arith.constant 1 : index
    %c0_139 = arith.constant 0 : index
    %c0_140 = arith.constant 0 : index
    %243 = vector.load %arg19[%c0_138, %c1, %c0_139, %c0_140] : memref<1x2x128x1xf32, #tpu.memory_space<vmem>>, vector<1x1x128x1xf32>
    %244 = vector.shape_cast %243 : vector<1x1x128x1xf32> to vector<128x1xf32>
    %cst_141 = arith.constant dense<0.000000e+00> : vector<16x1xf32>
    %245 = tpu.matmul %242, %244, %cst_141 {dimension_numbers = #tpu.dot_dimension_numbers<[1], [0], [0], [1], [0, 0, 1, 1], [], []>} : vector<16x128xf32>, vector<128x1xf32>, vector<16x1xf32> -> vector<16x1xf32>
    %c0_142 = arith.constant 0 : index
    %c1_143 = arith.constant 1 : index
    %c0_144 = arith.constant 0 : index
    %c0_145 = arith.constant 0 : index
    %246 = vector.load %arg21[%c0_142, %c1_143, %c0_144, %c0_145] : memref<1x2x1x1xf32, #tpu.memory_space<vmem>>, vector<1x1x1x1xf32>
    %247 = vector.shape_cast %246 : vector<1x1x1x1xf32> to vector<1x1xf32>
    %248 = vector.broadcast %247 : vector<1x1xf32> to vector<16x1xf32>
    %249 = arith.addf %245, %248 : vector<16x1xf32>
    %c0_146 = arith.constant 0 : index
    %c1_147 = arith.constant 1 : index
    %c0_148 = arith.constant 0 : index
    %c0_149 = arith.constant 0 : index
    %250 = vector.load %arg20[%c0_146, %c1_147, %c0_148, %c0_149] : memref<1x2x1x128xf32, #tpu.memory_space<vmem>>, vector<1x1x1x128xf32>
    %251 = vector.shape_cast %250 : vector<1x1x1x128xf32> to vector<1x128xf32>
    %cst_150 = arith.constant dense<0.000000e+00> : vector<1x16xf32>
    %252 = tpu.matmul %251, %242, %cst_150 {dimension_numbers = #tpu.dot_dimension_numbers<[1], [1], [0], [0], [0, 0, 1, 0], [], []>} : vector<1x128xf32>, vector<16x128xf32>, vector<1x16xf32> -> vector<1x16xf32>
    %253 = vector.broadcast %249 : vector<16x1xf32> to vector<16x16xf32>
    %254 = vector.broadcast %252 : vector<1x16xf32> to vector<16x16xf32>
    %255 = arith.addf %253, %254 : vector<16x16xf32>
    %cst_151 = arith.constant 0.000000e+00 : f32
    %256 = vector.broadcast %cst_151 : f32 to vector<16x16xf32>
    %257 = arith.cmpf oge, %255, %256 : vector<16x16xf32>
    %cst_152 = arith.constant 0.00999999977 : f32
    %258 = vector.broadcast %cst_152 : f32 to vector<16x16xf32>
    %259 = arith.mulf %258, %255 : vector<16x16xf32>
    %260 = arith.select %257, %255, %259 : vector<16x16xi1>, vector<16x16xf32>
    %cst_153 = arith.constant 0.000000e+00 : f32
    %261 = vector.broadcast %cst_153 : f32 to vector<16x16xf32>
    %262 = arith.cmpf ogt, %31, %261 : vector<16x16xf32>
    %cst_154 = arith.constant -1.000000e+30 : f32
    %263 = vector.broadcast %cst_154 : f32 to vector<16x16xf32>
    %264 = arith.select %262, %260, %263 : vector<16x16xi1>, vector<16x16xf32>
    %cst_155 = arith.constant dense<0xFF800000> : vector<16xf32>
    %265 = vector.multi_reduction <maximumf>, %264, %cst_155 [1] : vector<16x16xf32> to vector<16xf32>
    %266 = vector.shape_cast %265 : vector<16xf32> to vector<16x1xf32>
    %267 = vector.broadcast %266 : vector<16x1xf32> to vector<16x16xf32>
    %268 = arith.subf %264, %267 : vector<16x16xf32>
    %269 = math.exp %268 : vector<16x16xf32>
    %270 = arith.mulf %269, %31 : vector<16x16xf32>
    %cst_156 = arith.constant dense<0.000000e+00> : vector<16xf32>
    %271 = vector.multi_reduction <add>, %270, %cst_156 [1] : vector<16x16xf32> to vector<16xf32>
    %272 = vector.shape_cast %271 : vector<16xf32> to vector<16x1xf32>
    %cst_157 = arith.constant 9.99999968E-21 : f32
    %273 = vector.broadcast %cst_157 : f32 to vector<16x1xf32>
    %274 = arith.maximumf %272, %273 : vector<16x1xf32>
    %275 = tpu.reciprocal %274 {approx = true} : vector<16x1xf32> -> vector<16x1xf32>
    %276 = vector.broadcast %275 : vector<16x1xf32> to vector<16x16xf32>
    %277 = arith.mulf %270, %276 : vector<16x16xf32>
    %c0_158 = arith.constant 0 : index
    %c1_159 = arith.constant 1 : index
    %c0_160 = arith.constant 0 : index
    %c0_161 = arith.constant 0 : index
    %278 = vector.load %arg22[%c0_158, %c1_159, %c0_160, %c0_161] : memref<1x2x128x128xf32, #tpu.memory_space<vmem>>, vector<1x1x128x128xf32>
    %279 = vector.shape_cast %278 : vector<1x1x128x128xf32> to vector<128x128xf32>
    %cst_162 = arith.constant dense<0.000000e+00> : vector<16x128xf32>
    %280 = tpu.matmul %242, %279, %cst_162 {dimension_numbers = #tpu.dot_dimension_numbers<[1], [0], [0], [1], [0, 0, 1, 1], [], []>} : vector<16x128xf32>, vector<128x128xf32>, vector<16x128xf32> -> vector<16x128xf32>
    %c0_163 = arith.constant 0 : index
    %c1_164 = arith.constant 1 : index
    %c0_165 = arith.constant 0 : index
    %c0_166 = arith.constant 0 : index
    %281 = vector.load %arg23[%c0_163, %c1_164, %c0_165, %c0_166] : memref<1x2x1x128xf32, #tpu.memory_space<vmem>>, vector<1x1x1x128xf32>
    %282 = vector.shape_cast %281 : vector<1x1x1x128xf32> to vector<1x128xf32>
    %283 = vector.broadcast %282 : vector<1x128xf32> to vector<16x128xf32>
    %284 = arith.addf %280, %283 : vector<16x128xf32>
    %285 = arith.truncf %277 : vector<16x16xf32> to vector<16x16xbf16>
    %286 = arith.truncf %284 : vector<16x128xf32> to vector<16x128xbf16>
    %cst_167 = arith.constant dense<0.000000e+00> : vector<16x128xf32>
    %287 = tpu.matmul %285, %286, %cst_167 {dimension_numbers = #tpu.dot_dimension_numbers<[1], [0], [0], [1], [0, 0, 1, 1], [], []>} : vector<16x16xbf16>, vector<16x128xbf16>, vector<16x128xf32> -> vector<16x128xf32>
    %cst_168 = arith.constant 0.000000e+00 : f32
    %288 = vector.broadcast %cst_168 : f32 to vector<16x128xf32>
    %289 = arith.cmpf ogt, %287, %288 : vector<16x128xf32>
    %cst_169 = arith.constant 0.000000e+00 : f32
    %290 = vector.broadcast %cst_169 : f32 to vector<16x128xf32>
    %291 = arith.minimumf %287, %290 : vector<16x128xf32>
    %292 = math.exp %291 : vector<16x128xf32>
    %cst_170 = arith.constant 1.000000e+00 : f32
    %293 = vector.broadcast %cst_170 : f32 to vector<16x128xf32>
    %294 = arith.subf %292, %293 : vector<16x128xf32>
    %295 = arith.select %289, %287, %294 : vector<16x128xi1>, vector<16x128xf32>
    %c0_171 = arith.constant 0 : index
    %c1_172 = arith.constant 1 : index
    %c0_173 = arith.constant 0 : index
    %c0_174 = arith.constant 0 : index
    %296 = vector.load %arg24[%c0_171, %c1_172, %c0_173, %c0_174] : memref<1x2x128x384xf32, #tpu.memory_space<vmem>>, vector<1x1x128x384xf32>
    %297 = vector.shape_cast %296 : vector<1x1x128x384xf32> to vector<128x384xf32>
    %c0_175 = arith.constant 0 : index
    %c1_176 = arith.constant 1 : index
    %c0_177 = arith.constant 0 : index
    %c0_178 = arith.constant 0 : index
    %298 = vector.load %arg25[%c0_175, %c1_176, %c0_177, %c0_178] : memref<1x2x128x384xf32, #tpu.memory_space<vmem>>, vector<1x1x128x384xf32>
    %299 = vector.shape_cast %298 : vector<1x1x128x384xf32> to vector<128x384xf32>
    %c0_179 = arith.constant 0 : index
    %c1_180 = arith.constant 1 : index
    %c0_181 = arith.constant 0 : index
    %c0_182 = arith.constant 0 : index
    %300 = vector.load %arg26[%c0_179, %c1_180, %c0_181, %c0_182] : memref<1x2x1x384xf32, #tpu.memory_space<vmem>>, vector<1x1x1x384xf32>
    %301 = vector.shape_cast %300 : vector<1x1x1x384xf32> to vector<1x384xf32>
    %c0_183 = arith.constant 0 : index
    %c1_184 = arith.constant 1 : index
    %c0_185 = arith.constant 0 : index
    %c0_186 = arith.constant 0 : index
    %302 = vector.load %arg27[%c0_183, %c1_184, %c0_185, %c0_186] : memref<1x2x1x384xf32, #tpu.memory_space<vmem>>, vector<1x1x1x384xf32>
    %303 = vector.shape_cast %302 : vector<1x1x1x384xf32> to vector<1x384xf32>
    %cst_187 = arith.constant dense<0.000000e+00> : vector<16x384xf32>
    %304 = tpu.matmul %295, %297, %cst_187 {dimension_numbers = #tpu.dot_dimension_numbers<[1], [0], [0], [1], [0, 0, 1, 1], [], []>} : vector<16x128xf32>, vector<128x384xf32>, vector<16x384xf32> -> vector<16x384xf32>
    %305 = vector.broadcast %301 : vector<1x384xf32> to vector<16x384xf32>
    %306 = arith.addf %304, %305 : vector<16x384xf32>
    %cst_188 = arith.constant dense<0.000000e+00> : vector<16x384xf32>
    %307 = tpu.matmul %242, %299, %cst_188 {dimension_numbers = #tpu.dot_dimension_numbers<[1], [0], [0], [1], [0, 0, 1, 1], [], []>} : vector<16x128xf32>, vector<128x384xf32>, vector<16x384xf32> -> vector<16x384xf32>
    %308 = vector.broadcast %303 : vector<1x384xf32> to vector<16x384xf32>
    %309 = arith.addf %307, %308 : vector<16x384xf32>
    %310 = vector.extract_strided_slice %306 {offsets = [0, 0], sizes = [16, 128], strides = [1, 1]} : vector<16x384xf32> to vector<16x128xf32>
    %311 = vector.extract_strided_slice %309 {offsets = [0, 0], sizes = [16, 128], strides = [1, 1]} : vector<16x384xf32> to vector<16x128xf32>
    %312 = arith.addf %310, %311 : vector<16x128xf32>
    %cst_189 = arith.constant 0.000000e+00 : f32
    %313 = vector.broadcast %cst_189 : f32 to vector<16x128xf32>
    %314 = arith.subf %313, %312 : vector<16x128xf32>
    %315 = math.exp %314 : vector<16x128xf32>
    %cst_190 = arith.constant 1.000000e+00 : f32
    %316 = vector.broadcast %cst_190 : f32 to vector<16x128xf32>
    %317 = arith.addf %316, %315 : vector<16x128xf32>
    %318 = tpu.reciprocal %317 {approx = true} : vector<16x128xf32> -> vector<16x128xf32>
    %319 = vector.extract_strided_slice %306 {offsets = [0, 128], sizes = [16, 128], strides = [1, 1]} : vector<16x384xf32> to vector<16x128xf32>
    %320 = vector.extract_strided_slice %309 {offsets = [0, 128], sizes = [16, 128], strides = [1, 1]} : vector<16x384xf32> to vector<16x128xf32>
    %321 = arith.addf %319, %320 : vector<16x128xf32>
    %cst_191 = arith.constant 0.000000e+00 : f32
    %322 = vector.broadcast %cst_191 : f32 to vector<16x128xf32>
    %323 = arith.subf %322, %321 : vector<16x128xf32>
    %324 = math.exp %323 : vector<16x128xf32>
    %cst_192 = arith.constant 1.000000e+00 : f32
    %325 = vector.broadcast %cst_192 : f32 to vector<16x128xf32>
    %326 = arith.addf %325, %324 : vector<16x128xf32>
    %327 = tpu.reciprocal %326 {approx = true} : vector<16x128xf32> -> vector<16x128xf32>
    %328 = vector.extract_strided_slice %306 {offsets = [0, 256], sizes = [16, 128], strides = [1, 1]} : vector<16x384xf32> to vector<16x128xf32>
    %329 = vector.extract_strided_slice %309 {offsets = [0, 256], sizes = [16, 128], strides = [1, 1]} : vector<16x384xf32> to vector<16x128xf32>
    %330 = arith.mulf %318, %329 : vector<16x128xf32>
    %331 = arith.addf %328, %330 : vector<16x128xf32>
    %332 = math.tanh %331 : vector<16x128xf32>
    %cst_193 = arith.constant 1.000000e+00 : f32
    %333 = vector.broadcast %cst_193 : f32 to vector<16x128xf32>
    %334 = arith.subf %333, %327 : vector<16x128xf32>
    %335 = arith.mulf %334, %332 : vector<16x128xf32>
    %336 = arith.mulf %327, %242 : vector<16x128xf32>
    %337 = arith.addf %335, %336 : vector<16x128xf32>
    %cst_194 = arith.constant 0.000000e+00 : f32
    %338 = vector.broadcast %cst_194 : f32 to vector<16x128xf32>
    %339 = arith.maximumf %337, %338 : vector<16x128xf32>
    %c0_195 = arith.constant 0 : index
    %c0_196 = arith.constant 0 : index
    %340 = vector.load %arg4[%c0_195, %c0_196] : memref<2x16xf32, #tpu.memory_space<vmem>>, vector<2x16xf32>
    %cst_197 = arith.constant dense<0.000000e+00> : vector<2x128xf32>
    %341 = tpu.matmul %340, %339, %cst_197 {dimension_numbers = #tpu.dot_dimension_numbers<[1], [0], [0], [1], [0, 0, 1, 1], [], []>} : vector<2x16xf32>, vector<16x128xf32>, vector<2x128xf32> -> vector<2x128xf32>
    %cst_198 = arith.constant 0.000000e+00 : f32
    %342 = vector.broadcast %cst_198 : f32 to vector<2x128xf32>
    %343 = arith.maximumf %341, %342 : vector<2x128xf32>
    %c0_199 = arith.constant 0 : index
    %c0_200 = arith.constant 0 : index
    %c0_201 = arith.constant 0 : index
    %c0_202 = arith.constant 0 : index
    %344 = vector.load %arg28[%c0_199, %c0_200, %c0_201, %c0_202] : memref<1x2x128x1xf32, #tpu.memory_space<vmem>>, vector<1x1x128x1xf32>
    %345 = vector.shape_cast %344 : vector<1x1x128x1xf32> to vector<128x1xf32>
    %cst_203 = arith.constant dense<0.000000e+00> : vector<2x1xf32>
    %346 = tpu.matmul %343, %345, %cst_203 {dimension_numbers = #tpu.dot_dimension_numbers<[1], [0], [0], [1], [0, 0, 1, 1], [], []>} : vector<2x128xf32>, vector<128x1xf32>, vector<2x1xf32> -> vector<2x1xf32>
    %c0_204 = arith.constant 0 : index
    %c0_205 = arith.constant 0 : index
    %c0_206 = arith.constant 0 : index
    %c0_207 = arith.constant 0 : index
    %347 = vector.load %arg30[%c0_204, %c0_205, %c0_206, %c0_207] : memref<1x2x1x1xf32, #tpu.memory_space<vmem>>, vector<1x1x1x1xf32>
    %348 = vector.shape_cast %347 : vector<1x1x1x1xf32> to vector<1x1xf32>
    %349 = vector.broadcast %348 : vector<1x1xf32> to vector<2x1xf32>
    %350 = arith.addf %346, %349 : vector<2x1xf32>
    %c0_208 = arith.constant 0 : index
    %c0_209 = arith.constant 0 : index
    %c0_210 = arith.constant 0 : index
    %c0_211 = arith.constant 0 : index
    %351 = vector.load %arg29[%c0_208, %c0_209, %c0_210, %c0_211] : memref<1x2x1x128xf32, #tpu.memory_space<vmem>>, vector<1x1x1x128xf32>
    %352 = vector.shape_cast %351 : vector<1x1x1x128xf32> to vector<1x128xf32>
    %cst_212 = arith.constant dense<0.000000e+00> : vector<1x16xf32>
    %353 = tpu.matmul %352, %339, %cst_212 {dimension_numbers = #tpu.dot_dimension_numbers<[1], [1], [0], [0], [0, 0, 1, 0], [], []>} : vector<1x128xf32>, vector<16x128xf32>, vector<1x16xf32> -> vector<1x16xf32>
    %354 = vector.broadcast %350 : vector<2x1xf32> to vector<2x16xf32>
    %355 = vector.broadcast %353 : vector<1x16xf32> to vector<2x16xf32>
    %356 = arith.addf %354, %355 : vector<2x16xf32>
    %cst_213 = arith.constant 0.000000e+00 : f32
    %357 = vector.broadcast %cst_213 : f32 to vector<2x16xf32>
    %358 = arith.cmpf oge, %356, %357 : vector<2x16xf32>
    %cst_214 = arith.constant 0.00999999977 : f32
    %359 = vector.broadcast %cst_214 : f32 to vector<2x16xf32>
    %360 = arith.mulf %359, %356 : vector<2x16xf32>
    %361 = arith.select %358, %356, %360 : vector<2x16xi1>, vector<2x16xf32>
    %cst_215 = arith.constant 0.000000e+00 : f32
    %362 = vector.broadcast %cst_215 : f32 to vector<2x16xf32>
    %363 = arith.cmpf ogt, %340, %362 : vector<2x16xf32>
    %cst_216 = arith.constant -1.000000e+30 : f32
    %364 = vector.broadcast %cst_216 : f32 to vector<2x16xf32>
    %365 = arith.select %363, %361, %364 : vector<2x16xi1>, vector<2x16xf32>
    %cst_217 = arith.constant dense<0xFF800000> : vector<2xf32>
    %366 = vector.multi_reduction <maximumf>, %365, %cst_217 [1] : vector<2x16xf32> to vector<2xf32>
    %367 = vector.shape_cast %366 : vector<2xf32> to vector<2x1xf32>
    %368 = vector.broadcast %367 : vector<2x1xf32> to vector<2x16xf32>
    %369 = arith.subf %365, %368 : vector<2x16xf32>
    %370 = math.exp %369 : vector<2x16xf32>
    %371 = arith.mulf %370, %340 : vector<2x16xf32>
    %cst_218 = arith.constant dense<0.000000e+00> : vector<2xf32>
    %372 = vector.multi_reduction <add>, %371, %cst_218 [1] : vector<2x16xf32> to vector<2xf32>
    %373 = vector.shape_cast %372 : vector<2xf32> to vector<2x1xf32>
    %cst_219 = arith.constant 9.99999968E-21 : f32
    %374 = vector.broadcast %cst_219 : f32 to vector<2x1xf32>
    %375 = arith.maximumf %373, %374 : vector<2x1xf32>
    %376 = tpu.reciprocal %375 {approx = true} : vector<2x1xf32> -> vector<2x1xf32>
    %377 = vector.broadcast %376 : vector<2x1xf32> to vector<2x16xf32>
    %378 = arith.mulf %371, %377 : vector<2x16xf32>
    %c0_220 = arith.constant 0 : index
    %c0_221 = arith.constant 0 : index
    %c0_222 = arith.constant 0 : index
    %c0_223 = arith.constant 0 : index
    %379 = vector.load %arg31[%c0_220, %c0_221, %c0_222, %c0_223] : memref<1x2x128x128xf32, #tpu.memory_space<vmem>>, vector<1x1x128x128xf32>
    %380 = vector.shape_cast %379 : vector<1x1x128x128xf32> to vector<128x128xf32>
    %cst_224 = arith.constant dense<0.000000e+00> : vector<16x128xf32>
    %381 = tpu.matmul %339, %380, %cst_224 {dimension_numbers = #tpu.dot_dimension_numbers<[1], [0], [0], [1], [0, 0, 1, 1], [], []>} : vector<16x128xf32>, vector<128x128xf32>, vector<16x128xf32> -> vector<16x128xf32>
    %c0_225 = arith.constant 0 : index
    %c0_226 = arith.constant 0 : index
    %c0_227 = arith.constant 0 : index
    %c0_228 = arith.constant 0 : index
    %382 = vector.load %arg32[%c0_225, %c0_226, %c0_227, %c0_228] : memref<1x2x1x128xf32, #tpu.memory_space<vmem>>, vector<1x1x1x128xf32>
    %383 = vector.shape_cast %382 : vector<1x1x1x128xf32> to vector<1x128xf32>
    %384 = vector.broadcast %383 : vector<1x128xf32> to vector<16x128xf32>
    %385 = arith.addf %381, %384 : vector<16x128xf32>
    %cst_229 = arith.constant dense<0.000000e+00> : vector<2x128xf32>
    %386 = tpu.matmul %378, %385, %cst_229 {dimension_numbers = #tpu.dot_dimension_numbers<[1], [0], [0], [1], [0, 0, 1, 1], [], []>} : vector<2x16xf32>, vector<16x128xf32>, vector<2x128xf32> -> vector<2x128xf32>
    %cst_230 = arith.constant 0.000000e+00 : f32
    %387 = vector.broadcast %cst_230 : f32 to vector<2x128xf32>
    %388 = arith.cmpf ogt, %386, %387 : vector<2x128xf32>
    %cst_231 = arith.constant 0.000000e+00 : f32
    %389 = vector.broadcast %cst_231 : f32 to vector<2x128xf32>
    %390 = arith.minimumf %386, %389 : vector<2x128xf32>
    %391 = math.exp %390 : vector<2x128xf32>
    %cst_232 = arith.constant 1.000000e+00 : f32
    %392 = vector.broadcast %cst_232 : f32 to vector<2x128xf32>
    %393 = arith.subf %391, %392 : vector<2x128xf32>
    %394 = arith.select %388, %386, %393 : vector<2x128xi1>, vector<2x128xf32>
    %c0_233 = arith.constant 0 : index
    %c0_234 = arith.constant 0 : index
    %c0_235 = arith.constant 0 : index
    %c0_236 = arith.constant 0 : index
    %395 = vector.load %arg33[%c0_233, %c0_234, %c0_235, %c0_236] : memref<1x2x128x384xf32, #tpu.memory_space<vmem>>, vector<1x1x128x384xf32>
    %396 = vector.shape_cast %395 : vector<1x1x128x384xf32> to vector<128x384xf32>
    %c0_237 = arith.constant 0 : index
    %c0_238 = arith.constant 0 : index
    %c0_239 = arith.constant 0 : index
    %c0_240 = arith.constant 0 : index
    %397 = vector.load %arg34[%c0_237, %c0_238, %c0_239, %c0_240] : memref<1x2x128x384xf32, #tpu.memory_space<vmem>>, vector<1x1x128x384xf32>
    %398 = vector.shape_cast %397 : vector<1x1x128x384xf32> to vector<128x384xf32>
    %c0_241 = arith.constant 0 : index
    %c0_242 = arith.constant 0 : index
    %c0_243 = arith.constant 0 : index
    %c0_244 = arith.constant 0 : index
    %399 = vector.load %arg35[%c0_241, %c0_242, %c0_243, %c0_244] : memref<1x2x1x384xf32, #tpu.memory_space<vmem>>, vector<1x1x1x384xf32>
    %400 = vector.shape_cast %399 : vector<1x1x1x384xf32> to vector<1x384xf32>
    %c0_245 = arith.constant 0 : index
    %c0_246 = arith.constant 0 : index
    %c0_247 = arith.constant 0 : index
    %c0_248 = arith.constant 0 : index
    %401 = vector.load %arg36[%c0_245, %c0_246, %c0_247, %c0_248] : memref<1x2x1x384xf32, #tpu.memory_space<vmem>>, vector<1x1x1x384xf32>
    %402 = vector.shape_cast %401 : vector<1x1x1x384xf32> to vector<1x384xf32>
    %cst_249 = arith.constant dense<0.000000e+00> : vector<2x384xf32>
    %403 = tpu.matmul %394, %396, %cst_249 {dimension_numbers = #tpu.dot_dimension_numbers<[1], [0], [0], [1], [0, 0, 1, 1], [], []>} : vector<2x128xf32>, vector<128x384xf32>, vector<2x384xf32> -> vector<2x384xf32>
    %404 = vector.broadcast %400 : vector<1x384xf32> to vector<2x384xf32>
    %405 = arith.addf %403, %404 : vector<2x384xf32>
    %cst_250 = arith.constant dense<0.000000e+00> : vector<2x384xf32>
    %406 = tpu.matmul %341, %398, %cst_250 {dimension_numbers = #tpu.dot_dimension_numbers<[1], [0], [0], [1], [0, 0, 1, 1], [], []>} : vector<2x128xf32>, vector<128x384xf32>, vector<2x384xf32> -> vector<2x384xf32>
    %407 = vector.broadcast %402 : vector<1x384xf32> to vector<2x384xf32>
    %408 = arith.addf %406, %407 : vector<2x384xf32>
    %409 = vector.extract_strided_slice %405 {offsets = [0, 0], sizes = [2, 128], strides = [1, 1]} : vector<2x384xf32> to vector<2x128xf32>
    %410 = vector.extract_strided_slice %408 {offsets = [0, 0], sizes = [2, 128], strides = [1, 1]} : vector<2x384xf32> to vector<2x128xf32>
    %411 = arith.addf %409, %410 : vector<2x128xf32>
    %cst_251 = arith.constant 0.000000e+00 : f32
    %412 = vector.broadcast %cst_251 : f32 to vector<2x128xf32>
    %413 = arith.subf %412, %411 : vector<2x128xf32>
    %414 = math.exp %413 : vector<2x128xf32>
    %cst_252 = arith.constant 1.000000e+00 : f32
    %415 = vector.broadcast %cst_252 : f32 to vector<2x128xf32>
    %416 = arith.addf %415, %414 : vector<2x128xf32>
    %417 = tpu.reciprocal %416 {approx = true} : vector<2x128xf32> -> vector<2x128xf32>
    %418 = vector.extract_strided_slice %405 {offsets = [0, 128], sizes = [2, 128], strides = [1, 1]} : vector<2x384xf32> to vector<2x128xf32>
    %419 = vector.extract_strided_slice %408 {offsets = [0, 128], sizes = [2, 128], strides = [1, 1]} : vector<2x384xf32> to vector<2x128xf32>
    %420 = arith.addf %418, %419 : vector<2x128xf32>
    %cst_253 = arith.constant 0.000000e+00 : f32
    %421 = vector.broadcast %cst_253 : f32 to vector<2x128xf32>
    %422 = arith.subf %421, %420 : vector<2x128xf32>
    %423 = math.exp %422 : vector<2x128xf32>
    %cst_254 = arith.constant 1.000000e+00 : f32
    %424 = vector.broadcast %cst_254 : f32 to vector<2x128xf32>
    %425 = arith.addf %424, %423 : vector<2x128xf32>
    %426 = tpu.reciprocal %425 {approx = true} : vector<2x128xf32> -> vector<2x128xf32>
    %427 = vector.extract_strided_slice %405 {offsets = [0, 256], sizes = [2, 128], strides = [1, 1]} : vector<2x384xf32> to vector<2x128xf32>
    %428 = vector.extract_strided_slice %408 {offsets = [0, 256], sizes = [2, 128], strides = [1, 1]} : vector<2x384xf32> to vector<2x128xf32>
    %429 = arith.mulf %417, %428 : vector<2x128xf32>
    %430 = arith.addf %427, %429 : vector<2x128xf32>
    %431 = math.tanh %430 : vector<2x128xf32>
    %cst_255 = arith.constant 1.000000e+00 : f32
    %432 = vector.broadcast %cst_255 : f32 to vector<2x128xf32>
    %433 = arith.subf %432, %426 : vector<2x128xf32>
    %434 = arith.mulf %433, %431 : vector<2x128xf32>
    %435 = arith.mulf %426, %341 : vector<2x128xf32>
    %436 = arith.addf %434, %435 : vector<2x128xf32>
    %cst_256 = arith.constant 0.000000e+00 : f32
    %437 = vector.broadcast %cst_256 : f32 to vector<2x128xf32>
    %438 = arith.maximumf %436, %437 : vector<2x128xf32>
    %cst_257 = arith.constant 0.000000e+00 : f32
    %439 = vector.broadcast %cst_257 : f32 to vector<2x128xf32>
    %440 = arith.maximumf %438, %439 : vector<2x128xf32>
    %c0_258 = arith.constant 0 : index
    %c1_259 = arith.constant 1 : index
    %c0_260 = arith.constant 0 : index
    %c0_261 = arith.constant 0 : index
    %441 = vector.load %arg28[%c0_258, %c1_259, %c0_260, %c0_261] : memref<1x2x128x1xf32, #tpu.memory_space<vmem>>, vector<1x1x128x1xf32>
    %442 = vector.shape_cast %441 : vector<1x1x128x1xf32> to vector<128x1xf32>
    %cst_262 = arith.constant dense<0.000000e+00> : vector<2x1xf32>
    %443 = tpu.matmul %440, %442, %cst_262 {dimension_numbers = #tpu.dot_dimension_numbers<[1], [0], [0], [1], [0, 0, 1, 1], [], []>} : vector<2x128xf32>, vector<128x1xf32>, vector<2x1xf32> -> vector<2x1xf32>
    %c0_263 = arith.constant 0 : index
    %c1_264 = arith.constant 1 : index
    %c0_265 = arith.constant 0 : index
    %c0_266 = arith.constant 0 : index
    %444 = vector.load %arg30[%c0_263, %c1_264, %c0_265, %c0_266] : memref<1x2x1x1xf32, #tpu.memory_space<vmem>>, vector<1x1x1x1xf32>
    %445 = vector.shape_cast %444 : vector<1x1x1x1xf32> to vector<1x1xf32>
    %446 = vector.broadcast %445 : vector<1x1xf32> to vector<2x1xf32>
    %447 = arith.addf %443, %446 : vector<2x1xf32>
    %c0_267 = arith.constant 0 : index
    %c1_268 = arith.constant 1 : index
    %c0_269 = arith.constant 0 : index
    %c0_270 = arith.constant 0 : index
    %448 = vector.load %arg29[%c0_267, %c1_268, %c0_269, %c0_270] : memref<1x2x1x128xf32, #tpu.memory_space<vmem>>, vector<1x1x1x128xf32>
    %449 = vector.shape_cast %448 : vector<1x1x1x128xf32> to vector<1x128xf32>
    %cst_271 = arith.constant dense<0.000000e+00> : vector<1x16xf32>
    %450 = tpu.matmul %449, %339, %cst_271 {dimension_numbers = #tpu.dot_dimension_numbers<[1], [1], [0], [0], [0, 0, 1, 0], [], []>} : vector<1x128xf32>, vector<16x128xf32>, vector<1x16xf32> -> vector<1x16xf32>
    %451 = vector.broadcast %447 : vector<2x1xf32> to vector<2x16xf32>
    %452 = vector.broadcast %450 : vector<1x16xf32> to vector<2x16xf32>
    %453 = arith.addf %451, %452 : vector<2x16xf32>
    %cst_272 = arith.constant 0.000000e+00 : f32
    %454 = vector.broadcast %cst_272 : f32 to vector<2x16xf32>
    %455 = arith.cmpf oge, %453, %454 : vector<2x16xf32>
    %cst_273 = arith.constant 0.00999999977 : f32
    %456 = vector.broadcast %cst_273 : f32 to vector<2x16xf32>
    %457 = arith.mulf %456, %453 : vector<2x16xf32>
    %458 = arith.select %455, %453, %457 : vector<2x16xi1>, vector<2x16xf32>
    %cst_274 = arith.constant 0.000000e+00 : f32
    %459 = vector.broadcast %cst_274 : f32 to vector<2x16xf32>
    %460 = arith.cmpf ogt, %340, %459 : vector<2x16xf32>
    %cst_275 = arith.constant -1.000000e+30 : f32
    %461 = vector.broadcast %cst_275 : f32 to vector<2x16xf32>
    %462 = arith.select %460, %458, %461 : vector<2x16xi1>, vector<2x16xf32>
    %cst_276 = arith.constant dense<0xFF800000> : vector<2xf32>
    %463 = vector.multi_reduction <maximumf>, %462, %cst_276 [1] : vector<2x16xf32> to vector<2xf32>
    %464 = vector.shape_cast %463 : vector<2xf32> to vector<2x1xf32>
    %465 = vector.broadcast %464 : vector<2x1xf32> to vector<2x16xf32>
    %466 = arith.subf %462, %465 : vector<2x16xf32>
    %467 = math.exp %466 : vector<2x16xf32>
    %468 = arith.mulf %467, %340 : vector<2x16xf32>
    %cst_277 = arith.constant dense<0.000000e+00> : vector<2xf32>
    %469 = vector.multi_reduction <add>, %468, %cst_277 [1] : vector<2x16xf32> to vector<2xf32>
    %470 = vector.shape_cast %469 : vector<2xf32> to vector<2x1xf32>
    %cst_278 = arith.constant 9.99999968E-21 : f32
    %471 = vector.broadcast %cst_278 : f32 to vector<2x1xf32>
    %472 = arith.maximumf %470, %471 : vector<2x1xf32>
    %473 = tpu.reciprocal %472 {approx = true} : vector<2x1xf32> -> vector<2x1xf32>
    %474 = vector.broadcast %473 : vector<2x1xf32> to vector<2x16xf32>
    %475 = arith.mulf %468, %474 : vector<2x16xf32>
    %c0_279 = arith.constant 0 : index
    %c1_280 = arith.constant 1 : index
    %c0_281 = arith.constant 0 : index
    %c0_282 = arith.constant 0 : index
    %476 = vector.load %arg31[%c0_279, %c1_280, %c0_281, %c0_282] : memref<1x2x128x128xf32, #tpu.memory_space<vmem>>, vector<1x1x128x128xf32>
    %477 = vector.shape_cast %476 : vector<1x1x128x128xf32> to vector<128x128xf32>
    %cst_283 = arith.constant dense<0.000000e+00> : vector<16x128xf32>
    %478 = tpu.matmul %339, %477, %cst_283 {dimension_numbers = #tpu.dot_dimension_numbers<[1], [0], [0], [1], [0, 0, 1, 1], [], []>} : vector<16x128xf32>, vector<128x128xf32>, vector<16x128xf32> -> vector<16x128xf32>
    %c0_284 = arith.constant 0 : index
    %c1_285 = arith.constant 1 : index
    %c0_286 = arith.constant 0 : index
    %c0_287 = arith.constant 0 : index
    %479 = vector.load %arg32[%c0_284, %c1_285, %c0_286, %c0_287] : memref<1x2x1x128xf32, #tpu.memory_space<vmem>>, vector<1x1x1x128xf32>
    %480 = vector.shape_cast %479 : vector<1x1x1x128xf32> to vector<1x128xf32>
    %481 = vector.broadcast %480 : vector<1x128xf32> to vector<16x128xf32>
    %482 = arith.addf %478, %481 : vector<16x128xf32>
    %cst_288 = arith.constant dense<0.000000e+00> : vector<2x128xf32>
    %483 = tpu.matmul %475, %482, %cst_288 {dimension_numbers = #tpu.dot_dimension_numbers<[1], [0], [0], [1], [0, 0, 1, 1], [], []>} : vector<2x16xf32>, vector<16x128xf32>, vector<2x128xf32> -> vector<2x128xf32>
    %cst_289 = arith.constant 0.000000e+00 : f32
    %484 = vector.broadcast %cst_289 : f32 to vector<2x128xf32>
    %485 = arith.cmpf ogt, %483, %484 : vector<2x128xf32>
    %cst_290 = arith.constant 0.000000e+00 : f32
    %486 = vector.broadcast %cst_290 : f32 to vector<2x128xf32>
    %487 = arith.minimumf %483, %486 : vector<2x128xf32>
    %488 = math.exp %487 : vector<2x128xf32>
    %cst_291 = arith.constant 1.000000e+00 : f32
    %489 = vector.broadcast %cst_291 : f32 to vector<2x128xf32>
    %490 = arith.subf %488, %489 : vector<2x128xf32>
    %491 = arith.select %485, %483, %490 : vector<2x128xi1>, vector<2x128xf32>
    %c0_292 = arith.constant 0 : index
    %c1_293 = arith.constant 1 : index
    %c0_294 = arith.constant 0 : index
    %c0_295 = arith.constant 0 : index
    %492 = vector.load %arg33[%c0_292, %c1_293, %c0_294, %c0_295] : memref<1x2x128x384xf32, #tpu.memory_space<vmem>>, vector<1x1x128x384xf32>
    %493 = vector.shape_cast %492 : vector<1x1x128x384xf32> to vector<128x384xf32>
    %c0_296 = arith.constant 0 : index
    %c1_297 = arith.constant 1 : index
    %c0_298 = arith.constant 0 : index
    %c0_299 = arith.constant 0 : index
    %494 = vector.load %arg34[%c0_296, %c1_297, %c0_298, %c0_299] : memref<1x2x128x384xf32, #tpu.memory_space<vmem>>, vector<1x1x128x384xf32>
    %495 = vector.shape_cast %494 : vector<1x1x128x384xf32> to vector<128x384xf32>
    %c0_300 = arith.constant 0 : index
    %c1_301 = arith.constant 1 : index
    %c0_302 = arith.constant 0 : index
    %c0_303 = arith.constant 0 : index
    %496 = vector.load %arg35[%c0_300, %c1_301, %c0_302, %c0_303] : memref<1x2x1x384xf32, #tpu.memory_space<vmem>>, vector<1x1x1x384xf32>
    %497 = vector.shape_cast %496 : vector<1x1x1x384xf32> to vector<1x384xf32>
    %c0_304 = arith.constant 0 : index
    %c1_305 = arith.constant 1 : index
    %c0_306 = arith.constant 0 : index
    %c0_307 = arith.constant 0 : index
    %498 = vector.load %arg36[%c0_304, %c1_305, %c0_306, %c0_307] : memref<1x2x1x384xf32, #tpu.memory_space<vmem>>, vector<1x1x1x384xf32>
    %499 = vector.shape_cast %498 : vector<1x1x1x384xf32> to vector<1x384xf32>
    %cst_308 = arith.constant dense<0.000000e+00> : vector<2x384xf32>
    %500 = tpu.matmul %491, %493, %cst_308 {dimension_numbers = #tpu.dot_dimension_numbers<[1], [0], [0], [1], [0, 0, 1, 1], [], []>} : vector<2x128xf32>, vector<128x384xf32>, vector<2x384xf32> -> vector<2x384xf32>
    %501 = vector.broadcast %497 : vector<1x384xf32> to vector<2x384xf32>
    %502 = arith.addf %500, %501 : vector<2x384xf32>
    %cst_309 = arith.constant dense<0.000000e+00> : vector<2x384xf32>
    %503 = tpu.matmul %438, %495, %cst_309 {dimension_numbers = #tpu.dot_dimension_numbers<[1], [0], [0], [1], [0, 0, 1, 1], [], []>} : vector<2x128xf32>, vector<128x384xf32>, vector<2x384xf32> -> vector<2x384xf32>
    %504 = vector.broadcast %499 : vector<1x384xf32> to vector<2x384xf32>
    %505 = arith.addf %503, %504 : vector<2x384xf32>
    %506 = vector.extract_strided_slice %502 {offsets = [0, 0], sizes = [2, 128], strides = [1, 1]} : vector<2x384xf32> to vector<2x128xf32>
    %507 = vector.extract_strided_slice %505 {offsets = [0, 0], sizes = [2, 128], strides = [1, 1]} : vector<2x384xf32> to vector<2x128xf32>
    %508 = arith.addf %506, %507 : vector<2x128xf32>
    %cst_310 = arith.constant 0.000000e+00 : f32
    %509 = vector.broadcast %cst_310 : f32 to vector<2x128xf32>
    %510 = arith.subf %509, %508 : vector<2x128xf32>
    %511 = math.exp %510 : vector<2x128xf32>
    %cst_311 = arith.constant 1.000000e+00 : f32
    %512 = vector.broadcast %cst_311 : f32 to vector<2x128xf32>
    %513 = arith.addf %512, %511 : vector<2x128xf32>
    %514 = tpu.reciprocal %513 {approx = true} : vector<2x128xf32> -> vector<2x128xf32>
    %515 = vector.extract_strided_slice %502 {offsets = [0, 128], sizes = [2, 128], strides = [1, 1]} : vector<2x384xf32> to vector<2x128xf32>
    %516 = vector.extract_strided_slice %505 {offsets = [0, 128], sizes = [2, 128], strides = [1, 1]} : vector<2x384xf32> to vector<2x128xf32>
    %517 = arith.addf %515, %516 : vector<2x128xf32>
    %cst_312 = arith.constant 0.000000e+00 : f32
    %518 = vector.broadcast %cst_312 : f32 to vector<2x128xf32>
    %519 = arith.subf %518, %517 : vector<2x128xf32>
    %520 = math.exp %519 : vector<2x128xf32>
    %cst_313 = arith.constant 1.000000e+00 : f32
    %521 = vector.broadcast %cst_313 : f32 to vector<2x128xf32>
    %522 = arith.addf %521, %520 : vector<2x128xf32>
    %523 = tpu.reciprocal %522 {approx = true} : vector<2x128xf32> -> vector<2x128xf32>
    %524 = vector.extract_strided_slice %502 {offsets = [0, 256], sizes = [2, 128], strides = [1, 1]} : vector<2x384xf32> to vector<2x128xf32>
    %525 = vector.extract_strided_slice %505 {offsets = [0, 256], sizes = [2, 128], strides = [1, 1]} : vector<2x384xf32> to vector<2x128xf32>
    %526 = arith.mulf %514, %525 : vector<2x128xf32>
    %527 = arith.addf %524, %526 : vector<2x128xf32>
    %528 = math.tanh %527 : vector<2x128xf32>
    %cst_314 = arith.constant 1.000000e+00 : f32
    %529 = vector.broadcast %cst_314 : f32 to vector<2x128xf32>
    %530 = arith.subf %529, %523 : vector<2x128xf32>
    %531 = arith.mulf %530, %528 : vector<2x128xf32>
    %532 = arith.mulf %523, %438 : vector<2x128xf32>
    %533 = arith.addf %531, %532 : vector<2x128xf32>
    %cst_315 = arith.constant 0.000000e+00 : f32
    %534 = vector.broadcast %cst_315 : f32 to vector<2x128xf32>
    %535 = arith.maximumf %533, %534 : vector<2x128xf32>
    %c0_316 = arith.constant 0 : index
    %c0_317 = arith.constant 0 : index
    %c0_318 = arith.constant 0 : index
    %536 = vector.load %arg37[%c0_316, %c0_317, %c0_318] : memref<1x2x128xf32, #tpu.memory_space<vmem>>, vector<1x2x128xf32>
    %537 = vector.shape_cast %536 : vector<1x2x128xf32> to vector<2x128xf32>
    %538 = vector.shape_cast %535 : vector<2x128xf32> to vector<1x2x128xf32>
    tpu.vector_store %arg37[%c0_316, %c0_317, %c0_318], %538 {strides = array<i32>} : memref<1x2x128xf32, #tpu.memory_space<vmem>>, vector<1x2x128xf32>,
    return
  }
  func.func @transform_0(%arg0: i32) -> (i32, i32, i32) {
    %c0_i32 = arith.constant 0 : i32
    %c0_i32_0 = arith.constant 0 : i32
    %c0_i32_1 = arith.constant 0 : i32
    return %arg0, %c0_i32, %c0_i32_0 : i32, i32, i32
  }
  func.func @transform_1(%arg0: i32) -> (i32, i32, i32) {
    %c0_i32 = arith.constant 0 : i32
    %c0_i32_0 = arith.constant 0 : i32
    %c0_i32_1 = arith.constant 0 : i32
    return %arg0, %c0_i32, %c0_i32_0 : i32, i32, i32
  }
  func.func @transform_2(%arg0: i32) -> (i32, i32, i32) {
    %c0_i32 = arith.constant 0 : i32
    %c0_i32_0 = arith.constant 0 : i32
    %c0_i32_1 = arith.constant 0 : i32
    return %arg0, %c0_i32, %c0_i32_0 : i32, i32, i32
  }
  func.func @transform_3(%arg0: i32) -> (i32, i32) {
    %c0_i32 = arith.constant 0 : i32
    %c0_i32_0 = arith.constant 0 : i32
    %c0_i32_1 = arith.constant 0 : i32
    return %c0_i32, %c0_i32_0 : i32, i32
  }
  func.func @transform_4(%arg0: i32) -> (i32, i32, i32) {
    %c0_i32 = arith.constant 0 : i32
    %c0_i32_0 = arith.constant 0 : i32
    %c0_i32_1 = arith.constant 0 : i32
    return %arg0, %c0_i32, %c0_i32_0 : i32, i32, i32
  }
  func.func @transform_5(%arg0: i32) -> (i32, i32, i32) {
    %c0_i32 = arith.constant 0 : i32
    %c0_i32_0 = arith.constant 0 : i32
    %c0_i32_1 = arith.constant 0 : i32
    return %arg0, %c0_i32, %c0_i32_0 : i32, i32, i32
  }
  func.func @transform_6(%arg0: i32) -> (i32, i32, i32) {
    %c0_i32 = arith.constant 0 : i32
    %c0_i32_0 = arith.constant 0 : i32
    %c0_i32_1 = arith.constant 0 : i32
    return %arg0, %c0_i32, %c0_i32_0 : i32, i32, i32
  }
  func.func @transform_7(%arg0: i32) -> (i32, i32, i32) {
    %c0_i32 = arith.constant 0 : i32
    %c0_i32_0 = arith.constant 0 : i32
    %c0_i32_1 = arith.constant 0 : i32
    return %arg0, %c0_i32, %c0_i32_0 : i32, i32, i32
  }
  func.func @transform_8(%arg0: i32) -> (i32, i32, i32) {
    %c0_i32 = arith.constant 0 : i32
    %c0_i32_0 = arith.constant 0 : i32
    %c0_i32_1 = arith.constant 0 : i32
    return %arg0, %c0_i32, %c0_i32_0 : i32, i32, i32
  }
  func.func @transform_9(%arg0: i32) -> (i32, i32, i32) {
    %c0_i32 = arith.constant 0 : i32
    %c0_i32_0 = arith.constant 0 : i32
    %c0_i32_1 = arith.constant 0 : i32
    return %arg0, %c0_i32, %c0_i32_0 : i32, i32, i32
  }
  func.func @transform_10(%arg0: i32) -> (i32, i32, i32) {
    %c0_i32 = arith.constant 0 : i32
    %c0_i32_0 = arith.constant 0 : i32
    %c0_i32_1 = arith.constant 0 : i32
    return %arg0, %c0_i32, %c0_i32_0 : i32, i32, i32
  }
  func.func @transform_11(%arg0: i32) -> (i32, i32, i32) {
    %c0_i32 = arith.constant 0 : i32
    %c0_i32_0 = arith.constant 0 : i32
    %c0_i32_1 = arith.constant 0 : i32
    return %arg0, %c0_i32, %c0_i32_0 : i32, i32, i32
  }
  func.func @transform_12(%arg0: i32) -> (i32, i32, i32) {
    %c0_i32 = arith.constant 0 : i32
    %c0_i32_0 = arith.constant 0 : i32
    %c0_i32_1 = arith.constant 0 : i32
    return %arg0, %c0_i32, %c0_i32_0 : i32, i32, i32
  }
  func.func @transform_13(%arg0: i32) -> (i32, i32, i32) {
    %c0_i32 = arith.constant 0 : i32
    %c0_i32_0 = arith.constant 0 : i32
    %c0_i32_1 = arith.constant 0 : i32
    return %arg0, %c0_i32, %c0_i32_0 : i32, i32, i32
  }
  func.func @transform_14(%arg0: i32) -> (i32, i32, i32) {
    %c0_i32 = arith.constant 0 : i32
    %c0_i32_0 = arith.constant 0 : i32
    %c0_i32_1 = arith.constant 0 : i32
    return %arg0, %c0_i32, %c0_i32_0 : i32, i32, i32
  }
  func.func @transform_15(%arg0: i32) -> (i32, i32, i32) {
    %c0_i32 = arith.constant 0 : i32
    %c0_i32_0 = arith.constant 0 : i32
    %c0_i32_1 = arith.constant 0 : i32
    return %arg0, %c0_i32, %c0_i32_0 : i32, i32, i32
  }
  func.func @transform_16(%arg0: i32) -> (i32, i32, i32) {
    %c0_i32 = arith.constant 0 : i32
    %c0_i32_0 = arith.constant 0 : i32
    %c0_i32_1 = arith.constant 0 : i32
    return %arg0, %c0_i32, %c0_i32_0 : i32, i32, i32
  }
  func.func @transform_17(%arg0: i32) -> (i32, i32, i32) {
    %c0_i32 = arith.constant 0 : i32
    %c0_i32_0 = arith.constant 0 : i32
    %c0_i32_1 = arith.constant 0 : i32
    return %arg0, %c0_i32, %c0_i32_0 : i32, i32, i32
  }
  func.func @transform_18(%arg0: i32) -> (i32, i32, i32, i32) {
    %c0_i32 = arith.constant 0 : i32
    %c0_i32_0 = arith.constant 0 : i32
    %c0_i32_1 = arith.constant 0 : i32
    %c0_i32_2 = arith.constant 0 : i32
    return %arg0, %c0_i32, %c0_i32_0, %c0_i32_1 : i32, i32, i32, i32
  }
  func.func @transform_19(%arg0: i32) -> (i32, i32, i32, i32) {
    %c0_i32 = arith.constant 0 : i32
    %c0_i32_0 = arith.constant 0 : i32
    %c0_i32_1 = arith.constant 0 : i32
    %c0_i32_2 = arith.constant 0 : i32
    return %arg0, %c0_i32, %c0_i32_0, %c0_i32_1 : i32, i32, i32, i32
  }
  func.func @transform_20(%arg0: i32) -> (i32, i32, i32, i32) {
    %c0_i32 = arith.constant 0 : i32
    %c0_i32_0 = arith.constant 0 : i32
    %c0_i32_1 = arith.constant 0 : i32
    %c0_i32_2 = arith.constant 0 : i32
    return %arg0, %c0_i32, %c0_i32_0, %c0_i32_1 : i32, i32, i32, i32
  }
  func.func @transform_21(%arg0: i32) -> (i32, i32, i32, i32) {
    %c0_i32 = arith.constant 0 : i32
    %c0_i32_0 = arith.constant 0 : i32
    %c0_i32_1 = arith.constant 0 : i32
    %c0_i32_2 = arith.constant 0 : i32
    return %arg0, %c0_i32, %c0_i32_0, %c0_i32_1 : i32, i32, i32, i32
  }
  func.func @transform_22(%arg0: i32) -> (i32, i32, i32, i32) {
    %c0_i32 = arith.constant 0 : i32
    %c0_i32_0 = arith.constant 0 : i32
    %c0_i32_1 = arith.constant 0 : i32
    %c0_i32_2 = arith.constant 0 : i32
    return %arg0, %c0_i32, %c0_i32_0, %c0_i32_1 : i32, i32, i32, i32
  }
  func.func @transform_23(%arg0: i32) -> (i32, i32, i32, i32) {
    %c0_i32 = arith.constant 0 : i32
    %c0_i32_0 = arith.constant 0 : i32
    %c0_i32_1 = arith.constant 0 : i32
    %c0_i32_2 = arith.constant 0 : i32
    return %arg0, %c0_i32, %c0_i32_0, %c0_i32_1 : i32, i32, i32, i32
  }
  func.func @transform_24(%arg0: i32) -> (i32, i32, i32, i32) {
    %c0_i32 = arith.constant 0 : i32
    %c0_i32_0 = arith.constant 0 : i32
    %c0_i32_1 = arith.constant 0 : i32
    %c0_i32_2 = arith.constant 0 : i32
    return %arg0, %c0_i32, %c0_i32_0, %c0_i32_1 : i32, i32, i32, i32
  }
  func.func @transform_25(%arg0: i32) -> (i32, i32, i32, i32) {
    %c0_i32 = arith.constant 0 : i32
    %c0_i32_0 = arith.constant 0 : i32
    %c0_i32_1 = arith.constant 0 : i32
    %c0_i32_2 = arith.constant 0 : i32
    return %arg0, %c0_i32, %c0_i32_0, %c0_i32_1 : i32, i32, i32, i32
  }
  func.func @transform_26(%arg0: i32) -> (i32, i32, i32, i32) {
    %c0_i32 = arith.constant 0 : i32
    %c0_i32_0 = arith.constant 0 : i32
    %c0_i32_1 = arith.constant 0 : i32
    %c0_i32_2 = arith.constant 0 : i32
    return %arg0, %c0_i32, %c0_i32_0, %c0_i32_1 : i32, i32, i32, i32
  }
  func.func @transform_27(%arg0: i32) -> (i32, i32, i32, i32) {
    %c0_i32 = arith.constant 0 : i32
    %c0_i32_0 = arith.constant 0 : i32
    %c0_i32_1 = arith.constant 0 : i32
    %c0_i32_2 = arith.constant 0 : i32
    return %arg0, %c0_i32, %c0_i32_0, %c0_i32_1 : i32, i32, i32, i32
  }
  func.func @transform_28(%arg0: i32) -> (i32, i32, i32, i32) {
    %c0_i32 = arith.constant 0 : i32
    %c0_i32_0 = arith.constant 0 : i32
    %c0_i32_1 = arith.constant 0 : i32
    %c0_i32_2 = arith.constant 0 : i32
    return %arg0, %c0_i32, %c0_i32_0, %c0_i32_1 : i32, i32, i32, i32
  }
  func.func @transform_29(%arg0: i32) -> (i32, i32, i32, i32) {
    %c0_i32 = arith.constant 0 : i32
    %c0_i32_0 = arith.constant 0 : i32
    %c0_i32_1 = arith.constant 0 : i32
    %c0_i32_2 = arith.constant 0 : i32
    return %arg0, %c0_i32, %c0_i32_0, %c0_i32_1 : i32, i32, i32, i32
  }
  func.func @transform_30(%arg0: i32) -> (i32, i32, i32, i32) {
    %c0_i32 = arith.constant 0 : i32
    %c0_i32_0 = arith.constant 0 : i32
    %c0_i32_1 = arith.constant 0 : i32
    %c0_i32_2 = arith.constant 0 : i32
    return %arg0, %c0_i32, %c0_i32_0, %c0_i32_1 : i32, i32, i32, i32
  }
  func.func @transform_31(%arg0: i32) -> (i32, i32, i32, i32) {
    %c0_i32 = arith.constant 0 : i32
    %c0_i32_0 = arith.constant 0 : i32
    %c0_i32_1 = arith.constant 0 : i32
    %c0_i32_2 = arith.constant 0 : i32
    return %arg0, %c0_i32, %c0_i32_0, %c0_i32_1 : i32, i32, i32, i32
  }
  func.func @transform_32(%arg0: i32) -> (i32, i32, i32, i32) {
    %c0_i32 = arith.constant 0 : i32
    %c0_i32_0 = arith.constant 0 : i32
    %c0_i32_1 = arith.constant 0 : i32
    %c0_i32_2 = arith.constant 0 : i32
    return %arg0, %c0_i32, %c0_i32_0, %c0_i32_1 : i32, i32, i32, i32
  }
  func.func @transform_33(%arg0: i32) -> (i32, i32, i32, i32) {
    %c0_i32 = arith.constant 0 : i32
    %c0_i32_0 = arith.constant 0 : i32
    %c0_i32_1 = arith.constant 0 : i32
    %c0_i32_2 = arith.constant 0 : i32
    return %arg0, %c0_i32, %c0_i32_0, %c0_i32_1 : i32, i32, i32, i32
  }
  func.func @transform_34(%arg0: i32) -> (i32, i32, i32, i32) {
    %c0_i32 = arith.constant 0 : i32
    %c0_i32_0 = arith.constant 0 : i32
    %c0_i32_1 = arith.constant 0 : i32
    %c0_i32_2 = arith.constant 0 : i32
    return %arg0, %c0_i32, %c0_i32_0, %c0_i32_1 : i32, i32, i32, i32
  }
  func.func @transform_35(%arg0: i32) -> (i32, i32, i32, i32) {
    %c0_i32 = arith.constant 0 : i32
    %c0_i32_0 = arith.constant 0 : i32
    %c0_i32_1 = arith.constant 0 : i32
    %c0_i32_2 = arith.constant 0 : i32
    return %arg0, %c0_i32, %c0_i32_0, %c0_i32_1 : i32, i32, i32, i32
  }
  func.func @transform_36(%arg0: i32) -> (i32, i32, i32) {
    %c0_i32 = arith.constant 0 : i32
    %c0_i32_0 = arith.constant 0 : i32
    %c0_i32_1 = arith.constant 0 : i32
    return %arg0, %c0_i32, %c0_i32_0 : i32, i32, i32
  }
}

</mosaic_0001>

<llo_original>
// kernel: forward.1
$region0: #{forward.1}
  #allocation0 [shape = 'u32[]', space=smem, size = 0x4, offset = 0x4, fixed_abs, tag = 'smem constant byte address 0x4 - core index']
  #allocation1 [shape = 'u32[144,128]{1,0:T(1,128)}', space=vmem, size = 0x12000, scoped, tag = 'internal scratch']
  %s0 = inlined_call_operand.smem [shape: u32[37], index: -1, kind: input, shape index: {}]
  %s1 = sld [smem:[%s0]]
  %s2 = scalar_lea.smem %s0, 1
  %s3 = sld [smem:[%s2]]
  %s4 = scalar_lea.smem %s0, 2
  %s5 = sld [smem:[%s4]]
  %s6 = scalar_lea.smem %s0, 3
  %s7 = sld [smem:[%s6]]
  %s8 = scalar_lea.smem %s0, 4
  %s9 = sld [smem:[%s8]]
  %s10 = scalar_lea.smem %s0, 5
  %s11 = sld [smem:[%s10]]
  %s12 = scalar_lea.smem %s0, 6
  %s13 = sld [smem:[%s12]]
  %s14 = scalar_lea.smem %s0, 7
  %s15 = sld [smem:[%s14]]
  %s16 = scalar_lea.smem %s0, 8
  %s17 = sld [smem:[%s16]]
  %s18 = scalar_lea.smem %s0, 9
  %s19 = sld [smem:[%s18]]
  %s20 = scalar_lea.smem %s0, 10
  %s21 = sld [smem:[%s20]]
  %s22 = scalar_lea.smem %s0, 11
  %s23 = sld [smem:[%s22]]
  %s24 = scalar_lea.smem %s0, 12
  %s25 = sld [smem:[%s24]]
  %s26 = scalar_lea.smem %s0, 13
  %s27 = sld [smem:[%s26]]
  %s28 = scalar_lea.smem %s0, 14
  %s29 = sld [smem:[%s28]]
  %s30 = scalar_lea.smem %s0, 15
  %s31 = sld [smem:[%s30]]
  %s32 = scalar_lea.smem %s0, 16
  %s33 = sld [smem:[%s32]]
  %s34 = scalar_lea.smem %s0, 17
  %s35 = sld [smem:[%s34]]
  %s36 = scalar_lea.smem %s0, 18
  %s37 = sld [smem:[%s36]]
  %s38 = scalar_lea.smem %s0, 19
  %s39 = sld [smem:[%s38]]
  %s40 = scalar_lea.smem %s0, 20
  %s41 = sld [smem:[%s40]]
  %s42 = scalar_lea.smem %s0, 21
  %s43 = sld [smem:[%s42]]
  %s44 = scalar_lea.smem %s0, 22
  %s45 = sld [smem:[%s44]]
  %s46 = scalar_lea.smem %s0, 23
  %s47 = sld [smem:[%s46]]
  %s48 = scalar_lea.smem %s0, 24
  %s49 = sld [smem:[%s48]]
  %s50 = scalar_lea.smem %s0, 25
  %s51 = sld [smem:[%s50]]
  %s52 = scalar_lea.smem %s0, 26
  %s53 = sld [smem:[%s52]]
  %s54 = scalar_lea.smem %s0, 27
  %s55 = sld [smem:[%s54]]
  %s56 = scalar_lea.smem %s0, 28
  %s57 = sld [smem:[%s56]]
  %s58 = scalar_lea.smem %s0, 29
  %s59 = sld [smem:[%s58]]
  %s60 = scalar_lea.smem %s0, 30
  %s61 = sld [smem:[%s60]]
  %s62 = scalar_lea.smem %s0, 31
  %s63 = sld [smem:[%s62]]
  %s64 = scalar_lea.smem %s0, 32
  %s65 = sld [smem:[%s64]]
  %s66 = scalar_lea.smem %s0, 33
  %s67 = sld [smem:[%s66]]
  %s68 = scalar_lea.smem %s0, 34
  %s69 = sld [smem:[%s68]]
  %s70 = scalar_lea.smem %s0, 35
  %s71 = sld [smem:[%s70]]
  %s72 = scalar_lea.smem %s0, 36
  %s73 = sld [smem:[%s72]]
  %s74 = sld [smem:[#allocation0]]
  $region321: #{forward.1} parent=0
    _
  %s76 = ssub.s32 1, %s74
  %s77 = scalar_select 0, %s76, %s74
  $region1: #{forward.1} parent=0
    #allocation2 [shape = 'u8[16384]{0}', space=vmem, size = 0x4000, scoped, tag = 'input window, operand 0']
    #allocation3 [shape = 's32[2]{0}', space=sflag, size = 0x8, scoped, tag = 'scoped memory for forward.1']
    #allocation4 [shape = 's32[2]{0}', space=sflag, size = 0x8, scoped, tag = 'scoped memory for forward.1']
    #allocation5 [shape = 'u8[262144]{0}', space=vmem, size = 0x40000, scoped, tag = 'input window, operand 1']
    #allocation6 [shape = 's32[2]{0}', space=sflag, size = 0x8, scoped, tag = 'scoped memory for forward.1']
    #allocation7 [shape = 'u8[16384]{0}', space=vmem, size = 0x4000, scoped, tag = 'input window, operand 2']
    #allocation8 [shape = 'u8[1024]{0}', space=vmem, size = 0x400, scoped, tag = 'input window, operand 3, single buffered']
    #allocation9 [shape = 's32[1]{0}', space=sflag, size = 0x4, scoped, tag = 'scoped memory for forward.1']
    #allocation10 [shape = 'u8[8192]{0}', space=vmem, size = 0x2000, scoped, tag = 'input window, operand 4']
    #allocation11 [shape = 'u8[1024]{0}', space=vmem, size = 0x400, scoped, tag = 'input window, operand 5']
    #allocation12 [shape = 'u8[8192]{0}', space=vmem, size = 0x2000, scoped, tag = 'input window, operand 6']
    #allocation13 [shape = 'u8[8192]{0}', space=vmem, size = 0x2000, scoped, tag = 'input window, operand 7']
    #allocation14 [shape = 'u8[1024]{0}', space=vmem, size = 0x400, scoped, tag = 'input window, operand 8']
    #allocation15 [shape = 'u8[131072]{0}', space=vmem, size = 0x20000, scoped, tag = 'input window, operand 9']
    #allocation16 [shape = 'u8[1024]{0}', space=vmem, size = 0x400, scoped, tag = 'input window, operand 10']
    #allocation17 [shape = 'u8[1024]{0}', space=vmem, size = 0x400, scoped, tag = 'input window, operand 11']
    #allocation18 [shape = 'u8[131072]{0}', space=vmem, size = 0x20000, scoped, tag = 'input window, operand 12']
    #allocation19 [shape = 'u8[1024]{0}', space=vmem, size = 0x400, scoped, tag = 'input window, operand 13']
    #allocation20 [shape = 'u8[393216]{0}', space=vmem, size = 0x60000, scoped, tag = 'input window, operand 14']
    #allocation21 [shape = 'u8[393216]{0}', space=vmem, size = 0x60000, scoped, tag = 'input window, operand 15']
    #allocation22 [shape = 'u8[3072]{0}', space=vmem, size = 0xc00, scoped, tag = 'input window, operand 16']
    #allocation23 [shape = 'u8[3072]{0}', space=vmem, size = 0xc00, scoped, tag = 'input window, operand 17']
    #allocation24 [shape = 'u8[262144]{0}', space=vmem, size = 0x40000, scoped, tag = 'input window, operand 18']
    #allocation25 [shape = 'u8[2048]{0}', space=vmem, size = 0x800, scoped, tag = 'input window, operand 19']
    #allocation26 [shape = 'u8[2048]{0}', space=vmem, size = 0x800, scoped, tag = 'input window, operand 20']
    #allocation27 [shape = 'u8[262144]{0}', space=vmem, size = 0x40000, scoped, tag = 'input window, operand 21']
    #allocation28 [shape = 'u8[2048]{0}', space=vmem, size = 0x800, scoped, tag = 'input window, operand 22']
    #allocation29 [shape = 'u8[786432]{0}', space=vmem, size = 0xc0000, scoped, tag = 'input window, operand 23']
    #allocation30 [shape = 'u8[786432]{0}', space=vmem, size = 0xc0000, scoped, tag = 'input window, operand 24']
    #allocation31 [shape = 'u8[6144]{0}', space=vmem, size = 0x1800, scoped, tag = 'input window, operand 25']
    #allocation32 [shape = 'u8[6144]{0}', space=vmem, size = 0x1800, scoped, tag = 'input window, operand 26']
    #allocation33 [shape = 'u8[262144]{0}', space=vmem, size = 0x40000, scoped, tag = 'input window, operand 27']
    #allocation34 [shape = 'u8[2048]{0}', space=vmem, size = 0x800, scoped, tag = 'input window, operand 28']
    #allocation35 [shape = 'u8[2048]{0}', space=vmem, size = 0x800, scoped, tag = 'input window, operand 29']
    #allocation36 [shape = 'u8[262144]{0}', space=vmem, size = 0x40000, scoped, tag = 'input window, operand 30']
    #allocation37 [shape = 'u8[2048]{0}', space=vmem, size = 0x800, scoped, tag = 'input window, operand 31']
    #allocation38 [shape = 'u8[786432]{0}', space=vmem, size = 0xc0000, scoped, tag = 'input window, operand 32']
    #allocation39 [shape = 'u8[786432]{0}', space=vmem, size = 0xc0000, scoped, tag = 'input window, operand 33']
    #allocation40 [shape = 'u8[6144]{0}', space=vmem, size = 0x1800, scoped, tag = 'input window, operand 34']
    #allocation41 [shape = 'u8[6144]{0}', space=vmem, size = 0x1800, scoped, tag = 'input window, operand 35']
    #allocation42 [shape = 'u8[2048]{0}', space=vmem, size = 0x800, scoped, tag = 'output window, operand 0']
    %78 = vsyncpa [#allocation3], 0
    %s79 = scalar_lea.sflag [#allocation3], 1
    %80 = vsyncpa %s79, 0
    %81 = vsyncpa [#allocation6], 0
    %s82 = scalar_lea.sflag [#allocation6], 1
    %83 = vsyncpa %s82, 0
    %84 = vsyncpa [#allocation9], 0
    %85 = vsyncpa [#allocation4], 0
    %s86 = scalar_lea.sflag [#allocation4], 1
    %87 = vsyncpa %s86, 0
    loop: start=0, step=1, limit=5
    $region2: #{forward.1} parent=1 // loop_pre_header
      _
    $region3: #{forward.1} parent=1 // loop_header
      %s89 = sphi 0, %s93
      %p90 = scmp.ge.s32.totalorder %s89, 5
      %s99 = sphi 0, %s101
      %s102 = sphi 0, %s99
      %s103 = sphi 0, %s102
      %s119 = sphi 0, %s103
      %s125 = sphi 0, %s127
      %s128 = sphi 0, %s125
      %s129 = sphi 0, %s128
      %s145 = sphi 0, %s129
      %s151 = sphi 0, %s153
      %s154 = sphi 0, %s151
      %s155 = sphi 0, %s154
      %s171 = sphi 0, %s155
      %s175 = sphi 0, %s175
      %s177 = sphi 0, %s175
      %s178 = sphi 0, %s177
      %s192 = sphi 0, %s178
      %s198 = sphi 0, %s200
      %s201 = sphi 0, %s198
      %s202 = sphi 0, %s201
      %s218 = sphi 0, %s202
      %s224 = sphi 0, %s226
      %s227 = sphi 0, %s224
      %s228 = sphi 0, %s227
      %s244 = sphi 0, %s228
      %s250 = sphi 0, %s252
      %s253 = sphi 0, %s250
      %s254 = sphi 0, %s253
      %s270 = sphi 0, %s254
      %s276 = sphi 0, %s278
      %s279 = sphi 0, %s276
      %s280 = sphi 0, %s279
      %s296 = sphi 0, %s280
      %s302 = sphi 0, %s304
      %s305 = sphi 0, %s302
      %s306 = sphi 0, %s305
      %s322 = sphi 0, %s306
      %s328 = sphi 0, %s330
      %s331 = sphi 0, %s328
      %s332 = sphi 0, %s331
      %s348 = sphi 0, %s332
      %s354 = sphi 0, %s356
      %s357 = sphi 0, %s354
      %s358 = sphi 0, %s357
      %s374 = sphi 0, %s358
      %s380 = sphi 0, %s382
      %s383 = sphi 0, %s380
      %s384 = sphi 0, %s383
      %s400 = sphi 0, %s384
      %s406 = sphi 0, %s408
      %s409 = sphi 0, %s406
      %s410 = sphi 0, %s409
      %s426 = sphi 0, %s410
      %s432 = sphi 0, %s434
      %s435 = sphi 0, %s432
      %s436 = sphi 0, %s435
      %s452 = sphi 0, %s436
      %s458 = sphi 0, %s460
      %s461 = sphi 0, %s458
      %s462 = sphi 0, %s461
      %s478 = sphi 0, %s462
      %s484 = sphi 0, %s486
      %s487 = sphi 0, %s484
      %s488 = sphi 0, %s487
      %s504 = sphi 0, %s488
      %s510 = sphi 0, %s512
      %s513 = sphi 0, %s510
      %s514 = sphi 0, %s513
      %s530 = sphi 0, %s514
      %s536 = sphi 0, %s538
      %s539 = sphi 0, %s536
      %s540 = sphi 0, %s539
      %s556 = sphi 0, %s540
      %s562 = sphi 0, %s564
      %s565 = sphi 0, %s562
      %s566 = sphi 0, %s565
      %s582 = sphi 0, %s566
      %s588 = sphi 0, %s590
      %s591 = sphi 0, %s588
      %s592 = sphi 0, %s591
      %s608 = sphi 0, %s592
      %s614 = sphi 0, %s616
      %s617 = sphi 0, %s614
      %s618 = sphi 0, %s617
      %s634 = sphi 0, %s618
      %s640 = sphi 0, %s642
      %s643 = sphi 0, %s640
      %s644 = sphi 0, %s643
      %s660 = sphi 0, %s644
      %s666 = sphi 0, %s668
      %s669 = sphi 0, %s666
      %s670 = sphi 0, %s669
      %s686 = sphi 0, %s670
      %s692 = sphi 0, %s694
      %s695 = sphi 0, %s692
      %s696 = sphi 0, %s695
      %s712 = sphi 0, %s696
      %s718 = sphi 0, %s720
      %s721 = sphi 0, %s718
      %s722 = sphi 0, %s721
      %s738 = sphi 0, %s722
      %s744 = sphi 0, %s746
      %s747 = sphi 0, %s744
      %s748 = sphi 0, %s747
      %s764 = sphi 0, %s748
      %s770 = sphi 0, %s772
      %s773 = sphi 0, %s770
      %s774 = sphi 0, %s773
      %s790 = sphi 0, %s774
      %s796 = sphi 0, %s798
      %s799 = sphi 0, %s796
      %s800 = sphi 0, %s799
      %s816 = sphi 0, %s800
      %s822 = sphi 0, %s824
      %s825 = sphi 0, %s822
      %s826 = sphi 0, %s825
      %s842 = sphi 0, %s826
      %s848 = sphi 0, %s850
      %s851 = sphi 0, %s848
      %s852 = sphi 0, %s851
      %s868 = sphi 0, %s852
      %s874 = sphi 0, %s876
      %s877 = sphi 0, %s874
      %s878 = sphi 0, %s877
      %s894 = sphi 0, %s878
      %s900 = sphi 0, %s902
      %s903 = sphi 0, %s900
      %s904 = sphi 0, %s903
      %s920 = sphi 0, %s904
      %s926 = sphi 0, %s928
      %s929 = sphi 0, %s926
      %s930 = sphi 0, %s929
      %s946 = sphi 0, %s930
      %s952 = sphi 0, %s954
      %s955 = sphi 0, %s952
      %s956 = sphi 0, %s955
      %s972 = sphi 0, %s956
      %s978 = sphi 0, %s980
      %s981 = sphi 0, %s978
      %s982 = sphi 0, %s981
      %s998 = sphi 0, %s982
      %s1004 = sphi 0, %s1006
      %s1007 = sphi 0, %s1004
      %s1008 = sphi 0, %s1007
      %s1024 = sphi 0, %s1008
      %s1030 = sphi 0, %s1032
      %s1033 = sphi 0, %s1030
      %s1034 = sphi 0, %s1033
      %s1050 = sphi 0, %s1034
    $region4: #{forward.1} parent=1 // loop_header_branch
      %92 = sbr.rel (%p90) target = $region8
    $region5: #{forward.1} parent=1 // loop_body
      %s94 = ssub.s32 %s89, 1
      %s95 = ssub.s32 %s89, 2
      %s96 = sadd.s32 %s89, 1
      %s97 = ssub.s32 %s89, %s96
      %p98 = scmp.eq.s32.totalorder %s97, 0
      %s100 = sadd.s32 %s99, 1
      %s101 = scalar_select %p98, %s99, %s100
      %p104 = pneg %p98
      %p105 = scmp.eq.s32.totalorder %s89, 2
      %p106 = por %p104, %p105
      %p107 = scmp.ne.s32.totalorder %s99, %s102
      %p108 = scmp.eq.s32.totalorder %s89, 0
      %p109 = por %p107, %p108
      %p110 = scmp.ne.s32.totalorder %s99, %s102
      %p111 = scmp.eq.s32.totalorder %s94, 2
      %p112 = por %p110, %p111
      %p113 = scmp.ne.s32.totalorder %s102, %s103
      %p114 = scmp.eq.s32.totalorder %s94, 0
      %p115 = por %p113, %p114
      %p116 = scmp.ne.s32.totalorder %s102, %s103
      %p117 = scmp.eq.s32.totalorder %s95, 2
      %p118 = por %p116, %p117
      %p120 = scmp.ne.s32.totalorder %s103, %s119
      %p121 = scmp.eq.s32.totalorder %s95, 0
      %p122 = por %p120, %p121
      %s123 = ssub.s32 %s89, %s96
      %p124 = scmp.eq.s32.totalorder %s123, 0
      %s126 = sadd.s32 %s125, 1
      %s127 = scalar_select %p124, %s125, %s126
      %p130 = pneg %p124
      %p131 = scmp.eq.s32.totalorder %s89, 2
      %p132 = por %p130, %p131
      %p133 = scmp.ne.s32.totalorder %s125, %s128
      %p134 = scmp.eq.s32.totalorder %s89, 0
      %p135 = por %p133, %p134
      %p136 = scmp.ne.s32.totalorder %s125, %s128
      %p137 = scmp.eq.s32.totalorder %s94, 2
      %p138 = por %p136, %p137
      %p139 = scmp.ne.s32.totalorder %s128, %s129
      %p140 = scmp.eq.s32.totalorder %s94, 0
      %p141 = por %p139, %p140
      %p142 = scmp.ne.s32.totalorder %s128, %s129
      %p143 = scmp.eq.s32.totalorder %s95, 2
      %p144 = por %p142, %p143
      %p146 = scmp.ne.s32.totalorder %s129, %s145
      %p147 = scmp.eq.s32.totalorder %s95, 0
      %p148 = por %p146, %p147
      %s149 = ssub.s32 %s89, %s96
      %p150 = scmp.eq.s32.totalorder %s149, 0
      %s152 = sadd.s32 %s151, 1
      %s153 = scalar_select %p150, %s151, %s152
      %p156 = pneg %p150
      %p157 = scmp.eq.s32.totalorder %s89, 2
      %p158 = por %p156, %p157
      %p159 = scmp.ne.s32.totalorder %s151, %s154
      %p160 = scmp.eq.s32.totalorder %s89, 0
      %p161 = por %p159, %p160
      %p162 = scmp.ne.s32.totalorder %s151, %s154
      %p163 = scmp.eq.s32.totalorder %s94, 2
      %p164 = por %p162, %p163
      %p165 = scmp.ne.s32.totalorder %s154, %s155
      %p166 = scmp.eq.s32.totalorder %s94, 0
      %p167 = por %p165, %p166
      %p168 = scmp.ne.s32.totalorder %s154, %s155
      %p169 = scmp.eq.s32.totalorder %s95, 2
      %p170 = por %p168, %p169
      %p172 = scmp.ne.s32.totalorder %s155, %s171
      %p173 = scmp.eq.s32.totalorder %s95, 0
      %p174 = por %p172, %p173
      %s176 = sadd.s32 %s175, 1
      %p179 = scmp.eq.s32.totalorder %s89, 2
      %p180 = scmp.ne.s32.totalorder %s175, %s177
      %p181 = scmp.eq.s32.totalorder %s89, 0
      %p182 = por %p180, %p181
      %p183 = scmp.ne.s32.totalorder %s175, %s177
      %p184 = scmp.eq.s32.totalorder %s94, 2
      %p185 = por %p183, %p184
      %p186 = scmp.ne.s32.totalorder %s177, %s178
      %p187 = scmp.eq.s32.totalorder %s94, 0
      %p188 = por %p186, %p187
      %p189 = scmp.ne.s32.totalorder %s177, %s178
      %p190 = scmp.eq.s32.totalorder %s95, 2
      %p191 = por %p189, %p190
      %p193 = scmp.ne.s32.totalorder %s178, %s192
      %p194 = scmp.eq.s32.totalorder %s95, 0
      %p195 = por %p193, %p194
      %s196 = ssub.s32 %s89, %s96
      %p197 = scmp.eq.s32.totalorder %s196, 0
      %s199 = sadd.s32 %s198, 1
      %s200 = scalar_select %p197, %s198, %s199
      %p203 = pneg %p197
      %p204 = scmp.eq.s32.totalorder %s89, 2
      %p205 = por %p203, %p204
      %p206 = scmp.ne.s32.totalorder %s198, %s201
      %p207 = scmp.eq.s32.totalorder %s89, 0
      %p208 = por %p206, %p207
      %p209 = scmp.ne.s32.totalorder %s198, %s201
      %p210 = scmp.eq.s32.totalorder %s94, 2
      %p211 = por %p209, %p210
      %p212 = scmp.ne.s32.totalorder %s201, %s202
      %p213 = scmp.eq.s32.totalorder %s94, 0
      %p214 = por %p212, %p213
      %p215 = scmp.ne.s32.totalorder %s201, %s202
      %p216 = scmp.eq.s32.totalorder %s95, 2
      %p217 = por %p215, %p216
      %p219 = scmp.ne.s32.totalorder %s202, %s218
      %p220 = scmp.eq.s32.totalorder %s95, 0
      %p221 = por %p219, %p220
      %s222 = ssub.s32 %s89, %s96
      %p223 = scmp.eq.s32.totalorder %s222, 0
      %s225 = sadd.s32 %s224, 1
      %s226 = scalar_select %p223, %s224, %s225
      %p229 = pneg %p223
      %p230 = scmp.eq.s32.totalorder %s89, 2
      %p231 = por %p229, %p230
      %p232 = scmp.ne.s32.totalorder %s224, %s227
      %p233 = scmp.eq.s32.totalorder %s89, 0
      %p234 = por %p232, %p233
      %p235 = scmp.ne.s32.totalorder %s224, %s227
      %p236 = scmp.eq.s32.totalorder %s94, 2
      %p237 = por %p235, %p236
      %p238 = scmp.ne.s32.totalorder %s227, %s228
      %p239 = scmp.eq.s32.totalorder %s94, 0
      %p240 = por %p238, %p239
      %p241 = scmp.ne.s32.totalorder %s227, %s228
      %p242 = scmp.eq.s32.totalorder %s95, 2
      %p243 = por %p241, %p242
      %p245 = scmp.ne.s32.totalorder %s228, %s244
      %p246 = scmp.eq.s32.totalorder %s95, 0
      %p247 = por %p245, %p246
      %s248 = ssub.s32 %s89, %s96
      %p249 = scmp.eq.s32.totalorder %s248, 0
      %s251 = sadd.s32 %s250, 1
      %s252 = scalar_select %p249, %s250, %s251
      %p255 = pneg %p249
      %p256 = scmp.eq.s32.totalorder %s89, 2
      %p257 = por %p255, %p256
      %p258 = scmp.ne.s32.totalorder %s250, %s253
      %p259 = scmp.eq.s32.totalorder %s89, 0
      %p260 = por %p258, %p259
      %p261 = scmp.ne.s32.totalorder %s250, %s253
      %p262 = scmp.eq.s32.totalorder %s94, 2
      %p263 = por %p261, %p262
      %p264 = scmp.ne.s32.totalorder %s253, %s254
      %p265 = scmp.eq.s32.totalorder %s94, 0
      %p266 = por %p264, %p265
      %p267 = scmp.ne.s32.totalorder %s253, %s254
      %p268 = scmp.eq.s32.totalorder %s95, 2
      %p269 = por %p267, %p268
      %p271 = scmp.ne.s32.totalorder %s254, %s270
      %p272 = scmp.eq.s32.totalorder %s95, 0
      %p273 = por %p271, %p272
      %s274 = ssub.s32 %s89, %s96
      %p275 = scmp.eq.s32.totalorder %s274, 0
      %s277 = sadd.s32 %s276, 1
      %s278 = scalar_select %p275, %s276, %s277
      %p281 = pneg %p275
      %p282 = scmp.eq.s32.totalorder %s89, 2
      %p283 = por %p281, %p282
      %p284 = scmp.ne.s32.totalorder %s276, %s279
      %p285 = scmp.eq.s32.totalorder %s89, 0
      %p286 = por %p284, %p285
      %p287 = scmp.ne.s32.totalorder %s276, %s279
      %p288 = scmp.eq.s32.totalorder %s94, 2
      %p289 = por %p287, %p288
      %p290 = scmp.ne.s32.totalorder %s279, %s280
      %p291 = scmp.eq.s32.totalorder %s94, 0
      %p292 = por %p290, %p291
      %p293 = scmp.ne.s32.totalorder %s279, %s280
      %p294 = scmp.eq.s32.totalorder %s95, 2
      %p295 = por %p293, %p294
      %p297 = scmp.ne.s32.totalorder %s280, %s296
      %p298 = scmp.eq.s32.totalorder %s95, 0
      %p299 = por %p297, %p298
      %s300 = ssub.s32 %s89, %s96
      %p301 = scmp.eq.s32.totalorder %s300, 0
      %s303 = sadd.s32 %s302, 1
      %s304 = scalar_select %p301, %s302, %s303
      %p307 = pneg %p301
      %p308 = scmp.eq.s32.totalorder %s89, 2
      %p309 = por %p307, %p308
      %p310 = scmp.ne.s32.totalorder %s302, %s305
      %p311 = scmp.eq.s32.totalorder %s89, 0
      %p312 = por %p310, %p311
      %p313 = scmp.ne.s32.totalorder %s302, %s305
      %p314 = scmp.eq.s32.totalorder %s94, 2
      %p315 = por %p313, %p314
      %p316 = scmp.ne.s32.totalorder %s305, %s306
      %p317 = scmp.eq.s32.totalorder %s94, 0
      %p318 = por %p316, %p317
      %p319 = scmp.ne.s32.totalorder %s305, %s306
      %p320 = scmp.eq.s32.totalorder %s95, 2
      %p321 = por %p319, %p320
      %p323 = scmp.ne.s32.totalorder %s306, %s322
      %p324 = scmp.eq.s32.totalorder %s95, 0
      %p325 = por %p323, %p324
      %s326 = ssub.s32 %s89, %s96
      %p327 = scmp.eq.s32.totalorder %s326, 0
      %s329 = sadd.s32 %s328, 1
      %s330 = scalar_select %p327, %s328, %s329
      %p333 = pneg %p327
      %p334 = scmp.eq.s32.totalorder %s89, 2
      %p335 = por %p333, %p334
      %p336 = scmp.ne.s32.totalorder %s328, %s331
      %p337 = scmp.eq.s32.totalorder %s89, 0
      %p338 = por %p336, %p337
      %p339 = scmp.ne.s32.totalorder %s328, %s331
      %p340 = scmp.eq.s32.totalorder %s94, 2
      %p341 = por %p339, %p340
      %p342 = scmp.ne.s32.totalorder %s331, %s332
      %p343 = scmp.eq.s32.totalorder %s94, 0
      %p344 = por %p342, %p343
      %p345 = scmp.ne.s32.totalorder %s331, %s332
      %p346 = scmp.eq.s32.totalorder %s95, 2
      %p347 = por %p345, %p346
      %p349 = scmp.ne.s32.totalorder %s332, %s348
      %p350 = scmp.eq.s32.totalorder %s95, 0
      %p351 = por %p349, %p350
      %s352 = ssub.s32 %s89, %s96
      %p353 = scmp.eq.s32.totalorder %s352, 0
      %s355 = sadd.s32 %s354, 1
      %s356 = scalar_select %p353, %s354, %s355
      %p359 = pneg %p353
      %p360 = scmp.eq.s32.totalorder %s89, 2
      %p361 = por %p359, %p360
      %p362 = scmp.ne.s32.totalorder %s354, %s357
      %p363 = scmp.eq.s32.totalorder %s89, 0
      %p364 = por %p362, %p363
      %p365 = scmp.ne.s32.totalorder %s354, %s357
      %p366 = scmp.eq.s32.totalorder %s94, 2
      %p367 = por %p365, %p366
      %p368 = scmp.ne.s32.totalorder %s357, %s358
      %p369 = scmp.eq.s32.totalorder %s94, 0
      %p370 = por %p368, %p369
      %p371 = scmp.ne.s32.totalorder %s357, %s358
      %p372 = scmp.eq.s32.totalorder %s95, 2
      %p373 = por %p371, %p372
      %p375 = scmp.ne.s32.totalorder %s358, %s374
      %p376 = scmp.eq.s32.totalorder %s95, 0
      %p377 = por %p375, %p376
      %s378 = ssub.s32 %s89, %s96
      %p379 = scmp.eq.s32.totalorder %s378, 0
      %s381 = sadd.s32 %s380, 1
      %s382 = scalar_select %p379, %s380, %s381
      %p385 = pneg %p379
      %p386 = scmp.eq.s32.totalorder %s89, 2
      %p387 = por %p385, %p386
      %p388 = scmp.ne.s32.totalorder %s380, %s383
      %p389 = scmp.eq.s32.totalorder %s89, 0
      %p390 = por %p388, %p389
      %p391 = scmp.ne.s32.totalorder %s380, %s383
      %p392 = scmp.eq.s32.totalorder %s94, 2
      %p393 = por %p391, %p392
      %p394 = scmp.ne.s32.totalorder %s383, %s384
      %p395 = scmp.eq.s32.totalorder %s94, 0
      %p396 = por %p394, %p395
      %p397 = scmp.ne.s32.totalorder %s383, %s384
      %p398 = scmp.eq.s32.totalorder %s95, 2
      %p399 = por %p397, %p398
      %p401 = scmp.ne.s32.totalorder %s384, %s400
      %p402 = scmp.eq.s32.totalorder %s95, 0
      %p403 = por %p401, %p402
      %s404 = ssub.s32 %s89, %s96
      %p405 = scmp.eq.s32.totalorder %s404, 0
      %s407 = sadd.s32 %s406, 1
      %s408 = scalar_select %p405, %s406, %s407
      %p411 = pneg %p405
      %p412 = scmp.eq.s32.totalorder %s89, 2
      %p413 = por %p411, %p412
      %p414 = scmp.ne.s32.totalorder %s406, %s409
      %p415 = scmp.eq.s32.totalorder %s89, 0
      %p416 = por %p414, %p415
      %p417 = scmp.ne.s32.totalorder %s406, %s409
      %p418 = scmp.eq.s32.totalorder %s94, 2
      %p419 = por %p417, %p418
      %p420 = scmp.ne.s32.totalorder %s409, %s410
      %p421 = scmp.eq.s32.totalorder %s94, 0
      %p422 = por %p420, %p421
      %p423 = scmp.ne.s32.totalorder %s409, %s410
      %p424 = scmp.eq.s32.totalorder %s95, 2
      %p425 = por %p423, %p424
      %p427 = scmp.ne.s32.totalorder %s410, %s426
      %p428 = scmp.eq.s32.totalorder %s95, 0
      %p429 = por %p427, %p428
      %s430 = ssub.s32 %s89, %s96
      %p431 = scmp.eq.s32.totalorder %s430, 0
      %s433 = sadd.s32 %s432, 1
      %s434 = scalar_select %p431, %s432, %s433
      %p437 = pneg %p431
      %p438 = scmp.eq.s32.totalorder %s89, 2
      %p439 = por %p437, %p438
      %p440 = scmp.ne.s32.totalorder %s432, %s435
      %p441 = scmp.eq.s32.totalorder %s89, 0
      %p442 = por %p440, %p441
      %p443 = scmp.ne.s32.totalorder %s432, %s435
      %p444 = scmp.eq.s32.totalorder %s94, 2
      %p445 = por %p443, %p444
      %p446 = scmp.ne.s32.totalorder %s435, %s436
      %p447 = scmp.eq.s32.totalorder %s94, 0
      %p448 = por %p446, %p447
      %p449 = scmp.ne.s32.totalorder %s435, %s436
      %p450 = scmp.eq.s32.totalorder %s95, 2
      %p451 = por %p449, %p450
      %p453 = scmp.ne.s32.totalorder %s436, %s452
      %p454 = scmp.eq.s32.totalorder %s95, 0
      %p455 = por %p453, %p454
      %s456 = ssub.s32 %s89, %s96
      %p457 = scmp.eq.s32.totalorder %s456, 0
      %s459 = sadd.s32 %s458, 1
      %s460 = scalar_select %p457, %s458, %s459
      %p463 = pneg %p457
      %p464 = scmp.eq.s32.totalorder %s89, 2
      %p465 = por %p463, %p464
      %p466 = scmp.ne.s32.totalorder %s458, %s461
      %p467 = scmp.eq.s32.totalorder %s89, 0
      %p468 = por %p466, %p467
      %p469 = scmp.ne.s32.totalorder %s458, %s461
      %p470 = scmp.eq.s32.totalorder %s94, 2
      %p471 = por %p469, %p470
      %p472 = scmp.ne.s32.totalorder %s461, %s462
      %p473 = scmp.eq.s32.totalorder %s94, 0
      %p474 = por %p472, %p473
      %p475 = scmp.ne.s32.totalorder %s461, %s462
      %p476 = scmp.eq.s32.totalorder %s95, 2
      %p477 = por %p475, %p476
      %p479 = scmp.ne.s32.totalorder %s462, %s478
      %p480 = scmp.eq.s32.totalorder %s95, 0
      %p481 = por %p479, %p480
      %s482 = ssub.s32 %s89, %s96
      %p483 = scmp.eq.s32.totalorder %s482, 0
      %s485 = sadd.s32 %s484, 1
      %s486 = scalar_select %p483, %s484, %s485
      %p489 = pneg %p483
      %p490 = scmp.eq.s32.totalorder %s89, 2
      %p491 = por %p489, %p490
      %p492 = scmp.ne.s32.totalorder %s484, %s487
      %p493 = scmp.eq.s32.totalorder %s89, 0
      %p494 = por %p492, %p493
      %p495 = scmp.ne.s32.totalorder %s484, %s487
      %p496 = scmp.eq.s32.totalorder %s94, 2
      %p497 = por %p495, %p496
      %p498 = scmp.ne.s32.totalorder %s487, %s488
      %p499 = scmp.eq.s32.totalorder %s94, 0
      %p500 = por %p498, %p499
      %p501 = scmp.ne.s32.totalorder %s487, %s488
      %p502 = scmp.eq.s32.totalorder %s95, 2
      %p503 = por %p501, %p502
      %p505 = scmp.ne.s32.totalorder %s488, %s504
      %p506 = scmp.eq.s32.totalorder %s95, 0
      %p507 = por %p505, %p506
      %s508 = ssub.s32 %s89, %s96
      %p509 = scmp.eq.s32.totalorder %s508, 0
      %s511 = sadd.s32 %s510, 1
      %s512 = scalar_select %p509, %s510, %s511
      %p515 = pneg %p509
      %p516 = scmp.eq.s32.totalorder %s89, 2
      %p517 = por %p515, %p516
      %p518 = scmp.ne.s32.totalorder %s510, %s513
      %p519 = scmp.eq.s32.totalorder %s89, 0
      %p520 = por %p518, %p519
      %p521 = scmp.ne.s32.totalorder %s510, %s513
      %p522 = scmp.eq.s32.totalorder %s94, 2
      %p523 = por %p521, %p522
      %p524 = scmp.ne.s32.totalorder %s513, %s514
      %p525 = scmp.eq.s32.totalorder %s94, 0
      %p526 = por %p524, %p525
      %p527 = scmp.ne.s32.totalorder %s513, %s514
      %p528 = scmp.eq.s32.totalorder %s95, 2
      %p529 = por %p527, %p528
      %p531 = scmp.ne.s32.totalorder %s514, %s530
      %p532 = scmp.eq.s32.totalorder %s95, 0
      %p533 = por %p531, %p532
      %s534 = ssub.s32 %s89, %s96
      %p535 = scmp.eq.s32.totalorder %s534, 0
      %s537 = sadd.s32 %s536, 1
      %s538 = scalar_select %p535, %s536, %s537
      %p541 = pneg %p535
      %p542 = scmp.eq.s32.totalorder %s89, 2
      %p543 = por %p541, %p542
      %p544 = scmp.ne.s32.totalorder %s536, %s539
      %p545 = scmp.eq.s32.totalorder %s89, 0
      %p546 = por %p544, %p545
      %p547 = scmp.ne.s32.totalorder %s536, %s539
      %p548 = scmp.eq.s32.totalorder %s94, 2
      %p549 = por %p547, %p548
      %p550 = scmp.ne.s32.totalorder %s539, %s540
      %p551 = scmp.eq.s32.totalorder %s94, 0
      %p552 = por %p550, %p551
      %p553 = scmp.ne.s32.totalorder %s539, %s540
      %p554 = scmp.eq.s32.totalorder %s95, 2
      %p555 = por %p553, %p554
      %p557 = scmp.ne.s32.totalorder %s540, %s556
      %p558 = scmp.eq.s32.totalorder %s95, 0
      %p559 = por %p557, %p558
      %s560 = ssub.s32 %s89, %s96
      %p561 = scmp.eq.s32.totalorder %s560, 0
      %s563 = sadd.s32 %s562, 1
      %s564 = scalar_select %p561, %s562, %s563
      %p567 = pneg %p561
      %p568 = scmp.eq.s32.totalorder %s89, 2
      %p569 = por %p567, %p568
      %p570 = scmp.ne.s32.totalorder %s562, %s565
      %p571 = scmp.eq.s32.totalorder %s89, 0
      %p572 = por %p570, %p571
      %p573 = scmp.ne.s32.totalorder %s562, %s565
      %p574 = scmp.eq.s32.totalorder %s94, 2
      %p575 = por %p573, %p574
      %p576 = scmp.ne.s32.totalorder %s565, %s566
      %p577 = scmp.eq.s32.totalorder %s94, 0
      %p578 = por %p576, %p577
      %p579 = scmp.ne.s32.totalorder %s565, %s566
      %p580 = scmp.eq.s32.totalorder %s95, 2
      %p581 = por %p579, %p580
      %p583 = scmp.ne.s32.totalorder %s566, %s582
      %p584 = scmp.eq.s32.totalorder %s95, 0
      %p585 = por %p583, %p584
      %s586 = ssub.s32 %s89, %s96
      %p587 = scmp.eq.s32.totalorder %s586, 0
      %s589 = sadd.s32 %s588, 1
      %s590 = scalar_select %p587, %s588, %s589
      %p593 = pneg %p587
      %p594 = scmp.eq.s32.totalorder %s89, 2
      %p595 = por %p593, %p594
      %p596 = scmp.ne.s32.totalorder %s588, %s591
      %p597 = scmp.eq.s32.totalorder %s89, 0
      %p598 = por %p596, %p597
      %p599 = scmp.ne.s32.totalorder %s588, %s591
      %p600 = scmp.eq.s32.totalorder %s94, 2
      %p601 = por %p599, %p600
      %p602 = scmp.ne.s32.totalorder %s591, %s592
      %p603 = scmp.eq.s32.totalorder %s94, 0
      %p604 = por %p602, %p603
      %p605 = scmp.ne.s32.totalorder %s591, %s592
      %p606 = scmp.eq.s32.totalorder %s95, 2
      %p607 = por %p605, %p606
      %p609 = scmp.ne.s32.totalorder %s592, %s608
      %p610 = scmp.eq.s32.totalorder %s95, 0
      %p611 = por %p609, %p610
      %s612 = ssub.s32 %s89, %s96
      %p613 = scmp.eq.s32.totalorder %s612, 0
      %s615 = sadd.s32 %s614, 1
      %s616 = scalar_select %p613, %s614, %s615
      %p619 = pneg %p613
      %p620 = scmp.eq.s32.totalorder %s89, 2
      %p621 = por %p619, %p620
      %p622 = scmp.ne.s32.totalorder %s614, %s617
      %p623 = scmp.eq.s32.totalorder %s89, 0
      %p624 = por %p622, %p623
      %p625 = scmp.ne.s32.totalorder %s614, %s617
      %p626 = scmp.eq.s32.totalorder %s94, 2
      %p627 = por %p625, %p626
      %p628 = scmp.ne.s32.totalorder %s617, %s618
      %p629 = scmp.eq.s32.totalorder %s94, 0
      %p630 = por %p628, %p629
      %p631 = scmp.ne.s32.totalorder %s617, %s618
      %p632 = scmp.eq.s32.totalorder %s95, 2
      %p633 = por %p631, %p632
      %p635 = scmp.ne.s32.totalorder %s618, %s634
      %p636 = scmp.eq.s32.totalorder %s95, 0
      %p637 = por %p635, %p636
      %s638 = ssub.s32 %s89, %s96
      %p639 = scmp.eq.s32.totalorder %s638, 0
      %s641 = sadd.s32 %s640, 1
      %s642 = scalar_select %p639, %s640, %s641
      %p645 = pneg %p639
      %p646 = scmp.eq.s32.totalorder %s89, 2
      %p647 = por %p645, %p646
      %p648 = scmp.ne.s32.totalorder %s640, %s643
      %p649 = scmp.eq.s32.totalorder %s89, 0
      %p650 = por %p648, %p649
      %p651 = scmp.ne.s32.totalorder %s640, %s643
      %p652 = scmp.eq.s32.totalorder %s94, 2
      %p653 = por %p651, %p652
      %p654 = scmp.ne.s32.totalorder %s643, %s644
      %p655 = scmp.eq.s32.totalorder %s94, 0
      %p656 = por %p654, %p655
      %p657 = scmp.ne.s32.totalorder %s643, %s644
      %p658 = scmp.eq.s32.totalorder %s95, 2
      %p659 = por %p657, %p658
      %p661 = scmp.ne.s32.totalorder %s644, %s660
      %p662 = scmp.eq.s32.totalorder %s95, 0
      %p663 = por %p661, %p662
      %s664 = ssub.s32 %s89, %s96
      %p665 = scmp.eq.s32.totalorder %s664, 0
      %s667 = sadd.s32 %s666, 1
      %s668 = scalar_select %p665, %s666, %s667
      %p671 = pneg %p665
      %p672 = scmp.eq.s32.totalorder %s89, 2
      %p673 = por %p671, %p672
      %p674 = scmp.ne.s32.totalorder %s666, %s669
      %p675 = scmp.eq.s32.totalorder %s89, 0
      %p676 = por %p674, %p675
      %p677 = scmp.ne.s32.totalorder %s666, %s669
      %p678 = scmp.eq.s32.totalorder %s94, 2
      %p679 = por %p677, %p678
      %p680 = scmp.ne.s32.totalorder %s669, %s670
      %p681 = scmp.eq.s32.totalorder %s94, 0
      %p682 = por %p680, %p681
      %p683 = scmp.ne.s32.totalorder %s669, %s670
      %p684 = scmp.eq.s32.totalorder %s95, 2
      %p685 = por %p683, %p684
      %p687 = scmp.ne.s32.totalorder %s670, %s686
      %p688 = scmp.eq.s32.totalorder %s95, 0
      %p689 = por %p687, %p688
      %s690 = ssub.s32 %s89, %s96
      %p691 = scmp.eq.s32.totalorder %s690, 0
      %s693 = sadd.s32 %s692, 1
      %s694 = scalar_select %p691, %s692, %s693
      %p697 = pneg %p691
      %p698 = scmp.eq.s32.totalorder %s89, 2
      %p699 = por %p697, %p698
      %p700 = scmp.ne.s32.totalorder %s692, %s695
      %p701 = scmp.eq.s32.totalorder %s89, 0
      %p702 = por %p700, %p701
      %p703 = scmp.ne.s32.totalorder %s692, %s695
      %p704 = scmp.eq.s32.totalorder %s94, 2
      %p705 = por %p703, %p704
      %p706 = scmp.ne.s32.totalorder %s695, %s696
      %p707 = scmp.eq.s32.totalorder %s94, 0
      %p708 = por %p706, %p707
      %p709 = scmp.ne.s32.totalorder %s695, %s696
      %p710 = scmp.eq.s32.totalorder %s95, 2
      %p711 = por %p709, %p710
      %p713 = scmp.ne.s32.totalorder %s696, %s712
      %p714 = scmp.eq.s32.totalorder %s95, 0
      %p715 = por %p713, %p714
      %s716 = ssub.s32 %s89, %s96
      %p717 = scmp.eq.s32.totalorder %s716, 0
      %s719 = sadd.s32 %s718, 1
      %s720 = scalar_select %p717, %s718, %s719
      %p723 = pneg %p717
      %p724 = scmp.eq.s32.totalorder %s89, 2
      %p725 = por %p723, %p724
      %p726 = scmp.ne.s32.totalorder %s718, %s721
      %p727 = scmp.eq.s32.totalorder %s89, 0
      %p728 = por %p726, %p727
      %p729 = scmp.ne.s32.totalorder %s718, %s721
      %p730 = scmp.eq.s32.totalorder %s94, 2
      %p731 = por %p729, %p730
      %p732 = scmp.ne.s32.totalorder %s721, %s722
      %p733 = scmp.eq.s32.totalorder %s94, 0
      %p734 = por %p732, %p733
      %p735 = scmp.ne.s32.totalorder %s721, %s722
      %p736 = scmp.eq.s32.totalorder %s95, 2
      %p737 = por %p735, %p736
      %p739 = scmp.ne.s32.totalorder %s722, %s738
      %p740 = scmp.eq.s32.totalorder %s95, 0
      %p741 = por %p739, %p740
      %s742 = ssub.s32 %s89, %s96
      %p743 = scmp.eq.s32.totalorder %s742, 0
      %s745 = sadd.s32 %s744, 1
      %s746 = scalar_select %p743, %s744, %s745
      %p749 = pneg %p743
      %p750 = scmp.eq.s32.totalorder %s89, 2
      %p751 = por %p749, %p750
      %p752 = scmp.ne.s32.totalorder %s744, %s747
      %p753 = scmp.eq.s32.totalorder %s89, 0
      %p754 = por %p752, %p753
      %p755 = scmp.ne.s32.totalorder %s744, %s747
      %p756 = scmp.eq.s32.totalorder %s94, 2
      %p757 = por %p755, %p756
      %p758 = scmp.ne.s32.totalorder %s747, %s748
      %p759 = scmp.eq.s32.totalorder %s94, 0
      %p760 = por %p758, %p759
      %p761 = scmp.ne.s32.totalorder %s747, %s748
      %p762 = scmp.eq.s32.totalorder %s95, 2
      %p763 = por %p761, %p762
      %p765 = scmp.ne.s32.totalorder %s748, %s764
      %p766 = scmp.eq.s32.totalorder %s95, 0
      %p767 = por %p765, %p766
      %s768 = ssub.s32 %s89, %s96
      %p769 = scmp.eq.s32.totalorder %s768, 0
      %s771 = sadd.s32 %s770, 1
      %s772 = scalar_select %p769, %s770, %s771
      %p775 = pneg %p769
      %p776 = scmp.eq.s32.totalorder %s89, 2
      %p777 = por %p775, %p776
      %p778 = scmp.ne.s32.totalorder %s770, %s773
      %p779 = scmp.eq.s32.totalorder %s89, 0
      %p780 = por %p778, %p779
      %p781 = scmp.ne.s32.totalorder %s770, %s773
      %p782 = scmp.eq.s32.totalorder %s94, 2
      %p783 = por %p781, %p782
      %p784 = scmp.ne.s32.totalorder %s773, %s774
      %p785 = scmp.eq.s32.totalorder %s94, 0
      %p786 = por %p784, %p785
      %p787 = scmp.ne.s32.totalorder %s773, %s774
      %p788 = scmp.eq.s32.totalorder %s95, 2
      %p789 = por %p787, %p788
      %p791 = scmp.ne.s32.totalorder %s774, %s790
      %p792 = scmp.eq.s32.totalorder %s95, 0
      %p793 = por %p791, %p792
      %s794 = ssub.s32 %s89, %s96
      %p795 = scmp.eq.s32.totalorder %s794, 0
      %s797 = sadd.s32 %s796, 1
      %s798 = scalar_select %p795, %s796, %s797
      %p801 = pneg %p795
      %p802 = scmp.eq.s32.totalorder %s89, 2
      %p803 = por %p801, %p802
      %p804 = scmp.ne.s32.totalorder %s796, %s799
      %p805 = scmp.eq.s32.totalorder %s89, 0
      %p806 = por %p804, %p805
      %p807 = scmp.ne.s32.totalorder %s796, %s799
      %p808 = scmp.eq.s32.totalorder %s94, 2
      %p809 = por %p807, %p808
      %p810 = scmp.ne.s32.totalorder %s799, %s800
      %p811 = scmp.eq.s32.totalorder %s94, 0
      %p812 = por %p810, %p811
      %p813 = scmp.ne.s32.totalorder %s799, %s800
      %p814 = scmp.eq.s32.totalorder %s95, 2
      %p815 = por %p813, %p814
      %p817 = scmp.ne.s32.totalorder %s800, %s816
      %p818 = scmp.eq.s32.totalorder %s95, 0
      %p819 = por %p817, %p818
      %s820 = ssub.s32 %s89, %s96
      %p821 = scmp.eq.s32.totalorder %s820, 0
      %s823 = sadd.s32 %s822, 1
      %s824 = scalar_select %p821, %s822, %s823
      %p827 = pneg %p821
      %p828 = scmp.eq.s32.totalorder %s89, 2
      %p829 = por %p827, %p828
      %p830 = scmp.ne.s32.totalorder %s822, %s825
      %p831 = scmp.eq.s32.totalorder %s89, 0
      %p832 = por %p830, %p831
      %p833 = scmp.ne.s32.totalorder %s822, %s825
      %p834 = scmp.eq.s32.totalorder %s94, 2
      %p835 = por %p833, %p834
      %p836 = scmp.ne.s32.totalorder %s825, %s826
      %p837 = scmp.eq.s32.totalorder %s94, 0
      %p838 = por %p836, %p837
      %p839 = scmp.ne.s32.totalorder %s825, %s826
      %p840 = scmp.eq.s32.totalorder %s95, 2
      %p841 = por %p839, %p840
      %p843 = scmp.ne.s32.totalorder %s826, %s842
      %p844 = scmp.eq.s32.totalorder %s95, 0
      %p845 = por %p843, %p844
      %s846 = ssub.s32 %s89, %s96
      %p847 = scmp.eq.s32.totalorder %s846, 0
      %s849 = sadd.s32 %s848, 1
      %s850 = scalar_select %p847, %s848, %s849
      %p853 = pneg %p847
      %p854 = scmp.eq.s32.totalorder %s89, 2
      %p855 = por %p853, %p854
      %p856 = scmp.ne.s32.totalorder %s848, %s851
      %p857 = scmp.eq.s32.totalorder %s89, 0
      %p858 = por %p856, %p857
      %p859 = scmp.ne.s32.totalorder %s848, %s851
      %p860 = scmp.eq.s32.totalorder %s94, 2
      %p861 = por %p859, %p860
      %p862 = scmp.ne.s32.totalorder %s851, %s852
      %p863 = scmp.eq.s32.totalorder %s94, 0
      %p864 = por %p862, %p863
      %p865 = scmp.ne.s32.totalorder %s851, %s852
      %p866 = scmp.eq.s32.totalorder %s95, 2
      %p867 = por %p865, %p866
      %p869 = scmp.ne.s32.totalorder %s852, %s868
      %p870 = scmp.eq.s32.totalorder %s95, 0
      %p871 = por %p869, %p870
      %s872 = ssub.s32 %s89, %s96
      %p873 = scmp.eq.s32.totalorder %s872, 0
      %s875 = sadd.s32 %s874, 1
      %s876 = scalar_select %p873, %s874, %s875
      %p879 = pneg %p873
      %p880 = scmp.eq.s32.totalorder %s89, 2
      %p881 = por %p879, %p880
      %p882 = scmp.ne.s32.totalorder %s874, %s877
      %p883 = scmp.eq.s32.totalorder %s89, 0
      %p884 = por %p882, %p883
      %p885 = scmp.ne.s32.totalorder %s874, %s877
      %p886 = scmp.eq.s32.totalorder %s94, 2
      %p887 = por %p885, %p886
      %p888 = scmp.ne.s32.totalorder %s877, %s878
      %p889 = scmp.eq.s32.totalorder %s94, 0
      %p890 = por %p888, %p889
      %p891 = scmp.ne.s32.totalorder %s877, %s878
      %p892 = scmp.eq.s32.totalorder %s95, 2
      %p893 = por %p891, %p892
      %p895 = scmp.ne.s32.totalorder %s878, %s894
      %p896 = scmp.eq.s32.totalorder %s95, 0
      %p897 = por %p895, %p896
      %s898 = ssub.s32 %s89, %s96
      %p899 = scmp.eq.s32.totalorder %s898, 0
      %s901 = sadd.s32 %s900, 1
      %s902 = scalar_select %p899, %s900, %s901
      %p905 = pneg %p899
      %p906 = scmp.eq.s32.totalorder %s89, 2
      %p907 = por %p905, %p906
      %p908 = scmp.ne.s32.totalorder %s900, %s903
      %p909 = scmp.eq.s32.totalorder %s89, 0
      %p910 = por %p908, %p909
      %p911 = scmp.ne.s32.totalorder %s900, %s903
      %p912 = scmp.eq.s32.totalorder %s94, 2
      %p913 = por %p911, %p912
      %p914 = scmp.ne.s32.totalorder %s903, %s904
      %p915 = scmp.eq.s32.totalorder %s94, 0
      %p916 = por %p914, %p915
      %p917 = scmp.ne.s32.totalorder %s903, %s904
      %p918 = scmp.eq.s32.totalorder %s95, 2
      %p919 = por %p917, %p918
      %p921 = scmp.ne.s32.totalorder %s904, %s920
      %p922 = scmp.eq.s32.totalorder %s95, 0
      %p923 = por %p921, %p922
      %s924 = ssub.s32 %s89, %s96
      %p925 = scmp.eq.s32.totalorder %s924, 0
      %s927 = sadd.s32 %s926, 1
      %s928 = scalar_select %p925, %s926, %s927
      %p931 = pneg %p925
      %p932 = scmp.eq.s32.totalorder %s89, 2
      %p933 = por %p931, %p932
      %p934 = scmp.ne.s32.totalorder %s926, %s929
      %p935 = scmp.eq.s32.totalorder %s89, 0
      %p936 = por %p934, %p935
      %p937 = scmp.ne.s32.totalorder %s926, %s929
      %p938 = scmp.eq.s32.totalorder %s94, 2
      %p939 = por %p937, %p938
      %p940 = scmp.ne.s32.totalorder %s929, %s930
      %p941 = scmp.eq.s32.totalorder %s94, 0
      %p942 = por %p940, %p941
      %p943 = scmp.ne.s32.totalorder %s929, %s930
      %p944 = scmp.eq.s32.totalorder %s95, 2
      %p945 = por %p943, %p944
      %p947 = scmp.ne.s32.totalorder %s930, %s946
      %p948 = scmp.eq.s32.totalorder %s95, 0
      %p949 = por %p947, %p948
      %s950 = ssub.s32 %s89, %s96
      %p951 = scmp.eq.s32.totalorder %s950, 0
      %s953 = sadd.s32 %s952, 1
      %s954 = scalar_select %p951, %s952, %s953
      %p957 = pneg %p951
      %p958 = scmp.eq.s32.totalorder %s89, 2
      %p959 = por %p957, %p958
      %p960 = scmp.ne.s32.totalorder %s952, %s955
      %p961 = scmp.eq.s32.totalorder %s89, 0
      %p962 = por %p960, %p961
      %p963 = scmp.ne.s32.totalorder %s952, %s955
      %p964 = scmp.eq.s32.totalorder %s94, 2
      %p965 = por %p963, %p964
      %p966 = scmp.ne.s32.totalorder %s955, %s956
      %p967 = scmp.eq.s32.totalorder %s94, 0
      %p968 = por %p966, %p967
      %p969 = scmp.ne.s32.totalorder %s955, %s956
      %p970 = scmp.eq.s32.totalorder %s95, 2
      %p971 = por %p969, %p970
      %p973 = scmp.ne.s32.totalorder %s956, %s972
      %p974 = scmp.eq.s32.totalorder %s95, 0
      %p975 = por %p973, %p974
      %s976 = ssub.s32 %s89, %s96
      %p977 = scmp.eq.s32.totalorder %s976, 0
      %s979 = sadd.s32 %s978, 1
      %s980 = scalar_select %p977, %s978, %s979
      %p983 = pneg %p977
      %p984 = scmp.eq.s32.totalorder %s89, 2
      %p985 = por %p983, %p984
      %p986 = scmp.ne.s32.totalorder %s978, %s981
      %p987 = scmp.eq.s32.totalorder %s89, 0
      %p988 = por %p986, %p987
      %p989 = scmp.ne.s32.totalorder %s978, %s981
      %p990 = scmp.eq.s32.totalorder %s94, 2
      %p991 = por %p989, %p990
      %p992 = scmp.ne.s32.totalorder %s981, %s982
      %p993 = scmp.eq.s32.totalorder %s94, 0
      %p994 = por %p992, %p993
      %p995 = scmp.ne.s32.totalorder %s981, %s982
      %p996 = scmp.eq.s32.totalorder %s95, 2
      %p997 = por %p995, %p996
      %p999 = scmp.ne.s32.totalorder %s982, %s998
      %p1000 = scmp.eq.s32.totalorder %s95, 0
      %p1001 = por %p999, %p1000
      %s1002 = ssub.s32 %s89, %s96
      %p1003 = scmp.eq.s32.totalorder %s1002, 0
      %s1005 = sadd.s32 %s1004, 1
      %s1006 = scalar_select %p1003, %s1004, %s1005
      %p1009 = pneg %p1003
      %p1010 = scmp.eq.s32.totalorder %s89, 2
      %p1011 = por %p1009, %p1010
      %p1012 = scmp.ne.s32.totalorder %s1004, %s1007
      %p1013 = scmp.eq.s32.totalorder %s89, 0
      %p1014 = por %p1012, %p1013
      %p1015 = scmp.ne.s32.totalorder %s1004, %s1007
      %p1016 = scmp.eq.s32.totalorder %s94, 2
      %p1017 = por %p1015, %p1016
      %p1018 = scmp.ne.s32.totalorder %s1007, %s1008
      %p1019 = scmp.eq.s32.totalorder %s94, 0
      %p1020 = por %p1018, %p1019
      %p1021 = scmp.ne.s32.totalorder %s1007, %s1008
      %p1022 = scmp.eq.s32.totalorder %s95, 2
      %p1023 = por %p1021, %p1022
      %p1025 = scmp.ne.s32.totalorder %s1008, %s1024
      %p1026 = scmp.eq.s32.totalorder %s95, 0
      %p1027 = por %p1025, %p1026
      %s1028 = ssub.s32 %s89, %s96
      %p1029 = scmp.eq.s32.totalorder %s1028, 0
      %s1031 = sadd.s32 %s1030, 1
      %s1032 = scalar_select %p1029, %s1030, %s1031
      %p1035 = pneg %p1029
      %p1036 = scmp.eq.s32.totalorder %s89, 2
      %p1037 = por %p1035, %p1036
      %p1038 = scmp.ne.s32.totalorder %s1030, %s1033
      %p1039 = scmp.eq.s32.totalorder %s89, 0
      %p1040 = por %p1038, %p1039
      %p1041 = scmp.ne.s32.totalorder %s1030, %s1033
      %p1042 = scmp.eq.s32.totalorder %s94, 2
      %p1043 = por %p1041, %p1042
      %p1044 = scmp.ne.s32.totalorder %s1033, %s1034
      %p1045 = scmp.eq.s32.totalorder %s94, 0
      %p1046 = por %p1044, %p1045
      %p1047 = scmp.ne.s32.totalorder %s1033, %s1034
      %p1048 = scmp.eq.s32.totalorder %s95, 2
      %p1049 = por %p1047, %p1048
      %p1051 = scmp.ne.s32.totalorder %s1034, %s1050
      %p1052 = scmp.eq.s32.totalorder %s95, 0
      %p1053 = por %p1051, %p1052
      %p1054 = scmp.le.s32.totalorder 1, %s89
      %p1055 = scmp.lt.s32.totalorder %s89, 4
      %p1056 = pnand %p1054, %p1055
      %p1057 = pneg %p1056
      // Predicated region
      $region9: #{forward.1} parent=5 // pred_check
        _
      $region10: #{forward.1} parent=5 // pred_check_branch
        %1059 = sbr.rel (%p1056) target = $region12
      $region11: #{forward.1} parent=5 // pred_region
        %s1060 = ssub.s32 %s89, 1
        // Predicated region
        $region13: #{forward.1} parent=11 // pred_check
          %p1061 = pneg %p188
        $region14: #{forward.1} parent=11 // pred_check_branch
          %1063 = sbr.rel (%p1061) target = $region16
        $region15: #{forward.1} parent=11 // pred_region
          %s1065 = ssub.s32 32, 32
          %1066 = vsyncadd [#allocation9], %s1065
          %s1068 = sshll.u32 [#allocation8], 4
          %s1069 = int_to_ptr.vmem [resolvable:$true] %s1068
          %1071 = dma.hbm_to_vmem [thread:$0]  %s7, 32, %s1069, [#allocation9]
        $region16: #{forward.1} parent=11 // pred_fallthru
          _
      $region12: #{forward.1} parent=5 // pred_fallthru
        _
      %p1072 = scmp.lt.s32.totalorder %s89, 3
      // Predicated region
      $region17: #{forward.1} parent=5 // pred_check
        %p1073 = pneg %p1072
      $region18: #{forward.1} parent=5 // pred_check_branch
        %1075 = sbr.rel (%p1073) target = $region20
      $region19: #{forward.1} parent=5 // pred_region
        // Predicated region
        $region21: #{forward.1} parent=19 // pred_check
          %p1076 = pneg %p109
        $region22: #{forward.1} parent=19 // pred_check_branch
          %1078 = sbr.rel (%p1076) target = $region24
        $region23: #{forward.1} parent=19 // pred_region
          %s1079 = sand.u32 %s89, 1
          %s1080 = scalar_lea.sflag [#allocation3], %s1079
          %s1081 = sand.u32 %s99, 1
          %s1082 = smul.addr %s1081, 16
          %s1083 = scalar_lea.vmem [#allocation2], %s1082
          %s1085 = ssub.s32 256, 256
          %1086 = vsyncadd %s1080, %s1085
          %s1087 = smul.addr %s89, 2
          %s1088 = smul.addr %s1087, 128
          %s1089 = scalar_lea.hbm %s1, %s1088
          %s1090 = sshll.u32 %s1083, 4
          %s1091 = int_to_ptr.vmem [resolvable:$true] %s1090
          %1096 = dma.hbm_to_vmem [thread:$0]  %s1089, 256, %s1091, %s1080, 128, 128, 8
        $region24: #{forward.1} parent=19 // pred_fallthru
          _
        // Predicated region
        $region25: #{forward.1} parent=19 // pred_check
          %p1097 = pneg %p135
        $region26: #{forward.1} parent=19 // pred_check_branch
          %1099 = sbr.rel (%p1097) target = $region28
        $region27: #{forward.1} parent=19 // pred_region
          %s1100 = sand.u32 %s89, 1
          %s1101 = scalar_lea.sflag [#allocation6], %s1100
          %s1102 = sand.u32 %s125, 1
          %s1103 = smul.addr %s1102, 256
          %s1104 = scalar_lea.vmem [#allocation5], %s1103
          %s1106 = ssub.s32 4096, 4096
          %1107 = vsyncadd %s1101, %s1106
          %s1108 = smul.addr %s89, 32
          %s1109 = smul.addr %s1108, 128
          %s1110 = scalar_lea.hbm %s3, %s1109
          %s1111 = sshll.u32 %s1104, 4
          %s1112 = int_to_ptr.vmem [resolvable:$true] %s1111
          %1117 = dma.hbm_to_vmem [thread:$0]  %s1110, 4096, %s1112, %s1101, 128, 128, 8
        $region28: #{forward.1} parent=19 // pred_fallthru
          _
        // Predicated region
        $region29: #{forward.1} parent=19 // pred_check
          %p1118 = pneg %p161
        $region30: #{forward.1} parent=19 // pred_check_branch
          %1120 = sbr.rel (%p1118) target = $region32
        $region31: #{forward.1} parent=19 // pred_region
          %s1121 = sand.u32 %s89, 1
          %s1122 = scalar_lea.sflag [#allocation6], %s1121
          %s1123 = sand.u32 %s151, 1
          %s1124 = smul.addr %s1123, 16
          %s1125 = scalar_lea.vmem [#allocation7], %s1124
          %s1127 = ssub.s32 256, 256
          %1128 = vsyncadd %s1122, %s1127
          %s1129 = smul.addr %s89, 2
          %s1130 = smul.addr %s1129, 128
          %s1131 = scalar_lea.hbm %s5, %s1130
          %s1132 = sshll.u32 %s1125, 4
          %s1133 = int_to_ptr.vmem [resolvable:$true] %s1132
          %1138 = dma.hbm_to_vmem [thread:$0]  %s1131, 256, %s1133, %s1122, 128, 128, 8
        $region32: #{forward.1} parent=19 // pred_fallthru
          _
        // Predicated region
        $region33: #{forward.1} parent=19 // pred_check
          %p1139 = pneg %p208
        $region34: #{forward.1} parent=19 // pred_check_branch
          %1141 = sbr.rel (%p1139) target = $region36
        $region35: #{forward.1} parent=19 // pred_region
          %s1142 = sand.u32 %s89, 1
          %s1143 = scalar_lea.sflag [#allocation3], %s1142
          %s1144 = sand.u32 %s198, 1
          %s1145 = smul.addr %s1144, 8
          %s1146 = scalar_lea.vmem [#allocation10], %s1145
          %s1148 = ssub.s32 128, 128
          %1149 = vsyncadd %s1143, %s1148
          %s1150 = smul.addr %s89, 128
          %s1151 = scalar_lea.hbm %s9, %s1150
          %s1153 = sshll.u32 %s1146, 4
          %s1154 = int_to_ptr.vmem [resolvable:$true] %s1153
          %1156 = dma.hbm_to_vmem [thread:$0]  %s1151, 128, %s1154, %s1143
        $region36: #{forward.1} parent=19 // pred_fallthru
          _
        // Predicated region
        $region37: #{forward.1} parent=19 // pred_check
          %p1157 = pneg %p234
        $region38: #{forward.1} parent=19 // pred_check_branch
          %1159 = sbr.rel (%p1157) target = $region40
        $region39: #{forward.1} parent=19 // pred_region
          %s1160 = sand.u32 %s89, 1
          %s1161 = scalar_lea.sflag [#allocation6], %s1160
          %s1162 = sand.u32 %s224, 1
          %s1163 = scalar_lea.vmem [#allocation11], %s1162
          %s1165 = ssub.s32 16, 16
          %1166 = vsyncadd %s1161, %s1165
          %s1167 = smul.addr %s89, 16
          %s1168 = scalar_lea.hbm %s11, %s1167
          %s1170 = sshll.u32 %s1163, 4
          %s1171 = int_to_ptr.vmem [resolvable:$true] %s1170
          %1173 = dma.hbm_to_vmem [thread:$0]  %s1168, 16, %s1171, %s1161
        $region40: #{forward.1} parent=19 // pred_fallthru
          _
        // Predicated region
        $region41: #{forward.1} parent=19 // pred_check
          %p1174 = pneg %p260
        $region42: #{forward.1} parent=19 // pred_check_branch
          %1176 = sbr.rel (%p1174) target = $region44
        $region43: #{forward.1} parent=19 // pred_region
          %s1177 = sand.u32 %s89, 1
          %s1178 = scalar_lea.sflag [#allocation3], %s1177
          %s1179 = sand.u32 %s250, 1
          %s1180 = smul.addr %s1179, 8
          %s1181 = scalar_lea.vmem [#allocation12], %s1180
          %s1183 = ssub.s32 128, 128
          %1184 = vsyncadd %s1178, %s1183
          %s1185 = smul.addr %s89, 128
          %s1186 = scalar_lea.hbm %s13, %s1185
          %s1188 = sshll.u32 %s1181, 4
          %s1189 = int_to_ptr.vmem [resolvable:$true] %s1188
          %1191 = dma.hbm_to_vmem [thread:$0]  %s1186, 128, %s1189, %s1178
        $region44: #{forward.1} parent=19 // pred_fallthru
          _
        // Predicated region
        $region45: #{forward.1} parent=19 // pred_check
          %p1192 = pneg %p286
        $region46: #{forward.1} parent=19 // pred_check_branch
          %1194 = sbr.rel (%p1192) target = $region48
        $region47: #{forward.1} parent=19 // pred_region
          %s1195 = sand.u32 %s89, 1
          %s1196 = scalar_lea.sflag [#allocation6], %s1195
          %s1197 = sand.u32 %s276, 1
          %s1198 = smul.addr %s1197, 8
          %s1199 = scalar_lea.vmem [#allocation13], %s1198
          %s1201 = ssub.s32 128, 128
          %1202 = vsyncadd %s1196, %s1201
          %s1203 = smul.addr %s89, 128
          %s1204 = scalar_lea.hbm %s15, %s1203
          %s1206 = sshll.u32 %s1199, 4
          %s1207 = int_to_ptr.vmem [resolvable:$true] %s1206
          %1209 = dma.hbm_to_vmem [thread:$0]  %s1204, 128, %s1207, %s1196
        $region48: #{forward.1} parent=19 // pred_fallthru
          _
        // Predicated region
        $region49: #{forward.1} parent=19 // pred_check
          %p1210 = pneg %p312
        $region50: #{forward.1} parent=19 // pred_check_branch
          %1212 = sbr.rel (%p1210) target = $region52
        $region51: #{forward.1} parent=19 // pred_region
          %s1213 = sand.u32 %s89, 1
          %s1214 = scalar_lea.sflag [#allocation3], %s1213
          %s1215 = sand.u32 %s302, 1
          %s1216 = scalar_lea.vmem [#allocation14], %s1215
          %s1218 = ssub.s32 16, 16
          %1219 = vsyncadd %s1214, %s1218
          %s1220 = smul.addr %s89, 16
          %s1221 = scalar_lea.hbm %s17, %s1220
          %s1223 = sshll.u32 %s1216, 4
          %s1224 = int_to_ptr.vmem [resolvable:$true] %s1223
          %1226 = dma.hbm_to_vmem [thread:$0]  %s1221, 16, %s1224, %s1214
        $region52: #{forward.1} parent=19 // pred_fallthru
          _
        // Predicated region
        $region53: #{forward.1} parent=19 // pred_check
          %p1227 = pneg %p338
        $region54: #{forward.1} parent=19 // pred_check_branch
          %1229 = sbr.rel (%p1227) target = $region56
        $region55: #{forward.1} parent=19 // pred_region
          %s1230 = sand.u32 %s89, 1
          %s1231 = scalar_lea.sflag [#allocation6], %s1230
          %s1232 = sand.u32 %s328, 1
          %s1233 = smul.addr %s1232, 128
          %s1234 = scalar_lea.vmem [#allocation15], %s1233
          %s1236 = ssub.s32 2048, 2048
          %1237 = vsyncadd %s1231, %s1236
          %s1238 = smul.addr %s89, 16
          %s1239 = smul.addr %s1238, 128
          %s1240 = scalar_lea.hbm %s19, %s1239
          %s1241 = sshll.u32 %s1234, 4
          %s1242 = int_to_ptr.vmem [resolvable:$true] %s1241
          %1247 = dma.hbm_to_vmem [thread:$0]  %s1240, 2048, %s1242, %s1231, 128, 128, 8
        $region56: #{forward.1} parent=19 // pred_fallthru
          _
        // Predicated region
        $region57: #{forward.1} parent=19 // pred_check
          %p1248 = pneg %p364
        $region58: #{forward.1} parent=19 // pred_check_branch
          %1250 = sbr.rel (%p1248) target = $region60
        $region59: #{forward.1} parent=19 // pred_region
          %s1251 = sand.u32 %s89, 1
          %s1252 = scalar_lea.sflag [#allocation3], %s1251
          %s1253 = sand.u32 %s354, 1
          %s1254 = scalar_lea.vmem [#allocation16], %s1253
          %s1256 = ssub.s32 16, 16
          %1257 = vsyncadd %s1252, %s1256
          %s1258 = smul.addr %s89, 16
          %s1259 = scalar_lea.hbm %s21, %s1258
          %s1261 = sshll.u32 %s1254, 4
          %s1262 = int_to_ptr.vmem [resolvable:$true] %s1261
          %1264 = dma.hbm_to_vmem [thread:$0]  %s1259, 16, %s1262, %s1252
        $region60: #{forward.1} parent=19 // pred_fallthru
          _
        // Predicated region
        $region61: #{forward.1} parent=19 // pred_check
          %p1265 = pneg %p390
        $region62: #{forward.1} parent=19 // pred_check_branch
          %1267 = sbr.rel (%p1265) target = $region64
        $region63: #{forward.1} parent=19 // pred_region
          %s1268 = sand.u32 %s89, 1
          %s1269 = scalar_lea.sflag [#allocation6], %s1268
          %s1270 = sand.u32 %s380, 1
          %s1271 = scalar_lea.vmem [#allocation17], %s1270
          %s1273 = ssub.s32 16, 16
          %1274 = vsyncadd %s1269, %s1273
          %s1275 = smul.addr %s89, 16
          %s1276 = scalar_lea.hbm %s23, %s1275
          %s1278 = sshll.u32 %s1271, 4
          %s1279 = int_to_ptr.vmem [resolvable:$true] %s1278
          %1281 = dma.hbm_to_vmem [thread:$0]  %s1276, 16, %s1279, %s1269
        $region64: #{forward.1} parent=19 // pred_fallthru
          _
        // Predicated region
        $region65: #{forward.1} parent=19 // pred_check
          %p1282 = pneg %p416
        $region66: #{forward.1} parent=19 // pred_check_branch
          %1284 = sbr.rel (%p1282) target = $region68
        $region67: #{forward.1} parent=19 // pred_region
          %s1285 = sand.u32 %s89, 1
          %s1286 = scalar_lea.sflag [#allocation3], %s1285
          %s1287 = sand.u32 %s406, 1
          %s1288 = smul.addr %s1287, 128
          %s1289 = scalar_lea.vmem [#allocation18], %s1288
          %s1291 = ssub.s32 2048, 2048
          %1292 = vsyncadd %s1286, %s1291
          %s1293 = smul.addr %s89, 16
          %s1294 = smul.addr %s1293, 128
          %s1295 = scalar_lea.hbm %s25, %s1294
          %s1296 = sshll.u32 %s1289, 4
          %s1297 = int_to_ptr.vmem [resolvable:$true] %s1296
          %1302 = dma.hbm_to_vmem [thread:$0]  %s1295, 2048, %s1297, %s1286, 128, 128, 8
        $region68: #{forward.1} parent=19 // pred_fallthru
          _
        // Predicated region
        $region69: #{forward.1} parent=19 // pred_check
          %p1303 = pneg %p442
        $region70: #{forward.1} parent=19 // pred_check_branch
          %1305 = sbr.rel (%p1303) target = $region72
        $region71: #{forward.1} parent=19 // pred_region
          %s1306 = sand.u32 %s89, 1
          %s1307 = scalar_lea.sflag [#allocation6], %s1306
          %s1308 = sand.u32 %s432, 1
          %s1309 = scalar_lea.vmem [#allocation19], %s1308
          %s1311 = ssub.s32 16, 16
          %1312 = vsyncadd %s1307, %s1311
          %s1313 = smul.addr %s89, 16
          %s1314 = scalar_lea.hbm %s27, %s1313
          %s1316 = sshll.u32 %s1309, 4
          %s1317 = int_to_ptr.vmem [resolvable:$true] %s1316
          %1319 = dma.hbm_to_vmem [thread:$0]  %s1314, 16, %s1317, %s1307
        $region72: #{forward.1} parent=19 // pred_fallthru
          _
        // Predicated region
        $region73: #{forward.1} parent=19 // pred_check
          %p1320 = pneg %p468
        $region74: #{forward.1} parent=19 // pred_check_branch
          %1322 = sbr.rel (%p1320) target = $region76
        $region75: #{forward.1} parent=19 // pred_region
          %s1323 = sand.u32 %s89, 1
          %s1324 = scalar_lea.sflag [#allocation3], %s1323
          %s1325 = sand.u32 %s458, 1
          %s1326 = smul.addr %s1325, 384
          %s1327 = scalar_lea.vmem [#allocation20], %s1326
          %s1329 = ssub.s32 6144, 6144
          %1330 = vsyncadd %s1324, %s1329
          %s1331 = smul.addr %s89, 48
          %s1332 = smul.addr %s1331, 128
          %s1333 = scalar_lea.hbm %s29, %s1332
          %s1334 = sshll.u32 %s1327, 4
          %s1335 = int_to_ptr.vmem [resolvable:$true] %s1334
          %1340 = dma.hbm_to_vmem [thread:$0]  %s1333, 6144, %s1335, %s1324, 384, 384, 24
        $region76: #{forward.1} parent=19 // pred_fallthru
          _
        // Predicated region
        $region77: #{forward.1} parent=19 // pred_check
          %p1341 = pneg %p494
        $region78: #{forward.1} parent=19 // pred_check_branch
          %1343 = sbr.rel (%p1341) target = $region80
        $region79: #{forward.1} parent=19 // pred_region
          %s1344 = sand.u32 %s89, 1
          %s1345 = scalar_lea.sflag [#allocation6], %s1344
          %s1346 = sand.u32 %s484, 1
          %s1347 = smul.addr %s1346, 384
          %s1348 = scalar_lea.vmem [#allocation21], %s1347
          %s1350 = ssub.s32 6144, 6144
          %1351 = vsyncadd %s1345, %s1350
          %s1352 = smul.addr %s89, 48
          %s1353 = smul.addr %s1352, 128
          %s1354 = scalar_lea.hbm %s31, %s1353
          %s1355 = sshll.u32 %s1348, 4
          %s1356 = int_to_ptr.vmem [resolvable:$true] %s1355
          %1361 = dma.hbm_to_vmem [thread:$0]  %s1354, 6144, %s1356, %s1345, 384, 384, 24
        $region80: #{forward.1} parent=19 // pred_fallthru
          _
        // Predicated region
        $region81: #{forward.1} parent=19 // pred_check
          %p1362 = pneg %p520
        $region82: #{forward.1} parent=19 // pred_check_branch
          %1364 = sbr.rel (%p1362) target = $region84
        $region83: #{forward.1} parent=19 // pred_region
          %s1365 = sand.u32 %s89, 1
          %s1366 = scalar_lea.sflag [#allocation3], %s1365
          %s1367 = sand.u32 %s510, 1
          %s1368 = smul.addr %s1367, 3
          %s1369 = scalar_lea.vmem [#allocation22], %s1368
          %s1371 = ssub.s32 48, 48
          %1372 = vsyncadd %s1366, %s1371
          %s1373 = smul.addr %s89, 3
          %s1374 = smul.addr %s1373, 16
          %s1375 = scalar_lea.hbm %s33, %s1374
          %s1377 = sshll.u32 %s1369, 4
          %s1378 = int_to_ptr.vmem [resolvable:$true] %s1377
          %1380 = dma.hbm_to_vmem [thread:$0]  %s1375, 48, %s1378, %s1366
        $region84: #{forward.1} parent=19 // pred_fallthru
          _
        // Predicated region
        $region85: #{forward.1} parent=19 // pred_check
          %p1381 = pneg %p546
        $region86: #{forward.1} parent=19 // pred_check_branch
          %1383 = sbr.rel (%p1381) target = $region88
        $region87: #{forward.1} parent=19 // pred_region
          %s1384 = sand.u32 %s89, 1
          %s1385 = scalar_lea.sflag [#allocation6], %s1384
          %s1386 = sand.u32 %s536, 1
          %s1387 = smul.addr %s1386, 3
          %s1388 = scalar_lea.vmem [#allocation23], %s1387
          %s1390 = ssub.s32 48, 48
          %1391 = vsyncadd %s1385, %s1390
          %s1392 = smul.addr %s89, 3
          %s1393 = smul.addr %s1392, 16
          %s1394 = scalar_lea.hbm %s35, %s1393
          %s1396 = sshll.u32 %s1388, 4
          %s1397 = int_to_ptr.vmem [resolvable:$true] %s1396
          %1399 = dma.hbm_to_vmem [thread:$0]  %s1394, 48, %s1397, %s1385
        $region88: #{forward.1} parent=19 // pred_fallthru
          _
        // Predicated region
        $region89: #{forward.1} parent=19 // pred_check
          %p1400 = pneg %p572
        $region90: #{forward.1} parent=19 // pred_check_branch
          %1402 = sbr.rel (%p1400) target = $region92
        $region91: #{forward.1} parent=19 // pred_region
          %s1403 = sand.u32 %s89, 1
          %s1404 = scalar_lea.sflag [#allocation3], %s1403
          %s1405 = sand.u32 %s562, 1
          %s1406 = smul.addr %s1405, 256
          %s1407 = scalar_lea.vmem [#allocation24], %s1406
          %s1409 = ssub.s32 4096, 4096
          %1410 = vsyncadd %s1404, %s1409
          %s1411 = smul.addr %s89, 32
          %s1412 = smul.addr %s1411, 128
          %s1413 = scalar_lea.hbm %s37, %s1412
          %s1414 = sshll.u32 %s1407, 4
          %s1415 = int_to_ptr.vmem [resolvable:$true] %s1414
          %1420 = dma.hbm_to_vmem [thread:$0]  %s1413, 4096, %s1415, %s1404, 128, 128, 8
        $region92: #{forward.1} parent=19 // pred_fallthru
          _
        // Predicated region
        $region93: #{forward.1} parent=19 // pred_check
          %p1421 = pneg %p598
        $region94: #{forward.1} parent=19 // pred_check_branch
          %1423 = sbr.rel (%p1421) target = $region96
        $region95: #{forward.1} parent=19 // pred_region
          %s1424 = sand.u32 %s89, 1
          %s1425 = scalar_lea.sflag [#allocation6], %s1424
          %s1426 = sand.u32 %s588, 1
          %s1427 = smul.addr %s1426, 2
          %s1428 = scalar_lea.vmem [#allocation25], %s1427
          %s1430 = ssub.s32 32, 32
          %1431 = vsyncadd %s1425, %s1430
          %s1432 = smul.addr %s89, 2
          %s1433 = smul.addr %s1432, 16
          %s1434 = scalar_lea.hbm %s39, %s1433
          %s1435 = sshll.u32 %s1428, 4
          %s1436 = int_to_ptr.vmem [resolvable:$true] %s1435
          %1441 = dma.hbm_to_vmem [thread:$0]  %s1434, 32, %s1436, %s1425, 16, 16, 1
        $region96: #{forward.1} parent=19 // pred_fallthru
          _
        // Predicated region
        $region97: #{forward.1} parent=19 // pred_check
          %p1442 = pneg %p624
        $region98: #{forward.1} parent=19 // pred_check_branch
          %1444 = sbr.rel (%p1442) target = $region100
        $region99: #{forward.1} parent=19 // pred_region
          %s1445 = sand.u32 %s89, 1
          %s1446 = scalar_lea.sflag [#allocation3], %s1445
          %s1447 = sand.u32 %s614, 1
          %s1448 = smul.addr %s1447, 2
          %s1449 = scalar_lea.vmem [#allocation26], %s1448
          %s1451 = ssub.s32 32, 32
          %1452 = vsyncadd %s1446, %s1451
          %s1453 = smul.addr %s89, 2
          %s1454 = smul.addr %s1453, 16
          %s1455 = scalar_lea.hbm %s41, %s1454
          %s1456 = sshll.u32 %s1449, 4
          %s1457 = int_to_ptr.vmem [resolvable:$true] %s1456
          %1462 = dma.hbm_to_vmem [thread:$0]  %s1455, 32, %s1457, %s1446, 16, 16, 1
        $region100: #{forward.1} parent=19 // pred_fallthru
          _
        // Predicated region
        $region101: #{forward.1} parent=19 // pred_check
          %p1463 = pneg %p650
        $region102: #{forward.1} parent=19 // pred_check_branch
          %1465 = sbr.rel (%p1463) target = $region104
        $region103: #{forward.1} parent=19 // pred_region
          %s1466 = sand.u32 %s89, 1
          %s1467 = scalar_lea.sflag [#allocation6], %s1466
          %s1468 = sand.u32 %s640, 1
          %s1469 = smul.addr %s1468, 256
          %s1470 = scalar_lea.vmem [#allocation27], %s1469
          %s1472 = ssub.s32 4096, 4096
          %1473 = vsyncadd %s1467, %s1472
          %s1474 = smul.addr %s89, 32
          %s1475 = smul.addr %s1474, 128
          %s1476 = scalar_lea.hbm %s43, %s1475
          %s1477 = sshll.u32 %s1470, 4
          %s1478 = int_to_ptr.vmem [resolvable:$true] %s1477
          %1483 = dma.hbm_to_vmem [thread:$0]  %s1476, 4096, %s1478, %s1467, 128, 128, 8
        $region104: #{forward.1} parent=19 // pred_fallthru
          _
        // Predicated region
        $region105: #{forward.1} parent=19 // pred_check
          %p1484 = pneg %p676
        $region106: #{forward.1} parent=19 // pred_check_branch
          %1486 = sbr.rel (%p1484) target = $region108
        $region107: #{forward.1} parent=19 // pred_region
          %s1487 = sand.u32 %s89, 1
          %s1488 = scalar_lea.sflag [#allocation3], %s1487
          %s1489 = sand.u32 %s666, 1
          %s1490 = smul.addr %s1489, 2
          %s1491 = scalar_lea.vmem [#allocation28], %s1490
          %s1493 = ssub.s32 32, 32
          %1494 = vsyncadd %s1488, %s1493
          %s1495 = smul.addr %s89, 2
          %s1496 = smul.addr %s1495, 16
          %s1497 = scalar_lea.hbm %s45, %s1496
          %s1498 = sshll.u32 %s1491, 4
          %s1499 = int_to_ptr.vmem [resolvable:$true] %s1498
          %1504 = dma.hbm_to_vmem [thread:$0]  %s1497, 32, %s1499, %s1488, 16, 16, 1
        $region108: #{forward.1} parent=19 // pred_fallthru
          _
        // Predicated region
        $region109: #{forward.1} parent=19 // pred_check
          %p1505 = pneg %p702
        $region110: #{forward.1} parent=19 // pred_check_branch
          %1507 = sbr.rel (%p1505) target = $region112
        $region111: #{forward.1} parent=19 // pred_region
          %s1508 = sand.u32 %s89, 1
          %s1509 = scalar_lea.sflag [#allocation6], %s1508
          %s1510 = sand.u32 %s692, 1
          %s1511 = smul.addr %s1510, 768
          %s1512 = scalar_lea.vmem [#allocation29], %s1511
          %s1514 = ssub.s32 12288, 12288
          %1515 = vsyncadd %s1509, %s1514
          %s1516 = smul.addr %s89, 96
          %s1517 = smul.addr %s1516, 128
          %s1518 = scalar_lea.hbm %s47, %s1517
          %s1519 = sshll.u32 %s1512, 4
          %s1520 = int_to_ptr.vmem [resolvable:$true] %s1519
          %1525 = dma.hbm_to_vmem [thread:$0]  %s1518, 12288, %s1520, %s1509, 384, 384, 24
        $region112: #{forward.1} parent=19 // pred_fallthru
          _
        // Predicated region
        $region113: #{forward.1} parent=19 // pred_check
          %p1526 = pneg %p728
        $region114: #{forward.1} parent=19 // pred_check_branch
          %1528 = sbr.rel (%p1526) target = $region116
        $region115: #{forward.1} parent=19 // pred_region
          %s1529 = sand.u32 %s89, 1
          %s1530 = scalar_lea.sflag [#allocation3], %s1529
          %s1531 = sand.u32 %s718, 1
          %s1532 = smul.addr %s1531, 768
          %s1533 = scalar_lea.vmem [#allocation30], %s1532
          %s1535 = ssub.s32 12288, 12288
          %1536 = vsyncadd %s1530, %s1535
          %s1537 = smul.addr %s89, 96
          %s1538 = smul.addr %s1537, 128
          %s1539 = scalar_lea.hbm %s49, %s1538
          %s1540 = sshll.u32 %s1533, 4
          %s1541 = int_to_ptr.vmem [resolvable:$true] %s1540
          %1546 = dma.hbm_to_vmem [thread:$0]  %s1539, 12288, %s1541, %s1530, 384, 384, 24
        $region116: #{forward.1} parent=19 // pred_fallthru
          _
        // Predicated region
        $region117: #{forward.1} parent=19 // pred_check
          %p1547 = pneg %p754
        $region118: #{forward.1} parent=19 // pred_check_branch
          %1549 = sbr.rel (%p1547) target = $region120
        $region119: #{forward.1} parent=19 // pred_region
          %s1550 = sand.u32 %s89, 1
          %s1551 = scalar_lea.sflag [#allocation6], %s1550
          %s1552 = sand.u32 %s744, 1
          %s1553 = smul.addr %s1552, 6
          %s1554 = scalar_lea.vmem [#allocation31], %s1553
          %s1556 = ssub.s32 96, 96
          %1557 = vsyncadd %s1551, %s1556
          %s1558 = smul.addr %s89, 6
          %s1559 = smul.addr %s1558, 16
          %s1560 = scalar_lea.hbm %s51, %s1559
          %s1561 = sshll.u32 %s1554, 4
          %s1562 = int_to_ptr.vmem [resolvable:$true] %s1561
          %1567 = dma.hbm_to_vmem [thread:$0]  %s1560, 96, %s1562, %s1551, 48, 48, 3
        $region120: #{forward.1} parent=19 // pred_fallthru
          _
        // Predicated region
        $region121: #{forward.1} parent=19 // pred_check
          %p1568 = pneg %p780
        $region122: #{forward.1} parent=19 // pred_check_branch
          %1570 = sbr.rel (%p1568) target = $region124
        $region123: #{forward.1} parent=19 // pred_region
          %s1571 = sand.u32 %s89, 1
          %s1572 = scalar_lea.sflag [#allocation3], %s1571
          %s1573 = sand.u32 %s770, 1
          %s1574 = smul.addr %s1573, 6
          %s1575 = scalar_lea.vmem [#allocation32], %s1574
          %s1577 = ssub.s32 96, 96
          %1578 = vsyncadd %s1572, %s1577
          %s1579 = smul.addr %s89, 6
          %s1580 = smul.addr %s1579, 16
          %s1581 = scalar_lea.hbm %s53, %s1580
          %s1582 = sshll.u32 %s1575, 4
          %s1583 = int_to_ptr.vmem [resolvable:$true] %s1582
          %1588 = dma.hbm_to_vmem [thread:$0]  %s1581, 96, %s1583, %s1572, 48, 48, 3
        $region124: #{forward.1} parent=19 // pred_fallthru
          _
        // Predicated region
        $region125: #{forward.1} parent=19 // pred_check
          %p1589 = pneg %p806
        $region126: #{forward.1} parent=19 // pred_check_branch
          %1591 = sbr.rel (%p1589) target = $region128
        $region127: #{forward.1} parent=19 // pred_region
          %s1592 = sand.u32 %s89, 1
          %s1593 = scalar_lea.sflag [#allocation6], %s1592
          %s1594 = sand.u32 %s796, 1
          %s1595 = smul.addr %s1594, 256
          %s1596 = scalar_lea.vmem [#allocation33], %s1595
          %s1598 = ssub.s32 4096, 4096
          %1599 = vsyncadd %s1593, %s1598
          %s1600 = smul.addr %s89, 32
          %s1601 = smul.addr %s1600, 128
          %s1602 = scalar_lea.hbm %s55, %s1601
          %s1603 = sshll.u32 %s1596, 4
          %s1604 = int_to_ptr.vmem [resolvable:$true] %s1603
          %1609 = dma.hbm_to_vmem [thread:$0]  %s1602, 4096, %s1604, %s1593, 128, 128, 8
        $region128: #{forward.1} parent=19 // pred_fallthru
          _
        // Predicated region
        $region129: #{forward.1} parent=19 // pred_check
          %p1610 = pneg %p832
        $region130: #{forward.1} parent=19 // pred_check_branch
          %1612 = sbr.rel (%p1610) target = $region132
        $region131: #{forward.1} parent=19 // pred_region
          %s1613 = sand.u32 %s89, 1
          %s1614 = scalar_lea.sflag [#allocation3], %s1613
          %s1615 = sand.u32 %s822, 1
          %s1616 = smul.addr %s1615, 2
          %s1617 = scalar_lea.vmem [#allocation34], %s1616
          %s1619 = ssub.s32 32, 32
          %1620 = vsyncadd %s1614, %s1619
          %s1621 = smul.addr %s89, 2
          %s1622 = smul.addr %s1621, 16
          %s1623 = scalar_lea.hbm %s57, %s1622
          %s1624 = sshll.u32 %s1617, 4
          %s1625 = int_to_ptr.vmem [resolvable:$true] %s1624
          %1630 = dma.hbm_to_vmem [thread:$0]  %s1623, 32, %s1625, %s1614, 16, 16, 1
        $region132: #{forward.1} parent=19 // pred_fallthru
          _
        // Predicated region
        $region133: #{forward.1} parent=19 // pred_check
          %p1631 = pneg %p858
        $region134: #{forward.1} parent=19 // pred_check_branch
          %1633 = sbr.rel (%p1631) target = $region136
        $region135: #{forward.1} parent=19 // pred_region
          %s1634 = sand.u32 %s89, 1
          %s1635 = scalar_lea.sflag [#allocation6], %s1634
          %s1636 = sand.u32 %s848, 1
          %s1637 = smul.addr %s1636, 2
          %s1638 = scalar_lea.vmem [#allocation35], %s1637
          %s1640 = ssub.s32 32, 32
          %1641 = vsyncadd %s1635, %s1640
          %s1642 = smul.addr %s89, 2
          %s1643 = smul.addr %s1642, 16
          %s1644 = scalar_lea.hbm %s59, %s1643
          %s1645 = sshll.u32 %s1638, 4
          %s1646 = int_to_ptr.vmem [resolvable:$true] %s1645
          %1651 = dma.hbm_to_vmem [thread:$0]  %s1644, 32, %s1646, %s1635, 16, 16, 1
        $region136: #{forward.1} parent=19 // pred_fallthru
          _
        // Predicated region
        $region137: #{forward.1} parent=19 // pred_check
          %p1652 = pneg %p884
        $region138: #{forward.1} parent=19 // pred_check_branch
          %1654 = sbr.rel (%p1652) target = $region140
        $region139: #{forward.1} parent=19 // pred_region
          %s1655 = sand.u32 %s89, 1
          %s1656 = scalar_lea.sflag [#allocation3], %s1655
          %s1657 = sand.u32 %s874, 1
          %s1658 = smul.addr %s1657, 256
          %s1659 = scalar_lea.vmem [#allocation36], %s1658
          %s1661 = ssub.s32 4096, 4096
          %1662 = vsyncadd %s1656, %s1661
          %s1663 = smul.addr %s89, 32
          %s1664 = smul.addr %s1663, 128
          %s1665 = scalar_lea.hbm %s61, %s1664
          %s1666 = sshll.u32 %s1659, 4
          %s1667 = int_to_ptr.vmem [resolvable:$true] %s1666
          %1672 = dma.hbm_to_vmem [thread:$0]  %s1665, 4096, %s1667, %s1656, 128, 128, 8
        $region140: #{forward.1} parent=19 // pred_fallthru
          _
        // Predicated region
        $region141: #{forward.1} parent=19 // pred_check
          %p1673 = pneg %p910
        $region142: #{forward.1} parent=19 // pred_check_branch
          %1675 = sbr.rel (%p1673) target = $region144
        $region143: #{forward.1} parent=19 // pred_region
          %s1676 = sand.u32 %s89, 1
          %s1677 = scalar_lea.sflag [#allocation6], %s1676
          %s1678 = sand.u32 %s900, 1
          %s1679 = smul.addr %s1678, 2
          %s1680 = scalar_lea.vmem [#allocation37], %s1679
          %s1682 = ssub.s32 32, 32
          %1683 = vsyncadd %s1677, %s1682
          %s1684 = smul.addr %s89, 2
          %s1685 = smul.addr %s1684, 16
          %s1686 = scalar_lea.hbm %s63, %s1685
          %s1687 = sshll.u32 %s1680, 4
          %s1688 = int_to_ptr.vmem [resolvable:$true] %s1687
          %1693 = dma.hbm_to_vmem [thread:$0]  %s1686, 32, %s1688, %s1677, 16, 16, 1
        $region144: #{forward.1} parent=19 // pred_fallthru
          _
        // Predicated region
        $region145: #{forward.1} parent=19 // pred_check
          %p1694 = pneg %p936
        $region146: #{forward.1} parent=19 // pred_check_branch
          %1696 = sbr.rel (%p1694) target = $region148
        $region147: #{forward.1} parent=19 // pred_region
          %s1697 = sand.u32 %s89, 1
          %s1698 = scalar_lea.sflag [#allocation3], %s1697
          %s1699 = sand.u32 %s926, 1
          %s1700 = smul.addr %s1699, 768
          %s1701 = scalar_lea.vmem [#allocation38], %s1700
          %s1703 = ssub.s32 12288, 12288
          %1704 = vsyncadd %s1698, %s1703
          %s1705 = smul.addr %s89, 96
          %s1706 = smul.addr %s1705, 128
          %s1707 = scalar_lea.hbm %s65, %s1706
          %s1708 = sshll.u32 %s1701, 4
          %s1709 = int_to_ptr.vmem [resolvable:$true] %s1708
          %1714 = dma.hbm_to_vmem [thread:$0]  %s1707, 12288, %s1709, %s1698, 384, 384, 24
        $region148: #{forward.1} parent=19 // pred_fallthru
          _
        // Predicated region
        $region149: #{forward.1} parent=19 // pred_check
          %p1715 = pneg %p962
        $region150: #{forward.1} parent=19 // pred_check_branch
          %1717 = sbr.rel (%p1715) target = $region152
        $region151: #{forward.1} parent=19 // pred_region
          %s1718 = sand.u32 %s89, 1
          %s1719 = scalar_lea.sflag [#allocation6], %s1718
          %s1720 = sand.u32 %s952, 1
          %s1721 = smul.addr %s1720, 768
          %s1722 = scalar_lea.vmem [#allocation39], %s1721
          %s1724 = ssub.s32 12288, 12288
          %1725 = vsyncadd %s1719, %s1724
          %s1726 = smul.addr %s89, 96
          %s1727 = smul.addr %s1726, 128
          %s1728 = scalar_lea.hbm %s67, %s1727
          %s1729 = sshll.u32 %s1722, 4
          %s1730 = int_to_ptr.vmem [resolvable:$true] %s1729
          %1735 = dma.hbm_to_vmem [thread:$0]  %s1728, 12288, %s1730, %s1719, 384, 384, 24
        $region152: #{forward.1} parent=19 // pred_fallthru
          _
        // Predicated region
        $region153: #{forward.1} parent=19 // pred_check
          %p1736 = pneg %p988
        $region154: #{forward.1} parent=19 // pred_check_branch
          %1738 = sbr.rel (%p1736) target = $region156
        $region155: #{forward.1} parent=19 // pred_region
          %s1739 = sand.u32 %s89, 1
          %s1740 = scalar_lea.sflag [#allocation3], %s1739
          %s1741 = sand.u32 %s978, 1
          %s1742 = smul.addr %s1741, 6
          %s1743 = scalar_lea.vmem [#allocation40], %s1742
          %s1745 = ssub.s32 96, 96
          %1746 = vsyncadd %s1740, %s1745
          %s1747 = smul.addr %s89, 6
          %s1748 = smul.addr %s1747, 16
          %s1749 = scalar_lea.hbm %s69, %s1748
          %s1750 = sshll.u32 %s1743, 4
          %s1751 = int_to_ptr.vmem [resolvable:$true] %s1750
          %1756 = dma.hbm_to_vmem [thread:$0]  %s1749, 96, %s1751, %s1740, 48, 48, 3
        $region156: #{forward.1} parent=19 // pred_fallthru
          _
        // Predicated region
        $region157: #{forward.1} parent=19 // pred_check
          %p1757 = pneg %p1014
        $region158: #{forward.1} parent=19 // pred_check_branch
          %1759 = sbr.rel (%p1757) target = $region160
        $region159: #{forward.1} parent=19 // pred_region
          %s1760 = sand.u32 %s89, 1
          %s1761 = scalar_lea.sflag [#allocation6], %s1760
          %s1762 = sand.u32 %s1004, 1
          %s1763 = smul.addr %s1762, 6
          %s1764 = scalar_lea.vmem [#allocation41], %s1763
          %s1766 = ssub.s32 96, 96
          %1767 = vsyncadd %s1761, %s1766
          %s1768 = smul.addr %s89, 6
          %s1769 = smul.addr %s1768, 16
          %s1770 = scalar_lea.hbm %s71, %s1769
          %s1771 = sshll.u32 %s1764, 4
          %s1772 = int_to_ptr.vmem [resolvable:$true] %s1771
          %1777 = dma.hbm_to_vmem [thread:$0]  %s1770, 96, %s1772, %s1761, 48, 48, 3
        $region160: #{forward.1} parent=19 // pred_fallthru
          _
      $region20: #{forward.1} parent=5 // pred_fallthru
        _
      %p1778 = scmp.le.s32.totalorder 1, %s89
      %p1779 = scmp.lt.s32.totalorder %s89, 4
      %p1780 = pnand %p1778, %p1779
      %p1781 = pneg %p1780
      // Predicated region
      $region161: #{forward.1} parent=5 // pred_check
        _
      $region162: #{forward.1} parent=5 // pred_check_branch
        %1783 = sbr.rel (%p1780) target = $region164
      $region163: #{forward.1} parent=5 // pred_region
        %s1784 = ssub.s32 %s89, 1
        %s1785 = sand.u32 %s94, 1
        %s1786 = scalar_lea.sflag [#allocation3], %s1785
        %s1787 = sand.u32 %s102, 1
        %s1788 = smul.addr %s1787, 16
        %s1789 = scalar_lea.vmem [#allocation2], %s1788
        // Predicated region
        $region165: #{forward.1} parent=163 // pred_check
          %p1790 = pneg %p115
        $region166: #{forward.1} parent=163 // pred_check_branch
          %1792 = sbr.rel (%p1790) target = $region168
        $region167: #{forward.1} parent=163 // pred_region
          %1793 = dma.done %s1786, 256
        $region168: #{forward.1} parent=163 // pred_fallthru
          _
        %s1794 = sand.u32 %s94, 1
        %s1795 = scalar_lea.sflag [#allocation6], %s1794
        %s1796 = sand.u32 %s128, 1
        %s1797 = smul.addr %s1796, 256
        %s1798 = scalar_lea.vmem [#allocation5], %s1797
        // Predicated region
        $region169: #{forward.1} parent=163 // pred_check
          %p1799 = pneg %p141
        $region170: #{forward.1} parent=163 // pred_check_branch
          %1801 = sbr.rel (%p1799) target = $region172
        $region171: #{forward.1} parent=163 // pred_region
          %1802 = dma.done %s1795, 4096
        $region172: #{forward.1} parent=163 // pred_fallthru
          _
        %s1803 = sand.u32 %s94, 1
        %s1804 = scalar_lea.sflag [#allocation6], %s1803
        %s1805 = sand.u32 %s154, 1
        %s1806 = smul.addr %s1805, 16
        %s1807 = scalar_lea.vmem [#allocation7], %s1806
        // Predicated region
        $region173: #{forward.1} parent=163 // pred_check
          %p1808 = pneg %p167
        $region174: #{forward.1} parent=163 // pred_check_branch
          %1810 = sbr.rel (%p1808) target = $region176
        $region175: #{forward.1} parent=163 // pred_region
          %1811 = dma.done %s1804, 256
        $region176: #{forward.1} parent=163 // pred_fallthru
          _
        // Predicated region
        $region177: #{forward.1} parent=163 // pred_check
          %p1812 = pneg %p188
        $region178: #{forward.1} parent=163 // pred_check_branch
          %1814 = sbr.rel (%p1812) target = $region180
        $region179: #{forward.1} parent=163 // pred_region
          %1815 = dma.done [#allocation9], 32
        $region180: #{forward.1} parent=163 // pred_fallthru
          _
        %s1816 = sand.u32 %s94, 1
        %s1817 = scalar_lea.sflag [#allocation3], %s1816
        %s1818 = sand.u32 %s201, 1
        %s1819 = smul.addr %s1818, 8
        %s1820 = scalar_lea.vmem [#allocation10], %s1819
        // Predicated region
        $region181: #{forward.1} parent=163 // pred_check
          %p1821 = pneg %p214
        $region182: #{forward.1} parent=163 // pred_check_branch
          %1823 = sbr.rel (%p1821) target = $region184
        $region183: #{forward.1} parent=163 // pred_region
          %1824 = dma.done %s1817, 128
        $region184: #{forward.1} parent=163 // pred_fallthru
          _
        %s1825 = sand.u32 %s94, 1
        %s1826 = scalar_lea.sflag [#allocation6], %s1825
        %s1827 = sand.u32 %s227, 1
        %s1828 = scalar_lea.vmem [#allocation11], %s1827
        // Predicated region
        $region185: #{forward.1} parent=163 // pred_check
          %p1829 = pneg %p240
        $region186: #{forward.1} parent=163 // pred_check_branch
          %1831 = sbr.rel (%p1829) target = $region188
        $region187: #{forward.1} parent=163 // pred_region
          %1832 = dma.done %s1826, 16
        $region188: #{forward.1} parent=163 // pred_fallthru
          _
        %s1833 = sand.u32 %s94, 1
        %s1834 = scalar_lea.sflag [#allocation3], %s1833
        %s1835 = sand.u32 %s253, 1
        %s1836 = smul.addr %s1835, 8
        %s1837 = scalar_lea.vmem [#allocation12], %s1836
        // Predicated region
        $region189: #{forward.1} parent=163 // pred_check
          %p1838 = pneg %p266
        $region190: #{forward.1} parent=163 // pred_check_branch
          %1840 = sbr.rel (%p1838) target = $region192
        $region191: #{forward.1} parent=163 // pred_region
          %1841 = dma.done %s1834, 128
        $region192: #{forward.1} parent=163 // pred_fallthru
          _
        %s1842 = sand.u32 %s94, 1
        %s1843 = scalar_lea.sflag [#allocation6], %s1842
        %s1844 = sand.u32 %s279, 1
        %s1845 = smul.addr %s1844, 8
        %s1846 = scalar_lea.vmem [#allocation13], %s1845
        // Predicated region
        $region193: #{forward.1} parent=163 // pred_check
          %p1847 = pneg %p292
        $region194: #{forward.1} parent=163 // pred_check_branch
          %1849 = sbr.rel (%p1847) target = $region196
        $region195: #{forward.1} parent=163 // pred_region
          %1850 = dma.done %s1843, 128
        $region196: #{forward.1} parent=163 // pred_fallthru
          _
        %s1851 = sand.u32 %s94, 1
        %s1852 = scalar_lea.sflag [#allocation3], %s1851
        %s1853 = sand.u32 %s305, 1
        %s1854 = scalar_lea.vmem [#allocation14], %s1853
        // Predicated region
        $region197: #{forward.1} parent=163 // pred_check
          %p1855 = pneg %p318
        $region198: #{forward.1} parent=163 // pred_check_branch
          %1857 = sbr.rel (%p1855) target = $region200
        $region199: #{forward.1} parent=163 // pred_region
          %1858 = dma.done %s1852, 16
        $region200: #{forward.1} parent=163 // pred_fallthru
          _
        %s1859 = sand.u32 %s94, 1
        %s1860 = scalar_lea.sflag [#allocation6], %s1859
        %s1861 = sand.u32 %s331, 1
        %s1862 = smul.addr %s1861, 128
        %s1863 = scalar_lea.vmem [#allocation15], %s1862
        // Predicated region
        $region201: #{forward.1} parent=163 // pred_check
          %p1864 = pneg %p344
        $region202: #{forward.1} parent=163 // pred_check_branch
          %1866 = sbr.rel (%p1864) target = $region204
        $region203: #{forward.1} parent=163 // pred_region
          %1867 = dma.done %s1860, 2048
        $region204: #{forward.1} parent=163 // pred_fallthru
          _
        %s1868 = sand.u32 %s94, 1
        %s1869 = scalar_lea.sflag [#allocation3], %s1868
        %s1870 = sand.u32 %s357, 1
        %s1871 = scalar_lea.vmem [#allocation16], %s1870
        // Predicated region
        $region205: #{forward.1} parent=163 // pred_check
          %p1872 = pneg %p370
        $region206: #{forward.1} parent=163 // pred_check_branch
          %1874 = sbr.rel (%p1872) target = $region208
        $region207: #{forward.1} parent=163 // pred_region
          %1875 = dma.done %s1869, 16
        $region208: #{forward.1} parent=163 // pred_fallthru
          _
        %s1876 = sand.u32 %s94, 1
        %s1877 = scalar_lea.sflag [#allocation6], %s1876
        %s1878 = sand.u32 %s383, 1
        %s1879 = scalar_lea.vmem [#allocation17], %s1878
        // Predicated region
        $region209: #{forward.1} parent=163 // pred_check
          %p1880 = pneg %p396
        $region210: #{forward.1} parent=163 // pred_check_branch
          %1882 = sbr.rel (%p1880) target = $region212
        $region211: #{forward.1} parent=163 // pred_region
          %1883 = dma.done %s1877, 16
        $region212: #{forward.1} parent=163 // pred_fallthru
          _
        %s1884 = sand.u32 %s94, 1
        %s1885 = scalar_lea.sflag [#allocation3], %s1884
        %s1886 = sand.u32 %s409, 1
        %s1887 = smul.addr %s1886, 128
        %s1888 = scalar_lea.vmem [#allocation18], %s1887
        // Predicated region
        $region213: #{forward.1} parent=163 // pred_check
          %p1889 = pneg %p422
        $region214: #{forward.1} parent=163 // pred_check_branch
          %1891 = sbr.rel (%p1889) target = $region216
        $region215: #{forward.1} parent=163 // pred_region
          %1892 = dma.done %s1885, 2048
        $region216: #{forward.1} parent=163 // pred_fallthru
          _
        %s1893 = sand.u32 %s94, 1
        %s1894 = scalar_lea.sflag [#allocation6], %s1893
        %s1895 = sand.u32 %s435, 1
        %s1896 = scalar_lea.vmem [#allocation19], %s1895
        // Predicated region
        $region217: #{forward.1} parent=163 // pred_check
          %p1897 = pneg %p448
        $region218: #{forward.1} parent=163 // pred_check_branch
          %1899 = sbr.rel (%p1897) target = $region220
        $region219: #{forward.1} parent=163 // pred_region
          %1900 = dma.done %s1894, 16
        $region220: #{forward.1} parent=163 // pred_fallthru
          _
        %s1901 = sand.u32 %s94, 1
        %s1902 = scalar_lea.sflag [#allocation3], %s1901
        %s1903 = sand.u32 %s461, 1
        %s1904 = smul.addr %s1903, 384
        %s1905 = scalar_lea.vmem [#allocation20], %s1904
        // Predicated region
        $region221: #{forward.1} parent=163 // pred_check
          %p1906 = pneg %p474
        $region222: #{forward.1} parent=163 // pred_check_branch
          %1908 = sbr.rel (%p1906) target = $region224
        $region223: #{forward.1} parent=163 // pred_region
          %1909 = dma.done %s1902, 6144
        $region224: #{forward.1} parent=163 // pred_fallthru
          _
        %s1910 = sand.u32 %s94, 1
        %s1911 = scalar_lea.sflag [#allocation6], %s1910
        %s1912 = sand.u32 %s487, 1
        %s1913 = smul.addr %s1912, 384
        %s1914 = scalar_lea.vmem [#allocation21], %s1913
        // Predicated region
        $region225: #{forward.1} parent=163 // pred_check
          %p1915 = pneg %p500
        $region226: #{forward.1} parent=163 // pred_check_branch
          %1917 = sbr.rel (%p1915) target = $region228
        $region227: #{forward.1} parent=163 // pred_region
          %1918 = dma.done %s1911, 6144
        $region228: #{forward.1} parent=163 // pred_fallthru
          _
        %s1919 = sand.u32 %s94, 1
        %s1920 = scalar_lea.sflag [#allocation3], %s1919
        %s1921 = sand.u32 %s513, 1
        %s1922 = smul.addr %s1921, 3
        %s1923 = scalar_lea.vmem [#allocation22], %s1922
        // Predicated region
        $region229: #{forward.1} parent=163 // pred_check
          %p1924 = pneg %p526
        $region230: #{forward.1} parent=163 // pred_check_branch
          %1926 = sbr.rel (%p1924) target = $region232
        $region231: #{forward.1} parent=163 // pred_region
          %1927 = dma.done %s1920, 48
        $region232: #{forward.1} parent=163 // pred_fallthru
          _
        %s1928 = sand.u32 %s94, 1
        %s1929 = scalar_lea.sflag [#allocation6], %s1928
        %s1930 = sand.u32 %s539, 1
        %s1931 = smul.addr %s1930, 3
        %s1932 = scalar_lea.vmem [#allocation23], %s1931
        // Predicated region
        $region233: #{forward.1} parent=163 // pred_check
          %p1933 = pneg %p552
        $region234: #{forward.1} parent=163 // pred_check_branch
          %1935 = sbr.rel (%p1933) target = $region236
        $region235: #{forward.1} parent=163 // pred_region
          %1936 = dma.done %s1929, 48
        $region236: #{forward.1} parent=163 // pred_fallthru
          _
        %s1937 = sand.u32 %s94, 1
        %s1938 = scalar_lea.sflag [#allocation3], %s1937
        %s1939 = sand.u32 %s565, 1
        %s1940 = smul.addr %s1939, 256
        %s1941 = scalar_lea.vmem [#allocation24], %s1940
        // Predicated region
        $region237: #{forward.1} parent=163 // pred_check
          %p1942 = pneg %p578
        $region238: #{forward.1} parent=163 // pred_check_branch
          %1944 = sbr.rel (%p1942) target = $region240
        $region239: #{forward.1} parent=163 // pred_region
          %1945 = dma.done %s1938, 4096
        $region240: #{forward.1} parent=163 // pred_fallthru
          _
        %s1946 = sand.u32 %s94, 1
        %s1947 = scalar_lea.sflag [#allocation6], %s1946
        %s1948 = sand.u32 %s591, 1
        %s1949 = smul.addr %s1948, 2
        %s1950 = scalar_lea.vmem [#allocation25], %s1949
        // Predicated region
        $region241: #{forward.1} parent=163 // pred_check
          %p1951 = pneg %p604
        $region242: #{forward.1} parent=163 // pred_check_branch
          %1953 = sbr.rel (%p1951) target = $region244
        $region243: #{forward.1} parent=163 // pred_region
          %1954 = dma.done %s1947, 32
        $region244: #{forward.1} parent=163 // pred_fallthru
          _
        %s1955 = sand.u32 %s94, 1
        %s1956 = scalar_lea.sflag [#allocation3], %s1955
        %s1957 = sand.u32 %s617, 1
        %s1958 = smul.addr %s1957, 2
        %s1959 = scalar_lea.vmem [#allocation26], %s1958
        // Predicated region
        $region245: #{forward.1} parent=163 // pred_check
          %p1960 = pneg %p630
        $region246: #{forward.1} parent=163 // pred_check_branch
          %1962 = sbr.rel (%p1960) target = $region248
        $region247: #{forward.1} parent=163 // pred_region
          %1963 = dma.done %s1956, 32
        $region248: #{forward.1} parent=163 // pred_fallthru
          _
        %s1964 = sand.u32 %s94, 1
        %s1965 = scalar_lea.sflag [#allocation6], %s1964
        %s1966 = sand.u32 %s643, 1
        %s1967 = smul.addr %s1966, 256
        %s1968 = scalar_lea.vmem [#allocation27], %s1967
        // Predicated region
        $region249: #{forward.1} parent=163 // pred_check
          %p1969 = pneg %p656
        $region250: #{forward.1} parent=163 // pred_check_branch
          %1971 = sbr.rel (%p1969) target = $region252
        $region251: #{forward.1} parent=163 // pred_region
          %1972 = dma.done %s1965, 4096
        $region252: #{forward.1} parent=163 // pred_fallthru
          _
        %s1973 = sand.u32 %s94, 1
        %s1974 = scalar_lea.sflag [#allocation3], %s1973
        %s1975 = sand.u32 %s669, 1
        %s1976 = smul.addr %s1975, 2
        %s1977 = scalar_lea.vmem [#allocation28], %s1976
        // Predicated region
        $region253: #{forward.1} parent=163 // pred_check
          %p1978 = pneg %p682
        $region254: #{forward.1} parent=163 // pred_check_branch
          %1980 = sbr.rel (%p1978) target = $region256
        $region255: #{forward.1} parent=163 // pred_region
          %1981 = dma.done %s1974, 32
        $region256: #{forward.1} parent=163 // pred_fallthru
          _
        %s1982 = sand.u32 %s94, 1
        %s1983 = scalar_lea.sflag [#allocation6], %s1982
        %s1984 = sand.u32 %s695, 1
        %s1985 = smul.addr %s1984, 768
        %s1986 = scalar_lea.vmem [#allocation29], %s1985
        // Predicated region
        $region257: #{forward.1} parent=163 // pred_check
          %p1987 = pneg %p708
        $region258: #{forward.1} parent=163 // pred_check_branch
          %1989 = sbr.rel (%p1987) target = $region260
        $region259: #{forward.1} parent=163 // pred_region
          %1990 = dma.done %s1983, 12288
        $region260: #{forward.1} parent=163 // pred_fallthru
          _
        %s1991 = sand.u32 %s94, 1
        %s1992 = scalar_lea.sflag [#allocation3], %s1991
        %s1993 = sand.u32 %s721, 1
        %s1994 = smul.addr %s1993, 768
        %s1995 = scalar_lea.vmem [#allocation30], %s1994
        // Predicated region
        $region261: #{forward.1} parent=163 // pred_check
          %p1996 = pneg %p734
        $region262: #{forward.1} parent=163 // pred_check_branch
          %1998 = sbr.rel (%p1996) target = $region264
        $region263: #{forward.1} parent=163 // pred_region
          %1999 = dma.done %s1992, 12288
        $region264: #{forward.1} parent=163 // pred_fallthru
          _
        %s2000 = sand.u32 %s94, 1
        %s2001 = scalar_lea.sflag [#allocation6], %s2000
        %s2002 = sand.u32 %s747, 1
        %s2003 = smul.addr %s2002, 6
        %s2004 = scalar_lea.vmem [#allocation31], %s2003
        // Predicated region
        $region265: #{forward.1} parent=163 // pred_check
          %p2005 = pneg %p760
        $region266: #{forward.1} parent=163 // pred_check_branch
          %2007 = sbr.rel (%p2005) target = $region268
        $region267: #{forward.1} parent=163 // pred_region
          %2008 = dma.done %s2001, 96
        $region268: #{forward.1} parent=163 // pred_fallthru
          _
        %s2009 = sand.u32 %s94, 1
        %s2010 = scalar_lea.sflag [#allocation3], %s2009
        %s2011 = sand.u32 %s773, 1
        %s2012 = smul.addr %s2011, 6
        %s2013 = scalar_lea.vmem [#allocation32], %s2012
        // Predicated region
        $region269: #{forward.1} parent=163 // pred_check
          %p2014 = pneg %p786
        $region270: #{forward.1} parent=163 // pred_check_branch
          %2016 = sbr.rel (%p2014) target = $region272
        $region271: #{forward.1} parent=163 // pred_region
          %2017 = dma.done %s2010, 96
        $region272: #{forward.1} parent=163 // pred_fallthru
          _
        %s2018 = sand.u32 %s94, 1
        %s2019 = scalar_lea.sflag [#allocation6], %s2018
        %s2020 = sand.u32 %s799, 1
        %s2021 = smul.addr %s2020, 256
        %s2022 = scalar_lea.vmem [#allocation33], %s2021
        // Predicated region
        $region273: #{forward.1} parent=163 // pred_check
          %p2023 = pneg %p812
        $region274: #{forward.1} parent=163 // pred_check_branch
          %2025 = sbr.rel (%p2023) target = $region276
        $region275: #{forward.1} parent=163 // pred_region
          %2026 = dma.done %s2019, 4096
        $region276: #{forward.1} parent=163 // pred_fallthru
          _
        %s2027 = sand.u32 %s94, 1
        %s2028 = scalar_lea.sflag [#allocation3], %s2027
        %s2029 = sand.u32 %s825, 1
        %s2030 = smul.addr %s2029, 2
        %s2031 = scalar_lea.vmem [#allocation34], %s2030
        // Predicated region
        $region277: #{forward.1} parent=163 // pred_check
          %p2032 = pneg %p838
        $region278: #{forward.1} parent=163 // pred_check_branch
          %2034 = sbr.rel (%p2032) target = $region280
        $region279: #{forward.1} parent=163 // pred_region
          %2035 = dma.done %s2028, 32
        $region280: #{forward.1} parent=163 // pred_fallthru
          _
        %s2036 = sand.u32 %s94, 1
        %s2037 = scalar_lea.sflag [#allocation6], %s2036
        %s2038 = sand.u32 %s851, 1
        %s2039 = smul.addr %s2038, 2
        %s2040 = scalar_lea.vmem [#allocation35], %s2039
        // Predicated region
        $region281: #{forward.1} parent=163 // pred_check
          %p2041 = pneg %p864
        $region282: #{forward.1} parent=163 // pred_check_branch
          %2043 = sbr.rel (%p2041) target = $region284
        $region283: #{forward.1} parent=163 // pred_region
          %2044 = dma.done %s2037, 32
        $region284: #{forward.1} parent=163 // pred_fallthru
          _
        %s2045 = sand.u32 %s94, 1
        %s2046 = scalar_lea.sflag [#allocation3], %s2045
        %s2047 = sand.u32 %s877, 1
        %s2048 = smul.addr %s2047, 256
        %s2049 = scalar_lea.vmem [#allocation36], %s2048
        // Predicated region
        $region285: #{forward.1} parent=163 // pred_check
          %p2050 = pneg %p890
        $region286: #{forward.1} parent=163 // pred_check_branch
          %2052 = sbr.rel (%p2050) target = $region288
        $region287: #{forward.1} parent=163 // pred_region
          %2053 = dma.done %s2046, 4096
        $region288: #{forward.1} parent=163 // pred_fallthru
          _
        %s2054 = sand.u32 %s94, 1
        %s2055 = scalar_lea.sflag [#allocation6], %s2054
        %s2056 = sand.u32 %s903, 1
        %s2057 = smul.addr %s2056, 2
        %s2058 = scalar_lea.vmem [#allocation37], %s2057
        // Predicated region
        $region289: #{forward.1} parent=163 // pred_check
          %p2059 = pneg %p916
        $region290: #{forward.1} parent=163 // pred_check_branch
          %2061 = sbr.rel (%p2059) target = $region292
        $region291: #{forward.1} parent=163 // pred_region
          %2062 = dma.done %s2055, 32
        $region292: #{forward.1} parent=163 // pred_fallthru
          _
        %s2063 = sand.u32 %s94, 1
        %s2064 = scalar_lea.sflag [#allocation3], %s2063
        %s2065 = sand.u32 %s929, 1
        %s2066 = smul.addr %s2065, 768
        %s2067 = scalar_lea.vmem [#allocation38], %s2066
        // Predicated region
        $region293: #{forward.1} parent=163 // pred_check
          %p2068 = pneg %p942
        $region294: #{forward.1} parent=163 // pred_check_branch
          %2070 = sbr.rel (%p2068) target = $region296
        $region295: #{forward.1} parent=163 // pred_region
          %2071 = dma.done %s2064, 12288
        $region296: #{forward.1} parent=163 // pred_fallthru
          _
        %s2072 = sand.u32 %s94, 1
        %s2073 = scalar_lea.sflag [#allocation6], %s2072
        %s2074 = sand.u32 %s955, 1
        %s2075 = smul.addr %s2074, 768
        %s2076 = scalar_lea.vmem [#allocation39], %s2075
        // Predicated region
        $region297: #{forward.1} parent=163 // pred_check
          %p2077 = pneg %p968
        $region298: #{forward.1} parent=163 // pred_check_branch
          %2079 = sbr.rel (%p2077) target = $region300
        $region299: #{forward.1} parent=163 // pred_region
          %2080 = dma.done %s2073, 12288
        $region300: #{forward.1} parent=163 // pred_fallthru
          _
        %s2081 = sand.u32 %s94, 1
        %s2082 = scalar_lea.sflag [#allocation3], %s2081
        %s2083 = sand.u32 %s981, 1
        %s2084 = smul.addr %s2083, 6
        %s2085 = scalar_lea.vmem [#allocation40], %s2084
        // Predicated region
        $region301: #{forward.1} parent=163 // pred_check
          %p2086 = pneg %p994
        $region302: #{forward.1} parent=163 // pred_check_branch
          %2088 = sbr.rel (%p2086) target = $region304
        $region303: #{forward.1} parent=163 // pred_region
          %2089 = dma.done %s2082, 96
        $region304: #{forward.1} parent=163 // pred_fallthru
          _
        %s2090 = sand.u32 %s94, 1
        %s2091 = scalar_lea.sflag [#allocation6], %s2090
        %s2092 = sand.u32 %s1007, 1
        %s2093 = smul.addr %s2092, 6
        %s2094 = scalar_lea.vmem [#allocation41], %s2093
        // Predicated region
        $region305: #{forward.1} parent=163 // pred_check
          %p2095 = pneg %p1020
        $region306: #{forward.1} parent=163 // pred_check_branch
          %2097 = sbr.rel (%p2095) target = $region308
        $region307: #{forward.1} parent=163 // pred_region
          %2098 = dma.done %s2091, 96
        $region308: #{forward.1} parent=163 // pred_fallthru
          _
        %s2099 = sand.u32 %s94, 1
        %s2100 = scalar_lea.sflag [#allocation3], %s2099
        %s2101 = sand.u32 %s102, 1
        %s2102 = smul.addr %s2101, 16
        %s2103 = scalar_lea.vmem [#allocation2], %s2102
        %p2104 = pneg %p115
        %p2105 = pneg %p112
        %s2106 = sand.u32 %s94, 1
        %s2107 = scalar_lea.sflag [#allocation6], %s2106
        %s2108 = sand.u32 %s128, 1
        %s2109 = smul.addr %s2108, 256
        %s2110 = scalar_lea.vmem [#allocation5], %s2109
        %p2111 = pneg %p141
        %p2112 = pneg %p138
        %s2113 = sand.u32 %s94, 1
        %s2114 = scalar_lea.sflag [#allocation6], %s2113
        %s2115 = sand.u32 %s154, 1
        %s2116 = smul.addr %s2115, 16
        %s2117 = scalar_lea.vmem [#allocation7], %s2116
        %p2118 = pneg %p167
        %p2119 = pneg %p164
        %p2120 = pneg %p188
        %p2121 = pneg %p185
        %s2122 = sand.u32 %s94, 1
        %s2123 = scalar_lea.sflag [#allocation3], %s2122
        %s2124 = sand.u32 %s201, 1
        %s2125 = smul.addr %s2124, 8
        %s2126 = scalar_lea.vmem [#allocation10], %s2125
        %p2127 = pneg %p214
        %p2128 = pneg %p211
        %s2129 = sand.u32 %s94, 1
        %s2130 = scalar_lea.sflag [#allocation6], %s2129
        %s2131 = sand.u32 %s227, 1
        %s2132 = scalar_lea.vmem [#allocation11], %s2131
        %p2133 = pneg %p240
        %p2134 = pneg %p237
        %s2135 = sand.u32 %s94, 1
        %s2136 = scalar_lea.sflag [#allocation3], %s2135
        %s2137 = sand.u32 %s253, 1
        %s2138 = smul.addr %s2137, 8
        %s2139 = scalar_lea.vmem [#allocation12], %s2138
        %p2140 = pneg %p266
        %p2141 = pneg %p263
        %s2142 = sand.u32 %s94, 1
        %s2143 = scalar_lea.sflag [#allocation6], %s2142
        %s2144 = sand.u32 %s279, 1
        %s2145 = smul.addr %s2144, 8
        %s2146 = scalar_lea.vmem [#allocation13], %s2145
        %p2147 = pneg %p292
        %p2148 = pneg %p289
        %s2149 = sand.u32 %s94, 1
        %s2150 = scalar_lea.sflag [#allocation3], %s2149
        %s2151 = sand.u32 %s305, 1
        %s2152 = scalar_lea.vmem [#allocation14], %s2151
        %p2153 = pneg %p318
        %p2154 = pneg %p315
        %s2155 = sand.u32 %s94, 1
        %s2156 = scalar_lea.sflag [#allocation6], %s2155
        %s2157 = sand.u32 %s331, 1
        %s2158 = smul.addr %s2157, 128
        %s2159 = scalar_lea.vmem [#allocation15], %s2158
        %p2160 = pneg %p344
        %p2161 = pneg %p341
        %s2162 = sand.u32 %s94, 1
        %s2163 = scalar_lea.sflag [#allocation3], %s2162
        %s2164 = sand.u32 %s357, 1
        %s2165 = scalar_lea.vmem [#allocation16], %s2164
        %p2166 = pneg %p370
        %p2167 = pneg %p367
        %s2168 = sand.u32 %s94, 1
        %s2169 = scalar_lea.sflag [#allocation6], %s2168
        %s2170 = sand.u32 %s383, 1
        %s2171 = scalar_lea.vmem [#allocation17], %s2170
        %p2172 = pneg %p396
        %p2173 = pneg %p393
        %s2174 = sand.u32 %s94, 1
        %s2175 = scalar_lea.sflag [#allocation3], %s2174
        %s2176 = sand.u32 %s409, 1
        %s2177 = smul.addr %s2176, 128
        %s2178 = scalar_lea.vmem [#allocation18], %s2177
        %p2179 = pneg %p422
        %p2180 = pneg %p419
        %s2181 = sand.u32 %s94, 1
        %s2182 = scalar_lea.sflag [#allocation6], %s2181
        %s2183 = sand.u32 %s435, 1
        %s2184 = scalar_lea.vmem [#allocation19], %s2183
        %p2185 = pneg %p448
        %p2186 = pneg %p445
        %s2187 = sand.u32 %s94, 1
        %s2188 = scalar_lea.sflag [#allocation3], %s2187
        %s2189 = sand.u32 %s461, 1
        %s2190 = smul.addr %s2189, 384
        %s2191 = scalar_lea.vmem [#allocation20], %s2190
        %p2192 = pneg %p474
        %p2193 = pneg %p471
        %s2194 = sand.u32 %s94, 1
        %s2195 = scalar_lea.sflag [#allocation6], %s2194
        %s2196 = sand.u32 %s487, 1
        %s2197 = smul.addr %s2196, 384
        %s2198 = scalar_lea.vmem [#allocation21], %s2197
        %p2199 = pneg %p500
        %p2200 = pneg %p497
        %s2201 = sand.u32 %s94, 1
        %s2202 = scalar_lea.sflag [#allocation3], %s2201
        %s2203 = sand.u32 %s513, 1
        %s2204 = smul.addr %s2203, 3
        %s2205 = scalar_lea.vmem [#allocation22], %s2204
        %p2206 = pneg %p526
        %p2207 = pneg %p523
        %s2208 = sand.u32 %s94, 1
        %s2209 = scalar_lea.sflag [#allocation6], %s2208
        %s2210 = sand.u32 %s539, 1
        %s2211 = smul.addr %s2210, 3
        %s2212 = scalar_lea.vmem [#allocation23], %s2211
        %p2213 = pneg %p552
        %p2214 = pneg %p549
        %s2215 = sand.u32 %s94, 1
        %s2216 = scalar_lea.sflag [#allocation3], %s2215
        %s2217 = sand.u32 %s565, 1
        %s2218 = smul.addr %s2217, 256
        %s2219 = scalar_lea.vmem [#allocation24], %s2218
        %p2220 = pneg %p578
        %p2221 = pneg %p575
        %s2222 = sand.u32 %s94, 1
        %s2223 = scalar_lea.sflag [#allocation6], %s2222
        %s2224 = sand.u32 %s591, 1
        %s2225 = smul.addr %s2224, 2
        %s2226 = scalar_lea.vmem [#allocation25], %s2225
        %p2227 = pneg %p604
        %p2228 = pneg %p601
        %s2229 = sand.u32 %s94, 1
        %s2230 = scalar_lea.sflag [#allocation3], %s2229
        %s2231 = sand.u32 %s617, 1
        %s2232 = smul.addr %s2231, 2
        %s2233 = scalar_lea.vmem [#allocation26], %s2232
        %p2234 = pneg %p630
        %p2235 = pneg %p627
        %s2236 = sand.u32 %s94, 1
        %s2237 = scalar_lea.sflag [#allocation6], %s2236
        %s2238 = sand.u32 %s643, 1
        %s2239 = smul.addr %s2238, 256
        %s2240 = scalar_lea.vmem [#allocation27], %s2239
        %p2241 = pneg %p656
        %p2242 = pneg %p653
        %s2243 = sand.u32 %s94, 1
        %s2244 = scalar_lea.sflag [#allocation3], %s2243
        %s2245 = sand.u32 %s669, 1
        %s2246 = smul.addr %s2245, 2
        %s2247 = scalar_lea.vmem [#allocation28], %s2246
        %p2248 = pneg %p682
        %p2249 = pneg %p679
        %s2250 = sand.u32 %s94, 1
        %s2251 = scalar_lea.sflag [#allocation6], %s2250
        %s2252 = sand.u32 %s695, 1
        %s2253 = smul.addr %s2252, 768
        %s2254 = scalar_lea.vmem [#allocation29], %s2253
        %p2255 = pneg %p708
        %p2256 = pneg %p705
        %s2257 = sand.u32 %s94, 1
        %s2258 = scalar_lea.sflag [#allocation3], %s2257
        %s2259 = sand.u32 %s721, 1
        %s2260 = smul.addr %s2259, 768
        %s2261 = scalar_lea.vmem [#allocation30], %s2260
        %p2262 = pneg %p734
        %p2263 = pneg %p731
        %s2264 = sand.u32 %s94, 1
        %s2265 = scalar_lea.sflag [#allocation6], %s2264
        %s2266 = sand.u32 %s747, 1
        %s2267 = smul.addr %s2266, 6
        %s2268 = scalar_lea.vmem [#allocation31], %s2267
        %p2269 = pneg %p760
        %p2270 = pneg %p757
        %s2271 = sand.u32 %s94, 1
        %s2272 = scalar_lea.sflag [#allocation3], %s2271
        %s2273 = sand.u32 %s773, 1
        %s2274 = smul.addr %s2273, 6
        %s2275 = scalar_lea.vmem [#allocation32], %s2274
        %p2276 = pneg %p786
        %p2277 = pneg %p783
        %s2278 = sand.u32 %s94, 1
        %s2279 = scalar_lea.sflag [#allocation6], %s2278
        %s2280 = sand.u32 %s799, 1
        %s2281 = smul.addr %s2280, 256
        %s2282 = scalar_lea.vmem [#allocation33], %s2281
        %p2283 = pneg %p812
        %p2284 = pneg %p809
        %s2285 = sand.u32 %s94, 1
        %s2286 = scalar_lea.sflag [#allocation3], %s2285
        %s2287 = sand.u32 %s825, 1
        %s2288 = smul.addr %s2287, 2
        %s2289 = scalar_lea.vmem [#allocation34], %s2288
        %p2290 = pneg %p838
        %p2291 = pneg %p835
        %s2292 = sand.u32 %s94, 1
        %s2293 = scalar_lea.sflag [#allocation6], %s2292
        %s2294 = sand.u32 %s851, 1
        %s2295 = smul.addr %s2294, 2
        %s2296 = scalar_lea.vmem [#allocation35], %s2295
        %p2297 = pneg %p864
        %p2298 = pneg %p861
        %s2299 = sand.u32 %s94, 1
        %s2300 = scalar_lea.sflag [#allocation3], %s2299
        %s2301 = sand.u32 %s877, 1
        %s2302 = smul.addr %s2301, 256
        %s2303 = scalar_lea.vmem [#allocation36], %s2302
        %p2304 = pneg %p890
        %p2305 = pneg %p887
        %s2306 = sand.u32 %s94, 1
        %s2307 = scalar_lea.sflag [#allocation6], %s2306
        %s2308 = sand.u32 %s903, 1
        %s2309 = smul.addr %s2308, 2
        %s2310 = scalar_lea.vmem [#allocation37], %s2309
        %p2311 = pneg %p916
        %p2312 = pneg %p913
        %s2313 = sand.u32 %s94, 1
        %s2314 = scalar_lea.sflag [#allocation3], %s2313
        %s2315 = sand.u32 %s929, 1
        %s2316 = smul.addr %s2315, 768
        %s2317 = scalar_lea.vmem [#allocation38], %s2316
        %p2318 = pneg %p942
        %p2319 = pneg %p939
        %s2320 = sand.u32 %s94, 1
        %s2321 = scalar_lea.sflag [#allocation6], %s2320
        %s2322 = sand.u32 %s955, 1
        %s2323 = smul.addr %s2322, 768
        %s2324 = scalar_lea.vmem [#allocation39], %s2323
        %p2325 = pneg %p968
        %p2326 = pneg %p965
        %s2327 = sand.u32 %s94, 1
        %s2328 = scalar_lea.sflag [#allocation3], %s2327
        %s2329 = sand.u32 %s981, 1
        %s2330 = smul.addr %s2329, 6
        %s2331 = scalar_lea.vmem [#allocation40], %s2330
        %p2332 = pneg %p994
        %p2333 = pneg %p991
        %s2334 = sand.u32 %s94, 1
        %s2335 = scalar_lea.sflag [#allocation6], %s2334
        %s2336 = sand.u32 %s1007, 1
        %s2337 = smul.addr %s2336, 6
        %s2338 = scalar_lea.vmem [#allocation41], %s2337
        %p2339 = pneg %p1020
        %p2340 = pneg %p1017
        %p2341 = pneg %p1046
        %p2342 = pneg %p1043
        %s2343 = sand.u32 %s1033, 1
        %s2344 = scalar_lea.sflag [#allocation4], %s2343
        %s2345 = sand.u32 %s1033, 1
        %s2346 = smul.addr %s2345, 2
        %s2347 = scalar_lea.vmem [#allocation42], %s2346
        %v2349 = vld [vmem:[%s1820] sm:$0xff]
        %v2350 = vld [vmem:[%s1828] sm:$0x1]
        %v2351 = vld [vmem:[%s1837] sm:$0xff]
        %v2352 = vld [vmem:[%s1846] sm:$0xff]
        %v2353 = vld [vmem:[%s1854] sm:$0x1]
        %v2354 = vld [vmem:[%s1863] sm:$0xff]
        %v2355 = vld [vmem:[%s1863 + $0x8] sm:$0xff]
        %v2356 = vld [vmem:[%s1863 + $0x10] sm:$0xff]
        %v2357 = vld [vmem:[%s1863 + $0x18] sm:$0xff]
        %v2358 = vld [vmem:[%s1863 + $0x20] sm:$0xff]
        %v2359 = vld [vmem:[%s1863 + $0x28] sm:$0xff]
        %v2360 = vld [vmem:[%s1863 + $0x30] sm:$0xff]
        %v2361 = vld [vmem:[%s1863 + $0x38] sm:$0xff]
        %v2362 = vld [vmem:[%s1863 + $0x40] sm:$0xff]
        %v2363 = vld [vmem:[%s1863 + $0x48] sm:$0xff]
        %v2364 = vld [vmem:[%s1863 + $0x50] sm:$0xff]
        %v2365 = vld [vmem:[%s1863 + $0x58] sm:$0xff]
        %v2366 = vld [vmem:[%s1863 + $0x60] sm:$0xff]
        %v2367 = vld [vmem:[%s1863 + $0x68] sm:$0xff]
        %v2368 = vld [vmem:[%s1863 + $0x70] sm:$0xff]
        %v2369 = vld [vmem:[%s1863 + $0x78] sm:$0xff]
        %v2370 = vld [vmem:[%s1871] sm:$0x1]
        %v2371 = vld [vmem:[%s1879] sm:$0x1]
        %v2372 = vld [vmem:[%s1888] sm:$0xff]
        %v2373 = vld [vmem:[%s1888 + $0x8] sm:$0xff]
        %v2374 = vld [vmem:[%s1888 + $0x10] sm:$0xff]
        %v2375 = vld [vmem:[%s1888 + $0x18] sm:$0xff]
        %v2376 = vld [vmem:[%s1888 + $0x20] sm:$0xff]
        %v2377 = vld [vmem:[%s1888 + $0x28] sm:$0xff]
        %v2378 = vld [vmem:[%s1888 + $0x30] sm:$0xff]
        %v2379 = vld [vmem:[%s1888 + $0x38] sm:$0xff]
        %v2380 = vld [vmem:[%s1888 + $0x40] sm:$0xff]
        %v2381 = vld [vmem:[%s1888 + $0x48] sm:$0xff]
        %v2382 = vld [vmem:[%s1888 + $0x50] sm:$0xff]
        %v2383 = vld [vmem:[%s1888 + $0x58] sm:$0xff]
        %v2384 = vld [vmem:[%s1888 + $0x60] sm:$0xff]
        %v2385 = vld [vmem:[%s1888 + $0x68] sm:$0xff]
        %v2386 = vld [vmem:[%s1888 + $0x70] sm:$0xff]
        %v2387 = vld [vmem:[%s1888 + $0x78] sm:$0xff]
        %v2388 = vld [vmem:[%s1896] sm:$0x1]
        %v2389 = vld [vmem:[%s1905] sm:$0xff]
        %v2390 = vld [vmem:[%s1905 + $0x8] sm:$0xff]
        %v2391 = vld [vmem:[%s1905 + $0x10] sm:$0xff]
        %v2392 = vld [vmem:[%s1905 + $0x18] sm:$0xff]
        %v2393 = vld [vmem:[%s1905 + $0x20] sm:$0xff]
        %v2394 = vld [vmem:[%s1905 + $0x28] sm:$0xff]
        %v2395 = vld [vmem:[%s1905 + $0x30] sm:$0xff]
        %v2396 = vld [vmem:[%s1905 + $0x38] sm:$0xff]
        %v2397 = vld [vmem:[%s1905 + $0x40] sm:$0xff]
        %v2398 = vld [vmem:[%s1905 + $0x48] sm:$0xff]
        %v2399 = vld [vmem:[%s1905 + $0x50] sm:$0xff]
        %v2400 = vld [vmem:[%s1905 + $0x58] sm:$0xff]
        %v2401 = vld [vmem:[%s1905 + $0x60] sm:$0xff]
        %v2402 = vld [vmem:[%s1905 + $0x68] sm:$0xff]
        %v2403 = vld [vmem:[%s1905 + $0x70] sm:$0xff]
        %v2404 = vld [vmem:[%s1905 + $0x78] sm:$0xff]
        %v2405 = vld [vmem:[%s1905 + $0x80] sm:$0xff]
        %v2406 = vld [vmem:[%s1905 + $0x88] sm:$0xff]
        %v2407 = vld [vmem:[%s1905 + $0x90] sm:$0xff]
        %v2408 = vld [vmem:[%s1905 + $0x98] sm:$0xff]
        %v2409 = vld [vmem:[%s1905 + $0xa0] sm:$0xff]
        %v2410 = vld [vmem:[%s1905 + $0xa8] sm:$0xff]
        %v2411 = vld [vmem:[%s1905 + $0xb0] sm:$0xff]
        %v2412 = vld [vmem:[%s1905 + $0xb8] sm:$0xff]
        %v2413 = vld [vmem:[%s1905 + $0xc0] sm:$0xff]
        %v2414 = vld [vmem:[%s1905 + $0xc8] sm:$0xff]
        %v2415 = vld [vmem:[%s1905 + $0xd0] sm:$0xff]
        %v2416 = vld [vmem:[%s1905 + $0xd8] sm:$0xff]
        %v2417 = vld [vmem:[%s1905 + $0xe0] sm:$0xff]
        %v2418 = vld [vmem:[%s1905 + $0xe8] sm:$0xff]
        %v2419 = vld [vmem:[%s1905 + $0xf0] sm:$0xff]
        %v2420 = vld [vmem:[%s1905 + $0xf8] sm:$0xff]
        %v2421 = vld [vmem:[%s1905 + $0x100] sm:$0xff]
        %v2422 = vld [vmem:[%s1905 + $0x108] sm:$0xff]
        %v2423 = vld [vmem:[%s1905 + $0x110] sm:$0xff]
        %v2424 = vld [vmem:[%s1905 + $0x118] sm:$0xff]
        %v2425 = vld [vmem:[%s1905 + $0x120] sm:$0xff]
        %v2426 = vld [vmem:[%s1905 + $0x128] sm:$0xff]
        %v2427 = vld [vmem:[%s1905 + $0x130] sm:$0xff]
        %v2428 = vld [vmem:[%s1905 + $0x138] sm:$0xff]
        %v2429 = vld [vmem:[%s1905 + $0x140] sm:$0xff]
        %v2430 = vld [vmem:[%s1905 + $0x148] sm:$0xff]
        %v2431 = vld [vmem:[%s1905 + $0x150] sm:$0xff]
        %v2432 = vld [vmem:[%s1905 + $0x158] sm:$0xff]
        %v2433 = vld [vmem:[%s1905 + $0x160] sm:$0xff]
        %v2434 = vld [vmem:[%s1905 + $0x168] sm:$0xff]
        %v2435 = vld [vmem:[%s1905 + $0x170] sm:$0xff]
        %v2436 = vld [vmem:[%s1905 + $0x178] sm:$0xff]
        %v2437 = vld [vmem:[%s1914] sm:$0xff]
        %v2438 = vld [vmem:[%s1914 + $0x8] sm:$0xff]
        %v2439 = vld [vmem:[%s1914 + $0x10] sm:$0xff]
        %v2440 = vld [vmem:[%s1914 + $0x18] sm:$0xff]
        %v2441 = vld [vmem:[%s1914 + $0x20] sm:$0xff]
        %v2442 = vld [vmem:[%s1914 + $0x28] sm:$0xff]
        %v2443 = vld [vmem:[%s1914 + $0x30] sm:$0xff]
        %v2444 = vld [vmem:[%s1914 + $0x38] sm:$0xff]
        %v2445 = vld [vmem:[%s1914 + $0x40] sm:$0xff]
        %v2446 = vld [vmem:[%s1914 + $0x48] sm:$0xff]
        %v2447 = vld [vmem:[%s1914 + $0x50] sm:$0xff]
        %v2448 = vld [vmem:[%s1914 + $0x58] sm:$0xff]
        %v2449 = vld [vmem:[%s1914 + $0x60] sm:$0xff]
        %v2450 = vld [vmem:[%s1914 + $0x68] sm:$0xff]
        %v2451 = vld [vmem:[%s1914 + $0x70] sm:$0xff]
        %v2452 = vld [vmem:[%s1914 + $0x78] sm:$0xff]
        %v2453 = vld [vmem:[%s1914 + $0x80] sm:$0xff]
        %v2454 = vld [vmem:[%s1914 + $0x88] sm:$0xff]
        %v2455 = vld [vmem:[%s1914 + $0x90] sm:$0xff]
        %v2456 = vld [vmem:[%s1914 + $0x98] sm:$0xff]
        %v2457 = vld [vmem:[%s1914 + $0xa0] sm:$0xff]
        %v2458 = vld [vmem:[%s1914 + $0xa8] sm:$0xff]
        %v2459 = vld [vmem:[%s1914 + $0xb0] sm:$0xff]
        %v2460 = vld [vmem:[%s1914 + $0xb8] sm:$0xff]
        %v2461 = vld [vmem:[%s1914 + $0xc0] sm:$0xff]
        %v2462 = vld [vmem:[%s1914 + $0xc8] sm:$0xff]
        %v2463 = vld [vmem:[%s1914 + $0xd0] sm:$0xff]
        %v2464 = vld [vmem:[%s1914 + $0xd8] sm:$0xff]
        %v2465 = vld [vmem:[%s1914 + $0xe0] sm:$0xff]
        %v2466 = vld [vmem:[%s1914 + $0xe8] sm:$0xff]
        %v2467 = vld [vmem:[%s1914 + $0xf0] sm:$0xff]
        %v2468 = vld [vmem:[%s1914 + $0xf8] sm:$0xff]
        %v2469 = vld [vmem:[%s1914 + $0x100] sm:$0xff]
        %v2470 = vld [vmem:[%s1914 + $0x108] sm:$0xff]
        %v2471 = vld [vmem:[%s1914 + $0x110] sm:$0xff]
        %v2472 = vld [vmem:[%s1914 + $0x118] sm:$0xff]
        %v2473 = vld [vmem:[%s1914 + $0x120] sm:$0xff]
        %v2474 = vld [vmem:[%s1914 + $0x128] sm:$0xff]
        %v2475 = vld [vmem:[%s1914 + $0x130] sm:$0xff]
        %v2476 = vld [vmem:[%s1914 + $0x138] sm:$0xff]
        %v2477 = vld [vmem:[%s1914 + $0x140] sm:$0xff]
        %v2478 = vld [vmem:[%s1914 + $0x148] sm:$0xff]
        %v2479 = vld [vmem:[%s1914 + $0x150] sm:$0xff]
        %v2480 = vld [vmem:[%s1914 + $0x158] sm:$0xff]
        %v2481 = vld [vmem:[%s1914 + $0x160] sm:$0xff]
        %v2482 = vld [vmem:[%s1914 + $0x168] sm:$0xff]
        %v2483 = vld [vmem:[%s1914 + $0x170] sm:$0xff]
        %v2484 = vld [vmem:[%s1914 + $0x178] sm:$0xff]
        %v2485 = vld [vmem:[%s1923] sm:$0x7]
        %v2486 = vld [vmem:[%s1932] sm:$0x7]
        %v2487 = vld [vmem:[%s1789] sm:$0xff]
        %v2488 = vld [vmem:[%s1789 + $0x8] sm:$0xff]
        %v2489 = vld [vmem:[%s1807] sm:$0xff]
        %v2490 = vld [vmem:[%s1807 + $0x8] sm:$0xff]
        %v2492 = vlaneseq
        %v2493 = vshrl.u32 %v2492, 7
        %v2494 = vsub.s32 0, %v2493
        %v2495 = vrot.slane %v2350, %v2494
        %vm2497 = vcmask 64512
        %v2499 = vsel %vm2497, %v2487, 0
        %v2502 = vsel %vm2497, %v2488, 0
        %2504 = vmatprep.subr.mxu0 0.0
        %2505 = vmatpush1.msra.mxu0 %v2349
        %2506 = vmatprep.subr.mxu0 0.0
        %2507 = vmatpush1.msra.mxu0 0.0
        %2508 = vmatprep.subr.mxu0 0.0
        %2509 = vmatpush1.msra.mxu0 0.0
        %2510 = vmatprep.subr.mxu0 0.0
        %2511 = vmatpush1.msra.mxu0 0.0
        %2512 = vmatprep.subr.mxu0 0.0
        %2513 = vmatpush1.msra.mxu0 0.0
        %2514 = vmatprep.subr.mxu0 0.0
        %2515 = vmatpush1.msra.mxu0 0.0
        %2516 = vmatprep.subr.mxu0 0.0
        %2517 = vmatpush1.msra.mxu0 0.0
        %2518 = vmatprep.subr.mxu0 0.0
        %2519 = vmatpush1.msra.mxu0 0.0
        %2520 = vmatprep.subr.mxu0 0.0
        %2521 = vmatpush1.msra.mxu0 0.0
        %2522 = vmatprep.subr.mxu0 0.0
        %2523 = vmatpush1.msra.mxu0 0.0
        %2524 = vmatprep.subr.mxu0 0.0
        %2525 = vmatpush1.msra.mxu0 0.0
        %2526 = vmatprep.subr.mxu0 0.0
        %2527 = vmatpush1.msra.mxu0 0.0
        %2528 = vmatprep.subr.mxu0 0.0
        %2529 = vmatpush1.msra.mxu0 0.0
        %2530 = vmatprep.subr.mxu0 0.0
        %2531 = vmatpush1.msra.mxu0 0.0
        %2532 = vmatprep.subr.mxu0 0.0
        %2533 = vmatpush1.msra.mxu0 0.0
        %2534 = vmatprep.subr.mxu0 0.0
        %2535 = vmatpush1.msra.mxu0 0.0
        %2536 = vmatprep.subr.mxu0 0.0
        %2537 = vmatpush1.msra.mxu0 0.0
        %2538 = vmatprep.subr.mxu0 0.0
        %2539 = vmatpush1.msra.mxu0 0.0
        %2540 = vmatprep.subr.mxu0 0.0
        %2541 = vmatpush1.msra.mxu0 0.0
        %2542 = vmatprep.subr.mxu0 0.0
        %2543 = vmatpush1.msra.mxu0 0.0
        %2544 = vmatprep.subr.mxu0 0.0
        %2545 = vmatpush1.msra.mxu0 0.0
        %2546 = vmatprep.subr.mxu0 0.0
        %2547 = vmatpush1.msra.mxu0 0.0
        %2548 = vmatprep.subr.mxu0 0.0
        %2549 = vmatpush1.msra.mxu0 0.0
        %2550 = vmatprep.subr.mxu0 0.0
        %2551 = vmatpush1.msra.mxu0 0.0
        %2552 = vmatprep.subr.mxu0 0.0
        %2553 = vmatpush1.msra.mxu0 0.0
        %2554 = vmatprep.subr.mxu0 0.0
        %2555 = vmatpush1.msra.mxu0 0.0
        %2556 = vmatprep.subr.mxu0 0.0
        %2557 = vmatpush1.msra.mxu0 0.0
        %2558 = vmatprep.subr.mxu0 0.0
        %2559 = vmatpush1.msra.mxu0 0.0
        %2560 = vmatprep.subr.mxu0 0.0
        %2561 = vmatpush1.msra.mxu0 0.0
        %2562 = vmatprep.subr.mxu0 0.0
        %2563 = vmatpush1.msra.mxu0 0.0
        %2564 = vmatprep.subr.mxu0 0.0
        %2565 = vmatpush1.msra.mxu0 0.0
        %2566 = vmatprep.subr.mxu0 0.0
        %2567 = vmatpush1.msra.mxu0 0.0
        %2568 = vmatprep.mubr.f32.mxu0 0.0
        %2569 = vmatmul.mubr.f32.gmra.mrb[0].mxu0 %v2499
        %v2570 = vpop.f32.mrb[0].mxu0
        %v2571 = vadd.f32 %v2495, %v2570
        %v2572 = vpop.f32.mrb[0].mxu0
        %2573 = vmatprep.mubr.f32.mxu0 0.0
        %2574 = vmatmul.mubr.f32.gmra.mrb[0].mxu0 %v2502
        %v2575 = vpop.f32.mrb[0].mxu0
        %v2576 = vadd.f32 %v2495, %v2575
        %v2577 = vpop.f32.mrb[0].mxu0
        %2578 = vdwg.mxu0
        %vm2579 = vcmp.ge.f32.partialorder %v2571, 0.0
        %vm2580 = vcmp.ge.f32.partialorder %v2576, 0.0
        %v2581 = vmul.f32 %v2571, 0.01
        %v2582 = vmul.f32 %v2576, 0.01
        %v2583 = vsel %vm2579, %v2571, %v2581
        %v2584 = vsel %vm2580, %v2576, %v2582
        %v2586 = vlaneseq
        %v2587 = vshrl.u32 %v2586, 7
        %v2588 = vsub.s32 0, %v2587
        %v2589 = vrot.slane %v2353, %v2588
        %2591 = vmatprep.subr.mxu0 0.0
        %2592 = vmatpush1.msra.mxu0 %v2351
        %2593 = vmatprep.subr.mxu0 0.0
        %2594 = vmatpush1.msra.mxu0 0.0
        %2595 = vmatprep.subr.mxu0 0.0
        %2596 = vmatpush1.msra.mxu0 0.0
        %2597 = vmatprep.subr.mxu0 0.0
        %2598 = vmatpush1.msra.mxu0 0.0
        %2599 = vmatprep.subr.mxu0 0.0
        %2600 = vmatpush1.msra.mxu0 0.0
        %2601 = vmatprep.subr.mxu0 0.0
        %2602 = vmatpush1.msra.mxu0 0.0
        %2603 = vmatprep.subr.mxu0 0.0
        %2604 = vmatpush1.msra.mxu0 0.0
        %2605 = vmatprep.subr.mxu0 0.0
        %2606 = vmatpush1.msra.mxu0 0.0
        %2607 = vmatprep.subr.mxu0 0.0
        %2608 = vmatpush1.msra.mxu0 0.0
        %2609 = vmatprep.subr.mxu0 0.0
        %2610 = vmatpush1.msra.mxu0 0.0
        %2611 = vmatprep.subr.mxu0 0.0
        %2612 = vmatpush1.msra.mxu0 0.0
        %2613 = vmatprep.subr.mxu0 0.0
        %2614 = vmatpush1.msra.mxu0 0.0
        %2615 = vmatprep.subr.mxu0 0.0
        %2616 = vmatpush1.msra.mxu0 0.0
        %2617 = vmatprep.subr.mxu0 0.0
        %2618 = vmatpush1.msra.mxu0 0.0
        %2619 = vmatprep.subr.mxu0 0.0
        %2620 = vmatpush1.msra.mxu0 0.0
        %2621 = vmatprep.subr.mxu0 0.0
        %2622 = vmatpush1.msra.mxu0 0.0
        %2623 = vmatprep.subr.mxu0 0.0
        %2624 = vmatpush1.msra.mxu0 0.0
        %2625 = vmatprep.subr.mxu0 0.0
        %2626 = vmatpush1.msra.mxu0 0.0
        %2627 = vmatprep.subr.mxu0 0.0
        %2628 = vmatpush1.msra.mxu0 0.0
        %2629 = vmatprep.subr.mxu0 0.0
        %2630 = vmatpush1.msra.mxu0 0.0
        %2631 = vmatprep.subr.mxu0 0.0
        %2632 = vmatpush1.msra.mxu0 0.0
        %2633 = vmatprep.subr.mxu0 0.0
        %2634 = vmatpush1.msra.mxu0 0.0
        %2635 = vmatprep.subr.mxu0 0.0
        %2636 = vmatpush1.msra.mxu0 0.0
        %2637 = vmatprep.subr.mxu0 0.0
        %2638 = vmatpush1.msra.mxu0 0.0
        %2639 = vmatprep.subr.mxu0 0.0
        %2640 = vmatpush1.msra.mxu0 0.0
        %2641 = vmatprep.subr.mxu0 0.0
        %2642 = vmatpush1.msra.mxu0 0.0
        %2643 = vmatprep.subr.mxu0 0.0
        %2644 = vmatpush1.msra.mxu0 0.0
        %2645 = vmatprep.subr.mxu0 0.0
        %2646 = vmatpush1.msra.mxu0 0.0
        %2647 = vmatprep.subr.mxu0 0.0
        %2648 = vmatpush1.msra.mxu0 0.0
        %2649 = vmatprep.subr.mxu0 0.0
        %2650 = vmatpush1.msra.mxu0 0.0
        %2651 = vmatprep.subr.mxu0 0.0
        %2652 = vmatpush1.msra.mxu0 0.0
        %2653 = vmatprep.subr.mxu0 0.0
        %2654 = vmatpush1.msra.mxu0 0.0
        %2655 = vmatprep.mubr.f32.mxu0 0.0
        %2656 = vmatmul.mubr.f32.gmra.mrb[0].mxu0 %v2499
        %v2657 = vpop.f32.mrb[0].mxu0
        %v2658 = vadd.f32 %v2589, %v2657
        %v2659 = vpop.f32.mrb[0].mxu0
        %2660 = vmatprep.mubr.f32.mxu0 0.0
        %2661 = vmatmul.mubr.f32.gmra.mrb[0].mxu0 %v2502
        %v2662 = vpop.f32.mrb[0].mxu0
        %v2663 = vadd.f32 %v2589, %v2662
        %v2664 = vpop.f32.mrb[0].mxu0
        %2665 = vdwg.mxu0
        %v2667 = vlaneseq
        %v2668 = vshrl.u32 %v2667, 7
        %v2669 = vsub.s32 0, %v2668
        %v2670 = vrot.slane %v2371, %v2669
        %2672 = vmatprep.subr.mxu0 0.0
        %2673 = vmatpush1.msra.mxu0 %v2354
        %2674 = vmatprep.subr.mxu0 0.0
        %2675 = vmatpush1.msra.mxu0 %v2355
        %2676 = vmatprep.subr.mxu0 0.0
        %2677 = vmatpush1.msra.mxu0 %v2356
        %2678 = vmatprep.subr.mxu0 0.0
        %2679 = vmatpush1.msra.mxu0 %v2357
        %2680 = vmatprep.subr.mxu0 0.0
        %2681 = vmatpush1.msra.mxu0 %v2358
        %2682 = vmatprep.subr.mxu0 0.0
        %2683 = vmatpush1.msra.mxu0 %v2359
        %2684 = vmatprep.subr.mxu0 0.0
        %2685 = vmatpush1.msra.mxu0 %v2360
        %2686 = vmatprep.subr.mxu0 0.0
        %2687 = vmatpush1.msra.mxu0 %v2361
        %2688 = vmatprep.subr.mxu0 0.0
        %2689 = vmatpush1.msra.mxu0 %v2362
        %2690 = vmatprep.subr.mxu0 0.0
        %2691 = vmatpush1.msra.mxu0 %v2363
        %2692 = vmatprep.subr.mxu0 0.0
        %2693 = vmatpush1.msra.mxu0 %v2364
        %2694 = vmatprep.subr.mxu0 0.0
        %2695 = vmatpush1.msra.mxu0 %v2365
        %2696 = vmatprep.subr.mxu0 0.0
        %2697 = vmatpush1.msra.mxu0 %v2366
        %2698 = vmatprep.subr.mxu0 0.0
        %2699 = vmatpush1.msra.mxu0 %v2367
        %2700 = vmatprep.subr.mxu0 0.0
        %2701 = vmatpush1.msra.mxu0 %v2368
        %2702 = vmatprep.subr.mxu0 0.0
        %2703 = vmatpush1.msra.mxu0 %v2369
        %2704 = vmatprep.subr.mxu0 0.0
        %2705 = vmatpush1.msra.mxu0 0.0
        %2706 = vmatprep.subr.mxu0 0.0
        %2707 = vmatpush1.msra.mxu0 0.0
        %2708 = vmatprep.subr.mxu0 0.0
        %2709 = vmatpush1.msra.mxu0 0.0
        %2710 = vmatprep.subr.mxu0 0.0
        %2711 = vmatpush1.msra.mxu0 0.0
        %2712 = vmatprep.subr.mxu0 0.0
        %2713 = vmatpush1.msra.mxu0 0.0
        %2714 = vmatprep.subr.mxu0 0.0
        %2715 = vmatpush1.msra.mxu0 0.0
        %2716 = vmatprep.subr.mxu0 0.0
        %2717 = vmatpush1.msra.mxu0 0.0
        %2718 = vmatprep.subr.mxu0 0.0
        %2719 = vmatpush1.msra.mxu0 0.0
        %2720 = vmatprep.subr.mxu0 0.0
        %2721 = vmatpush1.msra.mxu0 0.0
        %2722 = vmatprep.subr.mxu0 0.0
        %2723 = vmatpush1.msra.mxu0 0.0
        %2724 = vmatprep.subr.mxu0 0.0
        %2725 = vmatpush1.msra.mxu0 0.0
        %2726 = vmatprep.subr.mxu0 0.0
        %2727 = vmatpush1.msra.mxu0 0.0
        %2728 = vmatprep.subr.mxu0 0.0
        %2729 = vmatpush1.msra.mxu0 0.0
        %2730 = vmatprep.subr.mxu0 0.0
        %2731 = vmatpush1.msra.mxu0 0.0
        %2732 = vmatprep.subr.mxu0 0.0
        %2733 = vmatpush1.msra.mxu0 0.0
        %2734 = vmatprep.subr.mxu0 0.0
        %2735 = vmatpush1.msra.mxu0 0.0
        %2736 = vmatprep.mubr.f32.mxu0 0.0
        %2737 = vmatmul.mubr.f32.gmra.mrb[0].mxu0 %v2583
        %v2738 = vpop.f32.mrb[0].mxu0
        %v2739 = vadd.f32 %v2670, %v2738
        %v2740 = vpop.f32.mrb[0].mxu0
        %2741 = vmatprep.mubr.f32.mxu0 0.0
        %2742 = vmatmul.mubr.f32.gmra.mrb[0].mxu0 %v2584
        %v2743 = vpop.f32.mrb[0].mxu0
        %v2744 = vadd.f32 %v2670, %v2743
        %v2745 = vpop.f32.mrb[0].mxu0
        %2746 = vdwg.mxu0
        %vm2747 = vcmask 130048
        %v2748 = vsel %vm2747, %v2489, 0.0
        %2749 = vadd.xlane.f32.xlu0 %v2748
        %v2750 = vpop.xlane.xlu0 %2749
        %v2751 = vsel %vm2747, %v2490, 0.0
        %2752 = vadd.xlane.f32.xlu0 %v2751
        %v2753 = vpop.xlane.xlu0 %2752
        %vm2754 = vcmp.gt.f32.partialorder %v2750, 0.0
        %vm2755 = vcmp.gt.f32.partialorder %v2753, 0.0
        %v2756 = vsel %vm2754, 1, 0
        %v2757 = vsel %vm2755, 1, 0
        %v2758 = vcvt.s32.f32 %v2756
        %v2759 = vcvt.s32.f32 %v2757
        %v2760 = vld [vmem:[%s1798] sm:$0xff]
        %v2761 = vld [vmem:[%s1798 + $0x8] sm:$0xff]
        %v2762 = vld [vmem:[%s1798 + $0x10] sm:$0xff]
        %v2763 = vld [vmem:[%s1798 + $0x18] sm:$0xff]
        %v2764 = vld [vmem:[%s1798 + $0x20] sm:$0xff]
        %v2765 = vld [vmem:[%s1798 + $0x28] sm:$0xff]
        %v2766 = vld [vmem:[%s1798 + $0x30] sm:$0xff]
        %v2767 = vld [vmem:[%s1798 + $0x38] sm:$0xff]
        %v2768 = vld [vmem:[%s1798 + $0x40] sm:$0xff]
        %v2769 = vld [vmem:[%s1798 + $0x48] sm:$0xff]
        %v2770 = vld [vmem:[%s1798 + $0x50] sm:$0xff]
        %v2771 = vld [vmem:[%s1798 + $0x58] sm:$0xff]
        %v2772 = vld [vmem:[%s1798 + $0x60] sm:$0xff]
        %v2773 = vld [vmem:[%s1798 + $0x68] sm:$0xff]
        %v2774 = vld [vmem:[%s1798 + $0x70] sm:$0xff]
        %v2775 = vld [vmem:[%s1798 + $0x78] sm:$0xff]
        %v2776 = vld [vmem:[%s1798 + $0x80] sm:$0xff]
        %v2777 = vld [vmem:[%s1798 + $0x88] sm:$0xff]
        %v2778 = vld [vmem:[%s1798 + $0x90] sm:$0xff]
        %v2779 = vld [vmem:[%s1798 + $0x98] sm:$0xff]
        %v2780 = vld [vmem:[%s1798 + $0xa0] sm:$0xff]
        %v2781 = vld [vmem:[%s1798 + $0xa8] sm:$0xff]
        %v2782 = vld [vmem:[%s1798 + $0xb0] sm:$0xff]
        %v2783 = vld [vmem:[%s1798 + $0xb8] sm:$0xff]
        %v2784 = vld [vmem:[%s1798 + $0xc0] sm:$0xff]
        %v2785 = vld [vmem:[%s1798 + $0xc8] sm:$0xff]
        %v2786 = vld [vmem:[%s1798 + $0xd0] sm:$0xff]
        %v2787 = vld [vmem:[%s1798 + $0xd8] sm:$0xff]
        %v2788 = vld [vmem:[%s1798 + $0xe0] sm:$0xff]
        %v2789 = vld [vmem:[%s1798 + $0xe8] sm:$0xff]
        %v2790 = vld [vmem:[%s1798 + $0xf0] sm:$0xff]
        %v2791 = vld [vmem:[%s1798 + $0xf8] sm:$0xff]
        %v2793 = vsel %vm2497, %v2760, 0
        %v2796 = vsel %vm2497, %v2761, 0
        %v2799 = vsel %vm2497, %v2762, 0
        %v2802 = vsel %vm2497, %v2763, 0
        %v2805 = vsel %vm2497, %v2764, 0
        %v2808 = vsel %vm2497, %v2765, 0
        %v2811 = vsel %vm2497, %v2766, 0
        %v2814 = vsel %vm2497, %v2767, 0
        %v2817 = vsel %vm2497, %v2768, 0
        %v2820 = vsel %vm2497, %v2769, 0
        %v2823 = vsel %vm2497, %v2770, 0
        %v2826 = vsel %vm2497, %v2771, 0
        %v2829 = vsel %vm2497, %v2772, 0
        %v2832 = vsel %vm2497, %v2773, 0
        %v2835 = vsel %vm2497, %v2774, 0
        %v2838 = vsel %vm2497, %v2775, 0
        %v2841 = vsel %vm2497, %v2776, 0
        %v2844 = vsel %vm2497, %v2777, 0
        %v2847 = vsel %vm2497, %v2778, 0
        %v2850 = vsel %vm2497, %v2779, 0
        %v2853 = vsel %vm2497, %v2780, 0
        %v2856 = vsel %vm2497, %v2781, 0
        %v2859 = vsel %vm2497, %v2782, 0
        %v2862 = vsel %vm2497, %v2783, 0
        %v2865 = vsel %vm2497, %v2784, 0
        %v2868 = vsel %vm2497, %v2785, 0
        %v2871 = vsel %vm2497, %v2786, 0
        %v2874 = vsel %vm2497, %v2787, 0
        %v2877 = vsel %vm2497, %v2788, 0
        %v2880 = vsel %vm2497, %v2789, 0
        %v2883 = vsel %vm2497, %v2790, 0
        %v2886 = vsel %vm2497, %v2791, 0
        %2888 = vmatprep.subr.mxu0 0.0
        %2889 = vmatpush1.msra.mxu0 %v2352
        %2890 = vmatprep.subr.mxu0 0.0
        %2891 = vmatpush1.msra.mxu0 0.0
        %2892 = vmatprep.subr.mxu0 0.0
        %2893 = vmatpush1.msra.mxu0 0.0
        %2894 = vmatprep.subr.mxu0 0.0
        %2895 = vmatpush1.msra.mxu0 0.0
        %2896 = vmatprep.subr.mxu0 0.0
        %2897 = vmatpush1.msra.mxu0 0.0
        %2898 = vmatprep.subr.mxu0 0.0
        %2899 = vmatpush1.msra.mxu0 0.0
        %2900 = vmatprep.subr.mxu0 0.0
        %2901 = vmatpush1.msra.mxu0 0.0
        %2902 = vmatprep.subr.mxu0 0.0
        %2903 = vmatpush1.msra.mxu0 0.0
        %2904 = vmatprep.subr.mxu0 0.0
        %2905 = vmatpush1.msra.mxu0 0.0
        %2906 = vmatprep.subr.mxu0 0.0
        %2907 = vmatpush1.msra.mxu0 0.0
        %2908 = vmatprep.subr.mxu0 0.0
        %2909 = vmatpush1.msra.mxu0 0.0
        %2910 = vmatprep.subr.mxu0 0.0
        %2911 = vmatpush1.msra.mxu0 0.0
        %2912 = vmatprep.subr.mxu0 0.0
        %2913 = vmatpush1.msra.mxu0 0.0
        %2914 = vmatprep.subr.mxu0 0.0
        %2915 = vmatpush1.msra.mxu0 0.0
        %2916 = vmatprep.subr.mxu0 0.0
        %2917 = vmatpush1.msra.mxu0 0.0
        %2918 = vmatprep.subr.mxu0 0.0
        %2919 = vmatpush1.msra.mxu0 0.0
        %2920 = vmatprep.subr.mxu0 0.0
        %2921 = vmatpush1.msra.mxu0 0.0
        %2922 = vmatprep.subr.mxu0 0.0
        %2923 = vmatpush1.msra.mxu0 0.0
        %2924 = vmatprep.subr.mxu0 0.0
        %2925 = vmatpush1.msra.mxu0 0.0
        %2926 = vmatprep.subr.mxu0 0.0
        %2927 = vmatpush1.msra.mxu0 0.0
        %2928 = vmatprep.subr.mxu0 0.0
        %2929 = vmatpush1.msra.mxu0 0.0
        %2930 = vmatprep.subr.mxu0 0.0
        %2931 = vmatpush1.msra.mxu0 0.0
        %2932 = vmatprep.subr.mxu0 0.0
        %2933 = vmatpush1.msra.mxu0 0.0
        %2934 = vmatprep.subr.mxu0 0.0
        %2935 = vmatpush1.msra.mxu0 0.0
        %2936 = vmatprep.subr.mxu0 0.0
        %2937 = vmatpush1.msra.mxu0 0.0
        %2938 = vmatprep.subr.mxu0 0.0
        %2939 = vmatpush1.msra.mxu0 0.0
        %2940 = vmatprep.subr.mxu0 0.0
        %2941 = vmatpush1.msra.mxu0 0.0
        %2942 = vmatprep.subr.mxu0 0.0
        %2943 = vmatpush1.msra.mxu0 0.0
        %2944 = vmatprep.subr.mxu0 0.0
        %2945 = vmatpush1.msra.mxu0 0.0
        %2946 = vmatprep.subr.mxu0 0.0
        %2947 = vmatpush1.msra.mxu0 0.0
        %2948 = vmatprep.subr.mxu0 0.0
        %2949 = vmatpush1.msra.mxu0 0.0
        %2950 = vmatprep.subr.mxu0 0.0
        %2951 = vmatpush1.msra.mxu0 0.0
        %2952 = vmatprep.mubr.f32.mxu0 0.0
        %2953 = vmatmul.mubr.f32.gmra.mrb[0].mxu0 %v2793
        %v2954 = vpop.f32.mrb[0].mxu0
        %v2955 = vadd.f32 0.0, %v2954
        %v2956 = vpop.f32.mrb[0].mxu0
        %2957 = vmatprep.mubr.f32.mxu0 0.0
        %2958 = vmatmul.mubr.f32.gmra.mrb[0].mxu0 %v2796
        %v2959 = vpop.f32.mrb[0].mxu0
        %v2960 = vadd.f32 0.0, %v2959
        %v2961 = vpop.f32.mrb[0].mxu0
        %2962 = vmatprep.mubr.f32.mxu0 0.0
        %2963 = vmatmul.mubr.f32.gmra.mrb[0].mxu0 %v2799
        %v2964 = vpop.f32.mrb[0].mxu0
        %v2965 = vadd.f32 0.0, %v2964
        %v2966 = vpop.f32.mrb[0].mxu0
        %2967 = vmatprep.mubr.f32.mxu0 0.0
        %2968 = vmatmul.mubr.f32.gmra.mrb[0].mxu0 %v2802
        %v2969 = vpop.f32.mrb[0].mxu0
        %v2970 = vadd.f32 0.0, %v2969
        %v2971 = vpop.f32.mrb[0].mxu0
        %2972 = vmatprep.mubr.f32.mxu0 0.0
        %2973 = vmatmul.mubr.f32.gmra.mrb[0].mxu0 %v2805
        %v2974 = vpop.f32.mrb[0].mxu0
        %v2975 = vadd.f32 0.0, %v2974
        %v2976 = vpop.f32.mrb[0].mxu0
        %2977 = vmatprep.mubr.f32.mxu0 0.0
        %2978 = vmatmul.mubr.f32.gmra.mrb[0].mxu0 %v2808
        %v2979 = vpop.f32.mrb[0].mxu0
        %v2980 = vadd.f32 0.0, %v2979
        %v2981 = vpop.f32.mrb[0].mxu0
        %2982 = vmatprep.mubr.f32.mxu0 0.0
        %2983 = vmatmul.mubr.f32.gmra.mrb[0].mxu0 %v2811
        %v2984 = vpop.f32.mrb[0].mxu0
        %v2985 = vadd.f32 0.0, %v2984
        %v2986 = vpop.f32.mrb[0].mxu0
        %2987 = vmatprep.mubr.f32.mxu0 0.0
        %2988 = vmatmul.mubr.f32.gmra.mrb[0].mxu0 %v2814
        %v2989 = vpop.f32.mrb[0].mxu0
        %v2990 = vadd.f32 0.0, %v2989
        %v2991 = vpop.f32.mrb[0].mxu0
        %2992 = vmatprep.mubr.f32.mxu0 0.0
        %2993 = vmatmul.mubr.f32.gmra.mrb[0].mxu0 %v2817
        %v2994 = vpop.f32.mrb[0].mxu0
        %v2995 = vadd.f32 0.0, %v2994
        %v2996 = vpop.f32.mrb[0].mxu0
        %2997 = vmatprep.mubr.f32.mxu0 0.0
        %2998 = vmatmul.mubr.f32.gmra.mrb[0].mxu0 %v2820
        %v2999 = vpop.f32.mrb[0].mxu0
        %v3000 = vadd.f32 0.0, %v2999
        %v3001 = vpop.f32.mrb[0].mxu0
        %3002 = vmatprep.mubr.f32.mxu0 0.0
        %3003 = vmatmul.mubr.f32.gmra.mrb[0].mxu0 %v2823
        %v3004 = vpop.f32.mrb[0].mxu0
        %v3005 = vadd.f32 0.0, %v3004
        %v3006 = vpop.f32.mrb[0].mxu0
        %3007 = vmatprep.mubr.f32.mxu0 0.0
        %3008 = vmatmul.mubr.f32.gmra.mrb[0].mxu0 %v2826
        %v3009 = vpop.f32.mrb[0].mxu0
        %v3010 = vadd.f32 0.0, %v3009
        %v3011 = vpop.f32.mrb[0].mxu0
        %3012 = vmatprep.mubr.f32.mxu0 0.0
        %3013 = vmatmul.mubr.f32.gmra.mrb[0].mxu0 %v2829
        %v3014 = vpop.f32.mrb[0].mxu0
        %v3015 = vadd.f32 0.0, %v3014
        %v3016 = vpop.f32.mrb[0].mxu0
        %3017 = vmatprep.mubr.f32.mxu0 0.0
        %3018 = vmatmul.mubr.f32.gmra.mrb[0].mxu0 %v2832
        %v3019 = vpop.f32.mrb[0].mxu0
        %v3020 = vadd.f32 0.0, %v3019
        %v3021 = vpop.f32.mrb[0].mxu0
        %3022 = vmatprep.mubr.f32.mxu0 0.0
        %3023 = vmatmul.mubr.f32.gmra.mrb[0].mxu0 %v2835
        %v3024 = vpop.f32.mrb[0].mxu0
        %v3025 = vadd.f32 0.0, %v3024
        %v3026 = vpop.f32.mrb[0].mxu0
        %3027 = vmatprep.mubr.f32.mxu0 0.0
        %3028 = vmatmul.mubr.f32.gmra.mrb[0].mxu0 %v2838
        %v3029 = vpop.f32.mrb[0].mxu0
        %v3030 = vadd.f32 0.0, %v3029
        %v3031 = vpop.f32.mrb[0].mxu0
        %3032 = vmatprep.mubr.f32.mxu0 0.0
        %3033 = vmatmul.mubr.f32.gmra.mrb[0].mxu0 %v2841
        %v3034 = vpop.f32.mrb[0].mxu0
        %v3035 = vadd.f32 0.0, %v3034
        %v3036 = vpop.f32.mrb[0].mxu0
        %3037 = vmatprep.mubr.f32.mxu0 0.0
        %3038 = vmatmul.mubr.f32.gmra.mrb[0].mxu0 %v2844
        %v3039 = vpop.f32.mrb[0].mxu0
        %v3040 = vadd.f32 0.0, %v3039
        %v3041 = vpop.f32.mrb[0].mxu0
        %3042 = vmatprep.mubr.f32.mxu0 0.0
        %3043 = vmatmul.mubr.f32.gmra.mrb[0].mxu0 %v2847
        %v3044 = vpop.f32.mrb[0].mxu0
        %v3045 = vadd.f32 0.0, %v3044
        %v3046 = vpop.f32.mrb[0].mxu0
        %3047 = vmatprep.mubr.f32.mxu0 0.0
        %3048 = vmatmul.mubr.f32.gmra.mrb[0].mxu0 %v2850
        %v3049 = vpop.f32.mrb[0].mxu0
        %v3050 = vadd.f32 0.0, %v3049
        %v3051 = vpop.f32.mrb[0].mxu0
        %3052 = vmatprep.mubr.f32.mxu0 0.0
        %3053 = vmatmul.mubr.f32.gmra.mrb[0].mxu0 %v2853
        %v3054 = vpop.f32.mrb[0].mxu0
        %v3055 = vadd.f32 0.0, %v3054
        %v3056 = vpop.f32.mrb[0].mxu0
        %3057 = vmatprep.mubr.f32.mxu0 0.0
        %3058 = vmatmul.mubr.f32.gmra.mrb[0].mxu0 %v2856
        %v3059 = vpop.f32.mrb[0].mxu0
        %v3060 = vadd.f32 0.0, %v3059
        %v3061 = vpop.f32.mrb[0].mxu0
        %3062 = vmatprep.mubr.f32.mxu0 0.0
        %3063 = vmatmul.mubr.f32.gmra.mrb[0].mxu0 %v2859
        %v3064 = vpop.f32.mrb[0].mxu0
        %v3065 = vadd.f32 0.0, %v3064
        %v3066 = vpop.f32.mrb[0].mxu0
        %3067 = vmatprep.mubr.f32.mxu0 0.0
        %3068 = vmatmul.mubr.f32.gmra.mrb[0].mxu0 %v2862
        %v3069 = vpop.f32.mrb[0].mxu0
        %v3070 = vadd.f32 0.0, %v3069
        %v3071 = vpop.f32.mrb[0].mxu0
        %3072 = vmatprep.mubr.f32.mxu0 0.0
        %3073 = vmatmul.mubr.f32.gmra.mrb[0].mxu0 %v2865
        %v3074 = vpop.f32.mrb[0].mxu0
        %v3075 = vadd.f32 0.0, %v3074
        %v3076 = vpop.f32.mrb[0].mxu0
        %3077 = vmatprep.mubr.f32.mxu0 0.0
        %3078 = vmatmul.mubr.f32.gmra.mrb[0].mxu0 %v2868
        %v3079 = vpop.f32.mrb[0].mxu0
        %v3080 = vadd.f32 0.0, %v3079
        %v3081 = vpop.f32.mrb[0].mxu0
        %3082 = vmatprep.mubr.f32.mxu0 0.0
        %3083 = vmatmul.mubr.f32.gmra.mrb[0].mxu0 %v2871
        %v3084 = vpop.f32.mrb[0].mxu0
        %v3085 = vadd.f32 0.0, %v3084
        %v3086 = vpop.f32.mrb[0].mxu0
        %3087 = vmatprep.mubr.f32.mxu0 0.0
        %3088 = vmatmul.mubr.f32.gmra.mrb[0].mxu0 %v2874
        %v3089 = vpop.f32.mrb[0].mxu0
        %v3090 = vadd.f32 0.0, %v3089
        %v3091 = vpop.f32.mrb[0].mxu0
        %3092 = vmatprep.mubr.f32.mxu0 0.0
        %3093 = vmatmul.mubr.f32.gmra.mrb[0].mxu0 %v2877
        %v3094 = vpop.f32.mrb[0].mxu0
        %v3095 = vadd.f32 0.0, %v3094
        %v3096 = vpop.f32.mrb[0].mxu0
        %3097 = vmatprep.mubr.f32.mxu0 0.0
        %3098 = vmatmul.mubr.f32.gmra.mrb[0].mxu0 %v2880
        %v3099 = vpop.f32.mrb[0].mxu0
        %v3100 = vadd.f32 0.0, %v3099
        %v3101 = vpop.f32.mrb[0].mxu0
        %3102 = vmatprep.mubr.f32.mxu0 0.0
        %3103 = vmatmul.mubr.f32.gmra.mrb[0].mxu0 %v2883
        %v3104 = vpop.f32.mrb[0].mxu0
        %v3105 = vadd.f32 0.0, %v3104
        %v3106 = vpop.f32.mrb[0].mxu0
        %3107 = vmatprep.mubr.f32.mxu0 0.0
        %3108 = vmatmul.mubr.f32.gmra.mrb[0].mxu0 %v2886
        %v3109 = vpop.f32.mrb[0].mxu0
        %v3110 = vadd.f32 0.0, %v3109
        %v3111 = vpop.f32.mrb[0].mxu0
        %3112 = vdwg.mxu0
        %v3113 = vadd.f32 %v2658, %v2955
        %v3114 = vadd.f32 %v2663, %v2960
        %v3115 = vadd.f32 %v2658, %v2965
        %v3116 = vadd.f32 %v2663, %v2970
        %v3117 = vadd.f32 %v2658, %v2975
        %v3118 = vadd.f32 %v2663, %v2980
        %v3119 = vadd.f32 %v2658, %v2985
        %v3120 = vadd.f32 %v2663, %v2990
        %v3121 = vadd.f32 %v2658, %v2995
        %v3122 = vadd.f32 %v2663, %v3000
        %v3123 = vadd.f32 %v2658, %v3005
        %v3124 = vadd.f32 %v2663, %v3010
        %v3125 = vadd.f32 %v2658, %v3015
        %v3126 = vadd.f32 %v2663, %v3020
        %v3127 = vadd.f32 %v2658, %v3025
        %v3128 = vadd.f32 %v2663, %v3030
        %v3129 = vadd.f32 %v2658, %v3035
        %v3130 = vadd.f32 %v2663, %v3040
        %v3131 = vadd.f32 %v2658, %v3045
        %v3132 = vadd.f32 %v2663, %v3050
        %v3133 = vadd.f32 %v2658, %v3055
        %v3134 = vadd.f32 %v2663, %v3060
        %v3135 = vadd.f32 %v2658, %v3065
        %v3136 = vadd.f32 %v2663, %v3070
        %v3137 = vadd.f32 %v2658, %v3075
        %v3138 = vadd.f32 %v2663, %v3080
        %v3139 = vadd.f32 %v2658, %v3085
        %v3140 = vadd.f32 %v2663, %v3090
        %v3141 = vadd.f32 %v2658, %v3095
        %v3142 = vadd.f32 %v2663, %v3100
        %v3143 = vadd.f32 %v2658, %v3105
        %v3144 = vadd.f32 %v2663, %v3110
        %vm3145 = vcmp.ge.f32.partialorder %v3113, 0.0
        %vm3146 = vcmp.ge.f32.partialorder %v3114, 0.0
        %vm3147 = vcmp.ge.f32.partialorder %v3115, 0.0
        %vm3148 = vcmp.ge.f32.partialorder %v3116, 0.0
        %vm3149 = vcmp.ge.f32.partialorder %v3117, 0.0
        %vm3150 = vcmp.ge.f32.partialorder %v3118, 0.0
        %vm3151 = vcmp.ge.f32.partialorder %v3119, 0.0
        %vm3152 = vcmp.ge.f32.partialorder %v3120, 0.0
        %vm3153 = vcmp.ge.f32.partialorder %v3121, 0.0
        %vm3154 = vcmp.ge.f32.partialorder %v3122, 0.0
        %vm3155 = vcmp.ge.f32.partialorder %v3123, 0.0
        %vm3156 = vcmp.ge.f32.partialorder %v3124, 0.0
        %vm3157 = vcmp.ge.f32.partialorder %v3125, 0.0
        %vm3158 = vcmp.ge.f32.partialorder %v3126, 0.0
        %vm3159 = vcmp.ge.f32.partialorder %v3127, 0.0
        %vm3160 = vcmp.ge.f32.partialorder %v3128, 0.0
        %vm3161 = vcmp.ge.f32.partialorder %v3129, 0.0
        %vm3162 = vcmp.ge.f32.partialorder %v3130, 0.0
        %vm3163 = vcmp.ge.f32.partialorder %v3131, 0.0
        %vm3164 = vcmp.ge.f32.partialorder %v3132, 0.0
        %vm3165 = vcmp.ge.f32.partialorder %v3133, 0.0
        %vm3166 = vcmp.ge.f32.partialorder %v3134, 0.0
        %vm3167 = vcmp.ge.f32.partialorder %v3135, 0.0
        %vm3168 = vcmp.ge.f32.partialorder %v3136, 0.0
        %vm3169 = vcmp.ge.f32.partialorder %v3137, 0.0
        %vm3170 = vcmp.ge.f32.partialorder %v3138, 0.0
        %vm3171 = vcmp.ge.f32.partialorder %v3139, 0.0
        %vm3172 = vcmp.ge.f32.partialorder %v3140, 0.0
        %vm3173 = vcmp.ge.f32.partialorder %v3141, 0.0
        %vm3174 = vcmp.ge.f32.partialorder %v3142, 0.0
        %vm3175 = vcmp.ge.f32.partialorder %v3143, 0.0
        %vm3176 = vcmp.ge.f32.partialorder %v3144, 0.0
        %v3177 = vmul.f32 %v3113, 0.01
        %v3178 = vmul.f32 %v3114, 0.01
        %v3179 = vmul.f32 %v3115, 0.01
        %v3180 = vmul.f32 %v3116, 0.01
        %v3181 = vmul.f32 %v3117, 0.01
        %v3182 = vmul.f32 %v3118, 0.01
        %v3183 = vmul.f32 %v3119, 0.01
        %v3184 = vmul.f32 %v3120, 0.01
        %v3185 = vmul.f32 %v3121, 0.01
        %v3186 = vmul.f32 %v3122, 0.01
        %v3187 = vmul.f32 %v3123, 0.01
        %v3188 = vmul.f32 %v3124, 0.01
        %v3189 = vmul.f32 %v3125, 0.01
        %v3190 = vmul.f32 %v3126, 0.01
        %v3191 = vmul.f32 %v3127, 0.01
        %v3192 = vmul.f32 %v3128, 0.01
        %v3193 = vmul.f32 %v3129, 0.01
        %v3194 = vmul.f32 %v3130, 0.01
        %v3195 = vmul.f32 %v3131, 0.01
        %v3196 = vmul.f32 %v3132, 0.01
        %v3197 = vmul.f32 %v3133, 0.01
        %v3198 = vmul.f32 %v3134, 0.01
        %v3199 = vmul.f32 %v3135, 0.01
        %v3200 = vmul.f32 %v3136, 0.01
        %v3201 = vmul.f32 %v3137, 0.01
        %v3202 = vmul.f32 %v3138, 0.01
        %v3203 = vmul.f32 %v3139, 0.01
        %v3204 = vmul.f32 %v3140, 0.01
        %v3205 = vmul.f32 %v3141, 0.01
        %v3206 = vmul.f32 %v3142, 0.01
        %v3207 = vmul.f32 %v3143, 0.01
        %v3208 = vmul.f32 %v3144, 0.01
        %v3209 = vsel %vm3145, %v3113, %v3177
        %v3210 = vsel %vm3146, %v3114, %v3178
        %v3211 = vsel %vm3147, %v3115, %v3179
        %v3212 = vsel %vm3148, %v3116, %v3180
        %v3213 = vsel %vm3149, %v3117, %v3181
        %v3214 = vsel %vm3150, %v3118, %v3182
        %v3215 = vsel %vm3151, %v3119, %v3183
        %v3216 = vsel %vm3152, %v3120, %v3184
        %v3217 = vsel %vm3153, %v3121, %v3185
        %v3218 = vsel %vm3154, %v3122, %v3186
        %v3219 = vsel %vm3155, %v3123, %v3187
        %v3220 = vsel %vm3156, %v3124, %v3188
        %v3221 = vsel %vm3157, %v3125, %v3189
        %v3222 = vsel %vm3158, %v3126, %v3190
        %v3223 = vsel %vm3159, %v3127, %v3191
        %v3224 = vsel %vm3160, %v3128, %v3192
        %v3225 = vsel %vm3161, %v3129, %v3193
        %v3226 = vsel %vm3162, %v3130, %v3194
        %v3227 = vsel %vm3163, %v3131, %v3195
        %v3228 = vsel %vm3164, %v3132, %v3196
        %v3229 = vsel %vm3165, %v3133, %v3197
        %v3230 = vsel %vm3166, %v3134, %v3198
        %v3231 = vsel %vm3167, %v3135, %v3199
        %v3232 = vsel %vm3168, %v3136, %v3200
        %v3233 = vsel %vm3169, %v3137, %v3201
        %v3234 = vsel %vm3170, %v3138, %v3202
        %v3235 = vsel %vm3171, %v3139, %v3203
        %v3236 = vsel %vm3172, %v3140, %v3204
        %v3237 = vsel %vm3173, %v3141, %v3205
        %v3238 = vsel %vm3174, %v3142, %v3206
        %v3239 = vsel %vm3175, %v3143, %v3207
        %v3240 = vsel %vm3176, %v3144, %v3208
        %v3242 = vlaneseq
        %v3243 = vshrl.u32 %v3242, 7
        %v3244 = vsub.s32 0, %v3243
        %v3245 = vrot.slane %v2370, %v3244
        %v3247 = vmul.f32 %v3209, %v3245
        %v3248 = vmul.f32 %v3210, %v3245
        %v3249 = vmul.f32 %v3211, %v3245
        %v3250 = vmul.f32 %v3212, %v3245
        %v3251 = vmul.f32 %v3213, %v3245
        %v3252 = vmul.f32 %v3214, %v3245
        %v3253 = vmul.f32 %v3215, %v3245
        %v3254 = vmul.f32 %v3216, %v3245
        %v3255 = vmul.f32 %v3217, %v3245
        %v3256 = vmul.f32 %v3218, %v3245
        %v3257 = vmul.f32 %v3219, %v3245
        %v3258 = vmul.f32 %v3220, %v3245
        %v3259 = vmul.f32 %v3221, %v3245
        %v3260 = vmul.f32 %v3222, %v3245
        %v3261 = vmul.f32 %v3223, %v3245
        %v3262 = vmul.f32 %v3224, %v3245
        %v3263 = vmul.f32 %v3225, %v3245
        %v3264 = vmul.f32 %v3226, %v3245
        %v3265 = vmul.f32 %v3227, %v3245
        %v3266 = vmul.f32 %v3228, %v3245
        %v3267 = vmul.f32 %v3229, %v3245
        %v3268 = vmul.f32 %v3230, %v3245
        %v3269 = vmul.f32 %v3231, %v3245
        %v3270 = vmul.f32 %v3232, %v3245
        %v3271 = vmul.f32 %v3233, %v3245
        %v3272 = vmul.f32 %v3234, %v3245
        %v3273 = vmul.f32 %v3235, %v3245
        %v3274 = vmul.f32 %v3236, %v3245
        %v3275 = vmul.f32 %v3237, %v3245
        %v3276 = vmul.f32 %v3238, %v3245
        %v3277 = vmul.f32 %v3239, %v3245
        %v3278 = vmul.f32 %v3240, %v3245
        %3279 = vadd.xlane.f32.xlu0 %v3247
        %v3280 = vpop.xlane.xlu0 %3279
        %3281 = vadd.xlane.f32.xlu0 %v3248
        %v3282 = vpop.xlane.xlu0 %3281
        %3283 = vadd.xlane.f32.xlu0 %v3249
        %v3284 = vpop.xlane.xlu0 %3283
        %3285 = vadd.xlane.f32.xlu0 %v3250
        %v3286 = vpop.xlane.xlu0 %3285
        %3287 = vadd.xlane.f32.xlu0 %v3251
        %v3288 = vpop.xlane.xlu0 %3287
        %3289 = vadd.xlane.f32.xlu0 %v3252
        %v3290 = vpop.xlane.xlu0 %3289
        %3291 = vadd.xlane.f32.xlu0 %v3253
        %v3292 = vpop.xlane.xlu0 %3291
        %3293 = vadd.xlane.f32.xlu0 %v3254
        %v3294 = vpop.xlane.xlu0 %3293
        %3295 = vadd.xlane.f32.xlu0 %v3255
        %v3296 = vpop.xlane.xlu0 %3295
        %3297 = vadd.xlane.f32.xlu0 %v3256
        %v3298 = vpop.xlane.xlu0 %3297
        %3299 = vadd.xlane.f32.xlu0 %v3257
        %v3300 = vpop.xlane.xlu0 %3299
        %3301 = vadd.xlane.f32.xlu0 %v3258
        %v3302 = vpop.xlane.xlu0 %3301
        %3303 = vadd.xlane.f32.xlu0 %v3259
        %v3304 = vpop.xlane.xlu0 %3303
        %3305 = vadd.xlane.f32.xlu0 %v3260
        %v3306 = vpop.xlane.xlu0 %3305
        %3307 = vadd.xlane.f32.xlu0 %v3261
        %v3308 = vpop.xlane.xlu0 %3307
        %3309 = vadd.xlane.f32.xlu0 %v3262
        %v3310 = vpop.xlane.xlu0 %3309
        %3311 = vadd.xlane.f32.xlu0 %v3263
        %v3312 = vpop.xlane.xlu0 %3311
        %3313 = vadd.xlane.f32.xlu0 %v3264
        %v3314 = vpop.xlane.xlu0 %3313
        %3315 = vadd.xlane.f32.xlu0 %v3265
        %v3316 = vpop.xlane.xlu0 %3315
        %3317 = vadd.xlane.f32.xlu0 %v3266
        %v3318 = vpop.xlane.xlu0 %3317
        %3319 = vadd.xlane.f32.xlu0 %v3267
        %v3320 = vpop.xlane.xlu0 %3319
        %3321 = vadd.xlane.f32.xlu0 %v3268
        %v3322 = vpop.xlane.xlu0 %3321
        %3323 = vadd.xlane.f32.xlu0 %v3269
        %v3324 = vpop.xlane.xlu0 %3323
        %3325 = vadd.xlane.f32.xlu0 %v3270
        %v3326 = vpop.xlane.xlu0 %3325
        %3327 = vadd.xlane.f32.xlu0 %v3271
        %v3328 = vpop.xlane.xlu0 %3327
        %3329 = vadd.xlane.f32.xlu0 %v3272
        %v3330 = vpop.xlane.xlu0 %3329
        %3331 = vadd.xlane.f32.xlu0 %v3273
        %v3332 = vpop.xlane.xlu0 %3331
        %3333 = vadd.xlane.f32.xlu0 %v3274
        %v3334 = vpop.xlane.xlu0 %3333
        %3335 = vadd.xlane.f32.xlu0 %v3275
        %v3336 = vpop.xlane.xlu0 %3335
        %3337 = vadd.xlane.f32.xlu0 %v3276
        %v3338 = vpop.xlane.xlu0 %3337
        %3339 = vadd.xlane.f32.xlu0 %v3277
        %v3340 = vpop.xlane.xlu0 %3339
        %3341 = vadd.xlane.f32.xlu0 %v3278
        %v3342 = vpop.xlane.xlu0 %3341
        %3344 = vset.pattern.permute.xlu0 0
        %3345 = vperm.xlu0 %3344, %v2739
        %v3346 = vpop.permute.xlu0 %3345
        %3349 = vset.pattern.permute.xlu0 0
        %3350 = vperm.xlu0 %3349, %v2744
        %v3351 = vpop.permute.xlu0 %3350
        %v3385 = vlaneseq
        %v3386 = vand.u32 %v3385, 127
        %v3387 = vlaneseq
        %v3388 = vshrl.u32 %v3387, 7
        %v3389 = vsub.s32 %v3386, %v3388
        %v3390 = vrot.slane %v3280, %v3389
        %v3391 = vadd.s32 %v3386, 4294967288
        %v3392 = vlaneseq
        %v3393 = vshrl.u32 %v3392, 7
        %v3394 = vsub.s32 %v3391, %v3393
        %v3395 = vrot.slane %v3282, %v3394
        %vm3396 = vcmask 130112
        %v3397 = vsel %vm3396, %v3395, %v3390
        %v3398 = vlaneseq
        %v3399 = vshrl.u32 %v3398, 7
        %v3400 = vsub.s32 %v3386, %v3399
        %v3401 = vrot.slane %v3284, %v3400
        %v3402 = vlaneseq
        %v3403 = vshrl.u32 %v3402, 7
        %v3404 = vsub.s32 %v3391, %v3403
        %v3405 = vrot.slane %v3286, %v3404
        %v3406 = vsel %vm3396, %v3405, %v3401
        %v3407 = vlaneseq
        %v3408 = vshrl.u32 %v3407, 7
        %v3409 = vsub.s32 %v3386, %v3408
        %v3410 = vrot.slane %v3288, %v3409
        %v3411 = vlaneseq
        %v3412 = vshrl.u32 %v3411, 7
        %v3413 = vsub.s32 %v3391, %v3412
        %v3414 = vrot.slane %v3290, %v3413
        %v3415 = vsel %vm3396, %v3414, %v3410
        %v3416 = vlaneseq
        %v3417 = vshrl.u32 %v3416, 7
        %v3418 = vsub.s32 %v3386, %v3417
        %v3419 = vrot.slane %v3292, %v3418
        %v3420 = vlaneseq
        %v3421 = vshrl.u32 %v3420, 7
        %v3422 = vsub.s32 %v3391, %v3421
        %v3423 = vrot.slane %v3294, %v3422
        %v3424 = vsel %vm3396, %v3423, %v3419
        %v3425 = vlaneseq
        %v3426 = vshrl.u32 %v3425, 7
        %v3427 = vsub.s32 %v3386, %v3426
        %v3428 = vrot.slane %v3296, %v3427
        %v3429 = vlaneseq
        %v3430 = vshrl.u32 %v3429, 7
        %v3431 = vsub.s32 %v3391, %v3430
        %v3432 = vrot.slane %v3298, %v3431
        %v3433 = vsel %vm3396, %v3432, %v3428
        %v3434 = vlaneseq
        %v3435 = vshrl.u32 %v3434, 7
        %v3436 = vsub.s32 %v3386, %v3435
        %v3437 = vrot.slane %v3300, %v3436
        %v3438 = vlaneseq
        %v3439 = vshrl.u32 %v3438, 7
        %v3440 = vsub.s32 %v3391, %v3439
        %v3441 = vrot.slane %v3302, %v3440
        %v3442 = vsel %vm3396, %v3441, %v3437
        %v3443 = vlaneseq
        %v3444 = vshrl.u32 %v3443, 7
        %v3445 = vsub.s32 %v3386, %v3444
        %v3446 = vrot.slane %v3304, %v3445
        %v3447 = vlaneseq
        %v3448 = vshrl.u32 %v3447, 7
        %v3449 = vsub.s32 %v3391, %v3448
        %v3450 = vrot.slane %v3306, %v3449
        %v3451 = vsel %vm3396, %v3450, %v3446
        %v3452 = vlaneseq
        %v3453 = vshrl.u32 %v3452, 7
        %v3454 = vsub.s32 %v3386, %v3453
        %v3455 = vrot.slane %v3308, %v3454
        %v3456 = vlaneseq
        %v3457 = vshrl.u32 %v3456, 7
        %v3458 = vsub.s32 %v3391, %v3457
        %v3459 = vrot.slane %v3310, %v3458
        %v3460 = vsel %vm3396, %v3459, %v3455
        %v3461 = vlaneseq
        %v3462 = vshrl.u32 %v3461, 7
        %v3463 = vsub.s32 %v3386, %v3462
        %v3464 = vrot.slane %v3312, %v3463
        %v3465 = vlaneseq
        %v3466 = vshrl.u32 %v3465, 7
        %v3467 = vsub.s32 %v3391, %v3466
        %v3468 = vrot.slane %v3314, %v3467
        %v3469 = vsel %vm3396, %v3468, %v3464
        %v3470 = vlaneseq
        %v3471 = vshrl.u32 %v3470, 7
        %v3472 = vsub.s32 %v3386, %v3471
        %v3473 = vrot.slane %v3316, %v3472
        %v3474 = vlaneseq
        %v3475 = vshrl.u32 %v3474, 7
        %v3476 = vsub.s32 %v3391, %v3475
        %v3477 = vrot.slane %v3318, %v3476
        %v3478 = vsel %vm3396, %v3477, %v3473
        %v3479 = vlaneseq
        %v3480 = vshrl.u32 %v3479, 7
        %v3481 = vsub.s32 %v3386, %v3480
        %v3482 = vrot.slane %v3320, %v3481
        %v3483 = vlaneseq
        %v3484 = vshrl.u32 %v3483, 7
        %v3485 = vsub.s32 %v3391, %v3484
        %v3486 = vrot.slane %v3322, %v3485
        %v3487 = vsel %vm3396, %v3486, %v3482
        %v3488 = vlaneseq
        %v3489 = vshrl.u32 %v3488, 7
        %v3490 = vsub.s32 %v3386, %v3489
        %v3491 = vrot.slane %v3324, %v3490
        %v3492 = vlaneseq
        %v3493 = vshrl.u32 %v3492, 7
        %v3494 = vsub.s32 %v3391, %v3493
        %v3495 = vrot.slane %v3326, %v3494
        %v3496 = vsel %vm3396, %v3495, %v3491
        %v3497 = vlaneseq
        %v3498 = vshrl.u32 %v3497, 7
        %v3499 = vsub.s32 %v3386, %v3498
        %v3500 = vrot.slane %v3328, %v3499
        %v3501 = vlaneseq
        %v3502 = vshrl.u32 %v3501, 7
        %v3503 = vsub.s32 %v3391, %v3502
        %v3504 = vrot.slane %v3330, %v3503
        %v3505 = vsel %vm3396, %v3504, %v3500
        %v3506 = vlaneseq
        %v3507 = vshrl.u32 %v3506, 7
        %v3508 = vsub.s32 %v3386, %v3507
        %v3509 = vrot.slane %v3332, %v3508
        %v3510 = vlaneseq
        %v3511 = vshrl.u32 %v3510, 7
        %v3512 = vsub.s32 %v3391, %v3511
        %v3513 = vrot.slane %v3334, %v3512
        %v3514 = vsel %vm3396, %v3513, %v3509
        %v3515 = vlaneseq
        %v3516 = vshrl.u32 %v3515, 7
        %v3517 = vsub.s32 %v3386, %v3516
        %v3518 = vrot.slane %v3336, %v3517
        %v3519 = vlaneseq
        %v3520 = vshrl.u32 %v3519, 7
        %v3521 = vsub.s32 %v3391, %v3520
        %v3522 = vrot.slane %v3338, %v3521
        %v3523 = vsel %vm3396, %v3522, %v3518
        %v3524 = vlaneseq
        %v3525 = vshrl.u32 %v3524, 7
        %v3526 = vsub.s32 %v3386, %v3525
        %v3527 = vrot.slane %v3340, %v3526
        %v3528 = vlaneseq
        %v3529 = vshrl.u32 %v3528, 7
        %v3530 = vsub.s32 %v3391, %v3529
        %v3531 = vrot.slane %v3342, %v3530
        %v3532 = vsel %vm3396, %v3531, %v3527
        %vm3533 = vcmask 1041409
        %v3534 = vsel %vm3533, %v3406, %v3397
        %vm3535 = vcmask 1042434
        %v3536 = vsel %vm3535, %v3415, %v3534
        %vm3537 = vcmask 1043459
        %v3538 = vsel %vm3537, %v3424, %v3536
        %vm3539 = vcmask 1044484
        %v3540 = vsel %vm3539, %v3433, %v3538
        %vm3541 = vcmask 1045509
        %v3542 = vsel %vm3541, %v3442, %v3540
        %vm3543 = vcmask 1046534
        %v3544 = vsel %vm3543, %v3451, %v3542
        %vm3545 = vcmask 1047559
        %v3546 = vsel %vm3545, %v3460, %v3544
        %v3547 = vsel %vm3533, %v3478, %v3469
        %v3548 = vsel %vm3535, %v3487, %v3547
        %v3549 = vsel %vm3537, %v3496, %v3548
        %v3550 = vsel %vm3539, %v3505, %v3549
        %v3551 = vsel %vm3541, %v3514, %v3550
        %v3552 = vsel %vm3543, %v3523, %v3551
        %v3553 = vsel %vm3545, %v3532, %v3552
        %v3556 = vadd.f32 %v3346, %v3546
        %v3557 = vadd.f32 %v3351, %v3553
        %vm3558 = vcmp.ge.f32.partialorder %v3556, 0.0
        %vm3559 = vcmp.ge.f32.partialorder %v3557, 0.0
        %v3560 = vmul.f32 %v3556, 0.01
        %v3561 = vmul.f32 %v3557, 0.01
        %v3562 = vsel %vm3558, %v3556, %v3560
        %v3563 = vsel %vm3559, %v3557, %v3561
        %vm3564 = vcmp.gt.f32.partialorder %v2489, 0.0
        %vm3565 = vcmp.gt.f32.partialorder %v2490, 0.0
        %v3566 = vsel %vm3564, %v3562, -1e+30
        %v3567 = vsel %vm3565, %v3563, -1e+30
        %v3568 = vsel %vm2747, %v3566, -inf
        %3569 = vmax.xlane.f32.xlu0 %v3568
        %v3570 = vpop.xlane.xlu0 %3569
        %v3571 = vsel %vm2747, %v3567, -inf
        %3572 = vmax.xlane.f32.xlu0 %v3571
        %v3573 = vpop.xlane.xlu0 %3572
        %v3574 = vsub.f32 %v3566, %v3570
        %v3575 = vsub.f32 %v3567, %v3573
        %v3576 = vmul.f32 %v3574, 1.442695
        %v3577 = vpow.pop %v3576
        %v3578 = vmul.f32 %v3575, 1.442695
        %v3579 = vpow.pop %v3578
        %v3580 = vmul.f32 %v3577, %v2489
        %v3581 = vmul.f32 %v3579, %v2490
        %v3582 = vsel %vm2747, %v3580, 0.0
        %3583 = vadd.xlane.f32.xlu0 %v3582
        %v3584 = vpop.xlane.xlu0 %3583
        %v3585 = vsel %vm2747, %v3581, 0.0
        %3586 = vadd.xlane.f32.xlu0 %v3585
        %v3587 = vpop.xlane.xlu0 %3586
        %v3588 = vmax.f32 %v3584, 1e-20
        %v3589 = vmax.f32 %v3587, 1e-20
        %v3590 = vrcp.pop %v3588
        %v3591 = vrcp.pop %v3589
        %v3592 = vmul.f32 %v3580, %v3590
        %v3593 = vmul.f32 %v3581, %v3591
        %v3596 = vcombine.high %v3592, %v3592
        %v3598 = vunpack.c.l.s4 1966171168
        %v3599 = vunpack.c.0.s8 %v3598
        %v3600 = vlaneseq
        %v3601 = vshrl.u32 %v3600, 7
        %v3602 = vsub.s32 %v3599, %v3601
        %v3603 = vrot.slane %v3592, %v3602
        %v3605 = vunpack.c.l.s4 1966171168
        %v3606 = vunpack.c.0.s8 %v3605
        %v3607 = vlaneseq
        %v3608 = vshrl.u32 %v3607, 7
        %v3609 = vsub.s32 %v3606, %v3608
        %v3610 = vrot.slane %v3596, %v3609
        %v3611 = vcombine.high %v3603, %v3603
        %v3612 = vcombine.high %v3610, %v3610
        %v3614 = vunpack.c.l.s4 1966171168
        %v3615 = vunpack.c.0.s8 %v3614
        %v3616 = vlaneseq
        %v3617 = vshrl.u32 %v3616, 7
        %v3618 = vsub.s32 %v3615, %v3617
        %v3619 = vrot.slane %v3603, %v3618
        %v3621 = vunpack.c.l.s4 1966171168
        %v3622 = vunpack.c.0.s8 %v3621
        %v3623 = vlaneseq
        %v3624 = vshrl.u32 %v3623, 7
        %v3625 = vsub.s32 %v3622, %v3624
        %v3626 = vrot.slane %v3610, %v3625
        %v3628 = vunpack.c.l.s4 1966171168
        %v3629 = vunpack.c.0.s8 %v3628
        %v3630 = vlaneseq
        %v3631 = vshrl.u32 %v3630, 7
        %v3632 = vsub.s32 %v3629, %v3631
        %v3633 = vrot.slane %v3611, %v3632
        %v3635 = vunpack.c.l.s4 1966171168
        %v3636 = vunpack.c.0.s8 %v3635
        %v3637 = vlaneseq
        %v3638 = vshrl.u32 %v3637, 7
        %v3639 = vsub.s32 %v3636, %v3638
        %v3640 = vrot.slane %v3612, %v3639
        %v3641 = vcombine.high %v3619, %v3619
        %v3642 = vcombine.high %v3626, %v3626
        %v3643 = vcombine.high %v3633, %v3633
        %v3644 = vcombine.high %v3640, %v3640
        %v3645 = vcombine.high %v3593, %v3593
        %v3647 = vunpack.c.l.s4 1966171168
        %v3648 = vunpack.c.0.s8 %v3647
        %v3649 = vlaneseq
        %v3650 = vshrl.u32 %v3649, 7
        %v3651 = vsub.s32 %v3648, %v3650
        %v3652 = vrot.slane %v3593, %v3651
        %v3654 = vunpack.c.l.s4 1966171168
        %v3655 = vunpack.c.0.s8 %v3654
        %v3656 = vlaneseq
        %v3657 = vshrl.u32 %v3656, 7
        %v3658 = vsub.s32 %v3655, %v3657
        %v3659 = vrot.slane %v3645, %v3658
        %v3660 = vcombine.high %v3652, %v3652
        %v3661 = vcombine.high %v3659, %v3659
        %v3663 = vunpack.c.l.s4 1966171168
        %v3664 = vunpack.c.0.s8 %v3663
        %v3665 = vlaneseq
        %v3666 = vshrl.u32 %v3665, 7
        %v3667 = vsub.s32 %v3664, %v3666
        %v3668 = vrot.slane %v3652, %v3667
        %v3670 = vunpack.c.l.s4 1966171168
        %v3671 = vunpack.c.0.s8 %v3670
        %v3672 = vlaneseq
        %v3673 = vshrl.u32 %v3672, 7
        %v3674 = vsub.s32 %v3671, %v3673
        %v3675 = vrot.slane %v3659, %v3674
        %v3677 = vunpack.c.l.s4 1966171168
        %v3678 = vunpack.c.0.s8 %v3677
        %v3679 = vlaneseq
        %v3680 = vshrl.u32 %v3679, 7
        %v3681 = vsub.s32 %v3678, %v3680
        %v3682 = vrot.slane %v3660, %v3681
        %v3684 = vunpack.c.l.s4 1966171168
        %v3685 = vunpack.c.0.s8 %v3684
        %v3686 = vlaneseq
        %v3687 = vshrl.u32 %v3686, 7
        %v3688 = vsub.s32 %v3685, %v3687
        %v3689 = vrot.slane %v3661, %v3688
        %v3690 = vcombine.high %v3668, %v3668
        %v3691 = vcombine.high %v3675, %v3675
        %v3692 = vcombine.high %v3682, %v3682
        %v3693 = vcombine.high %v3689, %v3689
        %v3710 = vpack.c.bf16 %v3619, %v3619
        %v3711 = vpack.c.bf16 %v3633, %v3633
        %v3712 = vpack.c.bf16 %v3641, %v3641
        %v3713 = vpack.c.bf16 %v3643, %v3643
        %v3714 = vpack.c.bf16 %v3626, %v3626
        %v3715 = vpack.c.bf16 %v3640, %v3640
        %v3716 = vpack.c.bf16 %v3642, %v3642
        %v3717 = vpack.c.bf16 %v3644, %v3644
        %v3718 = vpack.c.bf16 %v3668, %v3668
        %v3719 = vpack.c.bf16 %v3682, %v3682
        %v3720 = vpack.c.bf16 %v3690, %v3690
        %v3721 = vpack.c.bf16 %v3692, %v3692
        %v3722 = vpack.c.bf16 %v3675, %v3675
        %v3723 = vpack.c.bf16 %v3689, %v3689
        %v3724 = vpack.c.bf16 %v3691, %v3691
        %v3725 = vpack.c.bf16 %v3693, %v3693
        %v3726 = vpack.c.bf16 %v3210, %v3209
        %v3727 = vpack.c.bf16 %v3212, %v3211
        %v3728 = vpack.c.bf16 %v3214, %v3213
        %v3729 = vpack.c.bf16 %v3216, %v3215
        %v3730 = vpack.c.bf16 %v3218, %v3217
        %v3731 = vpack.c.bf16 %v3220, %v3219
        %v3732 = vpack.c.bf16 %v3222, %v3221
        %v3733 = vpack.c.bf16 %v3224, %v3223
        %v3734 = vpack.c.bf16 %v3226, %v3225
        %v3735 = vpack.c.bf16 %v3228, %v3227
        %v3736 = vpack.c.bf16 %v3230, %v3229
        %v3737 = vpack.c.bf16 %v3232, %v3231
        %v3738 = vpack.c.bf16 %v3234, %v3233
        %v3739 = vpack.c.bf16 %v3236, %v3235
        %v3740 = vpack.c.bf16 %v3238, %v3237
        %v3741 = vpack.c.bf16 %v3240, %v3239
        %v3743 = vsel %vm2747, %v3710, 0
        %3745 = vmatprep.subr.bf16.mxu0 0
        %3746 = vmatpush1.bf16.msra.mxu0 %v3726
        %3747 = vmatprep.subr.bf16.mxu0 0
        %3748 = vmatpush1.bf16.msra.mxu0 0
        %3749 = vmatprep.subr.bf16.mxu0 0
        %3750 = vmatpush1.bf16.msra.mxu0 0
        %3751 = vmatprep.subr.bf16.mxu0 0
        %3752 = vmatpush1.bf16.msra.mxu0 0
        %3753 = vmatprep.subr.bf16.mxu0 0
        %3754 = vmatpush1.bf16.msra.mxu0 0
        %3755 = vmatprep.subr.bf16.mxu0 0
        %3756 = vmatpush1.bf16.msra.mxu0 0
        %3757 = vmatprep.subr.bf16.mxu0 0
        %3758 = vmatpush1.bf16.msra.mxu0 0
        %3759 = vmatprep.subr.bf16.mxu0 0
        %3760 = vmatpush1.bf16.msra.mxu0 0
        %3761 = vmatprep.subr.bf16.mxu0 0
        %3762 = vmatpush1.bf16.msra.mxu0 0
        %3763 = vmatprep.subr.bf16.mxu0 0
        %3764 = vmatpush1.bf16.msra.mxu0 0
        %3765 = vmatprep.subr.bf16.mxu0 0
        %3766 = vmatpush1.bf16.msra.mxu0 0
        %3767 = vmatprep.subr.bf16.mxu0 0
        %3768 = vmatpush1.bf16.msra.mxu0 0
        %3769 = vmatprep.subr.bf16.mxu0 0
        %3770 = vmatpush1.bf16.msra.mxu0 0
        %3771 = vmatprep.subr.bf16.mxu0 0
        %3772 = vmatpush1.bf16.msra.mxu0 0
        %3773 = vmatprep.subr.bf16.mxu0 0
        %3774 = vmatpush1.bf16.msra.mxu0 0
        %3775 = vmatprep.subr.bf16.mxu0 0
        %3776 = vmatpush1.bf16.msra.mxu0 0
        %3777 = vmatprep.mubr.bf16.mxu0 0
        %3778 = vmatmul.mubr.bf16.gmra.mrb[0].mxu0 %v3743
        %v3779 = vpop.f32.mrb[0].mxu0
        %v3780 = vadd.f32 0.0, %v3779
        %v3781 = vpop.f32.mrb[0].mxu0
        %v3782 = vpop.f32.mrb[0].mxu0
        %v3783 = vpop.f32.mrb[0].mxu0
        %3784 = vdwg.mxu0
        %v3786 = vsel %vm2747, %v3711, 0
        %3788 = vmatprep.subr.bf16.mxu0 0
        %3789 = vmatpush1.bf16.msra.mxu0 %v3727
        %3790 = vmatprep.subr.bf16.mxu0 0
        %3791 = vmatpush1.bf16.msra.mxu0 0
        %3792 = vmatprep.subr.bf16.mxu0 0
        %3793 = vmatpush1.bf16.msra.mxu0 0
        %3794 = vmatprep.subr.bf16.mxu0 0
        %3795 = vmatpush1.bf16.msra.mxu0 0
        %3796 = vmatprep.subr.bf16.mxu0 0
        %3797 = vmatpush1.bf16.msra.mxu0 0
        %3798 = vmatprep.subr.bf16.mxu0 0
        %3799 = vmatpush1.bf16.msra.mxu0 0
        %3800 = vmatprep.subr.bf16.mxu0 0
        %3801 = vmatpush1.bf16.msra.mxu0 0
        %3802 = vmatprep.subr.bf16.mxu0 0
        %3803 = vmatpush1.bf16.msra.mxu0 0
        %3804 = vmatprep.subr.bf16.mxu0 0
        %3805 = vmatpush1.bf16.msra.mxu0 0
        %3806 = vmatprep.subr.bf16.mxu0 0
        %3807 = vmatpush1.bf16.msra.mxu0 0
        %3808 = vmatprep.subr.bf16.mxu0 0
        %3809 = vmatpush1.bf16.msra.mxu0 0
        %3810 = vmatprep.subr.bf16.mxu0 0
        %3811 = vmatpush1.bf16.msra.mxu0 0
        %3812 = vmatprep.subr.bf16.mxu0 0
        %3813 = vmatpush1.bf16.msra.mxu0 0
        %3814 = vmatprep.subr.bf16.mxu0 0
        %3815 = vmatpush1.bf16.msra.mxu0 0
        %3816 = vmatprep.subr.bf16.mxu0 0
        %3817 = vmatpush1.bf16.msra.mxu0 0
        %3818 = vmatprep.subr.bf16.mxu0 0
        %3819 = vmatpush1.bf16.msra.mxu0 0
        %3820 = vmatprep.mubr.bf16.mxu0 0
        %3821 = vmatmul.mubr.bf16.gmra.mrb[0].mxu0 %v3786
        %v3822 = vpop.f32.mrb[0].mxu0
        %v3823 = vadd.f32 0.0, %v3822
        %v3824 = vpop.f32.mrb[0].mxu0
        %v3825 = vpop.f32.mrb[0].mxu0
        %v3826 = vpop.f32.mrb[0].mxu0
        %3827 = vdwg.mxu0
        %v3829 = vsel %vm2747, %v3712, 0
        %3831 = vmatprep.subr.bf16.mxu0 0
        %3832 = vmatpush1.bf16.msra.mxu0 %v3728
        %3833 = vmatprep.subr.bf16.mxu0 0
        %3834 = vmatpush1.bf16.msra.mxu0 0
        %3835 = vmatprep.subr.bf16.mxu0 0
        %3836 = vmatpush1.bf16.msra.mxu0 0
        %3837 = vmatprep.subr.bf16.mxu0 0
        %3838 = vmatpush1.bf16.msra.mxu0 0
        %3839 = vmatprep.subr.bf16.mxu0 0
        %3840 = vmatpush1.bf16.msra.mxu0 0
        %3841 = vmatprep.subr.bf16.mxu0 0
        %3842 = vmatpush1.bf16.msra.mxu0 0
        %3843 = vmatprep.subr.bf16.mxu0 0
        %3844 = vmatpush1.bf16.msra.mxu0 0
        %3845 = vmatprep.subr.bf16.mxu0 0
        %3846 = vmatpush1.bf16.msra.mxu0 0
        %3847 = vmatprep.subr.bf16.mxu0 0
        %3848 = vmatpush1.bf16.msra.mxu0 0
        %3849 = vmatprep.subr.bf16.mxu0 0
        %3850 = vmatpush1.bf16.msra.mxu0 0
        %3851 = vmatprep.subr.bf16.mxu0 0
        %3852 = vmatpush1.bf16.msra.mxu0 0
        %3853 = vmatprep.subr.bf16.mxu0 0
        %3854 = vmatpush1.bf16.msra.mxu0 0
        %3855 = vmatprep.subr.bf16.mxu0 0
        %3856 = vmatpush1.bf16.msra.mxu0 0
        %3857 = vmatprep.subr.bf16.mxu0 0
        %3858 = vmatpush1.bf16.msra.mxu0 0
        %3859 = vmatprep.subr.bf16.mxu0 0
        %3860 = vmatpush1.bf16.msra.mxu0 0
        %3861 = vmatprep.subr.bf16.mxu0 0
        %3862 = vmatpush1.bf16.msra.mxu0 0
        %3863 = vmatprep.mubr.bf16.mxu0 0
        %3864 = vmatmul.mubr.bf16.gmra.mrb[0].mxu0 %v3829
        %v3865 = vpop.f32.mrb[0].mxu0
        %v3866 = vadd.f32 0.0, %v3865
        %v3867 = vpop.f32.mrb[0].mxu0
        %v3868 = vpop.f32.mrb[0].mxu0
        %v3869 = vpop.f32.mrb[0].mxu0
        %3870 = vdwg.mxu0
        %v3872 = vsel %vm2747, %v3713, 0
        %3874 = vmatprep.subr.bf16.mxu0 0
        %3875 = vmatpush1.bf16.msra.mxu0 %v3729
        %3876 = vmatprep.subr.bf16.mxu0 0
        %3877 = vmatpush1.bf16.msra.mxu0 0
        %3878 = vmatprep.subr.bf16.mxu0 0
        %3879 = vmatpush1.bf16.msra.mxu0 0
        %3880 = vmatprep.subr.bf16.mxu0 0
        %3881 = vmatpush1.bf16.msra.mxu0 0
        %3882 = vmatprep.subr.bf16.mxu0 0
        %3883 = vmatpush1.bf16.msra.mxu0 0
        %3884 = vmatprep.subr.bf16.mxu0 0
        %3885 = vmatpush1.bf16.msra.mxu0 0
        %3886 = vmatprep.subr.bf16.mxu0 0
        %3887 = vmatpush1.bf16.msra.mxu0 0
        %3888 = vmatprep.subr.bf16.mxu0 0
        %3889 = vmatpush1.bf16.msra.mxu0 0
        %3890 = vmatprep.subr.bf16.mxu0 0
        %3891 = vmatpush1.bf16.msra.mxu0 0
        %3892 = vmatprep.subr.bf16.mxu0 0
        %3893 = vmatpush1.bf16.msra.mxu0 0
        %3894 = vmatprep.subr.bf16.mxu0 0
        %3895 = vmatpush1.bf16.msra.mxu0 0
        %3896 = vmatprep.subr.bf16.mxu0 0
        %3897 = vmatpush1.bf16.msra.mxu0 0
        %3898 = vmatprep.subr.bf16.mxu0 0
        %3899 = vmatpush1.bf16.msra.mxu0 0
        %3900 = vmatprep.subr.bf16.mxu0 0
        %3901 = vmatpush1.bf16.msra.mxu0 0
        %3902 = vmatprep.subr.bf16.mxu0 0
        %3903 = vmatpush1.bf16.msra.mxu0 0
        %3904 = vmatprep.subr.bf16.mxu0 0
        %3905 = vmatpush1.bf16.msra.mxu0 0
        %3906 = vmatprep.mubr.bf16.mxu0 0
        %3907 = vmatmul.mubr.bf16.gmra.mrb[0].mxu0 %v3872
        %v3908 = vpop.f32.mrb[0].mxu0
        %v3909 = vadd.f32 0.0, %v3908
        %v3910 = vpop.f32.mrb[0].mxu0
        %v3911 = vpop.f32.mrb[0].mxu0
        %v3912 = vpop.f32.mrb[0].mxu0
        %3913 = vdwg.mxu0
        %v3915 = vsel %vm2747, %v3714, 0
        %3917 = vmatprep.subr.bf16.mxu0 0
        %3918 = vmatpush1.bf16.msra.mxu0 %v3730
        %3919 = vmatprep.subr.bf16.mxu0 0
        %3920 = vmatpush1.bf16.msra.mxu0 0
        %3921 = vmatprep.subr.bf16.mxu0 0
        %3922 = vmatpush1.bf16.msra.mxu0 0
        %3923 = vmatprep.subr.bf16.mxu0 0
        %3924 = vmatpush1.bf16.msra.mxu0 0
        %3925 = vmatprep.subr.bf16.mxu0 0
        %3926 = vmatpush1.bf16.msra.mxu0 0
        %3927 = vmatprep.subr.bf16.mxu0 0
        %3928 = vmatpush1.bf16.msra.mxu0 0
        %3929 = vmatprep.subr.bf16.mxu0 0
        %3930 = vmatpush1.bf16.msra.mxu0 0
        %3931 = vmatprep.subr.bf16.mxu0 0
        %3932 = vmatpush1.bf16.msra.mxu0 0
        %3933 = vmatprep.subr.bf16.mxu0 0
        %3934 = vmatpush1.bf16.msra.mxu0 0
        %3935 = vmatprep.subr.bf16.mxu0 0
        %3936 = vmatpush1.bf16.msra.mxu0 0
        %3937 = vmatprep.subr.bf16.mxu0 0
        %3938 = vmatpush1.bf16.msra.mxu0 0
        %3939 = vmatprep.subr.bf16.mxu0 0
        %3940 = vmatpush1.bf16.msra.mxu0 0
        %3941 = vmatprep.subr.bf16.mxu0 0
        %3942 = vmatpush1.bf16.msra.mxu0 0
        %3943 = vmatprep.subr.bf16.mxu0 0
        %3944 = vmatpush1.bf16.msra.mxu0 0
        %3945 = vmatprep.subr.bf16.mxu0 0
        %3946 = vmatpush1.bf16.msra.mxu0 0
        %3947 = vmatprep.subr.bf16.mxu0 0
        %3948 = vmatpush1.bf16.msra.mxu0 0
        %3949 = vmatprep.mubr.bf16.mxu0 0
        %3950 = vmatmul.mubr.bf16.gmra.mrb[0].mxu0 %v3915
        %v3951 = vpop.f32.mrb[0].mxu0
        %v3952 = vadd.f32 0.0, %v3951
        %v3953 = vpop.f32.mrb[0].mxu0
        %v3954 = vpop.f32.mrb[0].mxu0
        %v3955 = vpop.f32.mrb[0].mxu0
        %3956 = vdwg.mxu0
        %v3958 = vsel %vm2747, %v3715, 0
        %3960 = vmatprep.subr.bf16.mxu0 0
        %3961 = vmatpush1.bf16.msra.mxu0 %v3731
        %3962 = vmatprep.subr.bf16.mxu0 0
        %3963 = vmatpush1.bf16.msra.mxu0 0
        %3964 = vmatprep.subr.bf16.mxu0 0
        %3965 = vmatpush1.bf16.msra.mxu0 0
        %3966 = vmatprep.subr.bf16.mxu0 0
        %3967 = vmatpush1.bf16.msra.mxu0 0
        %3968 = vmatprep.subr.bf16.mxu0 0
        %3969 = vmatpush1.bf16.msra.mxu0 0
        %3970 = vmatprep.subr.bf16.mxu0 0
        %3971 = vmatpush1.bf16.msra.mxu0 0
        %3972 = vmatprep.subr.bf16.mxu0 0
        %3973 = vmatpush1.bf16.msra.mxu0 0
        %3974 = vmatprep.subr.bf16.mxu0 0
        %3975 = vmatpush1.bf16.msra.mxu0 0
        %3976 = vmatprep.subr.bf16.mxu0 0
        %3977 = vmatpush1.bf16.msra.mxu0 0
        %3978 = vmatprep.subr.bf16.mxu0 0
        %3979 = vmatpush1.bf16.msra.mxu0 0
        %3980 = vmatprep.subr.bf16.mxu0 0
        %3981 = vmatpush1.bf16.msra.mxu0 0
        %3982 = vmatprep.subr.bf16.mxu0 0
        %3983 = vmatpush1.bf16.msra.mxu0 0
        %3984 = vmatprep.subr.bf16.mxu0 0
        %3985 = vmatpush1.bf16.msra.mxu0 0
        %3986 = vmatprep.subr.bf16.mxu0 0
        %3987 = vmatpush1.bf16.msra.mxu0 0
        %3988 = vmatprep.subr.bf16.mxu0 0
        %3989 = vmatpush1.bf16.msra.mxu0 0
        %3990 = vmatprep.subr.bf16.mxu0 0
        %3991 = vmatpush1.bf16.msra.mxu0 0
        %3992 = vmatprep.mubr.bf16.mxu0 0
        %3993 = vmatmul.mubr.bf16.gmra.mrb[0].mxu0 %v3958
        %v3994 = vpop.f32.mrb[0].mxu0
        %v3995 = vadd.f32 0.0, %v3994
        %v3996 = vpop.f32.mrb[0].mxu0
        %v3997 = vpop.f32.mrb[0].mxu0
        %v3998 = vpop.f32.mrb[0].mxu0
        %3999 = vdwg.mxu0
        %v4001 = vsel %vm2747, %v3716, 0
        %4003 = vmatprep.subr.bf16.mxu0 0
        %4004 = vmatpush1.bf16.msra.mxu0 %v3732
        %4005 = vmatprep.subr.bf16.mxu0 0
        %4006 = vmatpush1.bf16.msra.mxu0 0
        %4007 = vmatprep.subr.bf16.mxu0 0
        %4008 = vmatpush1.bf16.msra.mxu0 0
        %4009 = vmatprep.subr.bf16.mxu0 0
        %4010 = vmatpush1.bf16.msra.mxu0 0
        %4011 = vmatprep.subr.bf16.mxu0 0
        %4012 = vmatpush1.bf16.msra.mxu0 0
        %4013 = vmatprep.subr.bf16.mxu0 0
        %4014 = vmatpush1.bf16.msra.mxu0 0
        %4015 = vmatprep.subr.bf16.mxu0 0
        %4016 = vmatpush1.bf16.msra.mxu0 0
        %4017 = vmatprep.subr.bf16.mxu0 0
        %4018 = vmatpush1.bf16.msra.mxu0 0
        %4019 = vmatprep.subr.bf16.mxu0 0
        %4020 = vmatpush1.bf16.msra.mxu0 0
        %4021 = vmatprep.subr.bf16.mxu0 0
        %4022 = vmatpush1.bf16.msra.mxu0 0
        %4023 = vmatprep.subr.bf16.mxu0 0
        %4024 = vmatpush1.bf16.msra.mxu0 0
        %4025 = vmatprep.subr.bf16.mxu0 0
        %4026 = vmatpush1.bf16.msra.mxu0 0
        %4027 = vmatprep.subr.bf16.mxu0 0
        %4028 = vmatpush1.bf16.msra.mxu0 0
        %4029 = vmatprep.subr.bf16.mxu0 0
        %4030 = vmatpush1.bf16.msra.mxu0 0
        %4031 = vmatprep.subr.bf16.mxu0 0
        %4032 = vmatpush1.bf16.msra.mxu0 0
        %4033 = vmatprep.subr.bf16.mxu0 0
        %4034 = vmatpush1.bf16.msra.mxu0 0
        %4035 = vmatprep.mubr.bf16.mxu0 0
        %4036 = vmatmul.mubr.bf16.gmra.mrb[0].mxu0 %v4001
        %v4037 = vpop.f32.mrb[0].mxu0
        %v4038 = vadd.f32 0.0, %v4037
        %v4039 = vpop.f32.mrb[0].mxu0
        %v4040 = vpop.f32.mrb[0].mxu0
        %v4041 = vpop.f32.mrb[0].mxu0
        %4042 = vdwg.mxu0
        %v4044 = vsel %vm2747, %v3717, 0
        %4046 = vmatprep.subr.bf16.mxu0 0
        %4047 = vmatpush1.bf16.msra.mxu0 %v3733
        %4048 = vmatprep.subr.bf16.mxu0 0
        %4049 = vmatpush1.bf16.msra.mxu0 0
        %4050 = vmatprep.subr.bf16.mxu0 0
        %4051 = vmatpush1.bf16.msra.mxu0 0
        %4052 = vmatprep.subr.bf16.mxu0 0
        %4053 = vmatpush1.bf16.msra.mxu0 0
        %4054 = vmatprep.subr.bf16.mxu0 0
        %4055 = vmatpush1.bf16.msra.mxu0 0
        %4056 = vmatprep.subr.bf16.mxu0 0
        %4057 = vmatpush1.bf16.msra.mxu0 0
        %4058 = vmatprep.subr.bf16.mxu0 0
        %4059 = vmatpush1.bf16.msra.mxu0 0
        %4060 = vmatprep.subr.bf16.mxu0 0
        %4061 = vmatpush1.bf16.msra.mxu0 0
        %4062 = vmatprep.subr.bf16.mxu0 0
        %4063 = vmatpush1.bf16.msra.mxu0 0
        %4064 = vmatprep.subr.bf16.mxu0 0
        %4065 = vmatpush1.bf16.msra.mxu0 0
        %4066 = vmatprep.subr.bf16.mxu0 0
        %4067 = vmatpush1.bf16.msra.mxu0 0
        %4068 = vmatprep.subr.bf16.mxu0 0
        %4069 = vmatpush1.bf16.msra.mxu0 0
        %4070 = vmatprep.subr.bf16.mxu0 0
        %4071 = vmatpush1.bf16.msra.mxu0 0
        %4072 = vmatprep.subr.bf16.mxu0 0
        %4073 = vmatpush1.bf16.msra.mxu0 0
        %4074 = vmatprep.subr.bf16.mxu0 0
        %4075 = vmatpush1.bf16.msra.mxu0 0
        %4076 = vmatprep.subr.bf16.mxu0 0
        %4077 = vmatpush1.bf16.msra.mxu0 0
        %4078 = vmatprep.mubr.bf16.mxu0 0
        %4079 = vmatmul.mubr.bf16.gmra.mrb[0].mxu0 %v4044
        %v4080 = vpop.f32.mrb[0].mxu0
        %v4081 = vadd.f32 0.0, %v4080
        %v4082 = vpop.f32.mrb[0].mxu0
        %v4083 = vpop.f32.mrb[0].mxu0
        %v4084 = vpop.f32.mrb[0].mxu0
        %4085 = vdwg.mxu0
        %v4087 = vsel %vm2747, %v3718, 0
        %4089 = vmatprep.subr.bf16.mxu0 0
        %4090 = vmatpush1.bf16.msra.mxu0 %v3734
        %4091 = vmatprep.subr.bf16.mxu0 0
        %4092 = vmatpush1.bf16.msra.mxu0 0
        %4093 = vmatprep.subr.bf16.mxu0 0
        %4094 = vmatpush1.bf16.msra.mxu0 0
        %4095 = vmatprep.subr.bf16.mxu0 0
        %4096 = vmatpush1.bf16.msra.mxu0 0
        %4097 = vmatprep.subr.bf16.mxu0 0
        %4098 = vmatpush1.bf16.msra.mxu0 0
        %4099 = vmatprep.subr.bf16.mxu0 0
        %4100 = vmatpush1.bf16.msra.mxu0 0
        %4101 = vmatprep.subr.bf16.mxu0 0
        %4102 = vmatpush1.bf16.msra.mxu0 0
        %4103 = vmatprep.subr.bf16.mxu0 0
        %4104 = vmatpush1.bf16.msra.mxu0 0
        %4105 = vmatprep.subr.bf16.mxu0 0
        %4106 = vmatpush1.bf16.msra.mxu0 0
        %4107 = vmatprep.subr.bf16.mxu0 0
        %4108 = vmatpush1.bf16.msra.mxu0 0
        %4109 = vmatprep.subr.bf16.mxu0 0
        %4110 = vmatpush1.bf16.msra.mxu0 0
        %4111 = vmatprep.subr.bf16.mxu0 0
        %4112 = vmatpush1.bf16.msra.mxu0 0
        %4113 = vmatprep.subr.bf16.mxu0 0
        %4114 = vmatpush1.bf16.msra.mxu0 0
        %4115 = vmatprep.subr.bf16.mxu0 0
        %4116 = vmatpush1.bf16.msra.mxu0 0
        %4117 = vmatprep.subr.bf16.mxu0 0
        %4118 = vmatpush1.bf16.msra.mxu0 0
        %4119 = vmatprep.subr.bf16.mxu0 0
        %4120 = vmatpush1.bf16.msra.mxu0 0
        %4121 = vmatprep.mubr.bf16.mxu0 0
        %4122 = vmatmul.mubr.bf16.gmra.mrb[0].mxu0 %v4087
        %v4123 = vpop.f32.mrb[0].mxu0
        %v4124 = vadd.f32 0.0, %v4123
        %v4125 = vpop.f32.mrb[0].mxu0
        %v4126 = vpop.f32.mrb[0].mxu0
        %v4127 = vpop.f32.mrb[0].mxu0
        %4128 = vdwg.mxu0
        %v4130 = vsel %vm2747, %v3719, 0
        %4132 = vmatprep.subr.bf16.mxu0 0
        %4133 = vmatpush1.bf16.msra.mxu0 %v3735
        %4134 = vmatprep.subr.bf16.mxu0 0
        %4135 = vmatpush1.bf16.msra.mxu0 0
        %4136 = vmatprep.subr.bf16.mxu0 0
        %4137 = vmatpush1.bf16.msra.mxu0 0
        %4138 = vmatprep.subr.bf16.mxu0 0
        %4139 = vmatpush1.bf16.msra.mxu0 0
        %4140 = vmatprep.subr.bf16.mxu0 0
        %4141 = vmatpush1.bf16.msra.mxu0 0
        %4142 = vmatprep.subr.bf16.mxu0 0
        %4143 = vmatpush1.bf16.msra.mxu0 0
        %4144 = vmatprep.subr.bf16.mxu0 0
        %4145 = vmatpush1.bf16.msra.mxu0 0
        %4146 = vmatprep.subr.bf16.mxu0 0
        %4147 = vmatpush1.bf16.msra.mxu0 0
        %4148 = vmatprep.subr.bf16.mxu0 0
        %4149 = vmatpush1.bf16.msra.mxu0 0
        %4150 = vmatprep.subr.bf16.mxu0 0
        %4151 = vmatpush1.bf16.msra.mxu0 0
        %4152 = vmatprep.subr.bf16.mxu0 0
        %4153 = vmatpush1.bf16.msra.mxu0 0
        %4154 = vmatprep.subr.bf16.mxu0 0
        %4155 = vmatpush1.bf16.msra.mxu0 0
        %4156 = vmatprep.subr.bf16.mxu0 0
        %4157 = vmatpush1.bf16.msra.mxu0 0
        %4158 = vmatprep.subr.bf16.mxu0 0
        %4159 = vmatpush1.bf16.msra.mxu0 0
        %4160 = vmatprep.subr.bf16.mxu0 0
        %4161 = vmatpush1.bf16.msra.mxu0 0
        %4162 = vmatprep.subr.bf16.mxu0 0
        %4163 = vmatpush1.bf16.msra.mxu0 0
        %4164 = vmatprep.mubr.bf16.mxu0 0
        %4165 = vmatmul.mubr.bf16.gmra.mrb[0].mxu0 %v4130
        %v4166 = vpop.f32.mrb[0].mxu0
        %v4167 = vadd.f32 0.0, %v4166
        %v4168 = vpop.f32.mrb[0].mxu0
        %v4169 = vpop.f32.mrb[0].mxu0
        %v4170 = vpop.f32.mrb[0].mxu0
        %4171 = vdwg.mxu0
        %v4173 = vsel %vm2747, %v3720, 0
        %4175 = vmatprep.subr.bf16.mxu0 0
        %4176 = vmatpush1.bf16.msra.mxu0 %v3736
        %4177 = vmatprep.subr.bf16.mxu0 0
        %4178 = vmatpush1.bf16.msra.mxu0 0
        %4179 = vmatprep.subr.bf16.mxu0 0
        %4180 = vmatpush1.bf16.msra.mxu0 0
        %4181 = vmatprep.subr.bf16.mxu0 0
        %4182 = vmatpush1.bf16.msra.mxu0 0
        %4183 = vmatprep.subr.bf16.mxu0 0
        %4184 = vmatpush1.bf16.msra.mxu0 0
        %4185 = vmatprep.subr.bf16.mxu0 0
        %4186 = vmatpush1.bf16.msra.mxu0 0
        %4187 = vmatprep.subr.bf16.mxu0 0
        %4188 = vmatpush1.bf16.msra.mxu0 0
        %4189 = vmatprep.subr.bf16.mxu0 0
        %4190 = vmatpush1.bf16.msra.mxu0 0
        %4191 = vmatprep.subr.bf16.mxu0 0
        %4192 = vmatpush1.bf16.msra.mxu0 0
        %4193 = vmatprep.subr.bf16.mxu0 0
        %4194 = vmatpush1.bf16.msra.mxu0 0
        %4195 = vmatprep.subr.bf16.mxu0 0
        %4196 = vmatpush1.bf16.msra.mxu0 0
        %4197 = vmatprep.subr.bf16.mxu0 0
        %4198 = vmatpush1.bf16.msra.mxu0 0
        %4199 = vmatprep.subr.bf16.mxu0 0
        %4200 = vmatpush1.bf16.msra.mxu0 0
        %4201 = vmatprep.subr.bf16.mxu0 0
        %4202 = vmatpush1.bf16.msra.mxu0 0
        %4203 = vmatprep.subr.bf16.mxu0 0
        %4204 = vmatpush1.bf16.msra.mxu0 0
        %4205 = vmatprep.subr.bf16.mxu0 0
        %4206 = vmatpush1.bf16.msra.mxu0 0
        %4207 = vmatprep.mubr.bf16.mxu0 0
        %4208 = vmatmul.mubr.bf16.gmra.mrb[0].mxu0 %v4173
        %v4209 = vpop.f32.mrb[0].mxu0
        %v4210 = vadd.f32 0.0, %v4209
        %v4211 = vpop.f32.mrb[0].mxu0
        %v4212 = vpop.f32.mrb[0].mxu0
        %v4213 = vpop.f32.mrb[0].mxu0
        %4214 = vdwg.mxu0
        %v4216 = vsel %vm2747, %v3721, 0
        %4218 = vmatprep.subr.bf16.mxu0 0
        %4219 = vmatpush1.bf16.msra.mxu0 %v3737
        %4220 = vmatprep.subr.bf16.mxu0 0
        %4221 = vmatpush1.bf16.msra.mxu0 0
        %4222 = vmatprep.subr.bf16.mxu0 0
        %4223 = vmatpush1.bf16.msra.mxu0 0
        %4224 = vmatprep.subr.bf16.mxu0 0
        %4225 = vmatpush1.bf16.msra.mxu0 0
        %4226 = vmatprep.subr.bf16.mxu0 0
        %4227 = vmatpush1.bf16.msra.mxu0 0
        %4228 = vmatprep.subr.bf16.mxu0 0
        %4229 = vmatpush1.bf16.msra.mxu0 0
        %4230 = vmatprep.subr.bf16.mxu0 0
        %4231 = vmatpush1.bf16.msra.mxu0 0
        %4232 = vmatprep.subr.bf16.mxu0 0
        %4233 = vmatpush1.bf16.msra.mxu0 0
        %4234 = vmatprep.subr.bf16.mxu0 0
        %4235 = vmatpush1.bf16.msra.mxu0 0
        %4236 = vmatprep.subr.bf16.mxu0 0
        %4237 = vmatpush1.bf16.msra.mxu0 0
        %4238 = vmatprep.subr.bf16.mxu0 0
        %4239 = vmatpush1.bf16.msra.mxu0 0
        %4240 = vmatprep.subr.bf16.mxu0 0
        %4241 = vmatpush1.bf16.msra.mxu0 0
        %4242 = vmatprep.subr.bf16.mxu0 0
        %4243 = vmatpush1.bf16.msra.mxu0 0
        %4244 = vmatprep.subr.bf16.mxu0 0
        %4245 = vmatpush1.bf16.msra.mxu0 0
        %4246 = vmatprep.subr.bf16.mxu0 0
        %4247 = vmatpush1.bf16.msra.mxu0 0
        %4248 = vmatprep.subr.bf16.mxu0 0
        %4249 = vmatpush1.bf16.msra.mxu0 0
        %4250 = vmatprep.mubr.bf16.mxu0 0
        %4251 = vmatmul.mubr.bf16.gmra.mrb[0].mxu0 %v4216
        %v4252 = vpop.f32.mrb[0].mxu0
        %v4253 = vadd.f32 0.0, %v4252
        %v4254 = vpop.f32.mrb[0].mxu0
        %v4255 = vpop.f32.mrb[0].mxu0
        %v4256 = vpop.f32.mrb[0].mxu0
        %4257 = vdwg.mxu0
        %v4259 = vsel %vm2747, %v3722, 0
        %4261 = vmatprep.subr.bf16.mxu0 0
        %4262 = vmatpush1.bf16.msra.mxu0 %v3738
        %4263 = vmatprep.subr.bf16.mxu0 0
        %4264 = vmatpush1.bf16.msra.mxu0 0
        %4265 = vmatprep.subr.bf16.mxu0 0
        %4266 = vmatpush1.bf16.msra.mxu0 0
        %4267 = vmatprep.subr.bf16.mxu0 0
        %4268 = vmatpush1.bf16.msra.mxu0 0
        %4269 = vmatprep.subr.bf16.mxu0 0
        %4270 = vmatpush1.bf16.msra.mxu0 0
        %4271 = vmatprep.subr.bf16.mxu0 0
        %4272 = vmatpush1.bf16.msra.mxu0 0
        %4273 = vmatprep.subr.bf16.mxu0 0
        %4274 = vmatpush1.bf16.msra.mxu0 0
        %4275 = vmatprep.subr.bf16.mxu0 0
        %4276 = vmatpush1.bf16.msra.mxu0 0
        %4277 = vmatprep.subr.bf16.mxu0 0
        %4278 = vmatpush1.bf16.msra.mxu0 0
        %4279 = vmatprep.subr.bf16.mxu0 0
        %4280 = vmatpush1.bf16.msra.mxu0 0
        %4281 = vmatprep.subr.bf16.mxu0 0
        %4282 = vmatpush1.bf16.msra.mxu0 0
        %4283 = vmatprep.subr.bf16.mxu0 0
        %4284 = vmatpush1.bf16.msra.mxu0 0
        %4285 = vmatprep.subr.bf16.mxu0 0
        %4286 = vmatpush1.bf16.msra.mxu0 0
        %4287 = vmatprep.subr.bf16.mxu0 0
        %4288 = vmatpush1.bf16.msra.mxu0 0
        %4289 = vmatprep.subr.bf16.mxu0 0
        %4290 = vmatpush1.bf16.msra.mxu0 0
        %4291 = vmatprep.subr.bf16.mxu0 0
        %4292 = vmatpush1.bf16.msra.mxu0 0
        %4293 = vmatprep.mubr.bf16.mxu0 0
        %4294 = vmatmul.mubr.bf16.gmra.mrb[0].mxu0 %v4259
        %v4295 = vpop.f32.mrb[0].mxu0
        %v4296 = vadd.f32 0.0, %v4295
        %v4297 = vpop.f32.mrb[0].mxu0
        %v4298 = vpop.f32.mrb[0].mxu0
        %v4299 = vpop.f32.mrb[0].mxu0
        %4300 = vdwg.mxu0
        %v4302 = vsel %vm2747, %v3723, 0
        %4304 = vmatprep.subr.bf16.mxu0 0
        %4305 = vmatpush1.bf16.msra.mxu0 %v3739
        %4306 = vmatprep.subr.bf16.mxu0 0
        %4307 = vmatpush1.bf16.msra.mxu0 0
        %4308 = vmatprep.subr.bf16.mxu0 0
        %4309 = vmatpush1.bf16.msra.mxu0 0
        %4310 = vmatprep.subr.bf16.mxu0 0
        %4311 = vmatpush1.bf16.msra.mxu0 0
        %4312 = vmatprep.subr.bf16.mxu0 0
        %4313 = vmatpush1.bf16.msra.mxu0 0
        %4314 = vmatprep.subr.bf16.mxu0 0
        %4315 = vmatpush1.bf16.msra.mxu0 0
        %4316 = vmatprep.subr.bf16.mxu0 0
        %4317 = vmatpush1.bf16.msra.mxu0 0
        %4318 = vmatprep.subr.bf16.mxu0 0
        %4319 = vmatpush1.bf16.msra.mxu0 0
        %4320 = vmatprep.subr.bf16.mxu0 0
        %4321 = vmatpush1.bf16.msra.mxu0 0
        %4322 = vmatprep.subr.bf16.mxu0 0
        %4323 = vmatpush1.bf16.msra.mxu0 0
        %4324 = vmatprep.subr.bf16.mxu0 0
        %4325 = vmatpush1.bf16.msra.mxu0 0
        %4326 = vmatprep.subr.bf16.mxu0 0
        %4327 = vmatpush1.bf16.msra.mxu0 0
        %4328 = vmatprep.subr.bf16.mxu0 0
        %4329 = vmatpush1.bf16.msra.mxu0 0
        %4330 = vmatprep.subr.bf16.mxu0 0
        %4331 = vmatpush1.bf16.msra.mxu0 0
        %4332 = vmatprep.subr.bf16.mxu0 0
        %4333 = vmatpush1.bf16.msra.mxu0 0
        %4334 = vmatprep.subr.bf16.mxu0 0
        %4335 = vmatpush1.bf16.msra.mxu0 0
        %4336 = vmatprep.mubr.bf16.mxu0 0
        %4337 = vmatmul.mubr.bf16.gmra.mrb[0].mxu0 %v4302
        %v4338 = vpop.f32.mrb[0].mxu0
        %v4339 = vadd.f32 0.0, %v4338
        %v4340 = vpop.f32.mrb[0].mxu0
        %v4341 = vpop.f32.mrb[0].mxu0
        %v4342 = vpop.f32.mrb[0].mxu0
        %4343 = vdwg.mxu0
        %v4345 = vsel %vm2747, %v3724, 0
        %4347 = vmatprep.subr.bf16.mxu0 0
        %4348 = vmatpush1.bf16.msra.mxu0 %v3740
        %4349 = vmatprep.subr.bf16.mxu0 0
        %4350 = vmatpush1.bf16.msra.mxu0 0
        %4351 = vmatprep.subr.bf16.mxu0 0
        %4352 = vmatpush1.bf16.msra.mxu0 0
        %4353 = vmatprep.subr.bf16.mxu0 0
        %4354 = vmatpush1.bf16.msra.mxu0 0
        %4355 = vmatprep.subr.bf16.mxu0 0
        %4356 = vmatpush1.bf16.msra.mxu0 0
        %4357 = vmatprep.subr.bf16.mxu0 0
        %4358 = vmatpush1.bf16.msra.mxu0 0
        %4359 = vmatprep.subr.bf16.mxu0 0
        %4360 = vmatpush1.bf16.msra.mxu0 0
        %4361 = vmatprep.subr.bf16.mxu0 0
        %4362 = vmatpush1.bf16.msra.mxu0 0
        %4363 = vmatprep.subr.bf16.mxu0 0
        %4364 = vmatpush1.bf16.msra.mxu0 0
        %4365 = vmatprep.subr.bf16.mxu0 0
        %4366 = vmatpush1.bf16.msra.mxu0 0
        %4367 = vmatprep.subr.bf16.mxu0 0
        %4368 = vmatpush1.bf16.msra.mxu0 0
        %4369 = vmatprep.subr.bf16.mxu0 0
        %4370 = vmatpush1.bf16.msra.mxu0 0
        %4371 = vmatprep.subr.bf16.mxu0 0
        %4372 = vmatpush1.bf16.msra.mxu0 0
        %4373 = vmatprep.subr.bf16.mxu0 0
        %4374 = vmatpush1.bf16.msra.mxu0 0
        %4375 = vmatprep.subr.bf16.mxu0 0
        %4376 = vmatpush1.bf16.msra.mxu0 0
        %4377 = vmatprep.subr.bf16.mxu0 0
        %4378 = vmatpush1.bf16.msra.mxu0 0
        %4379 = vmatprep.mubr.bf16.mxu0 0
        %4380 = vmatmul.mubr.bf16.gmra.mrb[0].mxu0 %v4345
        %v4381 = vpop.f32.mrb[0].mxu0
        %v4382 = vadd.f32 0.0, %v4381
        %v4383 = vpop.f32.mrb[0].mxu0
        %v4384 = vpop.f32.mrb[0].mxu0
        %v4385 = vpop.f32.mrb[0].mxu0
        %4386 = vdwg.mxu0
        %v4388 = vsel %vm2747, %v3725, 0
        %4390 = vmatprep.subr.bf16.mxu0 0
        %4391 = vmatpush1.bf16.msra.mxu0 %v3741
        %4392 = vmatprep.subr.bf16.mxu0 0
        %4393 = vmatpush1.bf16.msra.mxu0 0
        %4394 = vmatprep.subr.bf16.mxu0 0
        %4395 = vmatpush1.bf16.msra.mxu0 0
        %4396 = vmatprep.subr.bf16.mxu0 0
        %4397 = vmatpush1.bf16.msra.mxu0 0
        %4398 = vmatprep.subr.bf16.mxu0 0
        %4399 = vmatpush1.bf16.msra.mxu0 0
        %4400 = vmatprep.subr.bf16.mxu0 0
        %4401 = vmatpush1.bf16.msra.mxu0 0
        %4402 = vmatprep.subr.bf16.mxu0 0
        %4403 = vmatpush1.bf16.msra.mxu0 0
        %4404 = vmatprep.subr.bf16.mxu0 0
        %4405 = vmatpush1.bf16.msra.mxu0 0
        %4406 = vmatprep.subr.bf16.mxu0 0
        %4407 = vmatpush1.bf16.msra.mxu0 0
        %4408 = vmatprep.subr.bf16.mxu0 0
        %4409 = vmatpush1.bf16.msra.mxu0 0
        %4410 = vmatprep.subr.bf16.mxu0 0
        %4411 = vmatpush1.bf16.msra.mxu0 0
        %4412 = vmatprep.subr.bf16.mxu0 0
        %4413 = vmatpush1.bf16.msra.mxu0 0
        %4414 = vmatprep.subr.bf16.mxu0 0
        %4415 = vmatpush1.bf16.msra.mxu0 0
        %4416 = vmatprep.subr.bf16.mxu0 0
        %4417 = vmatpush1.bf16.msra.mxu0 0
        %4418 = vmatprep.subr.bf16.mxu0 0
        %4419 = vmatpush1.bf16.msra.mxu0 0
        %4420 = vmatprep.subr.bf16.mxu0 0
        %4421 = vmatpush1.bf16.msra.mxu0 0
        %4422 = vmatprep.mubr.bf16.mxu0 0
        %4423 = vmatmul.mubr.bf16.gmra.mrb[0].mxu0 %v4388
        %v4424 = vpop.f32.mrb[0].mxu0
        %v4425 = vadd.f32 0.0, %v4424
        %v4426 = vpop.f32.mrb[0].mxu0
        %v4427 = vpop.f32.mrb[0].mxu0
        %v4428 = vpop.f32.mrb[0].mxu0
        %4429 = vdwg.mxu0
        %v4431 = vlaneseq
        %v4432 = vshrl.u32 %v4431, 7
        %v4433 = vsub.s32 0, %v4432
        %v4434 = vrot.slane %v2388, %v4433
        %v4436 = vmul.f32 %v2758, %v4434
        %v4437 = vmul.f32 %v2759, %v4434
        %v4454 = vrot.slane %v3823, 7
        %v4455 = vsel %vm3533, %v4454, %v3780
        %v4456 = vrot.slane %v3866, 6
        %v4457 = vsel %vm3535, %v4456, %v4455
        %v4458 = vrot.slane %v3909, 5
        %v4459 = vsel %vm3537, %v4458, %v4457
        %v4460 = vrot.slane %v3952, 4
        %v4461 = vsel %vm3539, %v4460, %v4459
        %v4462 = vrot.slane %v3995, 3
        %v4463 = vsel %vm3541, %v4462, %v4461
        %v4464 = vrot.slane %v4038, 2
        %v4465 = vsel %vm3543, %v4464, %v4463
        %v4466 = vrot.slane %v4081, 1
        %v4467 = vsel %vm3545, %v4466, %v4465
        %v4468 = vrot.slane %v4167, 7
        %v4469 = vsel %vm3533, %v4468, %v4124
        %v4470 = vrot.slane %v4210, 6
        %v4471 = vsel %vm3535, %v4470, %v4469
        %v4472 = vrot.slane %v4253, 5
        %v4473 = vsel %vm3537, %v4472, %v4471
        %v4474 = vrot.slane %v4296, 4
        %v4475 = vsel %vm3539, %v4474, %v4473
        %v4476 = vrot.slane %v4339, 3
        %v4477 = vsel %vm3541, %v4476, %v4475
        %v4478 = vrot.slane %v4382, 2
        %v4479 = vsel %vm3543, %v4478, %v4477
        %v4480 = vrot.slane %v4425, 1
        %v4481 = vsel %vm3545, %v4480, %v4479
        %4484 = vmatprep.subr.mxu0 0.0
        %4485 = vmatpush1.msra.mxu0 %v2372
        %4486 = vmatprep.subr.mxu0 0.0
        %4487 = vmatpush1.msra.mxu0 %v2373
        %4488 = vmatprep.subr.mxu0 0.0
        %4489 = vmatpush1.msra.mxu0 %v2374
        %4490 = vmatprep.subr.mxu0 0.0
        %4491 = vmatpush1.msra.mxu0 %v2375
        %4492 = vmatprep.subr.mxu0 0.0
        %4493 = vmatpush1.msra.mxu0 %v2376
        %4494 = vmatprep.subr.mxu0 0.0
        %4495 = vmatpush1.msra.mxu0 %v2377
        %4496 = vmatprep.subr.mxu0 0.0
        %4497 = vmatpush1.msra.mxu0 %v2378
        %4498 = vmatprep.subr.mxu0 0.0
        %4499 = vmatpush1.msra.mxu0 %v2379
        %4500 = vmatprep.subr.mxu0 0.0
        %4501 = vmatpush1.msra.mxu0 %v2380
        %4502 = vmatprep.subr.mxu0 0.0
        %4503 = vmatpush1.msra.mxu0 %v2381
        %4504 = vmatprep.subr.mxu0 0.0
        %4505 = vmatpush1.msra.mxu0 %v2382
        %4506 = vmatprep.subr.mxu0 0.0
        %4507 = vmatpush1.msra.mxu0 %v2383
        %4508 = vmatprep.subr.mxu0 0.0
        %4509 = vmatpush1.msra.mxu0 %v2384
        %4510 = vmatprep.subr.mxu0 0.0
        %4511 = vmatpush1.msra.mxu0 %v2385
        %4512 = vmatprep.subr.mxu0 0.0
        %4513 = vmatpush1.msra.mxu0 %v2386
        %4514 = vmatprep.subr.mxu0 0.0
        %4515 = vmatpush1.msra.mxu0 %v2387
        %4516 = vmatprep.subr.mxu0 0.0
        %4517 = vmatpush1.msra.mxu0 0.0
        %4518 = vmatprep.subr.mxu0 0.0
        %4519 = vmatpush1.msra.mxu0 0.0
        %4520 = vmatprep.subr.mxu0 0.0
        %4521 = vmatpush1.msra.mxu0 0.0
        %4522 = vmatprep.subr.mxu0 0.0
        %4523 = vmatpush1.msra.mxu0 0.0
        %4524 = vmatprep.subr.mxu0 0.0
        %4525 = vmatpush1.msra.mxu0 0.0
        %4526 = vmatprep.subr.mxu0 0.0
        %4527 = vmatpush1.msra.mxu0 0.0
        %4528 = vmatprep.subr.mxu0 0.0
        %4529 = vmatpush1.msra.mxu0 0.0
        %4530 = vmatprep.subr.mxu0 0.0
        %4531 = vmatpush1.msra.mxu0 0.0
        %4532 = vmatprep.subr.mxu0 0.0
        %4533 = vmatpush1.msra.mxu0 0.0
        %4534 = vmatprep.subr.mxu0 0.0
        %4535 = vmatpush1.msra.mxu0 0.0
        %4536 = vmatprep.subr.mxu0 0.0
        %4537 = vmatpush1.msra.mxu0 0.0
        %4538 = vmatprep.subr.mxu0 0.0
        %4539 = vmatpush1.msra.mxu0 0.0
        %4540 = vmatprep.subr.mxu0 0.0
        %4541 = vmatpush1.msra.mxu0 0.0
        %4542 = vmatprep.subr.mxu0 0.0
        %4543 = vmatpush1.msra.mxu0 0.0
        %4544 = vmatprep.subr.mxu0 0.0
        %4545 = vmatpush1.msra.mxu0 0.0
        %4546 = vmatprep.subr.mxu0 0.0
        %4547 = vmatpush1.msra.mxu0 0.0
        %4548 = vmatprep.mubr.f32.mxu0 0.0
        %4549 = vmatmul.mubr.f32.gmra.mrb[0].mxu0 %v4467
        %v4550 = vpop.f32.mrb[0].mxu0
        %v4551 = vadd.f32 %v4436, %v4550
        %v4552 = vpop.f32.mrb[0].mxu0
        %4553 = vmatprep.mubr.f32.mxu0 0.0
        %4554 = vmatmul.mubr.f32.gmra.mrb[0].mxu0 %v4481
        %v4555 = vpop.f32.mrb[0].mxu0
        %v4556 = vadd.f32 %v4437, %v4555
        %v4557 = vpop.f32.mrb[0].mxu0
        %4558 = vdwg.mxu0
        %vm4559 = vcmp.gt.f32.partialorder %v4551, 0.0
        %vm4560 = vcmp.gt.f32.partialorder %v4556, 0.0
        %v4561 = vmin.f32 %v4551, 0.0
        %v4562 = vmin.f32 %v4556, 0.0
        %v4563 = vmul.f32 %v4561, 1.442695
        %v4564 = vpow.pop %v4563
        %v4565 = vmul.f32 %v4562, 1.442695
        %v4566 = vpow.pop %v4565
        %v4567 = vsub.f32 %v4564, 1.0
        %v4568 = vsub.f32 %v4566, 1.0
        %v4569 = vsel %vm4559, %v4551, %v4567
        %v4570 = vsel %vm4560, %v4556, %v4568
        %v4572 = vlaneseq
        %v4573 = vshrl.u32 %v4572, 7
        %v4574 = vsub.s32 0, %v4573
        %v4575 = vrot.slane %v2485, %v4574
        %v4576 = vlaneseq
        %v4577 = vshrl.u32 %v4576, 7
        %v4578 = vsub.s32 1, %v4577
        %v4579 = vrot.slane %v2485, %v4578
        %v4580 = vlaneseq
        %v4581 = vshrl.u32 %v4580, 7
        %v4582 = vsub.s32 2, %v4581
        %v4583 = vrot.slane %v2485, %v4582
        %4587 = vmatprep.subr.mxu0 %v2390
        %4588 = vmatpush1.msra.mxu0 %v2389
        %4589 = vmatprep.subr.mxu0 %v2393
        %4590 = vmatpush1.msra.mxu0 %v2392
        %4591 = vmatprep.subr.mxu0 %v2396
        %4592 = vmatpush1.msra.mxu0 %v2395
        %4593 = vmatprep.subr.mxu0 %v2399
        %4594 = vmatpush1.msra.mxu0 %v2398
        %4595 = vmatprep.subr.mxu0 %v2402
        %4596 = vmatpush1.msra.mxu0 %v2401
        %4597 = vmatprep.subr.mxu0 %v2405
        %4598 = vmatpush1.msra.mxu0 %v2404
        %4599 = vmatprep.subr.mxu0 %v2408
        %4600 = vmatpush1.msra.mxu0 %v2407
        %4601 = vmatprep.subr.mxu0 %v2411
        %4602 = vmatpush1.msra.mxu0 %v2410
        %4603 = vmatprep.subr.mxu0 %v2414
        %4604 = vmatpush1.msra.mxu0 %v2413
        %4605 = vmatprep.subr.mxu0 %v2417
        %4606 = vmatpush1.msra.mxu0 %v2416
        %4607 = vmatprep.subr.mxu0 %v2420
        %4608 = vmatpush1.msra.mxu0 %v2419
        %4609 = vmatprep.subr.mxu0 %v2423
        %4610 = vmatpush1.msra.mxu0 %v2422
        %4611 = vmatprep.subr.mxu0 %v2426
        %4612 = vmatpush1.msra.mxu0 %v2425
        %4613 = vmatprep.subr.mxu0 %v2429
        %4614 = vmatpush1.msra.mxu0 %v2428
        %4615 = vmatprep.subr.mxu0 %v2432
        %4616 = vmatpush1.msra.mxu0 %v2431
        %4617 = vmatprep.subr.mxu0 %v2435
        %4618 = vmatpush1.msra.mxu0 %v2434
        %4619 = vmatprep.subr.mxu0 0.0
        %4620 = vmatpush1.msra.mxu0 0.0
        %4621 = vmatprep.subr.mxu0 0.0
        %4622 = vmatpush1.msra.mxu0 0.0
        %4623 = vmatprep.subr.mxu0 0.0
        %4624 = vmatpush1.msra.mxu0 0.0
        %4625 = vmatprep.subr.mxu0 0.0
        %4626 = vmatpush1.msra.mxu0 0.0
        %4627 = vmatprep.subr.mxu0 0.0
        %4628 = vmatpush1.msra.mxu0 0.0
        %4629 = vmatprep.subr.mxu0 0.0
        %4630 = vmatpush1.msra.mxu0 0.0
        %4631 = vmatprep.subr.mxu0 0.0
        %4632 = vmatpush1.msra.mxu0 0.0
        %4633 = vmatprep.subr.mxu0 0.0
        %4634 = vmatpush1.msra.mxu0 0.0
        %4635 = vmatprep.subr.mxu0 0.0
        %4636 = vmatpush1.msra.mxu0 0.0
        %4637 = vmatprep.subr.mxu0 0.0
        %4638 = vmatpush1.msra.mxu0 0.0
        %4639 = vmatprep.subr.mxu0 0.0
        %4640 = vmatpush1.msra.mxu0 0.0
        %4641 = vmatprep.subr.mxu0 0.0
        %4642 = vmatpush1.msra.mxu0 0.0
        %4643 = vmatprep.subr.mxu0 0.0
        %4644 = vmatpush1.msra.mxu0 0.0
        %4645 = vmatprep.subr.mxu0 0.0
        %4646 = vmatpush1.msra.mxu0 0.0
        %4647 = vmatprep.subr.mxu0 0.0
        %4648 = vmatpush1.msra.mxu0 0.0
        %4649 = vmatprep.subr.mxu0 0.0
        %4650 = vmatpush1.msra.mxu0 0.0
        %4651 = vmatprep.mubr.f32.mxu0 0.0
        %4652 = vmatmul.mubr.f32.gmra.mrb[0].mxu0 %v4569
        %v4653 = vpop.f32.mrb[0].mxu0
        %v4654 = vadd.f32 %v4575, %v4653
        %v4655 = vpop.f32.mrb[0].mxu0
        %v4656 = vadd.f32 %v4579, %v4655
        %4657 = vmatprep.mubr.f32.mxu0 0.0
        %4658 = vmatmul.mubr.f32.gmra.mrb[0].mxu0 %v4570
        %v4659 = vpop.f32.mrb[0].mxu0
        %v4660 = vadd.f32 %v4575, %v4659
        %v4661 = vpop.f32.mrb[0].mxu0
        %v4662 = vadd.f32 %v4579, %v4661
        %4663 = vdwg.mxu0
        %4664 = vmatprep.subr.mxu0 0.0
        %4665 = vmatpush1.msra.mxu0 %v2391
        %4666 = vmatprep.subr.mxu0 0.0
        %4667 = vmatpush1.msra.mxu0 %v2394
        %4668 = vmatprep.subr.mxu0 0.0
        %4669 = vmatpush1.msra.mxu0 %v2397
        %4670 = vmatprep.subr.mxu0 0.0
        %4671 = vmatpush1.msra.mxu0 %v2400
        %4672 = vmatprep.subr.mxu0 0.0
        %4673 = vmatpush1.msra.mxu0 %v2403
        %4674 = vmatprep.subr.mxu0 0.0
        %4675 = vmatpush1.msra.mxu0 %v2406
        %4676 = vmatprep.subr.mxu0 0.0
        %4677 = vmatpush1.msra.mxu0 %v2409
        %4678 = vmatprep.subr.mxu0 0.0
        %4679 = vmatpush1.msra.mxu0 %v2412
        %4680 = vmatprep.subr.mxu0 0.0
        %4681 = vmatpush1.msra.mxu0 %v2415
        %4682 = vmatprep.subr.mxu0 0.0
        %4683 = vmatpush1.msra.mxu0 %v2418
        %4684 = vmatprep.subr.mxu0 0.0
        %4685 = vmatpush1.msra.mxu0 %v2421
        %4686 = vmatprep.subr.mxu0 0.0
        %4687 = vmatpush1.msra.mxu0 %v2424
        %4688 = vmatprep.subr.mxu0 0.0
        %4689 = vmatpush1.msra.mxu0 %v2427
        %4690 = vmatprep.subr.mxu0 0.0
        %4691 = vmatpush1.msra.mxu0 %v2430
        %4692 = vmatprep.subr.mxu0 0.0
        %4693 = vmatpush1.msra.mxu0 %v2433
        %4694 = vmatprep.subr.mxu0 0.0
        %4695 = vmatpush1.msra.mxu0 %v2436
        %4696 = vmatprep.subr.mxu0 0.0
        %4697 = vmatpush1.msra.mxu0 0.0
        %4698 = vmatprep.subr.mxu0 0.0
        %4699 = vmatpush1.msra.mxu0 0.0
        %4700 = vmatprep.subr.mxu0 0.0
        %4701 = vmatpush1.msra.mxu0 0.0
        %4702 = vmatprep.subr.mxu0 0.0
        %4703 = vmatpush1.msra.mxu0 0.0
        %4704 = vmatprep.subr.mxu0 0.0
        %4705 = vmatpush1.msra.mxu0 0.0
        %4706 = vmatprep.subr.mxu0 0.0
        %4707 = vmatpush1.msra.mxu0 0.0
        %4708 = vmatprep.subr.mxu0 0.0
        %4709 = vmatpush1.msra.mxu0 0.0
        %4710 = vmatprep.subr.mxu0 0.0
        %4711 = vmatpush1.msra.mxu0 0.0
        %4712 = vmatprep.subr.mxu0 0.0
        %4713 = vmatpush1.msra.mxu0 0.0
        %4714 = vmatprep.subr.mxu0 0.0
        %4715 = vmatpush1.msra.mxu0 0.0
        %4716 = vmatprep.subr.mxu0 0.0
        %4717 = vmatpush1.msra.mxu0 0.0
        %4718 = vmatprep.subr.mxu0 0.0
        %4719 = vmatpush1.msra.mxu0 0.0
        %4720 = vmatprep.subr.mxu0 0.0
        %4721 = vmatpush1.msra.mxu0 0.0
        %4722 = vmatprep.subr.mxu0 0.0
        %4723 = vmatpush1.msra.mxu0 0.0
        %4724 = vmatprep.subr.mxu0 0.0
        %4725 = vmatpush1.msra.mxu0 0.0
        %4726 = vmatprep.subr.mxu0 0.0
        %4727 = vmatpush1.msra.mxu0 0.0
        %4728 = vmatprep.mubr.f32.mxu0 0.0
        %4729 = vmatmul.mubr.f32.gmra.mrb[0].mxu0 %v4569
        %v4730 = vpop.f32.mrb[0].mxu0
        %v4731 = vadd.f32 %v4583, %v4730
        %v4732 = vpop.f32.mrb[0].mxu0
        %4733 = vmatprep.mubr.f32.mxu0 0.0
        %4734 = vmatmul.mubr.f32.gmra.mrb[0].mxu0 %v4570
        %v4735 = vpop.f32.mrb[0].mxu0
        %v4736 = vadd.f32 %v4583, %v4735
        %v4737 = vpop.f32.mrb[0].mxu0
        %4738 = vdwg.mxu0
        %v4740 = vlaneseq
        %v4741 = vshrl.u32 %v4740, 7
        %v4742 = vsub.s32 0, %v4741
        %v4743 = vrot.slane %v2486, %v4742
        %v4744 = vlaneseq
        %v4745 = vshrl.u32 %v4744, 7
        %v4746 = vsub.s32 1, %v4745
        %v4747 = vrot.slane %v2486, %v4746
        %v4748 = vlaneseq
        %v4749 = vshrl.u32 %v4748, 7
        %v4750 = vsub.s32 2, %v4749
        %v4751 = vrot.slane %v2486, %v4750
        %4755 = vmatprep.subr.mxu0 %v2438
        %4756 = vmatpush1.msra.mxu0 %v2437
        %4757 = vmatprep.subr.mxu0 %v2441
        %4758 = vmatpush1.msra.mxu0 %v2440
        %4759 = vmatprep.subr.mxu0 %v2444
        %4760 = vmatpush1.msra.mxu0 %v2443
        %4761 = vmatprep.subr.mxu0 %v2447
        %4762 = vmatpush1.msra.mxu0 %v2446
        %4763 = vmatprep.subr.mxu0 %v2450
        %4764 = vmatpush1.msra.mxu0 %v2449
        %4765 = vmatprep.subr.mxu0 %v2453
        %4766 = vmatpush1.msra.mxu0 %v2452
        %4767 = vmatprep.subr.mxu0 %v2456
        %4768 = vmatpush1.msra.mxu0 %v2455
        %4769 = vmatprep.subr.mxu0 %v2459
        %4770 = vmatpush1.msra.mxu0 %v2458
        %4771 = vmatprep.subr.mxu0 %v2462
        %4772 = vmatpush1.msra.mxu0 %v2461
        %4773 = vmatprep.subr.mxu0 %v2465
        %4774 = vmatpush1.msra.mxu0 %v2464
        %4775 = vmatprep.subr.mxu0 %v2468
        %4776 = vmatpush1.msra.mxu0 %v2467
        %4777 = vmatprep.subr.mxu0 %v2471
        %4778 = vmatpush1.msra.mxu0 %v2470
        %4779 = vmatprep.subr.mxu0 %v2474
        %4780 = vmatpush1.msra.mxu0 %v2473
        %4781 = vmatprep.subr.mxu0 %v2477
        %4782 = vmatpush1.msra.mxu0 %v2476
        %4783 = vmatprep.subr.mxu0 %v2480
        %4784 = vmatpush1.msra.mxu0 %v2479
        %4785 = vmatprep.subr.mxu0 %v2483
        %4786 = vmatpush1.msra.mxu0 %v2482
        %4787 = vmatprep.subr.mxu0 0.0
        %4788 = vmatpush1.msra.mxu0 0.0
        %4789 = vmatprep.subr.mxu0 0.0
        %4790 = vmatpush1.msra.mxu0 0.0
        %4791 = vmatprep.subr.mxu0 0.0
        %4792 = vmatpush1.msra.mxu0 0.0
        %4793 = vmatprep.subr.mxu0 0.0
        %4794 = vmatpush1.msra.mxu0 0.0
        %4795 = vmatprep.subr.mxu0 0.0
        %4796 = vmatpush1.msra.mxu0 0.0
        %4797 = vmatprep.subr.mxu0 0.0
        %4798 = vmatpush1.msra.mxu0 0.0
        %4799 = vmatprep.subr.mxu0 0.0
        %4800 = vmatpush1.msra.mxu0 0.0
        %4801 = vmatprep.subr.mxu0 0.0
        %4802 = vmatpush1.msra.mxu0 0.0
        %4803 = vmatprep.subr.mxu0 0.0
        %4804 = vmatpush1.msra.mxu0 0.0
        %4805 = vmatprep.subr.mxu0 0.0
        %4806 = vmatpush1.msra.mxu0 0.0
        %4807 = vmatprep.subr.mxu0 0.0
        %4808 = vmatpush1.msra.mxu0 0.0
        %4809 = vmatprep.subr.mxu0 0.0
        %4810 = vmatpush1.msra.mxu0 0.0
        %4811 = vmatprep.subr.mxu0 0.0
        %4812 = vmatpush1.msra.mxu0 0.0
        %4813 = vmatprep.subr.mxu0 0.0
        %4814 = vmatpush1.msra.mxu0 0.0
        %4815 = vmatprep.subr.mxu0 0.0
        %4816 = vmatpush1.msra.mxu0 0.0
        %4817 = vmatprep.subr.mxu0 0.0
        %4818 = vmatpush1.msra.mxu0 0.0
        %4819 = vmatprep.mubr.f32.mxu0 0.0
        %4820 = vmatmul.mubr.f32.gmra.mrb[0].mxu0 %v2583
        %v4821 = vpop.f32.mrb[0].mxu0
        %v4822 = vadd.f32 %v4743, %v4821
        %v4823 = vpop.f32.mrb[0].mxu0
        %v4824 = vadd.f32 %v4747, %v4823
        %4825 = vmatprep.mubr.f32.mxu0 0.0
        %4826 = vmatmul.mubr.f32.gmra.mrb[0].mxu0 %v2584
        %v4827 = vpop.f32.mrb[0].mxu0
        %v4828 = vadd.f32 %v4743, %v4827
        %v4829 = vpop.f32.mrb[0].mxu0
        %v4830 = vadd.f32 %v4747, %v4829
        %4831 = vdwg.mxu0
        %4832 = vmatprep.subr.mxu0 0.0
        %4833 = vmatpush1.msra.mxu0 %v2439
        %4834 = vmatprep.subr.mxu0 0.0
        %4835 = vmatpush1.msra.mxu0 %v2442
        %4836 = vmatprep.subr.mxu0 0.0
        %4837 = vmatpush1.msra.mxu0 %v2445
        %4838 = vmatprep.subr.mxu0 0.0
        %4839 = vmatpush1.msra.mxu0 %v2448
        %4840 = vmatprep.subr.mxu0 0.0
        %4841 = vmatpush1.msra.mxu0 %v2451
        %4842 = vmatprep.subr.mxu0 0.0
        %4843 = vmatpush1.msra.mxu0 %v2454
        %4844 = vmatprep.subr.mxu0 0.0
        %4845 = vmatpush1.msra.mxu0 %v2457
        %4846 = vmatprep.subr.mxu0 0.0
        %4847 = vmatpush1.msra.mxu0 %v2460
        %4848 = vmatprep.subr.mxu0 0.0
        %4849 = vmatpush1.msra.mxu0 %v2463
        %4850 = vmatprep.subr.mxu0 0.0
        %4851 = vmatpush1.msra.mxu0 %v2466
        %4852 = vmatprep.subr.mxu0 0.0
        %4853 = vmatpush1.msra.mxu0 %v2469
        %4854 = vmatprep.subr.mxu0 0.0
        %4855 = vmatpush1.msra.mxu0 %v2472
        %4856 = vmatprep.subr.mxu0 0.0
        %4857 = vmatpush1.msra.mxu0 %v2475
        %4858 = vmatprep.subr.mxu0 0.0
        %4859 = vmatpush1.msra.mxu0 %v2478
        %4860 = vmatprep.subr.mxu0 0.0
        %4861 = vmatpush1.msra.mxu0 %v2481
        %4862 = vmatprep.subr.mxu0 0.0
        %4863 = vmatpush1.msra.mxu0 %v2484
        %4864 = vmatprep.subr.mxu0 0.0
        %4865 = vmatpush1.msra.mxu0 0.0
        %4866 = vmatprep.subr.mxu0 0.0
        %4867 = vmatpush1.msra.mxu0 0.0
        %4868 = vmatprep.subr.mxu0 0.0
        %4869 = vmatpush1.msra.mxu0 0.0
        %4870 = vmatprep.subr.mxu0 0.0
        %4871 = vmatpush1.msra.mxu0 0.0
        %4872 = vmatprep.subr.mxu0 0.0
        %4873 = vmatpush1.msra.mxu0 0.0
        %4874 = vmatprep.subr.mxu0 0.0
        %4875 = vmatpush1.msra.mxu0 0.0
        %4876 = vmatprep.subr.mxu0 0.0
        %4877 = vmatpush1.msra.mxu0 0.0
        %4878 = vmatprep.subr.mxu0 0.0
        %4879 = vmatpush1.msra.mxu0 0.0
        %4880 = vmatprep.subr.mxu0 0.0
        %4881 = vmatpush1.msra.mxu0 0.0
        %4882 = vmatprep.subr.mxu0 0.0
        %4883 = vmatpush1.msra.mxu0 0.0
        %4884 = vmatprep.subr.mxu0 0.0
        %4885 = vmatpush1.msra.mxu0 0.0
        %4886 = vmatprep.subr.mxu0 0.0
        %4887 = vmatpush1.msra.mxu0 0.0
        %4888 = vmatprep.subr.mxu0 0.0
        %4889 = vmatpush1.msra.mxu0 0.0
        %4890 = vmatprep.subr.mxu0 0.0
        %4891 = vmatpush1.msra.mxu0 0.0
        %4892 = vmatprep.subr.mxu0 0.0
        %4893 = vmatpush1.msra.mxu0 0.0
        %4894 = vmatprep.subr.mxu0 0.0
        %4895 = vmatpush1.msra.mxu0 0.0
        %4896 = vmatprep.mubr.f32.mxu0 0.0
        %4897 = vmatmul.mubr.f32.gmra.mrb[0].mxu0 %v2583
        %v4898 = vpop.f32.mrb[0].mxu0
        %v4899 = vadd.f32 %v4751, %v4898
        %v4900 = vpop.f32.mrb[0].mxu0
        %4901 = vmatprep.mubr.f32.mxu0 0.0
        %4902 = vmatmul.mubr.f32.gmra.mrb[0].mxu0 %v2584
        %v4903 = vpop.f32.mrb[0].mxu0
        %v4904 = vadd.f32 %v4751, %v4903
        %v4905 = vpop.f32.mrb[0].mxu0
        %4906 = vdwg.mxu0
        %v4907 = vadd.f32 %v4654, %v4822
        %v4908 = vadd.f32 %v4660, %v4828
        %v4909 = vsub.f32 0.0, %v4907
        %v4910 = vsub.f32 0.0, %v4908
        %v4911 = vmul.f32 %v4909, 1.442695
        %v4912 = vpow.pop %v4911
        %v4913 = vmul.f32 %v4910, 1.442695
        %v4914 = vpow.pop %v4913
        %v4915 = vadd.f32 %v4912, 1.0
        %v4916 = vadd.f32 %v4914, 1.0
        %v4917 = vrcp.pop %v4915
        %v4918 = vrcp.pop %v4916
        %v4919 = vadd.f32 %v4656, %v4824
        %v4920 = vadd.f32 %v4662, %v4830
        %v4921 = vsub.f32 0.0, %v4919
        %v4922 = vsub.f32 0.0, %v4920
        %v4923 = vmul.f32 %v4921, 1.442695
        %v4924 = vpow.pop %v4923
        %v4925 = vmul.f32 %v4922, 1.442695
        %v4926 = vpow.pop %v4925
        %v4927 = vadd.f32 %v4924, 1.0
        %v4928 = vadd.f32 %v4926, 1.0
        %v4929 = vrcp.pop %v4927
        %v4930 = vrcp.pop %v4928
        %v4931 = vmul.f32 %v4917, %v4899
        %v4932 = vmul.f32 %v4918, %v4904
        %v4933 = vadd.f32 %v4731, %v4931
        %v4934 = vadd.f32 %v4736, %v4932
        %v4935 = vtanh.pop %v4933
        %v4936 = vtanh.pop %v4934
        %v4937 = vsub.f32 1.0, %v4929
        %v4938 = vsub.f32 1.0, %v4930
        %v4939 = vmul.f32 %v4937, %v4935
        %v4940 = vmul.f32 %v4938, %v4936
        %v4941 = vmul.f32 %v4929, %v2583
        %v4942 = vmul.f32 %v4930, %v2584
        %v4943 = vadd.f32 %v4939, %v4941
        %v4944 = vadd.f32 %v4940, %v4942
        %v4945 = vmax.f32 %v4943, 0.0
        %v4946 = vmax.f32 %v4944, 0.0
        %v4947 = vld [vmem:[%s1941] sm:$0xff]
        %v4948 = vld [vmem:[%s1941 + $0x8] sm:$0xff]
        %v4949 = vld [vmem:[%s1941 + $0x10] sm:$0xff]
        %v4950 = vld [vmem:[%s1941 + $0x18] sm:$0xff]
        %v4951 = vld [vmem:[%s1941 + $0x20] sm:$0xff]
        %v4952 = vld [vmem:[%s1941 + $0x28] sm:$0xff]
        %v4953 = vld [vmem:[%s1941 + $0x30] sm:$0xff]
        %v4954 = vld [vmem:[%s1941 + $0x38] sm:$0xff]
        %v4955 = vld [vmem:[%s1941 + $0x40] sm:$0xff]
        %v4956 = vld [vmem:[%s1941 + $0x48] sm:$0xff]
        %v4957 = vld [vmem:[%s1941 + $0x50] sm:$0xff]
        %v4958 = vld [vmem:[%s1941 + $0x58] sm:$0xff]
        %v4959 = vld [vmem:[%s1941 + $0x60] sm:$0xff]
        %v4960 = vld [vmem:[%s1941 + $0x68] sm:$0xff]
        %v4961 = vld [vmem:[%s1941 + $0x70] sm:$0xff]
        %v4962 = vld [vmem:[%s1941 + $0x78] sm:$0xff]
        %v4963 = vld [vmem:[%s1959] sm:$0x1]
        %v4965 = vlaneseq
        %v4966 = vshrl.u32 %v4965, 7
        %v4967 = vsub.s32 0, %v4966
        %v4968 = vrot.slane %v4963, %v4967
        %4970 = vmatprep.subr.mxu0 0.0
        %4971 = vmatpush1.msra.mxu0 %v4947
        %4972 = vmatprep.subr.mxu0 0.0
        %4973 = vmatpush1.msra.mxu0 %v4948
        %4974 = vmatprep.subr.mxu0 0.0
        %4975 = vmatpush1.msra.mxu0 %v4949
        %4976 = vmatprep.subr.mxu0 0.0
        %4977 = vmatpush1.msra.mxu0 %v4950
        %4978 = vmatprep.subr.mxu0 0.0
        %4979 = vmatpush1.msra.mxu0 %v4951
        %4980 = vmatprep.subr.mxu0 0.0
        %4981 = vmatpush1.msra.mxu0 %v4952
        %4982 = vmatprep.subr.mxu0 0.0
        %4983 = vmatpush1.msra.mxu0 %v4953
        %4984 = vmatprep.subr.mxu0 0.0
        %4985 = vmatpush1.msra.mxu0 %v4954
        %4986 = vmatprep.subr.mxu0 0.0
        %4987 = vmatpush1.msra.mxu0 %v4955
        %4988 = vmatprep.subr.mxu0 0.0
        %4989 = vmatpush1.msra.mxu0 %v4956
        %4990 = vmatprep.subr.mxu0 0.0
        %4991 = vmatpush1.msra.mxu0 %v4957
        %4992 = vmatprep.subr.mxu0 0.0
        %4993 = vmatpush1.msra.mxu0 %v4958
        %4994 = vmatprep.subr.mxu0 0.0
        %4995 = vmatpush1.msra.mxu0 %v4959
        %4996 = vmatprep.subr.mxu0 0.0
        %4997 = vmatpush1.msra.mxu0 %v4960
        %4998 = vmatprep.subr.mxu0 0.0
        %4999 = vmatpush1.msra.mxu0 %v4961
        %5000 = vmatprep.subr.mxu0 0.0
        %5001 = vmatpush1.msra.mxu0 %v4962
        %5002 = vmatprep.subr.mxu0 0.0
        %5003 = vmatpush1.msra.mxu0 0.0
        %5004 = vmatprep.subr.mxu0 0.0
        %5005 = vmatpush1.msra.mxu0 0.0
        %5006 = vmatprep.subr.mxu0 0.0
        %5007 = vmatpush1.msra.mxu0 0.0
        %5008 = vmatprep.subr.mxu0 0.0
        %5009 = vmatpush1.msra.mxu0 0.0
        %5010 = vmatprep.subr.mxu0 0.0
        %5011 = vmatpush1.msra.mxu0 0.0
        %5012 = vmatprep.subr.mxu0 0.0
        %5013 = vmatpush1.msra.mxu0 0.0
        %5014 = vmatprep.subr.mxu0 0.0
        %5015 = vmatpush1.msra.mxu0 0.0
        %5016 = vmatprep.subr.mxu0 0.0
        %5017 = vmatpush1.msra.mxu0 0.0
        %5018 = vmatprep.subr.mxu0 0.0
        %5019 = vmatpush1.msra.mxu0 0.0
        %5020 = vmatprep.subr.mxu0 0.0
        %5021 = vmatpush1.msra.mxu0 0.0
        %5022 = vmatprep.subr.mxu0 0.0
        %5023 = vmatpush1.msra.mxu0 0.0
        %5024 = vmatprep.subr.mxu0 0.0
        %5025 = vmatpush1.msra.mxu0 0.0
        %5026 = vmatprep.subr.mxu0 0.0
        %5027 = vmatpush1.msra.mxu0 0.0
        %5028 = vmatprep.subr.mxu0 0.0
        %5029 = vmatpush1.msra.mxu0 0.0
        %5030 = vmatprep.subr.mxu0 0.0
        %5031 = vmatpush1.msra.mxu0 0.0
        %5032 = vmatprep.subr.mxu0 0.0
        %5033 = vmatpush1.msra.mxu0 0.0
        %5034 = vmatprep.mubr.f32.mxu0 0.0
        %5035 = vmatmul.mubr.f32.gmra.mrb[0].mxu0 %v4945
        %v5036 = vpop.f32.mrb[0].mxu0
        %v5037 = vadd.f32 %v4968, %v5036
        %v5038 = vpop.f32.mrb[0].mxu0
        %5039 = vmatprep.mubr.f32.mxu0 0.0
        %5040 = vmatmul.mubr.f32.gmra.mrb[0].mxu0 %v4946
        %v5041 = vpop.f32.mrb[0].mxu0
        %v5042 = vadd.f32 %v4968, %v5041
        %v5043 = vpop.f32.mrb[0].mxu0
        %5044 = vdwg.mxu0
        %v5045 = vld [vmem:[%s1950] sm:$0x1]
        %5046 = vmatprep.subr.mxu0 0.0
        %5047 = vmatpush1.xpose.msra.mxu0 %v4945
        %5048 = vmatprep.subr.mxu0 0.0
        %5049 = vmatpush1.xpose.msra.mxu0 %v4946
        %5050 = vmatprep.subr.mxu0 0.0
        %5051 = vmatpush1.xpose.msra.mxu0 0.0
        %5052 = vmatprep.subr.mxu0 0.0
        %5053 = vmatpush1.xpose.msra.mxu0 0.0
        %5054 = vmatprep.subr.mxu0 0.0
        %5055 = vmatpush1.xpose.msra.mxu0 0.0
        %5056 = vmatprep.subr.mxu0 0.0
        %5057 = vmatpush1.xpose.msra.mxu0 0.0
        %5058 = vmatprep.subr.mxu0 0.0
        %5059 = vmatpush1.xpose.msra.mxu0 0.0
        %5060 = vmatprep.subr.mxu0 0.0
        %5061 = vmatpush1.xpose.msra.mxu0 0.0
        %5062 = vmatprep.subr.mxu0 0.0
        %5063 = vmatpush1.xpose.msra.mxu0 0.0
        %5064 = vmatprep.subr.mxu0 0.0
        %5065 = vmatpush1.xpose.msra.mxu0 0.0
        %5066 = vmatprep.subr.mxu0 0.0
        %5067 = vmatpush1.xpose.msra.mxu0 0.0
        %5068 = vmatprep.subr.mxu0 0.0
        %5069 = vmatpush1.xpose.msra.mxu0 0.0
        %5070 = vmatprep.subr.mxu0 0.0
        %5071 = vmatpush1.xpose.msra.mxu0 0.0
        %5072 = vmatprep.subr.mxu0 0.0
        %5073 = vmatpush1.xpose.msra.mxu0 0.0
        %5074 = vmatprep.subr.mxu0 0.0
        %5075 = vmatpush1.xpose.msra.mxu0 0.0
        %5076 = vmatprep.subr.mxu0 0.0
        %5077 = vmatpush1.xpose.msra.mxu0 0.0
        %5078 = vmatprep.subr.mxu0 0.0
        %5079 = vmatpush1.xpose.msra.mxu0 0.0
        %5080 = vmatprep.subr.mxu0 0.0
        %5081 = vmatpush1.xpose.msra.mxu0 0.0
        %5082 = vmatprep.subr.mxu0 0.0
        %5083 = vmatpush1.xpose.msra.mxu0 0.0
        %5084 = vmatprep.subr.mxu0 0.0
        %5085 = vmatpush1.xpose.msra.mxu0 0.0
        %5086 = vmatprep.subr.mxu0 0.0
        %5087 = vmatpush1.xpose.msra.mxu0 0.0
        %5088 = vmatprep.subr.mxu0 0.0
        %5089 = vmatpush1.xpose.msra.mxu0 0.0
        %5090 = vmatprep.subr.mxu0 0.0
        %5091 = vmatpush1.xpose.msra.mxu0 0.0
        %5092 = vmatprep.subr.mxu0 0.0
        %5093 = vmatpush1.xpose.msra.mxu0 0.0
        %5094 = vmatprep.subr.mxu0 0.0
        %5095 = vmatpush1.xpose.msra.mxu0 0.0
        %5096 = vmatprep.subr.mxu0 0.0
        %5097 = vmatpush1.xpose.msra.mxu0 0.0
        %5098 = vmatprep.subr.mxu0 0.0
        %5099 = vmatpush1.xpose.msra.mxu0 0.0
        %5100 = vmatprep.subr.mxu0 0.0
        %5101 = vmatpush1.xpose.msra.mxu0 0.0
        %5102 = vmatprep.subr.mxu0 0.0
        %5103 = vmatpush1.xpose.msra.mxu0 0.0
        %5104 = vmatprep.subr.mxu0 0.0
        %5105 = vmatpush1.xpose.msra.mxu0 0.0
        %5106 = vmatprep.subr.mxu0 0.0
        %5107 = vmatpush1.xpose.msra.mxu0 0.0
        %5108 = vmatprep.subr.mxu0 0.0
        %5109 = vmatpush1.xpose.msra.mxu0 0.0
        %5110 = vmatprep.mubr.f32.mxu0 0.0
        %5111 = vmatmul.mubr.f32.gmra.mrb[0].mxu0 %v5045
        %v5112 = vpop.f32.mrb[0].mxu0
        %v5113 = vadd.f32 0.0, %v5112
        %v5114 = vpop.f32.mrb[0].mxu0
        %5115 = vdwg.mxu0
        %5117 = vset.pattern.permute.xlu0 0
        %5118 = vperm.xlu0 %5117, %v5037
        %v5119 = vpop.permute.xlu0 %5118
        %5122 = vset.pattern.permute.xlu0 0
        %5123 = vperm.xlu0 %5122, %v5042
        %v5124 = vpop.permute.xlu0 %5123
        %v5126 = vlaneseq
        %v5127 = vshrl.u32 %v5126, 7
        %v5128 = vsub.s32 0, %v5127
        %v5129 = vrot.slane %v5113, %v5128
        %v5130 = vadd.f32 %v5119, %v5129
        %v5131 = vadd.f32 %v5124, %v5129
        %vm5132 = vcmp.ge.f32.partialorder %v5130, 0.0
        %vm5133 = vcmp.ge.f32.partialorder %v5131, 0.0
        %v5134 = vmul.f32 %v5130, 0.01
        %v5135 = vmul.f32 %v5131, 0.01
        %v5136 = vsel %vm5132, %v5130, %v5134
        %v5137 = vsel %vm5133, %v5131, %v5135
        %v5138 = vsel %vm3564, %v5136, -1e+30
        %v5139 = vsel %vm3565, %v5137, -1e+30
        %v5140 = vsel %vm2747, %v5138, -inf
        %5141 = vmax.xlane.f32.xlu0 %v5140
        %v5142 = vpop.xlane.xlu0 %5141
        %v5143 = vsel %vm2747, %v5139, -inf
        %5144 = vmax.xlane.f32.xlu0 %v5143
        %v5145 = vpop.xlane.xlu0 %5144
        %v5146 = vsub.f32 %v5138, %v5142
        %v5147 = vsub.f32 %v5139, %v5145
        %v5148 = vmul.f32 %v5146, 1.442695
        %v5149 = vpow.pop %v5148
        %v5150 = vmul.f32 %v5147, 1.442695
        %v5151 = vpow.pop %v5150
        %v5152 = vmul.f32 %v5149, %v2489
        %v5153 = vmul.f32 %v5151, %v2490
        %v5154 = vsel %vm2747, %v5152, 0.0
        %5155 = vadd.xlane.f32.xlu0 %v5154
        %v5156 = vpop.xlane.xlu0 %5155
        %v5157 = vsel %vm2747, %v5153, 0.0
        %5158 = vadd.xlane.f32.xlu0 %v5157
        %v5159 = vpop.xlane.xlu0 %5158
        %v5160 = vmax.f32 %v5156, 1e-20
        %v5161 = vmax.f32 %v5159, 1e-20
        %v5162 = vrcp.pop %v5160
        %v5163 = vrcp.pop %v5161
        %v5164 = vmul.f32 %v5152, %v5162
        %v5165 = vmul.f32 %v5153, %v5163
        %v5166 = vld [vmem:[%s1968] sm:$0xff]
        %v5167 = vld [vmem:[%s1968 + $0x8] sm:$0xff]
        %v5168 = vld [vmem:[%s1968 + $0x10] sm:$0xff]
        %v5169 = vld [vmem:[%s1968 + $0x18] sm:$0xff]
        %v5170 = vld [vmem:[%s1968 + $0x20] sm:$0xff]
        %v5171 = vld [vmem:[%s1968 + $0x28] sm:$0xff]
        %v5172 = vld [vmem:[%s1968 + $0x30] sm:$0xff]
        %v5173 = vld [vmem:[%s1968 + $0x38] sm:$0xff]
        %v5174 = vld [vmem:[%s1968 + $0x40] sm:$0xff]
        %v5175 = vld [vmem:[%s1968 + $0x48] sm:$0xff]
        %v5176 = vld [vmem:[%s1968 + $0x50] sm:$0xff]
        %v5177 = vld [vmem:[%s1968 + $0x58] sm:$0xff]
        %v5178 = vld [vmem:[%s1968 + $0x60] sm:$0xff]
        %v5179 = vld [vmem:[%s1968 + $0x68] sm:$0xff]
        %v5180 = vld [vmem:[%s1968 + $0x70] sm:$0xff]
        %v5181 = vld [vmem:[%s1968 + $0x78] sm:$0xff]
        %v5182 = vld [vmem:[%s1977] sm:$0x1]
        %v5184 = vlaneseq
        %v5185 = vshrl.u32 %v5184, 7
        %v5186 = vsub.s32 0, %v5185
        %v5187 = vrot.slane %v5182, %v5186
        %5189 = vmatprep.subr.mxu0 0.0
        %5190 = vmatpush1.msra.mxu0 %v5166
        %5191 = vmatprep.subr.mxu0 0.0
        %5192 = vmatpush1.msra.mxu0 %v5167
        %5193 = vmatprep.subr.mxu0 0.0
        %5194 = vmatpush1.msra.mxu0 %v5168
        %5195 = vmatprep.subr.mxu0 0.0
        %5196 = vmatpush1.msra.mxu0 %v5169
        %5197 = vmatprep.subr.mxu0 0.0
        %5198 = vmatpush1.msra.mxu0 %v5170
        %5199 = vmatprep.subr.mxu0 0.0
        %5200 = vmatpush1.msra.mxu0 %v5171
        %5201 = vmatprep.subr.mxu0 0.0
        %5202 = vmatpush1.msra.mxu0 %v5172
        %5203 = vmatprep.subr.mxu0 0.0
        %5204 = vmatpush1.msra.mxu0 %v5173
        %5205 = vmatprep.subr.mxu0 0.0
        %5206 = vmatpush1.msra.mxu0 %v5174
        %5207 = vmatprep.subr.mxu0 0.0
        %5208 = vmatpush1.msra.mxu0 %v5175
        %5209 = vmatprep.subr.mxu0 0.0
        %5210 = vmatpush1.msra.mxu0 %v5176
        %5211 = vmatprep.subr.mxu0 0.0
        %5212 = vmatpush1.msra.mxu0 %v5177
        %5213 = vmatprep.subr.mxu0 0.0
        %5214 = vmatpush1.msra.mxu0 %v5178
        %5215 = vmatprep.subr.mxu0 0.0
        %5216 = vmatpush1.msra.mxu0 %v5179
        %5217 = vmatprep.subr.mxu0 0.0
        %5218 = vmatpush1.msra.mxu0 %v5180
        %5219 = vmatprep.subr.mxu0 0.0
        %5220 = vmatpush1.msra.mxu0 %v5181
        %5221 = vmatprep.subr.mxu0 0.0
        %5222 = vmatpush1.msra.mxu0 0.0
        %5223 = vmatprep.subr.mxu0 0.0
        %5224 = vmatpush1.msra.mxu0 0.0
        %5225 = vmatprep.subr.mxu0 0.0
        %5226 = vmatpush1.msra.mxu0 0.0
        %5227 = vmatprep.subr.mxu0 0.0
        %5228 = vmatpush1.msra.mxu0 0.0
        %5229 = vmatprep.subr.mxu0 0.0
        %5230 = vmatpush1.msra.mxu0 0.0
        %5231 = vmatprep.subr.mxu0 0.0
        %5232 = vmatpush1.msra.mxu0 0.0
        %5233 = vmatprep.subr.mxu0 0.0
        %5234 = vmatpush1.msra.mxu0 0.0
        %5235 = vmatprep.subr.mxu0 0.0
        %5236 = vmatpush1.msra.mxu0 0.0
        %5237 = vmatprep.subr.mxu0 0.0
        %5238 = vmatpush1.msra.mxu0 0.0
        %5239 = vmatprep.subr.mxu0 0.0
        %5240 = vmatpush1.msra.mxu0 0.0
        %5241 = vmatprep.subr.mxu0 0.0
        %5242 = vmatpush1.msra.mxu0 0.0
        %5243 = vmatprep.subr.mxu0 0.0
        %5244 = vmatpush1.msra.mxu0 0.0
        %5245 = vmatprep.subr.mxu0 0.0
        %5246 = vmatpush1.msra.mxu0 0.0
        %5247 = vmatprep.subr.mxu0 0.0
        %5248 = vmatpush1.msra.mxu0 0.0
        %5249 = vmatprep.subr.mxu0 0.0
        %5250 = vmatpush1.msra.mxu0 0.0
        %5251 = vmatprep.subr.mxu0 0.0
        %5252 = vmatpush1.msra.mxu0 0.0
        %5253 = vmatprep.mubr.f32.mxu0 0.0
        %5254 = vmatmul.mubr.f32.gmra.mrb[0].mxu0 %v4945
        %v5255 = vpop.f32.mrb[0].mxu0
        %v5256 = vadd.f32 %v5187, %v5255
        %v5257 = vpop.f32.mrb[0].mxu0
        %5258 = vmatprep.mubr.f32.mxu0 0.0
        %5259 = vmatmul.mubr.f32.gmra.mrb[0].mxu0 %v4946
        %v5260 = vpop.f32.mrb[0].mxu0
        %v5261 = vadd.f32 %v5187, %v5260
        %v5262 = vpop.f32.mrb[0].mxu0
        %5263 = vdwg.mxu0
        %v5264 = vpack.c.bf16 %v5165, %v5164
        %v5265 = vpack.c.bf16 %v5261, %v5256
        %v5267 = vsel %vm2747, %v5264, 0
        %5269 = vmatprep.subr.bf16.mxu0 0
        %5270 = vmatpush1.bf16.msra.mxu0 %v5265
        %5271 = vmatprep.subr.bf16.mxu0 0
        %5272 = vmatpush1.bf16.msra.mxu0 0
        %5273 = vmatprep.subr.bf16.mxu0 0
        %5274 = vmatpush1.bf16.msra.mxu0 0
        %5275 = vmatprep.subr.bf16.mxu0 0
        %5276 = vmatpush1.bf16.msra.mxu0 0
        %5277 = vmatprep.subr.bf16.mxu0 0
        %5278 = vmatpush1.bf16.msra.mxu0 0
        %5279 = vmatprep.subr.bf16.mxu0 0
        %5280 = vmatpush1.bf16.msra.mxu0 0
        %5281 = vmatprep.subr.bf16.mxu0 0
        %5282 = vmatpush1.bf16.msra.mxu0 0
        %5283 = vmatprep.subr.bf16.mxu0 0
        %5284 = vmatpush1.bf16.msra.mxu0 0
        %5285 = vmatprep.subr.bf16.mxu0 0
        %5286 = vmatpush1.bf16.msra.mxu0 0
        %5287 = vmatprep.subr.bf16.mxu0 0
        %5288 = vmatpush1.bf16.msra.mxu0 0
        %5289 = vmatprep.subr.bf16.mxu0 0
        %5290 = vmatpush1.bf16.msra.mxu0 0
        %5291 = vmatprep.subr.bf16.mxu0 0
        %5292 = vmatpush1.bf16.msra.mxu0 0
        %5293 = vmatprep.subr.bf16.mxu0 0
        %5294 = vmatpush1.bf16.msra.mxu0 0
        %5295 = vmatprep.subr.bf16.mxu0 0
        %5296 = vmatpush1.bf16.msra.mxu0 0
        %5297 = vmatprep.subr.bf16.mxu0 0
        %5298 = vmatpush1.bf16.msra.mxu0 0
        %5299 = vmatprep.subr.bf16.mxu0 0
        %5300 = vmatpush1.bf16.msra.mxu0 0
        %5301 = vmatprep.mubr.bf16.mxu0 0
        %5302 = vmatmul.mubr.bf16.gmra.mrb[0].mxu0 %v5267
        %v5303 = vpop.f32.mrb[0].mxu0
        %v5304 = vadd.f32 0.0, %v5303
        %v5305 = vpop.f32.mrb[0].mxu0
        %v5306 = vpop.f32.mrb[0].mxu0
        %v5307 = vadd.f32 0.0, %v5306
        %v5308 = vpop.f32.mrb[0].mxu0
        %5309 = vdwg.mxu0
        %vm5310 = vcmp.gt.f32.partialorder %v5304, 0.0
        %vm5311 = vcmp.gt.f32.partialorder %v5307, 0.0
        %v5312 = vmin.f32 %v5304, 0.0
        %v5313 = vmin.f32 %v5307, 0.0
        %v5314 = vmul.f32 %v5312, 1.442695
        %v5315 = vpow.pop %v5314
        %v5316 = vmul.f32 %v5313, 1.442695
        %v5317 = vpow.pop %v5316
        %v5318 = vsub.f32 %v5315, 1.0
        %v5319 = vsub.f32 %v5317, 1.0
        %v5320 = vsel %vm5310, %v5304, %v5318
        %v5321 = vsel %vm5311, %v5307, %v5319
        %v5322 = vld [vmem:[%s1986] sm:$0xff]
        %v5323 = vld [vmem:[%s1986 + $0x8] sm:$0xff]
        %v5324 = vld [vmem:[%s1986 + $0x10] sm:$0xff]
        %v5325 = vld [vmem:[%s1986 + $0x18] sm:$0xff]
        %v5326 = vld [vmem:[%s1986 + $0x20] sm:$0xff]
        %v5327 = vld [vmem:[%s1986 + $0x28] sm:$0xff]
        %v5328 = vld [vmem:[%s1986 + $0x30] sm:$0xff]
        %v5329 = vld [vmem:[%s1986 + $0x38] sm:$0xff]
        %v5330 = vld [vmem:[%s1986 + $0x40] sm:$0xff]
        %v5331 = vld [vmem:[%s1986 + $0x48] sm:$0xff]
        %v5332 = vld [vmem:[%s1986 + $0x50] sm:$0xff]
        %v5333 = vld [vmem:[%s1986 + $0x58] sm:$0xff]
        %v5334 = vld [vmem:[%s1986 + $0x60] sm:$0xff]
        %v5335 = vld [vmem:[%s1986 + $0x68] sm:$0xff]
        %v5336 = vld [vmem:[%s1986 + $0x70] sm:$0xff]
        %v5337 = vld [vmem:[%s1986 + $0x78] sm:$0xff]
        %v5338 = vld [vmem:[%s1986 + $0x80] sm:$0xff]
        %v5339 = vld [vmem:[%s1986 + $0x88] sm:$0xff]
        %v5340 = vld [vmem:[%s1986 + $0x90] sm:$0xff]
        %v5341 = vld [vmem:[%s1986 + $0x98] sm:$0xff]
        %v5342 = vld [vmem:[%s1986 + $0xa0] sm:$0xff]
        %v5343 = vld [vmem:[%s1986 + $0xa8] sm:$0xff]
        %v5344 = vld [vmem:[%s1986 + $0xb0] sm:$0xff]
        %v5345 = vld [vmem:[%s1986 + $0xb8] sm:$0xff]
        %v5346 = vld [vmem:[%s1986 + $0xc0] sm:$0xff]
        %v5347 = vld [vmem:[%s1986 + $0xc8] sm:$0xff]
        %v5348 = vld [vmem:[%s1986 + $0xd0] sm:$0xff]
        %v5349 = vld [vmem:[%s1986 + $0xd8] sm:$0xff]
        %v5350 = vld [vmem:[%s1986 + $0xe0] sm:$0xff]
        %v5351 = vld [vmem:[%s1986 + $0xe8] sm:$0xff]
        %v5352 = vld [vmem:[%s1986 + $0xf0] sm:$0xff]
        %v5353 = vld [vmem:[%s1986 + $0xf8] sm:$0xff]
        %v5354 = vld [vmem:[%s1986 + $0x100] sm:$0xff]
        %v5355 = vld [vmem:[%s1986 + $0x108] sm:$0xff]
        %v5356 = vld [vmem:[%s1986 + $0x110] sm:$0xff]
        %v5357 = vld [vmem:[%s1986 + $0x118] sm:$0xff]
        %v5358 = vld [vmem:[%s1986 + $0x120] sm:$0xff]
        %v5359 = vld [vmem:[%s1986 + $0x128] sm:$0xff]
        %v5360 = vld [vmem:[%s1986 + $0x130] sm:$0xff]
        %v5361 = vld [vmem:[%s1986 + $0x138] sm:$0xff]
        %v5362 = vld [vmem:[%s1986 + $0x140] sm:$0xff]
        %v5363 = vld [vmem:[%s1986 + $0x148] sm:$0xff]
        %v5364 = vld [vmem:[%s1986 + $0x150] sm:$0xff]
        %v5365 = vld [vmem:[%s1986 + $0x158] sm:$0xff]
        %v5366 = vld [vmem:[%s1986 + $0x160] sm:$0xff]
        %v5367 = vld [vmem:[%s1986 + $0x168] sm:$0xff]
        %v5368 = vld [vmem:[%s1986 + $0x170] sm:$0xff]
        %v5369 = vld [vmem:[%s1986 + $0x178] sm:$0xff]
        %v5370 = vld [vmem:[%s1995] sm:$0xff]
        %v5371 = vld [vmem:[%s1995 + $0x8] sm:$0xff]
        %v5372 = vld [vmem:[%s1995 + $0x10] sm:$0xff]
        %v5373 = vld [vmem:[%s1995 + $0x18] sm:$0xff]
        %v5374 = vld [vmem:[%s1995 + $0x20] sm:$0xff]
        %v5375 = vld [vmem:[%s1995 + $0x28] sm:$0xff]
        %v5376 = vld [vmem:[%s1995 + $0x30] sm:$0xff]
        %v5377 = vld [vmem:[%s1995 + $0x38] sm:$0xff]
        %v5378 = vld [vmem:[%s1995 + $0x40] sm:$0xff]
        %v5379 = vld [vmem:[%s1995 + $0x48] sm:$0xff]
        %v5380 = vld [vmem:[%s1995 + $0x50] sm:$0xff]
        %v5381 = vld [vmem:[%s1995 + $0x58] sm:$0xff]
        %v5382 = vld [vmem:[%s1995 + $0x60] sm:$0xff]
        %v5383 = vld [vmem:[%s1995 + $0x68] sm:$0xff]
        %v5384 = vld [vmem:[%s1995 + $0x70] sm:$0xff]
        %v5385 = vld [vmem:[%s1995 + $0x78] sm:$0xff]
        %v5386 = vld [vmem:[%s1995 + $0x80] sm:$0xff]
        %v5387 = vld [vmem:[%s1995 + $0x88] sm:$0xff]
        %v5388 = vld [vmem:[%s1995 + $0x90] sm:$0xff]
        %v5389 = vld [vmem:[%s1995 + $0x98] sm:$0xff]
        %v5390 = vld [vmem:[%s1995 + $0xa0] sm:$0xff]
        %v5391 = vld [vmem:[%s1995 + $0xa8] sm:$0xff]
        %v5392 = vld [vmem:[%s1995 + $0xb0] sm:$0xff]
        %v5393 = vld [vmem:[%s1995 + $0xb8] sm:$0xff]
        %v5394 = vld [vmem:[%s1995 + $0xc0] sm:$0xff]
        %v5395 = vld [vmem:[%s1995 + $0xc8] sm:$0xff]
        %v5396 = vld [vmem:[%s1995 + $0xd0] sm:$0xff]
        %v5397 = vld [vmem:[%s1995 + $0xd8] sm:$0xff]
        %v5398 = vld [vmem:[%s1995 + $0xe0] sm:$0xff]
        %v5399 = vld [vmem:[%s1995 + $0xe8] sm:$0xff]
        %v5400 = vld [vmem:[%s1995 + $0xf0] sm:$0xff]
        %v5401 = vld [vmem:[%s1995 + $0xf8] sm:$0xff]
        %v5402 = vld [vmem:[%s1995 + $0x100] sm:$0xff]
        %v5403 = vld [vmem:[%s1995 + $0x108] sm:$0xff]
        %v5404 = vld [vmem:[%s1995 + $0x110] sm:$0xff]
        %v5405 = vld [vmem:[%s1995 + $0x118] sm:$0xff]
        %v5406 = vld [vmem:[%s1995 + $0x120] sm:$0xff]
        %v5407 = vld [vmem:[%s1995 + $0x128] sm:$0xff]
        %v5408 = vld [vmem:[%s1995 + $0x130] sm:$0xff]
        %v5409 = vld [vmem:[%s1995 + $0x138] sm:$0xff]
        %v5410 = vld [vmem:[%s1995 + $0x140] sm:$0xff]
        %v5411 = vld [vmem:[%s1995 + $0x148] sm:$0xff]
        %v5412 = vld [vmem:[%s1995 + $0x150] sm:$0xff]
        %v5413 = vld [vmem:[%s1995 + $0x158] sm:$0xff]
        %v5414 = vld [vmem:[%s1995 + $0x160] sm:$0xff]
        %v5415 = vld [vmem:[%s1995 + $0x168] sm:$0xff]
        %v5416 = vld [vmem:[%s1995 + $0x170] sm:$0xff]
        %v5417 = vld [vmem:[%s1995 + $0x178] sm:$0xff]
        %v5418 = vld [vmem:[%s2004] sm:$0x7]
        %v5419 = vld [vmem:[%s2013] sm:$0x7]
        %v5421 = vlaneseq
        %v5422 = vshrl.u32 %v5421, 7
        %v5423 = vsub.s32 0, %v5422
        %v5424 = vrot.slane %v5418, %v5423
        %v5425 = vlaneseq
        %v5426 = vshrl.u32 %v5425, 7
        %v5427 = vsub.s32 1, %v5426
        %v5428 = vrot.slane %v5418, %v5427
        %v5429 = vlaneseq
        %v5430 = vshrl.u32 %v5429, 7
        %v5431 = vsub.s32 2, %v5430
        %v5432 = vrot.slane %v5418, %v5431
        %5436 = vmatprep.subr.mxu0 %v5323
        %5437 = vmatpush1.msra.mxu0 %v5322
        %5438 = vmatprep.subr.mxu0 %v5326
        %5439 = vmatpush1.msra.mxu0 %v5325
        %5440 = vmatprep.subr.mxu0 %v5329
        %5441 = vmatpush1.msra.mxu0 %v5328
        %5442 = vmatprep.subr.mxu0 %v5332
        %5443 = vmatpush1.msra.mxu0 %v5331
        %5444 = vmatprep.subr.mxu0 %v5335
        %5445 = vmatpush1.msra.mxu0 %v5334
        %5446 = vmatprep.subr.mxu0 %v5338
        %5447 = vmatpush1.msra.mxu0 %v5337
        %5448 = vmatprep.subr.mxu0 %v5341
        %5449 = vmatpush1.msra.mxu0 %v5340
        %5450 = vmatprep.subr.mxu0 %v5344
        %5451 = vmatpush1.msra.mxu0 %v5343
        %5452 = vmatprep.subr.mxu0 %v5347
        %5453 = vmatpush1.msra.mxu0 %v5346
        %5454 = vmatprep.subr.mxu0 %v5350
        %5455 = vmatpush1.msra.mxu0 %v5349
        %5456 = vmatprep.subr.mxu0 %v5353
        %5457 = vmatpush1.msra.mxu0 %v5352
        %5458 = vmatprep.subr.mxu0 %v5356
        %5459 = vmatpush1.msra.mxu0 %v5355
        %5460 = vmatprep.subr.mxu0 %v5359
        %5461 = vmatpush1.msra.mxu0 %v5358
        %5462 = vmatprep.subr.mxu0 %v5362
        %5463 = vmatpush1.msra.mxu0 %v5361
        %5464 = vmatprep.subr.mxu0 %v5365
        %5465 = vmatpush1.msra.mxu0 %v5364
        %5466 = vmatprep.subr.mxu0 %v5368
        %5467 = vmatpush1.msra.mxu0 %v5367
        %5468 = vmatprep.subr.mxu0 0.0
        %5469 = vmatpush1.msra.mxu0 0.0
        %5470 = vmatprep.subr.mxu0 0.0
        %5471 = vmatpush1.msra.mxu0 0.0
        %5472 = vmatprep.subr.mxu0 0.0
        %5473 = vmatpush1.msra.mxu0 0.0
        %5474 = vmatprep.subr.mxu0 0.0
        %5475 = vmatpush1.msra.mxu0 0.0
        %5476 = vmatprep.subr.mxu0 0.0
        %5477 = vmatpush1.msra.mxu0 0.0
        %5478 = vmatprep.subr.mxu0 0.0
        %5479 = vmatpush1.msra.mxu0 0.0
        %5480 = vmatprep.subr.mxu0 0.0
        %5481 = vmatpush1.msra.mxu0 0.0
        %5482 = vmatprep.subr.mxu0 0.0
        %5483 = vmatpush1.msra.mxu0 0.0
        %5484 = vmatprep.subr.mxu0 0.0
        %5485 = vmatpush1.msra.mxu0 0.0
        %5486 = vmatprep.subr.mxu0 0.0
        %5487 = vmatpush1.msra.mxu0 0.0
        %5488 = vmatprep.subr.mxu0 0.0
        %5489 = vmatpush1.msra.mxu0 0.0
        %5490 = vmatprep.subr.mxu0 0.0
        %5491 = vmatpush1.msra.mxu0 0.0
        %5492 = vmatprep.subr.mxu0 0.0
        %5493 = vmatpush1.msra.mxu0 0.0
        %5494 = vmatprep.subr.mxu0 0.0
        %5495 = vmatpush1.msra.mxu0 0.0
        %5496 = vmatprep.subr.mxu0 0.0
        %5497 = vmatpush1.msra.mxu0 0.0
        %5498 = vmatprep.subr.mxu0 0.0
        %5499 = vmatpush1.msra.mxu0 0.0
        %5500 = vmatprep.mubr.f32.mxu0 0.0
        %5501 = vmatmul.mubr.f32.gmra.mrb[0].mxu0 %v5320
        %v5502 = vpop.f32.mrb[0].mxu0
        %v5503 = vadd.f32 %v5424, %v5502
        %v5504 = vpop.f32.mrb[0].mxu0
        %v5505 = vadd.f32 %v5428, %v5504
        %5506 = vmatprep.mubr.f32.mxu0 0.0
        %5507 = vmatmul.mubr.f32.gmra.mrb[0].mxu0 %v5321
        %v5508 = vpop.f32.mrb[0].mxu0
        %v5509 = vadd.f32 %v5424, %v5508
        %v5510 = vpop.f32.mrb[0].mxu0
        %v5511 = vadd.f32 %v5428, %v5510
        %5512 = vdwg.mxu0
        %5513 = vmatprep.subr.mxu0 0.0
        %5514 = vmatpush1.msra.mxu0 %v5324
        %5515 = vmatprep.subr.mxu0 0.0
        %5516 = vmatpush1.msra.mxu0 %v5327
        %5517 = vmatprep.subr.mxu0 0.0
        %5518 = vmatpush1.msra.mxu0 %v5330
        %5519 = vmatprep.subr.mxu0 0.0
        %5520 = vmatpush1.msra.mxu0 %v5333
        %5521 = vmatprep.subr.mxu0 0.0
        %5522 = vmatpush1.msra.mxu0 %v5336
        %5523 = vmatprep.subr.mxu0 0.0
        %5524 = vmatpush1.msra.mxu0 %v5339
        %5525 = vmatprep.subr.mxu0 0.0
        %5526 = vmatpush1.msra.mxu0 %v5342
        %5527 = vmatprep.subr.mxu0 0.0
        %5528 = vmatpush1.msra.mxu0 %v5345
        %5529 = vmatprep.subr.mxu0 0.0
        %5530 = vmatpush1.msra.mxu0 %v5348
        %5531 = vmatprep.subr.mxu0 0.0
        %5532 = vmatpush1.msra.mxu0 %v5351
        %5533 = vmatprep.subr.mxu0 0.0
        %5534 = vmatpush1.msra.mxu0 %v5354
        %5535 = vmatprep.subr.mxu0 0.0
        %5536 = vmatpush1.msra.mxu0 %v5357
        %5537 = vmatprep.subr.mxu0 0.0
        %5538 = vmatpush1.msra.mxu0 %v5360
        %5539 = vmatprep.subr.mxu0 0.0
        %5540 = vmatpush1.msra.mxu0 %v5363
        %5541 = vmatprep.subr.mxu0 0.0
        %5542 = vmatpush1.msra.mxu0 %v5366
        %5543 = vmatprep.subr.mxu0 0.0
        %5544 = vmatpush1.msra.mxu0 %v5369
        %5545 = vmatprep.subr.mxu0 0.0
        %5546 = vmatpush1.msra.mxu0 0.0
        %5547 = vmatprep.subr.mxu0 0.0
        %5548 = vmatpush1.msra.mxu0 0.0
        %5549 = vmatprep.subr.mxu0 0.0
        %5550 = vmatpush1.msra.mxu0 0.0
        %5551 = vmatprep.subr.mxu0 0.0
        %5552 = vmatpush1.msra.mxu0 0.0
        %5553 = vmatprep.subr.mxu0 0.0
        %5554 = vmatpush1.msra.mxu0 0.0
        %5555 = vmatprep.subr.mxu0 0.0
        %5556 = vmatpush1.msra.mxu0 0.0
        %5557 = vmatprep.subr.mxu0 0.0
        %5558 = vmatpush1.msra.mxu0 0.0
        %5559 = vmatprep.subr.mxu0 0.0
        %5560 = vmatpush1.msra.mxu0 0.0
        %5561 = vmatprep.subr.mxu0 0.0
        %5562 = vmatpush1.msra.mxu0 0.0
        %5563 = vmatprep.subr.mxu0 0.0
        %5564 = vmatpush1.msra.mxu0 0.0
        %5565 = vmatprep.subr.mxu0 0.0
        %5566 = vmatpush1.msra.mxu0 0.0
        %5567 = vmatprep.subr.mxu0 0.0
        %5568 = vmatpush1.msra.mxu0 0.0
        %5569 = vmatprep.subr.mxu0 0.0
        %5570 = vmatpush1.msra.mxu0 0.0
        %5571 = vmatprep.subr.mxu0 0.0
        %5572 = vmatpush1.msra.mxu0 0.0
        %5573 = vmatprep.subr.mxu0 0.0
        %5574 = vmatpush1.msra.mxu0 0.0
        %5575 = vmatprep.subr.mxu0 0.0
        %5576 = vmatpush1.msra.mxu0 0.0
        %5577 = vmatprep.mubr.f32.mxu0 0.0
        %5578 = vmatmul.mubr.f32.gmra.mrb[0].mxu0 %v5320
        %v5579 = vpop.f32.mrb[0].mxu0
        %v5580 = vadd.f32 %v5432, %v5579
        %v5581 = vpop.f32.mrb[0].mxu0
        %5582 = vmatprep.mubr.f32.mxu0 0.0
        %5583 = vmatmul.mubr.f32.gmra.mrb[0].mxu0 %v5321
        %v5584 = vpop.f32.mrb[0].mxu0
        %v5585 = vadd.f32 %v5432, %v5584
        %v5586 = vpop.f32.mrb[0].mxu0
        %5587 = vdwg.mxu0
        %v5589 = vlaneseq
        %v5590 = vshrl.u32 %v5589, 7
        %v5591 = vsub.s32 0, %v5590
        %v5592 = vrot.slane %v5419, %v5591
        %v5593 = vlaneseq
        %v5594 = vshrl.u32 %v5593, 7
        %v5595 = vsub.s32 1, %v5594
        %v5596 = vrot.slane %v5419, %v5595
        %v5597 = vlaneseq
        %v5598 = vshrl.u32 %v5597, 7
        %v5599 = vsub.s32 2, %v5598
        %v5600 = vrot.slane %v5419, %v5599
        %5604 = vmatprep.subr.mxu0 %v5371
        %5605 = vmatpush1.msra.mxu0 %v5370
        %5606 = vmatprep.subr.mxu0 %v5374
        %5607 = vmatpush1.msra.mxu0 %v5373
        %5608 = vmatprep.subr.mxu0 %v5377
        %5609 = vmatpush1.msra.mxu0 %v5376
        %5610 = vmatprep.subr.mxu0 %v5380
        %5611 = vmatpush1.msra.mxu0 %v5379
        %5612 = vmatprep.subr.mxu0 %v5383
        %5613 = vmatpush1.msra.mxu0 %v5382
        %5614 = vmatprep.subr.mxu0 %v5386
        %5615 = vmatpush1.msra.mxu0 %v5385
        %5616 = vmatprep.subr.mxu0 %v5389
        %5617 = vmatpush1.msra.mxu0 %v5388
        %5618 = vmatprep.subr.mxu0 %v5392
        %5619 = vmatpush1.msra.mxu0 %v5391
        %5620 = vmatprep.subr.mxu0 %v5395
        %5621 = vmatpush1.msra.mxu0 %v5394
        %5622 = vmatprep.subr.mxu0 %v5398
        %5623 = vmatpush1.msra.mxu0 %v5397
        %5624 = vmatprep.subr.mxu0 %v5401
        %5625 = vmatpush1.msra.mxu0 %v5400
        %5626 = vmatprep.subr.mxu0 %v5404
        %5627 = vmatpush1.msra.mxu0 %v5403
        %5628 = vmatprep.subr.mxu0 %v5407
        %5629 = vmatpush1.msra.mxu0 %v5406
        %5630 = vmatprep.subr.mxu0 %v5410
        %5631 = vmatpush1.msra.mxu0 %v5409
        %5632 = vmatprep.subr.mxu0 %v5413
        %5633 = vmatpush1.msra.mxu0 %v5412
        %5634 = vmatprep.subr.mxu0 %v5416
        %5635 = vmatpush1.msra.mxu0 %v5415
        %5636 = vmatprep.subr.mxu0 0.0
        %5637 = vmatpush1.msra.mxu0 0.0
        %5638 = vmatprep.subr.mxu0 0.0
        %5639 = vmatpush1.msra.mxu0 0.0
        %5640 = vmatprep.subr.mxu0 0.0
        %5641 = vmatpush1.msra.mxu0 0.0
        %5642 = vmatprep.subr.mxu0 0.0
        %5643 = vmatpush1.msra.mxu0 0.0
        %5644 = vmatprep.subr.mxu0 0.0
        %5645 = vmatpush1.msra.mxu0 0.0
        %5646 = vmatprep.subr.mxu0 0.0
        %5647 = vmatpush1.msra.mxu0 0.0
        %5648 = vmatprep.subr.mxu0 0.0
        %5649 = vmatpush1.msra.mxu0 0.0
        %5650 = vmatprep.subr.mxu0 0.0
        %5651 = vmatpush1.msra.mxu0 0.0
        %5652 = vmatprep.subr.mxu0 0.0
        %5653 = vmatpush1.msra.mxu0 0.0
        %5654 = vmatprep.subr.mxu0 0.0
        %5655 = vmatpush1.msra.mxu0 0.0
        %5656 = vmatprep.subr.mxu0 0.0
        %5657 = vmatpush1.msra.mxu0 0.0
        %5658 = vmatprep.subr.mxu0 0.0
        %5659 = vmatpush1.msra.mxu0 0.0
        %5660 = vmatprep.subr.mxu0 0.0
        %5661 = vmatpush1.msra.mxu0 0.0
        %5662 = vmatprep.subr.mxu0 0.0
        %5663 = vmatpush1.msra.mxu0 0.0
        %5664 = vmatprep.subr.mxu0 0.0
        %5665 = vmatpush1.msra.mxu0 0.0
        %5666 = vmatprep.subr.mxu0 0.0
        %5667 = vmatpush1.msra.mxu0 0.0
        %5668 = vmatprep.mubr.f32.mxu0 0.0
        %5669 = vmatmul.mubr.f32.gmra.mrb[0].mxu0 %v4945
        %v5670 = vpop.f32.mrb[0].mxu0
        %v5671 = vadd.f32 %v5592, %v5670
        %v5672 = vpop.f32.mrb[0].mxu0
        %v5673 = vadd.f32 %v5596, %v5672
        %5674 = vmatprep.mubr.f32.mxu0 0.0
        %5675 = vmatmul.mubr.f32.gmra.mrb[0].mxu0 %v4946
        %v5676 = vpop.f32.mrb[0].mxu0
        %v5677 = vadd.f32 %v5592, %v5676
        %v5678 = vpop.f32.mrb[0].mxu0
        %v5679 = vadd.f32 %v5596, %v5678
        %5680 = vdwg.mxu0
        %5681 = vmatprep.subr.mxu0 0.0
        %5682 = vmatpush1.msra.mxu0 %v5372
        %5683 = vmatprep.subr.mxu0 0.0
        %5684 = vmatpush1.msra.mxu0 %v5375
        %5685 = vmatprep.subr.mxu0 0.0
        %5686 = vmatpush1.msra.mxu0 %v5378
        %5687 = vmatprep.subr.mxu0 0.0
        %5688 = vmatpush1.msra.mxu0 %v5381
        %5689 = vmatprep.subr.mxu0 0.0
        %5690 = vmatpush1.msra.mxu0 %v5384
        %5691 = vmatprep.subr.mxu0 0.0
        %5692 = vmatpush1.msra.mxu0 %v5387
        %5693 = vmatprep.subr.mxu0 0.0
        %5694 = vmatpush1.msra.mxu0 %v5390
        %5695 = vmatprep.subr.mxu0 0.0
        %5696 = vmatpush1.msra.mxu0 %v5393
        %5697 = vmatprep.subr.mxu0 0.0
        %5698 = vmatpush1.msra.mxu0 %v5396
        %5699 = vmatprep.subr.mxu0 0.0
        %5700 = vmatpush1.msra.mxu0 %v5399
        %5701 = vmatprep.subr.mxu0 0.0
        %5702 = vmatpush1.msra.mxu0 %v5402
        %5703 = vmatprep.subr.mxu0 0.0
        %5704 = vmatpush1.msra.mxu0 %v5405
        %5705 = vmatprep.subr.mxu0 0.0
        %5706 = vmatpush1.msra.mxu0 %v5408
        %5707 = vmatprep.subr.mxu0 0.0
        %5708 = vmatpush1.msra.mxu0 %v5411
        %5709 = vmatprep.subr.mxu0 0.0
        %5710 = vmatpush1.msra.mxu0 %v5414
        %5711 = vmatprep.subr.mxu0 0.0
        %5712 = vmatpush1.msra.mxu0 %v5417
        %5713 = vmatprep.subr.mxu0 0.0
        %5714 = vmatpush1.msra.mxu0 0.0
        %5715 = vmatprep.subr.mxu0 0.0
        %5716 = vmatpush1.msra.mxu0 0.0
        %5717 = vmatprep.subr.mxu0 0.0
        %5718 = vmatpush1.msra.mxu0 0.0
        %5719 = vmatprep.subr.mxu0 0.0
        %5720 = vmatpush1.msra.mxu0 0.0
        %5721 = vmatprep.subr.mxu0 0.0
        %5722 = vmatpush1.msra.mxu0 0.0
        %5723 = vmatprep.subr.mxu0 0.0
        %5724 = vmatpush1.msra.mxu0 0.0
        %5725 = vmatprep.subr.mxu0 0.0
        %5726 = vmatpush1.msra.mxu0 0.0
        %5727 = vmatprep.subr.mxu0 0.0
        %5728 = vmatpush1.msra.mxu0 0.0
        %5729 = vmatprep.subr.mxu0 0.0
        %5730 = vmatpush1.msra.mxu0 0.0
        %5731 = vmatprep.subr.mxu0 0.0
        %5732 = vmatpush1.msra.mxu0 0.0
        %5733 = vmatprep.subr.mxu0 0.0
        %5734 = vmatpush1.msra.mxu0 0.0
        %5735 = vmatprep.subr.mxu0 0.0
        %5736 = vmatpush1.msra.mxu0 0.0
        %5737 = vmatprep.subr.mxu0 0.0
        %5738 = vmatpush1.msra.mxu0 0.0
        %5739 = vmatprep.subr.mxu0 0.0
        %5740 = vmatpush1.msra.mxu0 0.0
        %5741 = vmatprep.subr.mxu0 0.0
        %5742 = vmatpush1.msra.mxu0 0.0
        %5743 = vmatprep.subr.mxu0 0.0
        %5744 = vmatpush1.msra.mxu0 0.0
        %5745 = vmatprep.mubr.f32.mxu0 0.0
        %5746 = vmatmul.mubr.f32.gmra.mrb[0].mxu0 %v4945
        %v5747 = vpop.f32.mrb[0].mxu0
        %v5748 = vadd.f32 %v5600, %v5747
        %v5749 = vpop.f32.mrb[0].mxu0
        %5750 = vmatprep.mubr.f32.mxu0 0.0
        %5751 = vmatmul.mubr.f32.gmra.mrb[0].mxu0 %v4946
        %v5752 = vpop.f32.mrb[0].mxu0
        %v5753 = vadd.f32 %v5600, %v5752
        %v5754 = vpop.f32.mrb[0].mxu0
        %5755 = vdwg.mxu0
        %v5756 = vadd.f32 %v5503, %v5671
        %v5757 = vadd.f32 %v5509, %v5677
        %v5758 = vsub.f32 0.0, %v5756
        %v5759 = vsub.f32 0.0, %v5757
        %v5760 = vmul.f32 %v5758, 1.442695
        %v5761 = vpow.pop %v5760
        %v5762 = vmul.f32 %v5759, 1.442695
        %v5763 = vpow.pop %v5762
        %v5764 = vadd.f32 %v5761, 1.0
        %v5765 = vadd.f32 %v5763, 1.0
        %v5766 = vrcp.pop %v5764
        %v5767 = vrcp.pop %v5765
        %v5768 = vadd.f32 %v5505, %v5673
        %v5769 = vadd.f32 %v5511, %v5679
        %v5770 = vsub.f32 0.0, %v5768
        %v5771 = vsub.f32 0.0, %v5769
        %v5772 = vmul.f32 %v5770, 1.442695
        %v5773 = vpow.pop %v5772
        %v5774 = vmul.f32 %v5771, 1.442695
        %v5775 = vpow.pop %v5774
        %v5776 = vadd.f32 %v5773, 1.0
        %v5777 = vadd.f32 %v5775, 1.0
        %v5778 = vrcp.pop %v5776
        %v5779 = vrcp.pop %v5777
        %v5780 = vmul.f32 %v5766, %v5748
        %v5781 = vmul.f32 %v5767, %v5753
        %v5782 = vadd.f32 %v5580, %v5780
        %v5783 = vadd.f32 %v5585, %v5781
        %v5784 = vtanh.pop %v5782
        %v5785 = vtanh.pop %v5783
        %v5786 = vsub.f32 1.0, %v5778
        %v5787 = vsub.f32 1.0, %v5779
        %v5788 = vmul.f32 %v5786, %v5784
        %v5789 = vmul.f32 %v5787, %v5785
        %v5790 = vmul.f32 %v5778, %v4945
        %v5791 = vmul.f32 %v5779, %v4946
        %v5792 = vadd.f32 %v5788, %v5790
        %v5793 = vadd.f32 %v5789, %v5791
        %v5794 = vmax.f32 %v5792, 0.0
        %v5795 = vmax.f32 %v5793, 0.0
        %s5796 = scalar_lea.vmem %s1941, 128 [#allocation24]
        %v5797 = vld [vmem:[%s5796] sm:$0xff]
        %v5798 = vld [vmem:[%s5796 + $0x8] sm:$0xff]
        %v5799 = vld [vmem:[%s5796 + $0x10] sm:$0xff]
        %v5800 = vld [vmem:[%s5796 + $0x18] sm:$0xff]
        %v5801 = vld [vmem:[%s5796 + $0x20] sm:$0xff]
        %v5802 = vld [vmem:[%s5796 + $0x28] sm:$0xff]
        %v5803 = vld [vmem:[%s5796 + $0x30] sm:$0xff]
        %v5804 = vld [vmem:[%s5796 + $0x38] sm:$0xff]
        %v5805 = vld [vmem:[%s5796 + $0x40] sm:$0xff]
        %v5806 = vld [vmem:[%s5796 + $0x48] sm:$0xff]
        %v5807 = vld [vmem:[%s5796 + $0x50] sm:$0xff]
        %v5808 = vld [vmem:[%s5796 + $0x58] sm:$0xff]
        %v5809 = vld [vmem:[%s5796 + $0x60] sm:$0xff]
        %v5810 = vld [vmem:[%s5796 + $0x68] sm:$0xff]
        %v5811 = vld [vmem:[%s5796 + $0x70] sm:$0xff]
        %v5812 = vld [vmem:[%s5796 + $0x78] sm:$0xff]
        %s5813 = scalar_lea.vmem %s1959, 1 [#allocation26]
        %v5814 = vld [vmem:[%s5813] sm:$0x1]
        %v5816 = vlaneseq
        %v5817 = vshrl.u32 %v5816, 7
        %v5818 = vsub.s32 0, %v5817
        %v5819 = vrot.slane %v5814, %v5818
        %5821 = vmatprep.subr.mxu0 0.0
        %5822 = vmatpush1.msra.mxu0 %v5797
        %5823 = vmatprep.subr.mxu0 0.0
        %5824 = vmatpush1.msra.mxu0 %v5798
        %5825 = vmatprep.subr.mxu0 0.0
        %5826 = vmatpush1.msra.mxu0 %v5799
        %5827 = vmatprep.subr.mxu0 0.0
        %5828 = vmatpush1.msra.mxu0 %v5800
        %5829 = vmatprep.subr.mxu0 0.0
        %5830 = vmatpush1.msra.mxu0 %v5801
        %5831 = vmatprep.subr.mxu0 0.0
        %5832 = vmatpush1.msra.mxu0 %v5802
        %5833 = vmatprep.subr.mxu0 0.0
        %5834 = vmatpush1.msra.mxu0 %v5803
        %5835 = vmatprep.subr.mxu0 0.0
        %5836 = vmatpush1.msra.mxu0 %v5804
        %5837 = vmatprep.subr.mxu0 0.0
        %5838 = vmatpush1.msra.mxu0 %v5805
        %5839 = vmatprep.subr.mxu0 0.0
        %5840 = vmatpush1.msra.mxu0 %v5806
        %5841 = vmatprep.subr.mxu0 0.0
        %5842 = vmatpush1.msra.mxu0 %v5807
        %5843 = vmatprep.subr.mxu0 0.0
        %5844 = vmatpush1.msra.mxu0 %v5808
        %5845 = vmatprep.subr.mxu0 0.0
        %5846 = vmatpush1.msra.mxu0 %v5809
        %5847 = vmatprep.subr.mxu0 0.0
        %5848 = vmatpush1.msra.mxu0 %v5810
        %5849 = vmatprep.subr.mxu0 0.0
        %5850 = vmatpush1.msra.mxu0 %v5811
        %5851 = vmatprep.subr.mxu0 0.0
        %5852 = vmatpush1.msra.mxu0 %v5812
        %5853 = vmatprep.subr.mxu0 0.0
        %5854 = vmatpush1.msra.mxu0 0.0
        %5855 = vmatprep.subr.mxu0 0.0
        %5856 = vmatpush1.msra.mxu0 0.0
        %5857 = vmatprep.subr.mxu0 0.0
        %5858 = vmatpush1.msra.mxu0 0.0
        %5859 = vmatprep.subr.mxu0 0.0
        %5860 = vmatpush1.msra.mxu0 0.0
        %5861 = vmatprep.subr.mxu0 0.0
        %5862 = vmatpush1.msra.mxu0 0.0
        %5863 = vmatprep.subr.mxu0 0.0
        %5864 = vmatpush1.msra.mxu0 0.0
        %5865 = vmatprep.subr.mxu0 0.0
        %5866 = vmatpush1.msra.mxu0 0.0
        %5867 = vmatprep.subr.mxu0 0.0
        %5868 = vmatpush1.msra.mxu0 0.0
        %5869 = vmatprep.subr.mxu0 0.0
        %5870 = vmatpush1.msra.mxu0 0.0
        %5871 = vmatprep.subr.mxu0 0.0
        %5872 = vmatpush1.msra.mxu0 0.0
        %5873 = vmatprep.subr.mxu0 0.0
        %5874 = vmatpush1.msra.mxu0 0.0
        %5875 = vmatprep.subr.mxu0 0.0
        %5876 = vmatpush1.msra.mxu0 0.0
        %5877 = vmatprep.subr.mxu0 0.0
        %5878 = vmatpush1.msra.mxu0 0.0
        %5879 = vmatprep.subr.mxu0 0.0
        %5880 = vmatpush1.msra.mxu0 0.0
        %5881 = vmatprep.subr.mxu0 0.0
        %5882 = vmatpush1.msra.mxu0 0.0
        %5883 = vmatprep.subr.mxu0 0.0
        %5884 = vmatpush1.msra.mxu0 0.0
        %5885 = vmatprep.mubr.f32.mxu0 0.0
        %5886 = vmatmul.mubr.f32.gmra.mrb[0].mxu0 %v5794
        %v5887 = vpop.f32.mrb[0].mxu0
        %v5888 = vadd.f32 %v5819, %v5887
        %v5889 = vpop.f32.mrb[0].mxu0
        %5890 = vmatprep.mubr.f32.mxu0 0.0
        %5891 = vmatmul.mubr.f32.gmra.mrb[0].mxu0 %v5795
        %v5892 = vpop.f32.mrb[0].mxu0
        %v5893 = vadd.f32 %v5819, %v5892
        %v5894 = vpop.f32.mrb[0].mxu0
        %5895 = vdwg.mxu0
        %s5896 = scalar_lea.vmem %s1950, 1 [#allocation25]
        %v5897 = vld [vmem:[%s5896] sm:$0x1]
        %5898 = vmatprep.subr.mxu0 0.0
        %5899 = vmatpush1.xpose.msra.mxu0 %v5794
        %5900 = vmatprep.subr.mxu0 0.0
        %5901 = vmatpush1.xpose.msra.mxu0 %v5795
        %5902 = vmatprep.subr.mxu0 0.0
        %5903 = vmatpush1.xpose.msra.mxu0 0.0
        %5904 = vmatprep.subr.mxu0 0.0
        %5905 = vmatpush1.xpose.msra.mxu0 0.0
        %5906 = vmatprep.subr.mxu0 0.0
        %5907 = vmatpush1.xpose.msra.mxu0 0.0
        %5908 = vmatprep.subr.mxu0 0.0
        %5909 = vmatpush1.xpose.msra.mxu0 0.0
        %5910 = vmatprep.subr.mxu0 0.0
        %5911 = vmatpush1.xpose.msra.mxu0 0.0
        %5912 = vmatprep.subr.mxu0 0.0
        %5913 = vmatpush1.xpose.msra.mxu0 0.0
        %5914 = vmatprep.subr.mxu0 0.0
        %5915 = vmatpush1.xpose.msra.mxu0 0.0
        %5916 = vmatprep.subr.mxu0 0.0
        %5917 = vmatpush1.xpose.msra.mxu0 0.0
        %5918 = vmatprep.subr.mxu0 0.0
        %5919 = vmatpush1.xpose.msra.mxu0 0.0
        %5920 = vmatprep.subr.mxu0 0.0
        %5921 = vmatpush1.xpose.msra.mxu0 0.0
        %5922 = vmatprep.subr.mxu0 0.0
        %5923 = vmatpush1.xpose.msra.mxu0 0.0
        %5924 = vmatprep.subr.mxu0 0.0
        %5925 = vmatpush1.xpose.msra.mxu0 0.0
        %5926 = vmatprep.subr.mxu0 0.0
        %5927 = vmatpush1.xpose.msra.mxu0 0.0
        %5928 = vmatprep.subr.mxu0 0.0
        %5929 = vmatpush1.xpose.msra.mxu0 0.0
        %5930 = vmatprep.subr.mxu0 0.0
        %5931 = vmatpush1.xpose.msra.mxu0 0.0
        %5932 = vmatprep.subr.mxu0 0.0
        %5933 = vmatpush1.xpose.msra.mxu0 0.0
        %5934 = vmatprep.subr.mxu0 0.0
        %5935 = vmatpush1.xpose.msra.mxu0 0.0
        %5936 = vmatprep.subr.mxu0 0.0
        %5937 = vmatpush1.xpose.msra.mxu0 0.0
        %5938 = vmatprep.subr.mxu0 0.0
        %5939 = vmatpush1.xpose.msra.mxu0 0.0
        %5940 = vmatprep.subr.mxu0 0.0
        %5941 = vmatpush1.xpose.msra.mxu0 0.0
        %5942 = vmatprep.subr.mxu0 0.0
        %5943 = vmatpush1.xpose.msra.mxu0 0.0
        %5944 = vmatprep.subr.mxu0 0.0
        %5945 = vmatpush1.xpose.msra.mxu0 0.0
        %5946 = vmatprep.subr.mxu0 0.0
        %5947 = vmatpush1.xpose.msra.mxu0 0.0
        %5948 = vmatprep.subr.mxu0 0.0
        %5949 = vmatpush1.xpose.msra.mxu0 0.0
        %5950 = vmatprep.subr.mxu0 0.0
        %5951 = vmatpush1.xpose.msra.mxu0 0.0
        %5952 = vmatprep.subr.mxu0 0.0
        %5953 = vmatpush1.xpose.msra.mxu0 0.0
        %5954 = vmatprep.subr.mxu0 0.0
        %5955 = vmatpush1.xpose.msra.mxu0 0.0
        %5956 = vmatprep.subr.mxu0 0.0
        %5957 = vmatpush1.xpose.msra.mxu0 0.0
        %5958 = vmatprep.subr.mxu0 0.0
        %5959 = vmatpush1.xpose.msra.mxu0 0.0
        %5960 = vmatprep.subr.mxu0 0.0
        %5961 = vmatpush1.xpose.msra.mxu0 0.0
        %5962 = vmatprep.mubr.f32.mxu0 0.0
        %5963 = vmatmul.mubr.f32.gmra.mrb[0].mxu0 %v5897
        %v5964 = vpop.f32.mrb[0].mxu0
        %v5965 = vadd.f32 0.0, %v5964
        %v5966 = vpop.f32.mrb[0].mxu0
        %5967 = vdwg.mxu0
        %5969 = vset.pattern.permute.xlu0 0
        %5970 = vperm.xlu0 %5969, %v5888
        %v5971 = vpop.permute.xlu0 %5970
        %5974 = vset.pattern.permute.xlu0 0
        %5975 = vperm.xlu0 %5974, %v5893
        %v5976 = vpop.permute.xlu0 %5975
        %v5978 = vlaneseq
        %v5979 = vshrl.u32 %v5978, 7
        %v5980 = vsub.s32 0, %v5979
        %v5981 = vrot.slane %v5965, %v5980
        %v5982 = vadd.f32 %v5971, %v5981
        %v5983 = vadd.f32 %v5976, %v5981
        %vm5984 = vcmp.ge.f32.partialorder %v5982, 0.0
        %vm5985 = vcmp.ge.f32.partialorder %v5983, 0.0
        %v5986 = vmul.f32 %v5982, 0.01
        %v5987 = vmul.f32 %v5983, 0.01
        %v5988 = vsel %vm5984, %v5982, %v5986
        %v5989 = vsel %vm5985, %v5983, %v5987
        %v5990 = vsel %vm3564, %v5988, -1e+30
        %v5991 = vsel %vm3565, %v5989, -1e+30
        %v5992 = vsel %vm2747, %v5990, -inf
        %5993 = vmax.xlane.f32.xlu0 %v5992
        %v5994 = vpop.xlane.xlu0 %5993
        %v5995 = vsel %vm2747, %v5991, -inf
        %5996 = vmax.xlane.f32.xlu0 %v5995
        %v5997 = vpop.xlane.xlu0 %5996
        %v5998 = vsub.f32 %v5990, %v5994
        %v5999 = vsub.f32 %v5991, %v5997
        %v6000 = vmul.f32 %v5998, 1.442695
        %v6001 = vpow.pop %v6000
        %v6002 = vmul.f32 %v5999, 1.442695
        %v6003 = vpow.pop %v6002
        %v6004 = vmul.f32 %v6001, %v2489
        %v6005 = vmul.f32 %v6003, %v2490
        %v6006 = vsel %vm2747, %v6004, 0.0
        %6007 = vadd.xlane.f32.xlu0 %v6006
        %v6008 = vpop.xlane.xlu0 %6007
        %v6009 = vsel %vm2747, %v6005, 0.0
        %6010 = vadd.xlane.f32.xlu0 %v6009
        %v6011 = vpop.xlane.xlu0 %6010
        %v6012 = vmax.f32 %v6008, 1e-20
        %v6013 = vmax.f32 %v6011, 1e-20
        %v6014 = vrcp.pop %v6012
        %v6015 = vrcp.pop %v6013
        %v6016 = vmul.f32 %v6004, %v6014
        %v6017 = vmul.f32 %v6005, %v6015
        %s6018 = scalar_lea.vmem %s1968, 128 [#allocation27]
        %v6019 = vld [vmem:[%s6018] sm:$0xff]
        %v6020 = vld [vmem:[%s6018 + $0x8] sm:$0xff]
        %v6021 = vld [vmem:[%s6018 + $0x10] sm:$0xff]
        %v6022 = vld [vmem:[%s6018 + $0x18] sm:$0xff]
        %v6023 = vld [vmem:[%s6018 + $0x20] sm:$0xff]
        %v6024 = vld [vmem:[%s6018 + $0x28] sm:$0xff]
        %v6025 = vld [vmem:[%s6018 + $0x30] sm:$0xff]
        %v6026 = vld [vmem:[%s6018 + $0x38] sm:$0xff]
        %v6027 = vld [vmem:[%s6018 + $0x40] sm:$0xff]
        %v6028 = vld [vmem:[%s6018 + $0x48] sm:$0xff]
        %v6029 = vld [vmem:[%s6018 + $0x50] sm:$0xff]
        %v6030 = vld [vmem:[%s6018 + $0x58] sm:$0xff]
        %v6031 = vld [vmem:[%s6018 + $0x60] sm:$0xff]
        %v6032 = vld [vmem:[%s6018 + $0x68] sm:$0xff]
        %v6033 = vld [vmem:[%s6018 + $0x70] sm:$0xff]
        %v6034 = vld [vmem:[%s6018 + $0x78] sm:$0xff]
        %s6035 = scalar_lea.vmem %s1977, 1 [#allocation28]
        %v6036 = vld [vmem:[%s6035] sm:$0x1]
        %v6038 = vlaneseq
        %v6039 = vshrl.u32 %v6038, 7
        %v6040 = vsub.s32 0, %v6039
        %v6041 = vrot.slane %v6036, %v6040
        %6043 = vmatprep.subr.mxu0 0.0
        %6044 = vmatpush1.msra.mxu0 %v6019
        %6045 = vmatprep.subr.mxu0 0.0
        %6046 = vmatpush1.msra.mxu0 %v6020
        %6047 = vmatprep.subr.mxu0 0.0
        %6048 = vmatpush1.msra.mxu0 %v6021
        %6049 = vmatprep.subr.mxu0 0.0
        %6050 = vmatpush1.msra.mxu0 %v6022
        %6051 = vmatprep.subr.mxu0 0.0
        %6052 = vmatpush1.msra.mxu0 %v6023
        %6053 = vmatprep.subr.mxu0 0.0
        %6054 = vmatpush1.msra.mxu0 %v6024
        %6055 = vmatprep.subr.mxu0 0.0
        %6056 = vmatpush1.msra.mxu0 %v6025
        %6057 = vmatprep.subr.mxu0 0.0
        %6058 = vmatpush1.msra.mxu0 %v6026
        %6059 = vmatprep.subr.mxu0 0.0
        %6060 = vmatpush1.msra.mxu0 %v6027
        %6061 = vmatprep.subr.mxu0 0.0
        %6062 = vmatpush1.msra.mxu0 %v6028
        %6063 = vmatprep.subr.mxu0 0.0
        %6064 = vmatpush1.msra.mxu0 %v6029
        %6065 = vmatprep.subr.mxu0 0.0
        %6066 = vmatpush1.msra.mxu0 %v6030
        %6067 = vmatprep.subr.mxu0 0.0
        %6068 = vmatpush1.msra.mxu0 %v6031
        %6069 = vmatprep.subr.mxu0 0.0
        %6070 = vmatpush1.msra.mxu0 %v6032
        %6071 = vmatprep.subr.mxu0 0.0
        %6072 = vmatpush1.msra.mxu0 %v6033
        %6073 = vmatprep.subr.mxu0 0.0
        %6074 = vmatpush1.msra.mxu0 %v6034
        %6075 = vmatprep.subr.mxu0 0.0
        %6076 = vmatpush1.msra.mxu0 0.0
        %6077 = vmatprep.subr.mxu0 0.0
        %6078 = vmatpush1.msra.mxu0 0.0
        %6079 = vmatprep.subr.mxu0 0.0
        %6080 = vmatpush1.msra.mxu0 0.0
        %6081 = vmatprep.subr.mxu0 0.0
        %6082 = vmatpush1.msra.mxu0 0.0
        %6083 = vmatprep.subr.mxu0 0.0
        %6084 = vmatpush1.msra.mxu0 0.0
        %6085 = vmatprep.subr.mxu0 0.0
        %6086 = vmatpush1.msra.mxu0 0.0
        %6087 = vmatprep.subr.mxu0 0.0
        %6088 = vmatpush1.msra.mxu0 0.0
        %6089 = vmatprep.subr.mxu0 0.0
        %6090 = vmatpush1.msra.mxu0 0.0
        %6091 = vmatprep.subr.mxu0 0.0
        %6092 = vmatpush1.msra.mxu0 0.0
        %6093 = vmatprep.subr.mxu0 0.0
        %6094 = vmatpush1.msra.mxu0 0.0
        %6095 = vmatprep.subr.mxu0 0.0
        %6096 = vmatpush1.msra.mxu0 0.0
        %6097 = vmatprep.subr.mxu0 0.0
        %6098 = vmatpush1.msra.mxu0 0.0
        %6099 = vmatprep.subr.mxu0 0.0
        %6100 = vmatpush1.msra.mxu0 0.0
        %6101 = vmatprep.subr.mxu0 0.0
        %6102 = vmatpush1.msra.mxu0 0.0
        %6103 = vmatprep.subr.mxu0 0.0
        %6104 = vmatpush1.msra.mxu0 0.0
        %6105 = vmatprep.subr.mxu0 0.0
        %6106 = vmatpush1.msra.mxu0 0.0
        %6107 = vmatprep.mubr.f32.mxu0 0.0
        %6108 = vmatmul.mubr.f32.gmra.mrb[0].mxu0 %v5794
        %v6109 = vpop.f32.mrb[0].mxu0
        %v6110 = vadd.f32 %v6041, %v6109
        %v6111 = vpop.f32.mrb[0].mxu0
        %6112 = vmatprep.mubr.f32.mxu0 0.0
        %6113 = vmatmul.mubr.f32.gmra.mrb[0].mxu0 %v5795
        %v6114 = vpop.f32.mrb[0].mxu0
        %v6115 = vadd.f32 %v6041, %v6114
        %v6116 = vpop.f32.mrb[0].mxu0
        %6117 = vdwg.mxu0
        %v6118 = vpack.c.bf16 %v6017, %v6016
        %v6119 = vpack.c.bf16 %v6115, %v6110
        %v6121 = vsel %vm2747, %v6118, 0
        %6123 = vmatprep.subr.bf16.mxu0 0
        %6124 = vmatpush1.bf16.msra.mxu0 %v6119
        %6125 = vmatprep.subr.bf16.mxu0 0
        %6126 = vmatpush1.bf16.msra.mxu0 0
        %6127 = vmatprep.subr.bf16.mxu0 0
        %6128 = vmatpush1.bf16.msra.mxu0 0
        %6129 = vmatprep.subr.bf16.mxu0 0
        %6130 = vmatpush1.bf16.msra.mxu0 0
        %6131 = vmatprep.subr.bf16.mxu0 0
        %6132 = vmatpush1.bf16.msra.mxu0 0
        %6133 = vmatprep.subr.bf16.mxu0 0
        %6134 = vmatpush1.bf16.msra.mxu0 0
        %6135 = vmatprep.subr.bf16.mxu0 0
        %6136 = vmatpush1.bf16.msra.mxu0 0
        %6137 = vmatprep.subr.bf16.mxu0 0
        %6138 = vmatpush1.bf16.msra.mxu0 0
        %6139 = vmatprep.subr.bf16.mxu0 0
        %6140 = vmatpush1.bf16.msra.mxu0 0
        %6141 = vmatprep.subr.bf16.mxu0 0
        %6142 = vmatpush1.bf16.msra.mxu0 0
        %6143 = vmatprep.subr.bf16.mxu0 0
        %6144 = vmatpush1.bf16.msra.mxu0 0
        %6145 = vmatprep.subr.bf16.mxu0 0
        %6146 = vmatpush1.bf16.msra.mxu0 0
        %6147 = vmatprep.subr.bf16.mxu0 0
        %6148 = vmatpush1.bf16.msra.mxu0 0
        %6149 = vmatprep.subr.bf16.mxu0 0
        %6150 = vmatpush1.bf16.msra.mxu0 0
        %6151 = vmatprep.subr.bf16.mxu0 0
        %6152 = vmatpush1.bf16.msra.mxu0 0
        %6153 = vmatprep.subr.bf16.mxu0 0
        %6154 = vmatpush1.bf16.msra.mxu0 0
        %6155 = vmatprep.mubr.bf16.mxu0 0
        %6156 = vmatmul.mubr.bf16.gmra.mrb[0].mxu0 %v6121
        %v6157 = vpop.f32.mrb[0].mxu0
        %v6158 = vadd.f32 0.0, %v6157
        %v6159 = vpop.f32.mrb[0].mxu0
        %v6160 = vpop.f32.mrb[0].mxu0
        %v6161 = vadd.f32 0.0, %v6160
        %v6162 = vpop.f32.mrb[0].mxu0
        %6163 = vdwg.mxu0
        %vm6164 = vcmp.gt.f32.partialorder %v6158, 0.0
        %vm6165 = vcmp.gt.f32.partialorder %v6161, 0.0
        %v6166 = vmin.f32 %v6158, 0.0
        %v6167 = vmin.f32 %v6161, 0.0
        %v6168 = vmul.f32 %v6166, 1.442695
        %v6169 = vpow.pop %v6168
        %v6170 = vmul.f32 %v6167, 1.442695
        %v6171 = vpow.pop %v6170
        %v6172 = vsub.f32 %v6169, 1.0
        %v6173 = vsub.f32 %v6171, 1.0
        %v6174 = vsel %vm6164, %v6158, %v6172
        %v6175 = vsel %vm6165, %v6161, %v6173
        %s6176 = scalar_lea.vmem %s1986, 384 [#allocation29]
        %v6177 = vld [vmem:[%s6176] sm:$0xff]
        %v6178 = vld [vmem:[%s6176 + $0x8] sm:$0xff]
        %v6179 = vld [vmem:[%s6176 + $0x10] sm:$0xff]
        %v6180 = vld [vmem:[%s6176 + $0x18] sm:$0xff]
        %v6181 = vld [vmem:[%s6176 + $0x20] sm:$0xff]
        %v6182 = vld [vmem:[%s6176 + $0x28] sm:$0xff]
        %v6183 = vld [vmem:[%s6176 + $0x30] sm:$0xff]
        %v6184 = vld [vmem:[%s6176 + $0x38] sm:$0xff]
        %v6185 = vld [vmem:[%s6176 + $0x40] sm:$0xff]
        %v6186 = vld [vmem:[%s6176 + $0x48] sm:$0xff]
        %v6187 = vld [vmem:[%s6176 + $0x50] sm:$0xff]
        %v6188 = vld [vmem:[%s6176 + $0x58] sm:$0xff]
        %v6189 = vld [vmem:[%s6176 + $0x60] sm:$0xff]
        %v6190 = vld [vmem:[%s6176 + $0x68] sm:$0xff]
        %v6191 = vld [vmem:[%s6176 + $0x70] sm:$0xff]
        %v6192 = vld [vmem:[%s6176 + $0x78] sm:$0xff]
        %v6193 = vld [vmem:[%s6176 + $0x80] sm:$0xff]
        %v6194 = vld [vmem:[%s6176 + $0x88] sm:$0xff]
        %v6195 = vld [vmem:[%s6176 + $0x90] sm:$0xff]
        %v6196 = vld [vmem:[%s6176 + $0x98] sm:$0xff]
        %v6197 = vld [vmem:[%s6176 + $0xa0] sm:$0xff]
        %v6198 = vld [vmem:[%s6176 + $0xa8] sm:$0xff]
        %v6199 = vld [vmem:[%s6176 + $0xb0] sm:$0xff]
        %v6200 = vld [vmem:[%s6176 + $0xb8] sm:$0xff]
        %v6201 = vld [vmem:[%s6176 + $0xc0] sm:$0xff]
        %v6202 = vld [vmem:[%s6176 + $0xc8] sm:$0xff]
        %v6203 = vld [vmem:[%s6176 + $0xd0] sm:$0xff]
        %v6204 = vld [vmem:[%s6176 + $0xd8] sm:$0xff]
        %v6205 = vld [vmem:[%s6176 + $0xe0] sm:$0xff]
        %v6206 = vld [vmem:[%s6176 + $0xe8] sm:$0xff]
        %v6207 = vld [vmem:[%s6176 + $0xf0] sm:$0xff]
        %v6208 = vld [vmem:[%s6176 + $0xf8] sm:$0xff]
        %v6209 = vld [vmem:[%s6176 + $0x100] sm:$0xff]
        %v6210 = vld [vmem:[%s6176 + $0x108] sm:$0xff]
        %v6211 = vld [vmem:[%s6176 + $0x110] sm:$0xff]
        %v6212 = vld [vmem:[%s6176 + $0x118] sm:$0xff]
        %v6213 = vld [vmem:[%s6176 + $0x120] sm:$0xff]
        %v6214 = vld [vmem:[%s6176 + $0x128] sm:$0xff]
        %v6215 = vld [vmem:[%s6176 + $0x130] sm:$0xff]
        %v6216 = vld [vmem:[%s6176 + $0x138] sm:$0xff]
        %v6217 = vld [vmem:[%s6176 + $0x140] sm:$0xff]
        %v6218 = vld [vmem:[%s6176 + $0x148] sm:$0xff]
        %v6219 = vld [vmem:[%s6176 + $0x150] sm:$0xff]
        %v6220 = vld [vmem:[%s6176 + $0x158] sm:$0xff]
        %v6221 = vld [vmem:[%s6176 + $0x160] sm:$0xff]
        %v6222 = vld [vmem:[%s6176 + $0x168] sm:$0xff]
        %v6223 = vld [vmem:[%s6176 + $0x170] sm:$0xff]
        %v6224 = vld [vmem:[%s6176 + $0x178] sm:$0xff]
        %s6225 = scalar_lea.vmem %s1995, 384 [#allocation30]
        %v6226 = vld [vmem:[%s6225] sm:$0xff]
        %v6227 = vld [vmem:[%s6225 + $0x8] sm:$0xff]
        %v6228 = vld [vmem:[%s6225 + $0x10] sm:$0xff]
        %v6229 = vld [vmem:[%s6225 + $0x18] sm:$0xff]
        %v6230 = vld [vmem:[%s6225 + $0x20] sm:$0xff]
        %v6231 = vld [vmem:[%s6225 + $0x28] sm:$0xff]
        %v6232 = vld [vmem:[%s6225 + $0x30] sm:$0xff]
        %v6233 = vld [vmem:[%s6225 + $0x38] sm:$0xff]
        %v6234 = vld [vmem:[%s6225 + $0x40] sm:$0xff]
        %v6235 = vld [vmem:[%s6225 + $0x48] sm:$0xff]
        %v6236 = vld [vmem:[%s6225 + $0x50] sm:$0xff]
        %v6237 = vld [vmem:[%s6225 + $0x58] sm:$0xff]
        %v6238 = vld [vmem:[%s6225 + $0x60] sm:$0xff]
        %v6239 = vld [vmem:[%s6225 + $0x68] sm:$0xff]
        %v6240 = vld [vmem:[%s6225 + $0x70] sm:$0xff]
        %v6241 = vld [vmem:[%s6225 + $0x78] sm:$0xff]
        %v6242 = vld [vmem:[%s6225 + $0x80] sm:$0xff]
        %v6243 = vld [vmem:[%s6225 + $0x88] sm:$0xff]
        %v6244 = vld [vmem:[%s6225 + $0x90] sm:$0xff]
        %v6245 = vld [vmem:[%s6225 + $0x98] sm:$0xff]
        %v6246 = vld [vmem:[%s6225 + $0xa0] sm:$0xff]
        %v6247 = vld [vmem:[%s6225 + $0xa8] sm:$0xff]
        %v6248 = vld [vmem:[%s6225 + $0xb0] sm:$0xff]
        %v6249 = vld [vmem:[%s6225 + $0xb8] sm:$0xff]
        %v6250 = vld [vmem:[%s6225 + $0xc0] sm:$0xff]
        %v6251 = vld [vmem:[%s6225 + $0xc8] sm:$0xff]
        %v6252 = vld [vmem:[%s6225 + $0xd0] sm:$0xff]
        %v6253 = vld [vmem:[%s6225 + $0xd8] sm:$0xff]
        %v6254 = vld [vmem:[%s6225 + $0xe0] sm:$0xff]
        %v6255 = vld [vmem:[%s6225 + $0xe8] sm:$0xff]
        %v6256 = vld [vmem:[%s6225 + $0xf0] sm:$0xff]
        %v6257 = vld [vmem:[%s6225 + $0xf8] sm:$0xff]
        %v6258 = vld [vmem:[%s6225 + $0x100] sm:$0xff]
        %v6259 = vld [vmem:[%s6225 + $0x108] sm:$0xff]
        %v6260 = vld [vmem:[%s6225 + $0x110] sm:$0xff]
        %v6261 = vld [vmem:[%s6225 + $0x118] sm:$0xff]
        %v6262 = vld [vmem:[%s6225 + $0x120] sm:$0xff]
        %v6263 = vld [vmem:[%s6225 + $0x128] sm:$0xff]
        %v6264 = vld [vmem:[%s6225 + $0x130] sm:$0xff]
        %v6265 = vld [vmem:[%s6225 + $0x138] sm:$0xff]
        %v6266 = vld [vmem:[%s6225 + $0x140] sm:$0xff]
        %v6267 = vld [vmem:[%s6225 + $0x148] sm:$0xff]
        %v6268 = vld [vmem:[%s6225 + $0x150] sm:$0xff]
        %v6269 = vld [vmem:[%s6225 + $0x158] sm:$0xff]
        %v6270 = vld [vmem:[%s6225 + $0x160] sm:$0xff]
        %v6271 = vld [vmem:[%s6225 + $0x168] sm:$0xff]
        %v6272 = vld [vmem:[%s6225 + $0x170] sm:$0xff]
        %v6273 = vld [vmem:[%s6225 + $0x178] sm:$0xff]
        %s6274 = scalar_lea.vmem %s2004, 3 [#allocation31]
        %v6275 = vld [vmem:[%s6274] sm:$0x7]
        %s6276 = scalar_lea.vmem %s2013, 3 [#allocation32]
        %v6277 = vld [vmem:[%s6276] sm:$0x7]
        %v6279 = vlaneseq
        %v6280 = vshrl.u32 %v6279, 7
        %v6281 = vsub.s32 0, %v6280
        %v6282 = vrot.slane %v6275, %v6281
        %v6283 = vlaneseq
        %v6284 = vshrl.u32 %v6283, 7
        %v6285 = vsub.s32 1, %v6284
        %v6286 = vrot.slane %v6275, %v6285
        %v6287 = vlaneseq
        %v6288 = vshrl.u32 %v6287, 7
        %v6289 = vsub.s32 2, %v6288
        %v6290 = vrot.slane %v6275, %v6289
        %6294 = vmatprep.subr.mxu0 %v6178
        %6295 = vmatpush1.msra.mxu0 %v6177
        %6296 = vmatprep.subr.mxu0 %v6181
        %6297 = vmatpush1.msra.mxu0 %v6180
        %6298 = vmatprep.subr.mxu0 %v6184
        %6299 = vmatpush1.msra.mxu0 %v6183
        %6300 = vmatprep.subr.mxu0 %v6187
        %6301 = vmatpush1.msra.mxu0 %v6186
        %6302 = vmatprep.subr.mxu0 %v6190
        %6303 = vmatpush1.msra.mxu0 %v6189
        %6304 = vmatprep.subr.mxu0 %v6193
        %6305 = vmatpush1.msra.mxu0 %v6192
        %6306 = vmatprep.subr.mxu0 %v6196
        %6307 = vmatpush1.msra.mxu0 %v6195
        %6308 = vmatprep.subr.mxu0 %v6199
        %6309 = vmatpush1.msra.mxu0 %v6198
        %6310 = vmatprep.subr.mxu0 %v6202
        %6311 = vmatpush1.msra.mxu0 %v6201
        %6312 = vmatprep.subr.mxu0 %v6205
        %6313 = vmatpush1.msra.mxu0 %v6204
        %6314 = vmatprep.subr.mxu0 %v6208
        %6315 = vmatpush1.msra.mxu0 %v6207
        %6316 = vmatprep.subr.mxu0 %v6211
        %6317 = vmatpush1.msra.mxu0 %v6210
        %6318 = vmatprep.subr.mxu0 %v6214
        %6319 = vmatpush1.msra.mxu0 %v6213
        %6320 = vmatprep.subr.mxu0 %v6217
        %6321 = vmatpush1.msra.mxu0 %v6216
        %6322 = vmatprep.subr.mxu0 %v6220
        %6323 = vmatpush1.msra.mxu0 %v6219
        %6324 = vmatprep.subr.mxu0 %v6223
        %6325 = vmatpush1.msra.mxu0 %v6222
        %6326 = vmatprep.subr.mxu0 0.0
        %6327 = vmatpush1.msra.mxu0 0.0
        %6328 = vmatprep.subr.mxu0 0.0
        %6329 = vmatpush1.msra.mxu0 0.0
        %6330 = vmatprep.subr.mxu0 0.0
        %6331 = vmatpush1.msra.mxu0 0.0
        %6332 = vmatprep.subr.mxu0 0.0
        %6333 = vmatpush1.msra.mxu0 0.0
        %6334 = vmatprep.subr.mxu0 0.0
        %6335 = vmatpush1.msra.mxu0 0.0
        %6336 = vmatprep.subr.mxu0 0.0
        %6337 = vmatpush1.msra.mxu0 0.0
        %6338 = vmatprep.subr.mxu0 0.0
        %6339 = vmatpush1.msra.mxu0 0.0
        %6340 = vmatprep.subr.mxu0 0.0
        %6341 = vmatpush1.msra.mxu0 0.0
        %6342 = vmatprep.subr.mxu0 0.0
        %6343 = vmatpush1.msra.mxu0 0.0
        %6344 = vmatprep.subr.mxu0 0.0
        %6345 = vmatpush1.msra.mxu0 0.0
        %6346 = vmatprep.subr.mxu0 0.0
        %6347 = vmatpush1.msra.mxu0 0.0
        %6348 = vmatprep.subr.mxu0 0.0
        %6349 = vmatpush1.msra.mxu0 0.0
        %6350 = vmatprep.subr.mxu0 0.0
        %6351 = vmatpush1.msra.mxu0 0.0
        %6352 = vmatprep.subr.mxu0 0.0
        %6353 = vmatpush1.msra.mxu0 0.0
        %6354 = vmatprep.subr.mxu0 0.0
        %6355 = vmatpush1.msra.mxu0 0.0
        %6356 = vmatprep.subr.mxu0 0.0
        %6357 = vmatpush1.msra.mxu0 0.0
        %6358 = vmatprep.mubr.f32.mxu0 0.0
        %6359 = vmatmul.mubr.f32.gmra.mrb[0].mxu0 %v6174
        %v6360 = vpop.f32.mrb[0].mxu0
        %v6361 = vadd.f32 %v6282, %v6360
        %v6362 = vpop.f32.mrb[0].mxu0
        %v6363 = vadd.f32 %v6286, %v6362
        %6364 = vmatprep.mubr.f32.mxu0 0.0
        %6365 = vmatmul.mubr.f32.gmra.mrb[0].mxu0 %v6175
        %v6366 = vpop.f32.mrb[0].mxu0
        %v6367 = vadd.f32 %v6282, %v6366
        %v6368 = vpop.f32.mrb[0].mxu0
        %v6369 = vadd.f32 %v6286, %v6368
        %6370 = vdwg.mxu0
        %6371 = vmatprep.subr.mxu0 0.0
        %6372 = vmatpush1.msra.mxu0 %v6179
        %6373 = vmatprep.subr.mxu0 0.0
        %6374 = vmatpush1.msra.mxu0 %v6182
        %6375 = vmatprep.subr.mxu0 0.0
        %6376 = vmatpush1.msra.mxu0 %v6185
        %6377 = vmatprep.subr.mxu0 0.0
        %6378 = vmatpush1.msra.mxu0 %v6188
        %6379 = vmatprep.subr.mxu0 0.0
        %6380 = vmatpush1.msra.mxu0 %v6191
        %6381 = vmatprep.subr.mxu0 0.0
        %6382 = vmatpush1.msra.mxu0 %v6194
        %6383 = vmatprep.subr.mxu0 0.0
        %6384 = vmatpush1.msra.mxu0 %v6197
        %6385 = vmatprep.subr.mxu0 0.0
        %6386 = vmatpush1.msra.mxu0 %v6200
        %6387 = vmatprep.subr.mxu0 0.0
        %6388 = vmatpush1.msra.mxu0 %v6203
        %6389 = vmatprep.subr.mxu0 0.0
        %6390 = vmatpush1.msra.mxu0 %v6206
        %6391 = vmatprep.subr.mxu0 0.0
        %6392 = vmatpush1.msra.mxu0 %v6209
        %6393 = vmatprep.subr.mxu0 0.0
        %6394 = vmatpush1.msra.mxu0 %v6212
        %6395 = vmatprep.subr.mxu0 0.0
        %6396 = vmatpush1.msra.mxu0 %v6215
        %6397 = vmatprep.subr.mxu0 0.0
        %6398 = vmatpush1.msra.mxu0 %v6218
        %6399 = vmatprep.subr.mxu0 0.0
        %6400 = vmatpush1.msra.mxu0 %v6221
        %6401 = vmatprep.subr.mxu0 0.0
        %6402 = vmatpush1.msra.mxu0 %v6224
        %6403 = vmatprep.subr.mxu0 0.0
        %6404 = vmatpush1.msra.mxu0 0.0
        %6405 = vmatprep.subr.mxu0 0.0
        %6406 = vmatpush1.msra.mxu0 0.0
        %6407 = vmatprep.subr.mxu0 0.0
        %6408 = vmatpush1.msra.mxu0 0.0
        %6409 = vmatprep.subr.mxu0 0.0
        %6410 = vmatpush1.msra.mxu0 0.0
        %6411 = vmatprep.subr.mxu0 0.0
        %6412 = vmatpush1.msra.mxu0 0.0
        %6413 = vmatprep.subr.mxu0 0.0
        %6414 = vmatpush1.msra.mxu0 0.0
        %6415 = vmatprep.subr.mxu0 0.0
        %6416 = vmatpush1.msra.mxu0 0.0
        %6417 = vmatprep.subr.mxu0 0.0
        %6418 = vmatpush1.msra.mxu0 0.0
        %6419 = vmatprep.subr.mxu0 0.0
        %6420 = vmatpush1.msra.mxu0 0.0
        %6421 = vmatprep.subr.mxu0 0.0
        %6422 = vmatpush1.msra.mxu0 0.0
        %6423 = vmatprep.subr.mxu0 0.0
        %6424 = vmatpush1.msra.mxu0 0.0
        %6425 = vmatprep.subr.mxu0 0.0
        %6426 = vmatpush1.msra.mxu0 0.0
        %6427 = vmatprep.subr.mxu0 0.0
        %6428 = vmatpush1.msra.mxu0 0.0
        %6429 = vmatprep.subr.mxu0 0.0
        %6430 = vmatpush1.msra.mxu0 0.0
        %6431 = vmatprep.subr.mxu0 0.0
        %6432 = vmatpush1.msra.mxu0 0.0
        %6433 = vmatprep.subr.mxu0 0.0
        %6434 = vmatpush1.msra.mxu0 0.0
        %6435 = vmatprep.mubr.f32.mxu0 0.0
        %6436 = vmatmul.mubr.f32.gmra.mrb[0].mxu0 %v6174
        %v6437 = vpop.f32.mrb[0].mxu0
        %v6438 = vadd.f32 %v6290, %v6437
        %v6439 = vpop.f32.mrb[0].mxu0
        %6440 = vmatprep.mubr.f32.mxu0 0.0
        %6441 = vmatmul.mubr.f32.gmra.mrb[0].mxu0 %v6175
        %v6442 = vpop.f32.mrb[0].mxu0
        %v6443 = vadd.f32 %v6290, %v6442
        %v6444 = vpop.f32.mrb[0].mxu0
        %6445 = vdwg.mxu0
        %v6447 = vlaneseq
        %v6448 = vshrl.u32 %v6447, 7
        %v6449 = vsub.s32 0, %v6448
        %v6450 = vrot.slane %v6277, %v6449
        %v6451 = vlaneseq
        %v6452 = vshrl.u32 %v6451, 7
        %v6453 = vsub.s32 1, %v6452
        %v6454 = vrot.slane %v6277, %v6453
        %v6455 = vlaneseq
        %v6456 = vshrl.u32 %v6455, 7
        %v6457 = vsub.s32 2, %v6456
        %v6458 = vrot.slane %v6277, %v6457
        %6462 = vmatprep.subr.mxu0 %v6227
        %6463 = vmatpush1.msra.mxu0 %v6226
        %6464 = vmatprep.subr.mxu0 %v6230
        %6465 = vmatpush1.msra.mxu0 %v6229
        %6466 = vmatprep.subr.mxu0 %v6233
        %6467 = vmatpush1.msra.mxu0 %v6232
        %6468 = vmatprep.subr.mxu0 %v6236
        %6469 = vmatpush1.msra.mxu0 %v6235
        %6470 = vmatprep.subr.mxu0 %v6239
        %6471 = vmatpush1.msra.mxu0 %v6238
        %6472 = vmatprep.subr.mxu0 %v6242
        %6473 = vmatpush1.msra.mxu0 %v6241
        %6474 = vmatprep.subr.mxu0 %v6245
        %6475 = vmatpush1.msra.mxu0 %v6244
        %6476 = vmatprep.subr.mxu0 %v6248
        %6477 = vmatpush1.msra.mxu0 %v6247
        %6478 = vmatprep.subr.mxu0 %v6251
        %6479 = vmatpush1.msra.mxu0 %v6250
        %6480 = vmatprep.subr.mxu0 %v6254
        %6481 = vmatpush1.msra.mxu0 %v6253
        %6482 = vmatprep.subr.mxu0 %v6257
        %6483 = vmatpush1.msra.mxu0 %v6256
        %6484 = vmatprep.subr.mxu0 %v6260
        %6485 = vmatpush1.msra.mxu0 %v6259
        %6486 = vmatprep.subr.mxu0 %v6263
        %6487 = vmatpush1.msra.mxu0 %v6262
        %6488 = vmatprep.subr.mxu0 %v6266
        %6489 = vmatpush1.msra.mxu0 %v6265
        %6490 = vmatprep.subr.mxu0 %v6269
        %6491 = vmatpush1.msra.mxu0 %v6268
        %6492 = vmatprep.subr.mxu0 %v6272
        %6493 = vmatpush1.msra.mxu0 %v6271
        %6494 = vmatprep.subr.mxu0 0.0
        %6495 = vmatpush1.msra.mxu0 0.0
        %6496 = vmatprep.subr.mxu0 0.0
        %6497 = vmatpush1.msra.mxu0 0.0
        %6498 = vmatprep.subr.mxu0 0.0
        %6499 = vmatpush1.msra.mxu0 0.0
        %6500 = vmatprep.subr.mxu0 0.0
        %6501 = vmatpush1.msra.mxu0 0.0
        %6502 = vmatprep.subr.mxu0 0.0
        %6503 = vmatpush1.msra.mxu0 0.0
        %6504 = vmatprep.subr.mxu0 0.0
        %6505 = vmatpush1.msra.mxu0 0.0
        %6506 = vmatprep.subr.mxu0 0.0
        %6507 = vmatpush1.msra.mxu0 0.0
        %6508 = vmatprep.subr.mxu0 0.0
        %6509 = vmatpush1.msra.mxu0 0.0
        %6510 = vmatprep.subr.mxu0 0.0
        %6511 = vmatpush1.msra.mxu0 0.0
        %6512 = vmatprep.subr.mxu0 0.0
        %6513 = vmatpush1.msra.mxu0 0.0
        %6514 = vmatprep.subr.mxu0 0.0
        %6515 = vmatpush1.msra.mxu0 0.0
        %6516 = vmatprep.subr.mxu0 0.0
        %6517 = vmatpush1.msra.mxu0 0.0
        %6518 = vmatprep.subr.mxu0 0.0
        %6519 = vmatpush1.msra.mxu0 0.0
        %6520 = vmatprep.subr.mxu0 0.0
        %6521 = vmatpush1.msra.mxu0 0.0
        %6522 = vmatprep.subr.mxu0 0.0
        %6523 = vmatpush1.msra.mxu0 0.0
        %6524 = vmatprep.subr.mxu0 0.0
        %6525 = vmatpush1.msra.mxu0 0.0
        %6526 = vmatprep.mubr.f32.mxu0 0.0
        %6527 = vmatmul.mubr.f32.gmra.mrb[0].mxu0 %v5794
        %v6528 = vpop.f32.mrb[0].mxu0
        %v6529 = vadd.f32 %v6450, %v6528
        %v6530 = vpop.f32.mrb[0].mxu0
        %v6531 = vadd.f32 %v6454, %v6530
        %6532 = vmatprep.mubr.f32.mxu0 0.0
        %6533 = vmatmul.mubr.f32.gmra.mrb[0].mxu0 %v5795
        %v6534 = vpop.f32.mrb[0].mxu0
        %v6535 = vadd.f32 %v6450, %v6534
        %v6536 = vpop.f32.mrb[0].mxu0
        %v6537 = vadd.f32 %v6454, %v6536
        %6538 = vdwg.mxu0
        %6539 = vmatprep.subr.mxu0 0.0
        %6540 = vmatpush1.msra.mxu0 %v6228
        %6541 = vmatprep.subr.mxu0 0.0
        %6542 = vmatpush1.msra.mxu0 %v6231
        %6543 = vmatprep.subr.mxu0 0.0
        %6544 = vmatpush1.msra.mxu0 %v6234
        %6545 = vmatprep.subr.mxu0 0.0
        %6546 = vmatpush1.msra.mxu0 %v6237
        %6547 = vmatprep.subr.mxu0 0.0
        %6548 = vmatpush1.msra.mxu0 %v6240
        %6549 = vmatprep.subr.mxu0 0.0
        %6550 = vmatpush1.msra.mxu0 %v6243
        %6551 = vmatprep.subr.mxu0 0.0
        %6552 = vmatpush1.msra.mxu0 %v6246
        %6553 = vmatprep.subr.mxu0 0.0
        %6554 = vmatpush1.msra.mxu0 %v6249
        %6555 = vmatprep.subr.mxu0 0.0
        %6556 = vmatpush1.msra.mxu0 %v6252
        %6557 = vmatprep.subr.mxu0 0.0
        %6558 = vmatpush1.msra.mxu0 %v6255
        %6559 = vmatprep.subr.mxu0 0.0
        %6560 = vmatpush1.msra.mxu0 %v6258
        %6561 = vmatprep.subr.mxu0 0.0
        %6562 = vmatpush1.msra.mxu0 %v6261
        %6563 = vmatprep.subr.mxu0 0.0
        %6564 = vmatpush1.msra.mxu0 %v6264
        %6565 = vmatprep.subr.mxu0 0.0
        %6566 = vmatpush1.msra.mxu0 %v6267
        %6567 = vmatprep.subr.mxu0 0.0
        %6568 = vmatpush1.msra.mxu0 %v6270
        %6569 = vmatprep.subr.mxu0 0.0
        %6570 = vmatpush1.msra.mxu0 %v6273
        %6571 = vmatprep.subr.mxu0 0.0
        %6572 = vmatpush1.msra.mxu0 0.0
        %6573 = vmatprep.subr.mxu0 0.0
        %6574 = vmatpush1.msra.mxu0 0.0
        %6575 = vmatprep.subr.mxu0 0.0
        %6576 = vmatpush1.msra.mxu0 0.0
        %6577 = vmatprep.subr.mxu0 0.0
        %6578 = vmatpush1.msra.mxu0 0.0
        %6579 = vmatprep.subr.mxu0 0.0
        %6580 = vmatpush1.msra.mxu0 0.0
        %6581 = vmatprep.subr.mxu0 0.0
        %6582 = vmatpush1.msra.mxu0 0.0
        %6583 = vmatprep.subr.mxu0 0.0
        %6584 = vmatpush1.msra.mxu0 0.0
        %6585 = vmatprep.subr.mxu0 0.0
        %6586 = vmatpush1.msra.mxu0 0.0
        %6587 = vmatprep.subr.mxu0 0.0
        %6588 = vmatpush1.msra.mxu0 0.0
        %6589 = vmatprep.subr.mxu0 0.0
        %6590 = vmatpush1.msra.mxu0 0.0
        %6591 = vmatprep.subr.mxu0 0.0
        %6592 = vmatpush1.msra.mxu0 0.0
        %6593 = vmatprep.subr.mxu0 0.0
        %6594 = vmatpush1.msra.mxu0 0.0
        %6595 = vmatprep.subr.mxu0 0.0
        %6596 = vmatpush1.msra.mxu0 0.0
        %6597 = vmatprep.subr.mxu0 0.0
        %6598 = vmatpush1.msra.mxu0 0.0
        %6599 = vmatprep.subr.mxu0 0.0
        %6600 = vmatpush1.msra.mxu0 0.0
        %6601 = vmatprep.subr.mxu0 0.0
        %6602 = vmatpush1.msra.mxu0 0.0
        %6603 = vmatprep.mubr.f32.mxu0 0.0
        %6604 = vmatmul.mubr.f32.gmra.mrb[0].mxu0 %v5794
        %v6605 = vpop.f32.mrb[0].mxu0
        %v6606 = vadd.f32 %v6458, %v6605
        %v6607 = vpop.f32.mrb[0].mxu0
        %6608 = vmatprep.mubr.f32.mxu0 0.0
        %6609 = vmatmul.mubr.f32.gmra.mrb[0].mxu0 %v5795
        %v6610 = vpop.f32.mrb[0].mxu0
        %v6611 = vadd.f32 %v6458, %v6610
        %v6612 = vpop.f32.mrb[0].mxu0
        %6613 = vdwg.mxu0
        %v6614 = vadd.f32 %v6361, %v6529
        %v6615 = vadd.f32 %v6367, %v6535
        %v6616 = vsub.f32 0.0, %v6614
        %v6617 = vsub.f32 0.0, %v6615
        %v6618 = vmul.f32 %v6616, 1.442695
        %v6619 = vpow.pop %v6618
        %v6620 = vmul.f32 %v6617, 1.442695
        %v6621 = vpow.pop %v6620
        %v6622 = vadd.f32 %v6619, 1.0
        %v6623 = vadd.f32 %v6621, 1.0
        %v6624 = vrcp.pop %v6622
        %v6625 = vrcp.pop %v6623
        %v6626 = vadd.f32 %v6363, %v6531
        %v6627 = vadd.f32 %v6369, %v6537
        %v6628 = vsub.f32 0.0, %v6626
        %v6629 = vsub.f32 0.0, %v6627
        %v6630 = vmul.f32 %v6628, 1.442695
        %v6631 = vpow.pop %v6630
        %v6632 = vmul.f32 %v6629, 1.442695
        %v6633 = vpow.pop %v6632
        %v6634 = vadd.f32 %v6631, 1.0
        %v6635 = vadd.f32 %v6633, 1.0
        %v6636 = vrcp.pop %v6634
        %v6637 = vrcp.pop %v6635
        %v6638 = vmul.f32 %v6624, %v6606
        %v6639 = vmul.f32 %v6625, %v6611
        %v6640 = vadd.f32 %v6438, %v6638
        %v6641 = vadd.f32 %v6443, %v6639
        %v6642 = vtanh.pop %v6640
        %v6643 = vtanh.pop %v6641
        %v6644 = vsub.f32 1.0, %v6636
        %v6645 = vsub.f32 1.0, %v6637
        %v6646 = vmul.f32 %v6644, %v6642
        %v6647 = vmul.f32 %v6645, %v6643
        %v6648 = vmul.f32 %v6636, %v5794
        %v6649 = vmul.f32 %v6637, %v5795
        %v6650 = vadd.f32 %v6646, %v6648
        %v6651 = vadd.f32 %v6647, %v6649
        %v6652 = vmax.f32 %v6650, 0.0
        %v6653 = vmax.f32 %v6651, 0.0
        %v6654 = vld [vmem:[#allocation8] sm:$0x3]
        %v6656 = vsel %vm2747, %v6654, 0
        %6658 = vmatprep.subr.mxu0 0.0
        %6659 = vmatpush1.msra.mxu0 %v6652
        %6660 = vmatprep.subr.mxu0 0.0
        %6661 = vmatpush1.msra.mxu0 %v6653
        %6662 = vmatprep.subr.mxu0 0.0
        %6663 = vmatpush1.msra.mxu0 0.0
        %6664 = vmatprep.subr.mxu0 0.0
        %6665 = vmatpush1.msra.mxu0 0.0
        %6666 = vmatprep.subr.mxu0 0.0
        %6667 = vmatpush1.msra.mxu0 0.0
        %6668 = vmatprep.subr.mxu0 0.0
        %6669 = vmatpush1.msra.mxu0 0.0
        %6670 = vmatprep.subr.mxu0 0.0
        %6671 = vmatpush1.msra.mxu0 0.0
        %6672 = vmatprep.subr.mxu0 0.0
        %6673 = vmatpush1.msra.mxu0 0.0
        %6674 = vmatprep.subr.mxu0 0.0
        %6675 = vmatpush1.msra.mxu0 0.0
        %6676 = vmatprep.subr.mxu0 0.0
        %6677 = vmatpush1.msra.mxu0 0.0
        %6678 = vmatprep.subr.mxu0 0.0
        %6679 = vmatpush1.msra.mxu0 0.0
        %6680 = vmatprep.subr.mxu0 0.0
        %6681 = vmatpush1.msra.mxu0 0.0
        %6682 = vmatprep.subr.mxu0 0.0
        %6683 = vmatpush1.msra.mxu0 0.0
        %6684 = vmatprep.subr.mxu0 0.0
        %6685 = vmatpush1.msra.mxu0 0.0
        %6686 = vmatprep.subr.mxu0 0.0
        %6687 = vmatpush1.msra.mxu0 0.0
        %6688 = vmatprep.subr.mxu0 0.0
        %6689 = vmatpush1.msra.mxu0 0.0
        %6690 = vmatprep.subr.mxu0 0.0
        %6691 = vmatpush1.msra.mxu0 0.0
        %6692 = vmatprep.subr.mxu0 0.0
        %6693 = vmatpush1.msra.mxu0 0.0
        %6694 = vmatprep.subr.mxu0 0.0
        %6695 = vmatpush1.msra.mxu0 0.0
        %6696 = vmatprep.subr.mxu0 0.0
        %6697 = vmatpush1.msra.mxu0 0.0
        %6698 = vmatprep.subr.mxu0 0.0
        %6699 = vmatpush1.msra.mxu0 0.0
        %6700 = vmatprep.subr.mxu0 0.0
        %6701 = vmatpush1.msra.mxu0 0.0
        %6702 = vmatprep.subr.mxu0 0.0
        %6703 = vmatpush1.msra.mxu0 0.0
        %6704 = vmatprep.subr.mxu0 0.0
        %6705 = vmatpush1.msra.mxu0 0.0
        %6706 = vmatprep.subr.mxu0 0.0
        %6707 = vmatpush1.msra.mxu0 0.0
        %6708 = vmatprep.subr.mxu0 0.0
        %6709 = vmatpush1.msra.mxu0 0.0
        %6710 = vmatprep.subr.mxu0 0.0
        %6711 = vmatpush1.msra.mxu0 0.0
        %6712 = vmatprep.subr.mxu0 0.0
        %6713 = vmatpush1.msra.mxu0 0.0
        %6714 = vmatprep.subr.mxu0 0.0
        %6715 = vmatpush1.msra.mxu0 0.0
        %6716 = vmatprep.subr.mxu0 0.0
        %6717 = vmatpush1.msra.mxu0 0.0
        %6718 = vmatprep.subr.mxu0 0.0
        %6719 = vmatpush1.msra.mxu0 0.0
        %6720 = vmatprep.subr.mxu0 0.0
        %6721 = vmatpush1.msra.mxu0 0.0
        %6722 = vmatprep.mubr.f32.mxu0 0.0
        %6723 = vmatmul.mubr.f32.gmra.mrb[0].mxu0 %v6656
        %v6724 = vpop.f32.mrb[0].mxu0
        %v6725 = vadd.f32 0.0, %v6724
        %v6726 = vpop.f32.mrb[0].mxu0
        %6727 = vdwg.mxu0
        %v6728 = vmax.f32 %v6725, 0.0
        %v6729 = vld [vmem:[%s2022] sm:$0xff]
        %v6730 = vld [vmem:[%s2022 + $0x8] sm:$0xff]
        %v6731 = vld [vmem:[%s2022 + $0x10] sm:$0xff]
        %v6732 = vld [vmem:[%s2022 + $0x18] sm:$0xff]
        %v6733 = vld [vmem:[%s2022 + $0x20] sm:$0xff]
        %v6734 = vld [vmem:[%s2022 + $0x28] sm:$0xff]
        %v6735 = vld [vmem:[%s2022 + $0x30] sm:$0xff]
        %v6736 = vld [vmem:[%s2022 + $0x38] sm:$0xff]
        %v6737 = vld [vmem:[%s2022 + $0x40] sm:$0xff]
        %v6738 = vld [vmem:[%s2022 + $0x48] sm:$0xff]
        %v6739 = vld [vmem:[%s2022 + $0x50] sm:$0xff]
        %v6740 = vld [vmem:[%s2022 + $0x58] sm:$0xff]
        %v6741 = vld [vmem:[%s2022 + $0x60] sm:$0xff]
        %v6742 = vld [vmem:[%s2022 + $0x68] sm:$0xff]
        %v6743 = vld [vmem:[%s2022 + $0x70] sm:$0xff]
        %v6744 = vld [vmem:[%s2022 + $0x78] sm:$0xff]
        %v6745 = vld [vmem:[%s2040] sm:$0x1]
        %v6747 = vlaneseq
        %v6748 = vshrl.u32 %v6747, 7
        %v6749 = vsub.s32 0, %v6748
        %v6750 = vrot.slane %v6745, %v6749
        %6752 = vmatprep.subr.mxu0 0.0
        %6753 = vmatpush1.msra.mxu0 %v6729
        %6754 = vmatprep.subr.mxu0 0.0
        %6755 = vmatpush1.msra.mxu0 %v6730
        %6756 = vmatprep.subr.mxu0 0.0
        %6757 = vmatpush1.msra.mxu0 %v6731
        %6758 = vmatprep.subr.mxu0 0.0
        %6759 = vmatpush1.msra.mxu0 %v6732
        %6760 = vmatprep.subr.mxu0 0.0
        %6761 = vmatpush1.msra.mxu0 %v6733
        %6762 = vmatprep.subr.mxu0 0.0
        %6763 = vmatpush1.msra.mxu0 %v6734
        %6764 = vmatprep.subr.mxu0 0.0
        %6765 = vmatpush1.msra.mxu0 %v6735
        %6766 = vmatprep.subr.mxu0 0.0
        %6767 = vmatpush1.msra.mxu0 %v6736
        %6768 = vmatprep.subr.mxu0 0.0
        %6769 = vmatpush1.msra.mxu0 %v6737
        %6770 = vmatprep.subr.mxu0 0.0
        %6771 = vmatpush1.msra.mxu0 %v6738
        %6772 = vmatprep.subr.mxu0 0.0
        %6773 = vmatpush1.msra.mxu0 %v6739
        %6774 = vmatprep.subr.mxu0 0.0
        %6775 = vmatpush1.msra.mxu0 %v6740
        %6776 = vmatprep.subr.mxu0 0.0
        %6777 = vmatpush1.msra.mxu0 %v6741
        %6778 = vmatprep.subr.mxu0 0.0
        %6779 = vmatpush1.msra.mxu0 %v6742
        %6780 = vmatprep.subr.mxu0 0.0
        %6781 = vmatpush1.msra.mxu0 %v6743
        %6782 = vmatprep.subr.mxu0 0.0
        %6783 = vmatpush1.msra.mxu0 %v6744
        %6784 = vmatprep.subr.mxu0 0.0
        %6785 = vmatpush1.msra.mxu0 0.0
        %6786 = vmatprep.subr.mxu0 0.0
        %6787 = vmatpush1.msra.mxu0 0.0
        %6788 = vmatprep.subr.mxu0 0.0
        %6789 = vmatpush1.msra.mxu0 0.0
        %6790 = vmatprep.subr.mxu0 0.0
        %6791 = vmatpush1.msra.mxu0 0.0
        %6792 = vmatprep.subr.mxu0 0.0
        %6793 = vmatpush1.msra.mxu0 0.0
        %6794 = vmatprep.subr.mxu0 0.0
        %6795 = vmatpush1.msra.mxu0 0.0
        %6796 = vmatprep.subr.mxu0 0.0
        %6797 = vmatpush1.msra.mxu0 0.0
        %6798 = vmatprep.subr.mxu0 0.0
        %6799 = vmatpush1.msra.mxu0 0.0
        %6800 = vmatprep.subr.mxu0 0.0
        %6801 = vmatpush1.msra.mxu0 0.0
        %6802 = vmatprep.subr.mxu0 0.0
        %6803 = vmatpush1.msra.mxu0 0.0
        %6804 = vmatprep.subr.mxu0 0.0
        %6805 = vmatpush1.msra.mxu0 0.0
        %6806 = vmatprep.subr.mxu0 0.0
        %6807 = vmatpush1.msra.mxu0 0.0
        %6808 = vmatprep.subr.mxu0 0.0
        %6809 = vmatpush1.msra.mxu0 0.0
        %6810 = vmatprep.subr.mxu0 0.0
        %6811 = vmatpush1.msra.mxu0 0.0
        %6812 = vmatprep.subr.mxu0 0.0
        %6813 = vmatpush1.msra.mxu0 0.0
        %6814 = vmatprep.subr.mxu0 0.0
        %6815 = vmatpush1.msra.mxu0 0.0
        %6816 = vmatprep.mubr.f32.mxu0 0.0
        %6817 = vmatmul.mubr.f32.gmra.mrb[0].mxu0 %v6728
        %v6818 = vpop.f32.mrb[0].mxu0
        %v6819 = vadd.f32 %v6750, %v6818
        %v6820 = vpop.f32.mrb[0].mxu0
        %6821 = vdwg.mxu0
        %v6822 = vld [vmem:[%s2031] sm:$0x1]
        %6823 = vmatprep.subr.mxu0 0.0
        %6824 = vmatpush1.xpose.msra.mxu0 %v6652
        %6825 = vmatprep.subr.mxu0 0.0
        %6826 = vmatpush1.xpose.msra.mxu0 %v6653
        %6827 = vmatprep.subr.mxu0 0.0
        %6828 = vmatpush1.xpose.msra.mxu0 0.0
        %6829 = vmatprep.subr.mxu0 0.0
        %6830 = vmatpush1.xpose.msra.mxu0 0.0
        %6831 = vmatprep.subr.mxu0 0.0
        %6832 = vmatpush1.xpose.msra.mxu0 0.0
        %6833 = vmatprep.subr.mxu0 0.0
        %6834 = vmatpush1.xpose.msra.mxu0 0.0
        %6835 = vmatprep.subr.mxu0 0.0
        %6836 = vmatpush1.xpose.msra.mxu0 0.0
        %6837 = vmatprep.subr.mxu0 0.0
        %6838 = vmatpush1.xpose.msra.mxu0 0.0
        %6839 = vmatprep.subr.mxu0 0.0
        %6840 = vmatpush1.xpose.msra.mxu0 0.0
        %6841 = vmatprep.subr.mxu0 0.0
        %6842 = vmatpush1.xpose.msra.mxu0 0.0
        %6843 = vmatprep.subr.mxu0 0.0
        %6844 = vmatpush1.xpose.msra.mxu0 0.0
        %6845 = vmatprep.subr.mxu0 0.0
        %6846 = vmatpush1.xpose.msra.mxu0 0.0
        %6847 = vmatprep.subr.mxu0 0.0
        %6848 = vmatpush1.xpose.msra.mxu0 0.0
        %6849 = vmatprep.subr.mxu0 0.0
        %6850 = vmatpush1.xpose.msra.mxu0 0.0
        %6851 = vmatprep.subr.mxu0 0.0
        %6852 = vmatpush1.xpose.msra.mxu0 0.0
        %6853 = vmatprep.subr.mxu0 0.0
        %6854 = vmatpush1.xpose.msra.mxu0 0.0
        %6855 = vmatprep.subr.mxu0 0.0
        %6856 = vmatpush1.xpose.msra.mxu0 0.0
        %6857 = vmatprep.subr.mxu0 0.0
        %6858 = vmatpush1.xpose.msra.mxu0 0.0
        %6859 = vmatprep.subr.mxu0 0.0
        %6860 = vmatpush1.xpose.msra.mxu0 0.0
        %6861 = vmatprep.subr.mxu0 0.0
        %6862 = vmatpush1.xpose.msra.mxu0 0.0
        %6863 = vmatprep.subr.mxu0 0.0
        %6864 = vmatpush1.xpose.msra.mxu0 0.0
        %6865 = vmatprep.subr.mxu0 0.0
        %6866 = vmatpush1.xpose.msra.mxu0 0.0
        %6867 = vmatprep.subr.mxu0 0.0
        %6868 = vmatpush1.xpose.msra.mxu0 0.0
        %6869 = vmatprep.subr.mxu0 0.0
        %6870 = vmatpush1.xpose.msra.mxu0 0.0
        %6871 = vmatprep.subr.mxu0 0.0
        %6872 = vmatpush1.xpose.msra.mxu0 0.0
        %6873 = vmatprep.subr.mxu0 0.0
        %6874 = vmatpush1.xpose.msra.mxu0 0.0
        %6875 = vmatprep.subr.mxu0 0.0
        %6876 = vmatpush1.xpose.msra.mxu0 0.0
        %6877 = vmatprep.subr.mxu0 0.0
        %6878 = vmatpush1.xpose.msra.mxu0 0.0
        %6879 = vmatprep.subr.mxu0 0.0
        %6880 = vmatpush1.xpose.msra.mxu0 0.0
        %6881 = vmatprep.subr.mxu0 0.0
        %6882 = vmatpush1.xpose.msra.mxu0 0.0
        %6883 = vmatprep.subr.mxu0 0.0
        %6884 = vmatpush1.xpose.msra.mxu0 0.0
        %6885 = vmatprep.subr.mxu0 0.0
        %6886 = vmatpush1.xpose.msra.mxu0 0.0
        %6887 = vmatprep.mubr.f32.mxu0 0.0
        %6888 = vmatmul.mubr.f32.gmra.mrb[0].mxu0 %v6822
        %v6889 = vpop.f32.mrb[0].mxu0
        %v6890 = vadd.f32 0.0, %v6889
        %v6891 = vpop.f32.mrb[0].mxu0
        %6892 = vdwg.mxu0
        %6894 = vset.pattern.permute.xlu0 0
        %6895 = vperm.xlu0 %6894, %v6819
        %v6896 = vpop.permute.xlu0 %6895
        %v6898 = vlaneseq
        %v6899 = vshrl.u32 %v6898, 7
        %v6900 = vsub.s32 0, %v6899
        %v6901 = vrot.slane %v6890, %v6900
        %v6902 = vadd.f32 %v6896, %v6901
        %vm6903 = vcmp.ge.f32.partialorder %v6902, 0.0
        %v6904 = vmul.f32 %v6902, 0.01
        %v6905 = vsel %vm6903, %v6902, %v6904
        %vm6906 = vcmp.gt.f32.partialorder %v6654, 0.0
        %v6907 = vsel %vm6906, %v6905, -1e+30
        %vm6908 = vcmask 123904
        %v6909 = vsel %vm6908, %v6907, -inf
        %6910 = vmax.xlane.f32.xlu0 %v6909
        %v6911 = vpop.xlane.xlu0 %6910
        %v6912 = vsub.f32 %v6907, %v6911
        %v6913 = vmul.f32 %v6912, 1.442695
        %v6914 = vpow.pop %v6913
        %v6915 = vmul.f32 %v6914, %v6654
        %v6916 = vsel %vm6908, %v6915, 0.0
        %6917 = vadd.xlane.f32.xlu0 %v6916
        %v6918 = vpop.xlane.xlu0 %6917
        %v6919 = vmax.f32 %v6918, 1e-20
        %v6920 = vrcp.pop %v6919
        %v6921 = vmul.f32 %v6915, %v6920
        %v6922 = vld [vmem:[%s2049] sm:$0xff]
        %v6923 = vld [vmem:[%s2049 + $0x8] sm:$0xff]
        %v6924 = vld [vmem:[%s2049 + $0x10] sm:$0xff]
        %v6925 = vld [vmem:[%s2049 + $0x18] sm:$0xff]
        %v6926 = vld [vmem:[%s2049 + $0x20] sm:$0xff]
        %v6927 = vld [vmem:[%s2049 + $0x28] sm:$0xff]
        %v6928 = vld [vmem:[%s2049 + $0x30] sm:$0xff]
        %v6929 = vld [vmem:[%s2049 + $0x38] sm:$0xff]
        %v6930 = vld [vmem:[%s2049 + $0x40] sm:$0xff]
        %v6931 = vld [vmem:[%s2049 + $0x48] sm:$0xff]
        %v6932 = vld [vmem:[%s2049 + $0x50] sm:$0xff]
        %v6933 = vld [vmem:[%s2049 + $0x58] sm:$0xff]
        %v6934 = vld [vmem:[%s2049 + $0x60] sm:$0xff]
        %v6935 = vld [vmem:[%s2049 + $0x68] sm:$0xff]
        %v6936 = vld [vmem:[%s2049 + $0x70] sm:$0xff]
        %v6937 = vld [vmem:[%s2049 + $0x78] sm:$0xff]
        %v6938 = vld [vmem:[%s2058] sm:$0x1]
        %v6940 = vlaneseq
        %v6941 = vshrl.u32 %v6940, 7
        %v6942 = vsub.s32 0, %v6941
        %v6943 = vrot.slane %v6938, %v6942
        %6945 = vmatprep.subr.mxu0 0.0
        %6946 = vmatpush1.msra.mxu0 %v6922
        %6947 = vmatprep.subr.mxu0 0.0
        %6948 = vmatpush1.msra.mxu0 %v6923
        %6949 = vmatprep.subr.mxu0 0.0
        %6950 = vmatpush1.msra.mxu0 %v6924
        %6951 = vmatprep.subr.mxu0 0.0
        %6952 = vmatpush1.msra.mxu0 %v6925
        %6953 = vmatprep.subr.mxu0 0.0
        %6954 = vmatpush1.msra.mxu0 %v6926
        %6955 = vmatprep.subr.mxu0 0.0
        %6956 = vmatpush1.msra.mxu0 %v6927
        %6957 = vmatprep.subr.mxu0 0.0
        %6958 = vmatpush1.msra.mxu0 %v6928
        %6959 = vmatprep.subr.mxu0 0.0
        %6960 = vmatpush1.msra.mxu0 %v6929
        %6961 = vmatprep.subr.mxu0 0.0
        %6962 = vmatpush1.msra.mxu0 %v6930
        %6963 = vmatprep.subr.mxu0 0.0
        %6964 = vmatpush1.msra.mxu0 %v6931
        %6965 = vmatprep.subr.mxu0 0.0
        %6966 = vmatpush1.msra.mxu0 %v6932
        %6967 = vmatprep.subr.mxu0 0.0
        %6968 = vmatpush1.msra.mxu0 %v6933
        %6969 = vmatprep.subr.mxu0 0.0
        %6970 = vmatpush1.msra.mxu0 %v6934
        %6971 = vmatprep.subr.mxu0 0.0
        %6972 = vmatpush1.msra.mxu0 %v6935
        %6973 = vmatprep.subr.mxu0 0.0
        %6974 = vmatpush1.msra.mxu0 %v6936
        %6975 = vmatprep.subr.mxu0 0.0
        %6976 = vmatpush1.msra.mxu0 %v6937
        %6977 = vmatprep.subr.mxu0 0.0
        %6978 = vmatpush1.msra.mxu0 0.0
        %6979 = vmatprep.subr.mxu0 0.0
        %6980 = vmatpush1.msra.mxu0 0.0
        %6981 = vmatprep.subr.mxu0 0.0
        %6982 = vmatpush1.msra.mxu0 0.0
        %6983 = vmatprep.subr.mxu0 0.0
        %6984 = vmatpush1.msra.mxu0 0.0
        %6985 = vmatprep.subr.mxu0 0.0
        %6986 = vmatpush1.msra.mxu0 0.0
        %6987 = vmatprep.subr.mxu0 0.0
        %6988 = vmatpush1.msra.mxu0 0.0
        %6989 = vmatprep.subr.mxu0 0.0
        %6990 = vmatpush1.msra.mxu0 0.0
        %6991 = vmatprep.subr.mxu0 0.0
        %6992 = vmatpush1.msra.mxu0 0.0
        %6993 = vmatprep.subr.mxu0 0.0
        %6994 = vmatpush1.msra.mxu0 0.0
        %6995 = vmatprep.subr.mxu0 0.0
        %6996 = vmatpush1.msra.mxu0 0.0
        %6997 = vmatprep.subr.mxu0 0.0
        %6998 = vmatpush1.msra.mxu0 0.0
        %6999 = vmatprep.subr.mxu0 0.0
        %7000 = vmatpush1.msra.mxu0 0.0
        %7001 = vmatprep.subr.mxu0 0.0
        %7002 = vmatpush1.msra.mxu0 0.0
        %7003 = vmatprep.subr.mxu0 0.0
        %7004 = vmatpush1.msra.mxu0 0.0
        %7005 = vmatprep.subr.mxu0 0.0
        %7006 = vmatpush1.msra.mxu0 0.0
        %7007 = vmatprep.subr.mxu0 0.0
        %7008 = vmatpush1.msra.mxu0 0.0
        %7009 = vmatprep.mubr.f32.mxu0 0.0
        %7010 = vmatmul.mubr.f32.gmra.mrb[0].mxu0 %v6652
        %v7011 = vpop.f32.mrb[0].mxu0
        %v7012 = vadd.f32 %v6943, %v7011
        %v7013 = vpop.f32.mrb[0].mxu0
        %7014 = vmatprep.mubr.f32.mxu0 0.0
        %7015 = vmatmul.mubr.f32.gmra.mrb[0].mxu0 %v6653
        %v7016 = vpop.f32.mrb[0].mxu0
        %v7017 = vadd.f32 %v6943, %v7016
        %v7018 = vpop.f32.mrb[0].mxu0
        %7019 = vdwg.mxu0
        %v7021 = vsel %vm2747, %v6921, 0
        %7023 = vmatprep.subr.mxu0 0.0
        %7024 = vmatpush1.msra.mxu0 %v7012
        %7025 = vmatprep.subr.mxu0 0.0
        %7026 = vmatpush1.msra.mxu0 %v7017
        %7027 = vmatprep.subr.mxu0 0.0
        %7028 = vmatpush1.msra.mxu0 0.0
        %7029 = vmatprep.subr.mxu0 0.0
        %7030 = vmatpush1.msra.mxu0 0.0
        %7031 = vmatprep.subr.mxu0 0.0
        %7032 = vmatpush1.msra.mxu0 0.0
        %7033 = vmatprep.subr.mxu0 0.0
        %7034 = vmatpush1.msra.mxu0 0.0
        %7035 = vmatprep.subr.mxu0 0.0
        %7036 = vmatpush1.msra.mxu0 0.0
        %7037 = vmatprep.subr.mxu0 0.0
        %7038 = vmatpush1.msra.mxu0 0.0
        %7039 = vmatprep.subr.mxu0 0.0
        %7040 = vmatpush1.msra.mxu0 0.0
        %7041 = vmatprep.subr.mxu0 0.0
        %7042 = vmatpush1.msra.mxu0 0.0
        %7043 = vmatprep.subr.mxu0 0.0
        %7044 = vmatpush1.msra.mxu0 0.0
        %7045 = vmatprep.subr.mxu0 0.0
        %7046 = vmatpush1.msra.mxu0 0.0
        %7047 = vmatprep.subr.mxu0 0.0
        %7048 = vmatpush1.msra.mxu0 0.0
        %7049 = vmatprep.subr.mxu0 0.0
        %7050 = vmatpush1.msra.mxu0 0.0
        %7051 = vmatprep.subr.mxu0 0.0
        %7052 = vmatpush1.msra.mxu0 0.0
        %7053 = vmatprep.subr.mxu0 0.0
        %7054 = vmatpush1.msra.mxu0 0.0
        %7055 = vmatprep.subr.mxu0 0.0
        %7056 = vmatpush1.msra.mxu0 0.0
        %7057 = vmatprep.subr.mxu0 0.0
        %7058 = vmatpush1.msra.mxu0 0.0
        %7059 = vmatprep.subr.mxu0 0.0
        %7060 = vmatpush1.msra.mxu0 0.0
        %7061 = vmatprep.subr.mxu0 0.0
        %7062 = vmatpush1.msra.mxu0 0.0
        %7063 = vmatprep.subr.mxu0 0.0
        %7064 = vmatpush1.msra.mxu0 0.0
        %7065 = vmatprep.subr.mxu0 0.0
        %7066 = vmatpush1.msra.mxu0 0.0
        %7067 = vmatprep.subr.mxu0 0.0
        %7068 = vmatpush1.msra.mxu0 0.0
        %7069 = vmatprep.subr.mxu0 0.0
        %7070 = vmatpush1.msra.mxu0 0.0
        %7071 = vmatprep.subr.mxu0 0.0
        %7072 = vmatpush1.msra.mxu0 0.0
        %7073 = vmatprep.subr.mxu0 0.0
        %7074 = vmatpush1.msra.mxu0 0.0
        %7075 = vmatprep.subr.mxu0 0.0
        %7076 = vmatpush1.msra.mxu0 0.0
        %7077 = vmatprep.subr.mxu0 0.0
        %7078 = vmatpush1.msra.mxu0 0.0
        %7079 = vmatprep.subr.mxu0 0.0
        %7080 = vmatpush1.msra.mxu0 0.0
        %7081 = vmatprep.subr.mxu0 0.0
        %7082 = vmatpush1.msra.mxu0 0.0
        %7083 = vmatprep.subr.mxu0 0.0
        %7084 = vmatpush1.msra.mxu0 0.0
        %7085 = vmatprep.subr.mxu0 0.0
        %7086 = vmatpush1.msra.mxu0 0.0
        %7087 = vmatprep.mubr.f32.mxu0 0.0
        %7088 = vmatmul.mubr.f32.gmra.mrb[0].mxu0 %v7021
        %v7089 = vpop.f32.mrb[0].mxu0
        %v7090 = vadd.f32 0.0, %v7089
        %v7091 = vpop.f32.mrb[0].mxu0
        %7092 = vdwg.mxu0
        %vm7093 = vcmp.gt.f32.partialorder %v7090, 0.0
        %v7094 = vmin.f32 %v7090, 0.0
        %v7095 = vmul.f32 %v7094, 1.442695
        %v7096 = vpow.pop %v7095
        %v7097 = vsub.f32 %v7096, 1.0
        %v7098 = vsel %vm7093, %v7090, %v7097
        %v7099 = vld [vmem:[%s2067] sm:$0xff]
        %v7100 = vld [vmem:[%s2067 + $0x8] sm:$0xff]
        %v7101 = vld [vmem:[%s2067 + $0x10] sm:$0xff]
        %v7102 = vld [vmem:[%s2067 + $0x18] sm:$0xff]
        %v7103 = vld [vmem:[%s2067 + $0x20] sm:$0xff]
        %v7104 = vld [vmem:[%s2067 + $0x28] sm:$0xff]
        %v7105 = vld [vmem:[%s2067 + $0x30] sm:$0xff]
        %v7106 = vld [vmem:[%s2067 + $0x38] sm:$0xff]
        %v7107 = vld [vmem:[%s2067 + $0x40] sm:$0xff]
        %v7108 = vld [vmem:[%s2067 + $0x48] sm:$0xff]
        %v7109 = vld [vmem:[%s2067 + $0x50] sm:$0xff]
        %v7110 = vld [vmem:[%s2067 + $0x58] sm:$0xff]
        %v7111 = vld [vmem:[%s2067 + $0x60] sm:$0xff]
        %v7112 = vld [vmem:[%s2067 + $0x68] sm:$0xff]
        %v7113 = vld [vmem:[%s2067 + $0x70] sm:$0xff]
        %v7114 = vld [vmem:[%s2067 + $0x78] sm:$0xff]
        %v7115 = vld [vmem:[%s2067 + $0x80] sm:$0xff]
        %v7116 = vld [vmem:[%s2067 + $0x88] sm:$0xff]
        %v7117 = vld [vmem:[%s2067 + $0x90] sm:$0xff]
        %v7118 = vld [vmem:[%s2067 + $0x98] sm:$0xff]
        %v7119 = vld [vmem:[%s2067 + $0xa0] sm:$0xff]
        %v7120 = vld [vmem:[%s2067 + $0xa8] sm:$0xff]
        %v7121 = vld [vmem:[%s2067 + $0xb0] sm:$0xff]
        %v7122 = vld [vmem:[%s2067 + $0xb8] sm:$0xff]
        %v7123 = vld [vmem:[%s2067 + $0xc0] sm:$0xff]
        %v7124 = vld [vmem:[%s2067 + $0xc8] sm:$0xff]
        %v7125 = vld [vmem:[%s2067 + $0xd0] sm:$0xff]
        %v7126 = vld [vmem:[%s2067 + $0xd8] sm:$0xff]
        %v7127 = vld [vmem:[%s2067 + $0xe0] sm:$0xff]
        %v7128 = vld [vmem:[%s2067 + $0xe8] sm:$0xff]
        %v7129 = vld [vmem:[%s2067 + $0xf0] sm:$0xff]
        %v7130 = vld [vmem:[%s2067 + $0xf8] sm:$0xff]
        %v7131 = vld [vmem:[%s2067 + $0x100] sm:$0xff]
        %v7132 = vld [vmem:[%s2067 + $0x108] sm:$0xff]
        %v7133 = vld [vmem:[%s2067 + $0x110] sm:$0xff]
        %v7134 = vld [vmem:[%s2067 + $0x118] sm:$0xff]
        %v7135 = vld [vmem:[%s2067 + $0x120] sm:$0xff]
        %v7136 = vld [vmem:[%s2067 + $0x128] sm:$0xff]
        %v7137 = vld [vmem:[%s2067 + $0x130] sm:$0xff]
        %v7138 = vld [vmem:[%s2067 + $0x138] sm:$0xff]
        %v7139 = vld [vmem:[%s2067 + $0x140] sm:$0xff]
        %v7140 = vld [vmem:[%s2067 + $0x148] sm:$0xff]
        %v7141 = vld [vmem:[%s2067 + $0x150] sm:$0xff]
        %v7142 = vld [vmem:[%s2067 + $0x158] sm:$0xff]
        %v7143 = vld [vmem:[%s2067 + $0x160] sm:$0xff]
        %v7144 = vld [vmem:[%s2067 + $0x168] sm:$0xff]
        %v7145 = vld [vmem:[%s2067 + $0x170] sm:$0xff]
        %v7146 = vld [vmem:[%s2067 + $0x178] sm:$0xff]
        %v7147 = vld [vmem:[%s2076] sm:$0xff]
        %v7148 = vld [vmem:[%s2076 + $0x8] sm:$0xff]
        %v7149 = vld [vmem:[%s2076 + $0x10] sm:$0xff]
        %v7150 = vld [vmem:[%s2076 + $0x18] sm:$0xff]
        %v7151 = vld [vmem:[%s2076 + $0x20] sm:$0xff]
        %v7152 = vld [vmem:[%s2076 + $0x28] sm:$0xff]
        %v7153 = vld [vmem:[%s2076 + $0x30] sm:$0xff]
        %v7154 = vld [vmem:[%s2076 + $0x38] sm:$0xff]
        %v7155 = vld [vmem:[%s2076 + $0x40] sm:$0xff]
        %v7156 = vld [vmem:[%s2076 + $0x48] sm:$0xff]
        %v7157 = vld [vmem:[%s2076 + $0x50] sm:$0xff]
        %v7158 = vld [vmem:[%s2076 + $0x58] sm:$0xff]
        %v7159 = vld [vmem:[%s2076 + $0x60] sm:$0xff]
        %v7160 = vld [vmem:[%s2076 + $0x68] sm:$0xff]
        %v7161 = vld [vmem:[%s2076 + $0x70] sm:$0xff]
        %v7162 = vld [vmem:[%s2076 + $0x78] sm:$0xff]
        %v7163 = vld [vmem:[%s2076 + $0x80] sm:$0xff]
        %v7164 = vld [vmem:[%s2076 + $0x88] sm:$0xff]
        %v7165 = vld [vmem:[%s2076 + $0x90] sm:$0xff]
        %v7166 = vld [vmem:[%s2076 + $0x98] sm:$0xff]
        %v7167 = vld [vmem:[%s2076 + $0xa0] sm:$0xff]
        %v7168 = vld [vmem:[%s2076 + $0xa8] sm:$0xff]
        %v7169 = vld [vmem:[%s2076 + $0xb0] sm:$0xff]
        %v7170 = vld [vmem:[%s2076 + $0xb8] sm:$0xff]
        %v7171 = vld [vmem:[%s2076 + $0xc0] sm:$0xff]
        %v7172 = vld [vmem:[%s2076 + $0xc8] sm:$0xff]
        %v7173 = vld [vmem:[%s2076 + $0xd0] sm:$0xff]
        %v7174 = vld [vmem:[%s2076 + $0xd8] sm:$0xff]
        %v7175 = vld [vmem:[%s2076 + $0xe0] sm:$0xff]
        %v7176 = vld [vmem:[%s2076 + $0xe8] sm:$0xff]
        %v7177 = vld [vmem:[%s2076 + $0xf0] sm:$0xff]
        %v7178 = vld [vmem:[%s2076 + $0xf8] sm:$0xff]
        %v7179 = vld [vmem:[%s2076 + $0x100] sm:$0xff]
        %v7180 = vld [vmem:[%s2076 + $0x108] sm:$0xff]
        %v7181 = vld [vmem:[%s2076 + $0x110] sm:$0xff]
        %v7182 = vld [vmem:[%s2076 + $0x118] sm:$0xff]
        %v7183 = vld [vmem:[%s2076 + $0x120] sm:$0xff]
        %v7184 = vld [vmem:[%s2076 + $0x128] sm:$0xff]
        %v7185 = vld [vmem:[%s2076 + $0x130] sm:$0xff]
        %v7186 = vld [vmem:[%s2076 + $0x138] sm:$0xff]
        %v7187 = vld [vmem:[%s2076 + $0x140] sm:$0xff]
        %v7188 = vld [vmem:[%s2076 + $0x148] sm:$0xff]
        %v7189 = vld [vmem:[%s2076 + $0x150] sm:$0xff]
        %v7190 = vld [vmem:[%s2076 + $0x158] sm:$0xff]
        %v7191 = vld [vmem:[%s2076 + $0x160] sm:$0xff]
        %v7192 = vld [vmem:[%s2076 + $0x168] sm:$0xff]
        %v7193 = vld [vmem:[%s2076 + $0x170] sm:$0xff]
        %v7194 = vld [vmem:[%s2076 + $0x178] sm:$0xff]
        %v7195 = vld [vmem:[%s2085] sm:$0x7]
        %v7196 = vld [vmem:[%s2094] sm:$0x7]
        %v7198 = vlaneseq
        %v7199 = vshrl.u32 %v7198, 7
        %v7200 = vsub.s32 0, %v7199
        %v7201 = vrot.slane %v7195, %v7200
        %v7202 = vlaneseq
        %v7203 = vshrl.u32 %v7202, 7
        %v7204 = vsub.s32 1, %v7203
        %v7205 = vrot.slane %v7195, %v7204
        %v7206 = vlaneseq
        %v7207 = vshrl.u32 %v7206, 7
        %v7208 = vsub.s32 2, %v7207
        %v7209 = vrot.slane %v7195, %v7208
        %7213 = vmatprep.subr.mxu0 %v7100
        %7214 = vmatpush1.msra.mxu0 %v7099
        %7215 = vmatprep.subr.mxu0 %v7103
        %7216 = vmatpush1.msra.mxu0 %v7102
        %7217 = vmatprep.subr.mxu0 %v7106
        %7218 = vmatpush1.msra.mxu0 %v7105
        %7219 = vmatprep.subr.mxu0 %v7109
        %7220 = vmatpush1.msra.mxu0 %v7108
        %7221 = vmatprep.subr.mxu0 %v7112
        %7222 = vmatpush1.msra.mxu0 %v7111
        %7223 = vmatprep.subr.mxu0 %v7115
        %7224 = vmatpush1.msra.mxu0 %v7114
        %7225 = vmatprep.subr.mxu0 %v7118
        %7226 = vmatpush1.msra.mxu0 %v7117
        %7227 = vmatprep.subr.mxu0 %v7121
        %7228 = vmatpush1.msra.mxu0 %v7120
        %7229 = vmatprep.subr.mxu0 %v7124
        %7230 = vmatpush1.msra.mxu0 %v7123
        %7231 = vmatprep.subr.mxu0 %v7127
        %7232 = vmatpush1.msra.mxu0 %v7126
        %7233 = vmatprep.subr.mxu0 %v7130
        %7234 = vmatpush1.msra.mxu0 %v7129
        %7235 = vmatprep.subr.mxu0 %v7133
        %7236 = vmatpush1.msra.mxu0 %v7132
        %7237 = vmatprep.subr.mxu0 %v7136
        %7238 = vmatpush1.msra.mxu0 %v7135
        %7239 = vmatprep.subr.mxu0 %v7139
        %7240 = vmatpush1.msra.mxu0 %v7138
        %7241 = vmatprep.subr.mxu0 %v7142
        %7242 = vmatpush1.msra.mxu0 %v7141
        %7243 = vmatprep.subr.mxu0 %v7145
        %7244 = vmatpush1.msra.mxu0 %v7144
        %7245 = vmatprep.subr.mxu0 0.0
        %7246 = vmatpush1.msra.mxu0 0.0
        %7247 = vmatprep.subr.mxu0 0.0
        %7248 = vmatpush1.msra.mxu0 0.0
        %7249 = vmatprep.subr.mxu0 0.0
        %7250 = vmatpush1.msra.mxu0 0.0
        %7251 = vmatprep.subr.mxu0 0.0
        %7252 = vmatpush1.msra.mxu0 0.0
        %7253 = vmatprep.subr.mxu0 0.0
        %7254 = vmatpush1.msra.mxu0 0.0
        %7255 = vmatprep.subr.mxu0 0.0
        %7256 = vmatpush1.msra.mxu0 0.0
        %7257 = vmatprep.subr.mxu0 0.0
        %7258 = vmatpush1.msra.mxu0 0.0
        %7259 = vmatprep.subr.mxu0 0.0
        %7260 = vmatpush1.msra.mxu0 0.0
        %7261 = vmatprep.subr.mxu0 0.0
        %7262 = vmatpush1.msra.mxu0 0.0
        %7263 = vmatprep.subr.mxu0 0.0
        %7264 = vmatpush1.msra.mxu0 0.0
        %7265 = vmatprep.subr.mxu0 0.0
        %7266 = vmatpush1.msra.mxu0 0.0
        %7267 = vmatprep.subr.mxu0 0.0
        %7268 = vmatpush1.msra.mxu0 0.0
        %7269 = vmatprep.subr.mxu0 0.0
        %7270 = vmatpush1.msra.mxu0 0.0
        %7271 = vmatprep.subr.mxu0 0.0
        %7272 = vmatpush1.msra.mxu0 0.0
        %7273 = vmatprep.subr.mxu0 0.0
        %7274 = vmatpush1.msra.mxu0 0.0
        %7275 = vmatprep.subr.mxu0 0.0
        %7276 = vmatpush1.msra.mxu0 0.0
        %7277 = vmatprep.mubr.f32.mxu0 0.0
        %7278 = vmatmul.mubr.f32.gmra.mrb[0].mxu0 %v7098
        %v7279 = vpop.f32.mrb[0].mxu0
        %v7280 = vadd.f32 %v7201, %v7279
        %v7281 = vpop.f32.mrb[0].mxu0
        %v7282 = vadd.f32 %v7205, %v7281
        %7283 = vdwg.mxu0
        %7284 = vmatprep.subr.mxu0 0.0
        %7285 = vmatpush1.msra.mxu0 %v7101
        %7286 = vmatprep.subr.mxu0 0.0
        %7287 = vmatpush1.msra.mxu0 %v7104
        %7288 = vmatprep.subr.mxu0 0.0
        %7289 = vmatpush1.msra.mxu0 %v7107
        %7290 = vmatprep.subr.mxu0 0.0
        %7291 = vmatpush1.msra.mxu0 %v7110
        %7292 = vmatprep.subr.mxu0 0.0
        %7293 = vmatpush1.msra.mxu0 %v7113
        %7294 = vmatprep.subr.mxu0 0.0
        %7295 = vmatpush1.msra.mxu0 %v7116
        %7296 = vmatprep.subr.mxu0 0.0
        %7297 = vmatpush1.msra.mxu0 %v7119
        %7298 = vmatprep.subr.mxu0 0.0
        %7299 = vmatpush1.msra.mxu0 %v7122
        %7300 = vmatprep.subr.mxu0 0.0
        %7301 = vmatpush1.msra.mxu0 %v7125
        %7302 = vmatprep.subr.mxu0 0.0
        %7303 = vmatpush1.msra.mxu0 %v7128
        %7304 = vmatprep.subr.mxu0 0.0
        %7305 = vmatpush1.msra.mxu0 %v7131
        %7306 = vmatprep.subr.mxu0 0.0
        %7307 = vmatpush1.msra.mxu0 %v7134
        %7308 = vmatprep.subr.mxu0 0.0
        %7309 = vmatpush1.msra.mxu0 %v7137
        %7310 = vmatprep.subr.mxu0 0.0
        %7311 = vmatpush1.msra.mxu0 %v7140
        %7312 = vmatprep.subr.mxu0 0.0
        %7313 = vmatpush1.msra.mxu0 %v7143
        %7314 = vmatprep.subr.mxu0 0.0
        %7315 = vmatpush1.msra.mxu0 %v7146
        %7316 = vmatprep.subr.mxu0 0.0
        %7317 = vmatpush1.msra.mxu0 0.0
        %7318 = vmatprep.subr.mxu0 0.0
        %7319 = vmatpush1.msra.mxu0 0.0
        %7320 = vmatprep.subr.mxu0 0.0
        %7321 = vmatpush1.msra.mxu0 0.0
        %7322 = vmatprep.subr.mxu0 0.0
        %7323 = vmatpush1.msra.mxu0 0.0
        %7324 = vmatprep.subr.mxu0 0.0
        %7325 = vmatpush1.msra.mxu0 0.0
        %7326 = vmatprep.subr.mxu0 0.0
        %7327 = vmatpush1.msra.mxu0 0.0
        %7328 = vmatprep.subr.mxu0 0.0
        %7329 = vmatpush1.msra.mxu0 0.0
        %7330 = vmatprep.subr.mxu0 0.0
        %7331 = vmatpush1.msra.mxu0 0.0
        %7332 = vmatprep.subr.mxu0 0.0
        %7333 = vmatpush1.msra.mxu0 0.0
        %7334 = vmatprep.subr.mxu0 0.0
        %7335 = vmatpush1.msra.mxu0 0.0
        %7336 = vmatprep.subr.mxu0 0.0
        %7337 = vmatpush1.msra.mxu0 0.0
        %7338 = vmatprep.subr.mxu0 0.0
        %7339 = vmatpush1.msra.mxu0 0.0
        %7340 = vmatprep.subr.mxu0 0.0
        %7341 = vmatpush1.msra.mxu0 0.0
        %7342 = vmatprep.subr.mxu0 0.0
        %7343 = vmatpush1.msra.mxu0 0.0
        %7344 = vmatprep.subr.mxu0 0.0
        %7345 = vmatpush1.msra.mxu0 0.0
        %7346 = vmatprep.subr.mxu0 0.0
        %7347 = vmatpush1.msra.mxu0 0.0
        %7348 = vmatprep.mubr.f32.mxu0 0.0
        %7349 = vmatmul.mubr.f32.gmra.mrb[0].mxu0 %v7098
        %v7350 = vpop.f32.mrb[0].mxu0
        %v7351 = vadd.f32 %v7209, %v7350
        %v7352 = vpop.f32.mrb[0].mxu0
        %7353 = vdwg.mxu0
        %v7355 = vlaneseq
        %v7356 = vshrl.u32 %v7355, 7
        %v7357 = vsub.s32 0, %v7356
        %v7358 = vrot.slane %v7196, %v7357
        %v7359 = vlaneseq
        %v7360 = vshrl.u32 %v7359, 7
        %v7361 = vsub.s32 1, %v7360
        %v7362 = vrot.slane %v7196, %v7361
        %v7363 = vlaneseq
        %v7364 = vshrl.u32 %v7363, 7
        %v7365 = vsub.s32 2, %v7364
        %v7366 = vrot.slane %v7196, %v7365
        %7370 = vmatprep.subr.mxu0 %v7148
        %7371 = vmatpush1.msra.mxu0 %v7147
        %7372 = vmatprep.subr.mxu0 %v7151
        %7373 = vmatpush1.msra.mxu0 %v7150
        %7374 = vmatprep.subr.mxu0 %v7154
        %7375 = vmatpush1.msra.mxu0 %v7153
        %7376 = vmatprep.subr.mxu0 %v7157
        %7377 = vmatpush1.msra.mxu0 %v7156
        %7378 = vmatprep.subr.mxu0 %v7160
        %7379 = vmatpush1.msra.mxu0 %v7159
        %7380 = vmatprep.subr.mxu0 %v7163
        %7381 = vmatpush1.msra.mxu0 %v7162
        %7382 = vmatprep.subr.mxu0 %v7166
        %7383 = vmatpush1.msra.mxu0 %v7165
        %7384 = vmatprep.subr.mxu0 %v7169
        %7385 = vmatpush1.msra.mxu0 %v7168
        %7386 = vmatprep.subr.mxu0 %v7172
        %7387 = vmatpush1.msra.mxu0 %v7171
        %7388 = vmatprep.subr.mxu0 %v7175
        %7389 = vmatpush1.msra.mxu0 %v7174
        %7390 = vmatprep.subr.mxu0 %v7178
        %7391 = vmatpush1.msra.mxu0 %v7177
        %7392 = vmatprep.subr.mxu0 %v7181
        %7393 = vmatpush1.msra.mxu0 %v7180
        %7394 = vmatprep.subr.mxu0 %v7184
        %7395 = vmatpush1.msra.mxu0 %v7183
        %7396 = vmatprep.subr.mxu0 %v7187
        %7397 = vmatpush1.msra.mxu0 %v7186
        %7398 = vmatprep.subr.mxu0 %v7190
        %7399 = vmatpush1.msra.mxu0 %v7189
        %7400 = vmatprep.subr.mxu0 %v7193
        %7401 = vmatpush1.msra.mxu0 %v7192
        %7402 = vmatprep.subr.mxu0 0.0
        %7403 = vmatpush1.msra.mxu0 0.0
        %7404 = vmatprep.subr.mxu0 0.0
        %7405 = vmatpush1.msra.mxu0 0.0
        %7406 = vmatprep.subr.mxu0 0.0
        %7407 = vmatpush1.msra.mxu0 0.0
        %7408 = vmatprep.subr.mxu0 0.0
        %7409 = vmatpush1.msra.mxu0 0.0
        %7410 = vmatprep.subr.mxu0 0.0
        %7411 = vmatpush1.msra.mxu0 0.0
        %7412 = vmatprep.subr.mxu0 0.0
        %7413 = vmatpush1.msra.mxu0 0.0
        %7414 = vmatprep.subr.mxu0 0.0
        %7415 = vmatpush1.msra.mxu0 0.0
        %7416 = vmatprep.subr.mxu0 0.0
        %7417 = vmatpush1.msra.mxu0 0.0
        %7418 = vmatprep.subr.mxu0 0.0
        %7419 = vmatpush1.msra.mxu0 0.0
        %7420 = vmatprep.subr.mxu0 0.0
        %7421 = vmatpush1.msra.mxu0 0.0
        %7422 = vmatprep.subr.mxu0 0.0
        %7423 = vmatpush1.msra.mxu0 0.0
        %7424 = vmatprep.subr.mxu0 0.0
        %7425 = vmatpush1.msra.mxu0 0.0
        %7426 = vmatprep.subr.mxu0 0.0
        %7427 = vmatpush1.msra.mxu0 0.0
        %7428 = vmatprep.subr.mxu0 0.0
        %7429 = vmatpush1.msra.mxu0 0.0
        %7430 = vmatprep.subr.mxu0 0.0
        %7431 = vmatpush1.msra.mxu0 0.0
        %7432 = vmatprep.subr.mxu0 0.0
        %7433 = vmatpush1.msra.mxu0 0.0
        %7434 = vmatprep.mubr.f32.mxu0 0.0
        %7435 = vmatmul.mubr.f32.gmra.mrb[0].mxu0 %v6725
        %v7436 = vpop.f32.mrb[0].mxu0
        %v7437 = vadd.f32 %v7358, %v7436
        %v7438 = vpop.f32.mrb[0].mxu0
        %v7439 = vadd.f32 %v7362, %v7438
        %7440 = vdwg.mxu0
        %7441 = vmatprep.subr.mxu0 0.0
        %7442 = vmatpush1.msra.mxu0 %v7149
        %7443 = vmatprep.subr.mxu0 0.0
        %7444 = vmatpush1.msra.mxu0 %v7152
        %7445 = vmatprep.subr.mxu0 0.0
        %7446 = vmatpush1.msra.mxu0 %v7155
        %7447 = vmatprep.subr.mxu0 0.0
        %7448 = vmatpush1.msra.mxu0 %v7158
        %7449 = vmatprep.subr.mxu0 0.0
        %7450 = vmatpush1.msra.mxu0 %v7161
        %7451 = vmatprep.subr.mxu0 0.0
        %7452 = vmatpush1.msra.mxu0 %v7164
        %7453 = vmatprep.subr.mxu0 0.0
        %7454 = vmatpush1.msra.mxu0 %v7167
        %7455 = vmatprep.subr.mxu0 0.0
        %7456 = vmatpush1.msra.mxu0 %v7170
        %7457 = vmatprep.subr.mxu0 0.0
        %7458 = vmatpush1.msra.mxu0 %v7173
        %7459 = vmatprep.subr.mxu0 0.0
        %7460 = vmatpush1.msra.mxu0 %v7176
        %7461 = vmatprep.subr.mxu0 0.0
        %7462 = vmatpush1.msra.mxu0 %v7179
        %7463 = vmatprep.subr.mxu0 0.0
        %7464 = vmatpush1.msra.mxu0 %v7182
        %7465 = vmatprep.subr.mxu0 0.0
        %7466 = vmatpush1.msra.mxu0 %v7185
        %7467 = vmatprep.subr.mxu0 0.0
        %7468 = vmatpush1.msra.mxu0 %v7188
        %7469 = vmatprep.subr.mxu0 0.0
        %7470 = vmatpush1.msra.mxu0 %v7191
        %7471 = vmatprep.subr.mxu0 0.0
        %7472 = vmatpush1.msra.mxu0 %v7194
        %7473 = vmatprep.subr.mxu0 0.0
        %7474 = vmatpush1.msra.mxu0 0.0
        %7475 = vmatprep.subr.mxu0 0.0
        %7476 = vmatpush1.msra.mxu0 0.0
        %7477 = vmatprep.subr.mxu0 0.0
        %7478 = vmatpush1.msra.mxu0 0.0
        %7479 = vmatprep.subr.mxu0 0.0
        %7480 = vmatpush1.msra.mxu0 0.0
        %7481 = vmatprep.subr.mxu0 0.0
        %7482 = vmatpush1.msra.mxu0 0.0
        %7483 = vmatprep.subr.mxu0 0.0
        %7484 = vmatpush1.msra.mxu0 0.0
        %7485 = vmatprep.subr.mxu0 0.0
        %7486 = vmatpush1.msra.mxu0 0.0
        %7487 = vmatprep.subr.mxu0 0.0
        %7488 = vmatpush1.msra.mxu0 0.0
        %7489 = vmatprep.subr.mxu0 0.0
        %7490 = vmatpush1.msra.mxu0 0.0
        %7491 = vmatprep.subr.mxu0 0.0
        %7492 = vmatpush1.msra.mxu0 0.0
        %7493 = vmatprep.subr.mxu0 0.0
        %7494 = vmatpush1.msra.mxu0 0.0
        %7495 = vmatprep.subr.mxu0 0.0
        %7496 = vmatpush1.msra.mxu0 0.0
        %7497 = vmatprep.subr.mxu0 0.0
        %7498 = vmatpush1.msra.mxu0 0.0
        %7499 = vmatprep.subr.mxu0 0.0
        %7500 = vmatpush1.msra.mxu0 0.0
        %7501 = vmatprep.subr.mxu0 0.0
        %7502 = vmatpush1.msra.mxu0 0.0
        %7503 = vmatprep.subr.mxu0 0.0
        %7504 = vmatpush1.msra.mxu0 0.0
        %7505 = vmatprep.mubr.f32.mxu0 0.0
        %7506 = vmatmul.mubr.f32.gmra.mrb[0].mxu0 %v6725
        %v7507 = vpop.f32.mrb[0].mxu0
        %v7508 = vadd.f32 %v7366, %v7507
        %v7509 = vpop.f32.mrb[0].mxu0
        %7510 = vdwg.mxu0
        %v7511 = vadd.f32 %v7280, %v7437
        %v7512 = vsub.f32 0.0, %v7511
        %v7513 = vmul.f32 %v7512, 1.442695
        %v7514 = vpow.pop %v7513
        %v7515 = vadd.f32 %v7514, 1.0
        %v7516 = vrcp.pop %v7515
        %v7517 = vadd.f32 %v7282, %v7439
        %v7518 = vsub.f32 0.0, %v7517
        %v7519 = vmul.f32 %v7518, 1.442695
        %v7520 = vpow.pop %v7519
        %v7521 = vadd.f32 %v7520, 1.0
        %v7522 = vrcp.pop %v7521
        %v7523 = vmul.f32 %v7516, %v7508
        %v7524 = vadd.f32 %v7351, %v7523
        %v7525 = vtanh.pop %v7524
        %v7526 = vsub.f32 1.0, %v7522
        %v7527 = vmul.f32 %v7526, %v7525
        %v7528 = vmul.f32 %v7522, %v6725
        %v7529 = vadd.f32 %v7527, %v7528
        %v7530 = vmax.f32 %v7529, 0.0
        %v7531 = vmax.f32 %v7530, 0.0
        %s7532 = scalar_lea.vmem %s2022, 128 [#allocation33]
        %v7533 = vld [vmem:[%s7532] sm:$0xff]
        %v7534 = vld [vmem:[%s7532 + $0x8] sm:$0xff]
        %v7535 = vld [vmem:[%s7532 + $0x10] sm:$0xff]
        %v7536 = vld [vmem:[%s7532 + $0x18] sm:$0xff]
        %v7537 = vld [vmem:[%s7532 + $0x20] sm:$0xff]
        %v7538 = vld [vmem:[%s7532 + $0x28] sm:$0xff]
        %v7539 = vld [vmem:[%s7532 + $0x30] sm:$0xff]
        %v7540 = vld [vmem:[%s7532 + $0x38] sm:$0xff]
        %v7541 = vld [vmem:[%s7532 + $0x40] sm:$0xff]
        %v7542 = vld [vmem:[%s7532 + $0x48] sm:$0xff]
        %v7543 = vld [vmem:[%s7532 + $0x50] sm:$0xff]
        %v7544 = vld [vmem:[%s7532 + $0x58] sm:$0xff]
        %v7545 = vld [vmem:[%s7532 + $0x60] sm:$0xff]
        %v7546 = vld [vmem:[%s7532 + $0x68] sm:$0xff]
        %v7547 = vld [vmem:[%s7532 + $0x70] sm:$0xff]
        %v7548 = vld [vmem:[%s7532 + $0x78] sm:$0xff]
        %s7549 = scalar_lea.vmem %s2040, 1 [#allocation35]
        %v7550 = vld [vmem:[%s7549] sm:$0x1]
        %v7552 = vlaneseq
        %v7553 = vshrl.u32 %v7552, 7
        %v7554 = vsub.s32 0, %v7553
        %v7555 = vrot.slane %v7550, %v7554
        %7557 = vmatprep.subr.mxu0 0.0
        %7558 = vmatpush1.msra.mxu0 %v7533
        %7559 = vmatprep.subr.mxu0 0.0
        %7560 = vmatpush1.msra.mxu0 %v7534
        %7561 = vmatprep.subr.mxu0 0.0
        %7562 = vmatpush1.msra.mxu0 %v7535
        %7563 = vmatprep.subr.mxu0 0.0
        %7564 = vmatpush1.msra.mxu0 %v7536
        %7565 = vmatprep.subr.mxu0 0.0
        %7566 = vmatpush1.msra.mxu0 %v7537
        %7567 = vmatprep.subr.mxu0 0.0
        %7568 = vmatpush1.msra.mxu0 %v7538
        %7569 = vmatprep.subr.mxu0 0.0
        %7570 = vmatpush1.msra.mxu0 %v7539
        %7571 = vmatprep.subr.mxu0 0.0
        %7572 = vmatpush1.msra.mxu0 %v7540
        %7573 = vmatprep.subr.mxu0 0.0
        %7574 = vmatpush1.msra.mxu0 %v7541
        %7575 = vmatprep.subr.mxu0 0.0
        %7576 = vmatpush1.msra.mxu0 %v7542
        %7577 = vmatprep.subr.mxu0 0.0
        %7578 = vmatpush1.msra.mxu0 %v7543
        %7579 = vmatprep.subr.mxu0 0.0
        %7580 = vmatpush1.msra.mxu0 %v7544
        %7581 = vmatprep.subr.mxu0 0.0
        %7582 = vmatpush1.msra.mxu0 %v7545
        %7583 = vmatprep.subr.mxu0 0.0
        %7584 = vmatpush1.msra.mxu0 %v7546
        %7585 = vmatprep.subr.mxu0 0.0
        %7586 = vmatpush1.msra.mxu0 %v7547
        %7587 = vmatprep.subr.mxu0 0.0
        %7588 = vmatpush1.msra.mxu0 %v7548
        %7589 = vmatprep.subr.mxu0 0.0
        %7590 = vmatpush1.msra.mxu0 0.0
        %7591 = vmatprep.subr.mxu0 0.0
        %7592 = vmatpush1.msra.mxu0 0.0
        %7593 = vmatprep.subr.mxu0 0.0
        %7594 = vmatpush1.msra.mxu0 0.0
        %7595 = vmatprep.subr.mxu0 0.0
        %7596 = vmatpush1.msra.mxu0 0.0
        %7597 = vmatprep.subr.mxu0 0.0
        %7598 = vmatpush1.msra.mxu0 0.0
        %7599 = vmatprep.subr.mxu0 0.0
        %7600 = vmatpush1.msra.mxu0 0.0
        %7601 = vmatprep.subr.mxu0 0.0
        %7602 = vmatpush1.msra.mxu0 0.0
        %7603 = vmatprep.subr.mxu0 0.0
        %7604 = vmatpush1.msra.mxu0 0.0
        %7605 = vmatprep.subr.mxu0 0.0
        %7606 = vmatpush1.msra.mxu0 0.0
        %7607 = vmatprep.subr.mxu0 0.0
        %7608 = vmatpush1.msra.mxu0 0.0
        %7609 = vmatprep.subr.mxu0 0.0
        %7610 = vmatpush1.msra.mxu0 0.0
        %7611 = vmatprep.subr.mxu0 0.0
        %7612 = vmatpush1.msra.mxu0 0.0
        %7613 = vmatprep.subr.mxu0 0.0
        %7614 = vmatpush1.msra.mxu0 0.0
        %7615 = vmatprep.subr.mxu0 0.0
        %7616 = vmatpush1.msra.mxu0 0.0
        %7617 = vmatprep.subr.mxu0 0.0
        %7618 = vmatpush1.msra.mxu0 0.0
        %7619 = vmatprep.subr.mxu0 0.0
        %7620 = vmatpush1.msra.mxu0 0.0
        %7621 = vmatprep.mubr.f32.mxu0 0.0
        %7622 = vmatmul.mubr.f32.gmra.mrb[0].mxu0 %v7531
        %v7623 = vpop.f32.mrb[0].mxu0
        %v7624 = vadd.f32 %v7555, %v7623
        %v7625 = vpop.f32.mrb[0].mxu0
        %7626 = vdwg.mxu0
        %s7627 = scalar_lea.vmem %s2031, 1 [#allocation34]
        %v7628 = vld [vmem:[%s7627] sm:$0x1]
        %7629 = vmatprep.subr.mxu0 0.0
        %7630 = vmatpush1.xpose.msra.mxu0 %v6652
        %7631 = vmatprep.subr.mxu0 0.0
        %7632 = vmatpush1.xpose.msra.mxu0 %v6653
        %7633 = vmatprep.subr.mxu0 0.0
        %7634 = vmatpush1.xpose.msra.mxu0 0.0
        %7635 = vmatprep.subr.mxu0 0.0
        %7636 = vmatpush1.xpose.msra.mxu0 0.0
        %7637 = vmatprep.subr.mxu0 0.0
        %7638 = vmatpush1.xpose.msra.mxu0 0.0
        %7639 = vmatprep.subr.mxu0 0.0
        %7640 = vmatpush1.xpose.msra.mxu0 0.0
        %7641 = vmatprep.subr.mxu0 0.0
        %7642 = vmatpush1.xpose.msra.mxu0 0.0
        %7643 = vmatprep.subr.mxu0 0.0
        %7644 = vmatpush1.xpose.msra.mxu0 0.0
        %7645 = vmatprep.subr.mxu0 0.0
        %7646 = vmatpush1.xpose.msra.mxu0 0.0
        %7647 = vmatprep.subr.mxu0 0.0
        %7648 = vmatpush1.xpose.msra.mxu0 0.0
        %7649 = vmatprep.subr.mxu0 0.0
        %7650 = vmatpush1.xpose.msra.mxu0 0.0
        %7651 = vmatprep.subr.mxu0 0.0
        %7652 = vmatpush1.xpose.msra.mxu0 0.0
        %7653 = vmatprep.subr.mxu0 0.0
        %7654 = vmatpush1.xpose.msra.mxu0 0.0
        %7655 = vmatprep.subr.mxu0 0.0
        %7656 = vmatpush1.xpose.msra.mxu0 0.0
        %7657 = vmatprep.subr.mxu0 0.0
        %7658 = vmatpush1.xpose.msra.mxu0 0.0
        %7659 = vmatprep.subr.mxu0 0.0
        %7660 = vmatpush1.xpose.msra.mxu0 0.0
        %7661 = vmatprep.subr.mxu0 0.0
        %7662 = vmatpush1.xpose.msra.mxu0 0.0
        %7663 = vmatprep.subr.mxu0 0.0
        %7664 = vmatpush1.xpose.msra.mxu0 0.0
        %7665 = vmatprep.subr.mxu0 0.0
        %7666 = vmatpush1.xpose.msra.mxu0 0.0
        %7667 = vmatprep.subr.mxu0 0.0
        %7668 = vmatpush1.xpose.msra.mxu0 0.0
        %7669 = vmatprep.subr.mxu0 0.0
        %7670 = vmatpush1.xpose.msra.mxu0 0.0
        %7671 = vmatprep.subr.mxu0 0.0
        %7672 = vmatpush1.xpose.msra.mxu0 0.0
        %7673 = vmatprep.subr.mxu0 0.0
        %7674 = vmatpush1.xpose.msra.mxu0 0.0
        %7675 = vmatprep.subr.mxu0 0.0
        %7676 = vmatpush1.xpose.msra.mxu0 0.0
        %7677 = vmatprep.subr.mxu0 0.0
        %7678 = vmatpush1.xpose.msra.mxu0 0.0
        %7679 = vmatprep.subr.mxu0 0.0
        %7680 = vmatpush1.xpose.msra.mxu0 0.0
        %7681 = vmatprep.subr.mxu0 0.0
        %7682 = vmatpush1.xpose.msra.mxu0 0.0
        %7683 = vmatprep.subr.mxu0 0.0
        %7684 = vmatpush1.xpose.msra.mxu0 0.0
        %7685 = vmatprep.subr.mxu0 0.0
        %7686 = vmatpush1.xpose.msra.mxu0 0.0
        %7687 = vmatprep.subr.mxu0 0.0
        %7688 = vmatpush1.xpose.msra.mxu0 0.0
        %7689 = vmatprep.subr.mxu0 0.0
        %7690 = vmatpush1.xpose.msra.mxu0 0.0
        %7691 = vmatprep.subr.mxu0 0.0
        %7692 = vmatpush1.xpose.msra.mxu0 0.0
        %7693 = vmatprep.mubr.f32.mxu0 0.0
        %7694 = vmatmul.mubr.f32.gmra.mrb[0].mxu0 %v7628
        %v7695 = vpop.f32.mrb[0].mxu0
        %v7696 = vadd.f32 0.0, %v7695
        %v7697 = vpop.f32.mrb[0].mxu0
        %7698 = vdwg.mxu0
        %7700 = vset.pattern.permute.xlu0 0
        %7701 = vperm.xlu0 %7700, %v7624
        %v7702 = vpop.permute.xlu0 %7701
        %v7704 = vlaneseq
        %v7705 = vshrl.u32 %v7704, 7
        %v7706 = vsub.s32 0, %v7705
        %v7707 = vrot.slane %v7696, %v7706
        %v7708 = vadd.f32 %v7702, %v7707
        %vm7709 = vcmp.ge.f32.partialorder %v7708, 0.0
        %v7710 = vmul.f32 %v7708, 0.01
        %v7711 = vsel %vm7709, %v7708, %v7710
        %v7712 = vsel %vm6906, %v7711, -1e+30
        %v7713 = vsel %vm6908, %v7712, -inf
        %7714 = vmax.xlane.f32.xlu0 %v7713
        %v7715 = vpop.xlane.xlu0 %7714
        %v7716 = vsub.f32 %v7712, %v7715
        %v7717 = vmul.f32 %v7716, 1.442695
        %v7718 = vpow.pop %v7717
        %v7719 = vmul.f32 %v7718, %v6654
        %v7720 = vsel %vm6908, %v7719, 0.0
        %7721 = vadd.xlane.f32.xlu0 %v7720
        %v7722 = vpop.xlane.xlu0 %7721
        %v7723 = vmax.f32 %v7722, 1e-20
        %v7724 = vrcp.pop %v7723
        %v7725 = vmul.f32 %v7719, %v7724
        %s7726 = scalar_lea.vmem %s2049, 128 [#allocation36]
        %v7727 = vld [vmem:[%s7726] sm:$0xff]
        %v7728 = vld [vmem:[%s7726 + $0x8] sm:$0xff]
        %v7729 = vld [vmem:[%s7726 + $0x10] sm:$0xff]
        %v7730 = vld [vmem:[%s7726 + $0x18] sm:$0xff]
        %v7731 = vld [vmem:[%s7726 + $0x20] sm:$0xff]
        %v7732 = vld [vmem:[%s7726 + $0x28] sm:$0xff]
        %v7733 = vld [vmem:[%s7726 + $0x30] sm:$0xff]
        %v7734 = vld [vmem:[%s7726 + $0x38] sm:$0xff]
        %v7735 = vld [vmem:[%s7726 + $0x40] sm:$0xff]
        %v7736 = vld [vmem:[%s7726 + $0x48] sm:$0xff]
        %v7737 = vld [vmem:[%s7726 + $0x50] sm:$0xff]
        %v7738 = vld [vmem:[%s7726 + $0x58] sm:$0xff]
        %v7739 = vld [vmem:[%s7726 + $0x60] sm:$0xff]
        %v7740 = vld [vmem:[%s7726 + $0x68] sm:$0xff]
        %v7741 = vld [vmem:[%s7726 + $0x70] sm:$0xff]
        %v7742 = vld [vmem:[%s7726 + $0x78] sm:$0xff]
        %s7743 = scalar_lea.vmem %s2058, 1 [#allocation37]
        %v7744 = vld [vmem:[%s7743] sm:$0x1]
        %v7746 = vlaneseq
        %v7747 = vshrl.u32 %v7746, 7
        %v7748 = vsub.s32 0, %v7747
        %v7749 = vrot.slane %v7744, %v7748
        %7751 = vmatprep.subr.mxu0 0.0
        %7752 = vmatpush1.msra.mxu0 %v7727
        %7753 = vmatprep.subr.mxu0 0.0
        %7754 = vmatpush1.msra.mxu0 %v7728
        %7755 = vmatprep.subr.mxu0 0.0
        %7756 = vmatpush1.msra.mxu0 %v7729
        %7757 = vmatprep.subr.mxu0 0.0
        %7758 = vmatpush1.msra.mxu0 %v7730
        %7759 = vmatprep.subr.mxu0 0.0
        %7760 = vmatpush1.msra.mxu0 %v7731
        %7761 = vmatprep.subr.mxu0 0.0
        %7762 = vmatpush1.msra.mxu0 %v7732
        %7763 = vmatprep.subr.mxu0 0.0
        %7764 = vmatpush1.msra.mxu0 %v7733
        %7765 = vmatprep.subr.mxu0 0.0
        %7766 = vmatpush1.msra.mxu0 %v7734
        %7767 = vmatprep.subr.mxu0 0.0
        %7768 = vmatpush1.msra.mxu0 %v7735
        %7769 = vmatprep.subr.mxu0 0.0
        %7770 = vmatpush1.msra.mxu0 %v7736
        %7771 = vmatprep.subr.mxu0 0.0
        %7772 = vmatpush1.msra.mxu0 %v7737
        %7773 = vmatprep.subr.mxu0 0.0
        %7774 = vmatpush1.msra.mxu0 %v7738
        %7775 = vmatprep.subr.mxu0 0.0
        %7776 = vmatpush1.msra.mxu0 %v7739
        %7777 = vmatprep.subr.mxu0 0.0
        %7778 = vmatpush1.msra.mxu0 %v7740
        %7779 = vmatprep.subr.mxu0 0.0
        %7780 = vmatpush1.msra.mxu0 %v7741
        %7781 = vmatprep.subr.mxu0 0.0
        %7782 = vmatpush1.msra.mxu0 %v7742
        %7783 = vmatprep.subr.mxu0 0.0
        %7784 = vmatpush1.msra.mxu0 0.0
        %7785 = vmatprep.subr.mxu0 0.0
        %7786 = vmatpush1.msra.mxu0 0.0
        %7787 = vmatprep.subr.mxu0 0.0
        %7788 = vmatpush1.msra.mxu0 0.0
        %7789 = vmatprep.subr.mxu0 0.0
        %7790 = vmatpush1.msra.mxu0 0.0
        %7791 = vmatprep.subr.mxu0 0.0
        %7792 = vmatpush1.msra.mxu0 0.0
        %7793 = vmatprep.subr.mxu0 0.0
        %7794 = vmatpush1.msra.mxu0 0.0
        %7795 = vmatprep.subr.mxu0 0.0
        %7796 = vmatpush1.msra.mxu0 0.0
        %7797 = vmatprep.subr.mxu0 0.0
        %7798 = vmatpush1.msra.mxu0 0.0
        %7799 = vmatprep.subr.mxu0 0.0
        %7800 = vmatpush1.msra.mxu0 0.0
        %7801 = vmatprep.subr.mxu0 0.0
        %7802 = vmatpush1.msra.mxu0 0.0
        %7803 = vmatprep.subr.mxu0 0.0
        %7804 = vmatpush1.msra.mxu0 0.0
        %7805 = vmatprep.subr.mxu0 0.0
        %7806 = vmatpush1.msra.mxu0 0.0
        %7807 = vmatprep.subr.mxu0 0.0
        %7808 = vmatpush1.msra.mxu0 0.0
        %7809 = vmatprep.subr.mxu0 0.0
        %7810 = vmatpush1.msra.mxu0 0.0
        %7811 = vmatprep.subr.mxu0 0.0
        %7812 = vmatpush1.msra.mxu0 0.0
        %7813 = vmatprep.subr.mxu0 0.0
        %7814 = vmatpush1.msra.mxu0 0.0
        %7815 = vmatprep.mubr.f32.mxu0 0.0
        %7816 = vmatmul.mubr.f32.gmra.mrb[0].mxu0 %v6652
        %v7817 = vpop.f32.mrb[0].mxu0
        %v7818 = vadd.f32 %v7749, %v7817
        %v7819 = vpop.f32.mrb[0].mxu0
        %7820 = vmatprep.mubr.f32.mxu0 0.0
        %7821 = vmatmul.mubr.f32.gmra.mrb[0].mxu0 %v6653
        %v7822 = vpop.f32.mrb[0].mxu0
        %v7823 = vadd.f32 %v7749, %v7822
        %v7824 = vpop.f32.mrb[0].mxu0
        %7825 = vdwg.mxu0
        %v7827 = vsel %vm2747, %v7725, 0
        %7829 = vmatprep.subr.mxu0 0.0
        %7830 = vmatpush1.msra.mxu0 %v7818
        %7831 = vmatprep.subr.mxu0 0.0
        %7832 = vmatpush1.msra.mxu0 %v7823
        %7833 = vmatprep.subr.mxu0 0.0
        %7834 = vmatpush1.msra.mxu0 0.0
        %7835 = vmatprep.subr.mxu0 0.0
        %7836 = vmatpush1.msra.mxu0 0.0
        %7837 = vmatprep.subr.mxu0 0.0
        %7838 = vmatpush1.msra.mxu0 0.0
        %7839 = vmatprep.subr.mxu0 0.0
        %7840 = vmatpush1.msra.mxu0 0.0
        %7841 = vmatprep.subr.mxu0 0.0
        %7842 = vmatpush1.msra.mxu0 0.0
        %7843 = vmatprep.subr.mxu0 0.0
        %7844 = vmatpush1.msra.mxu0 0.0
        %7845 = vmatprep.subr.mxu0 0.0
        %7846 = vmatpush1.msra.mxu0 0.0
        %7847 = vmatprep.subr.mxu0 0.0
        %7848 = vmatpush1.msra.mxu0 0.0
        %7849 = vmatprep.subr.mxu0 0.0
        %7850 = vmatpush1.msra.mxu0 0.0
        %7851 = vmatprep.subr.mxu0 0.0
        %7852 = vmatpush1.msra.mxu0 0.0
        %7853 = vmatprep.subr.mxu0 0.0
        %7854 = vmatpush1.msra.mxu0 0.0
        %7855 = vmatprep.subr.mxu0 0.0
        %7856 = vmatpush1.msra.mxu0 0.0
        %7857 = vmatprep.subr.mxu0 0.0
        %7858 = vmatpush1.msra.mxu0 0.0
        %7859 = vmatprep.subr.mxu0 0.0
        %7860 = vmatpush1.msra.mxu0 0.0
        %7861 = vmatprep.subr.mxu0 0.0
        %7862 = vmatpush1.msra.mxu0 0.0
        %7863 = vmatprep.subr.mxu0 0.0
        %7864 = vmatpush1.msra.mxu0 0.0
        %7865 = vmatprep.subr.mxu0 0.0
        %7866 = vmatpush1.msra.mxu0 0.0
        %7867 = vmatprep.subr.mxu0 0.0
        %7868 = vmatpush1.msra.mxu0 0.0
        %7869 = vmatprep.subr.mxu0 0.0
        %7870 = vmatpush1.msra.mxu0 0.0
        %7871 = vmatprep.subr.mxu0 0.0
        %7872 = vmatpush1.msra.mxu0 0.0
        %7873 = vmatprep.subr.mxu0 0.0
        %7874 = vmatpush1.msra.mxu0 0.0
        %7875 = vmatprep.subr.mxu0 0.0
        %7876 = vmatpush1.msra.mxu0 0.0
        %7877 = vmatprep.subr.mxu0 0.0
        %7878 = vmatpush1.msra.mxu0 0.0
        %7879 = vmatprep.subr.mxu0 0.0
        %7880 = vmatpush1.msra.mxu0 0.0
        %7881 = vmatprep.subr.mxu0 0.0
        %7882 = vmatpush1.msra.mxu0 0.0
        %7883 = vmatprep.subr.mxu0 0.0
        %7884 = vmatpush1.msra.mxu0 0.0
        %7885 = vmatprep.subr.mxu0 0.0
        %7886 = vmatpush1.msra.mxu0 0.0
        %7887 = vmatprep.subr.mxu0 0.0
        %7888 = vmatpush1.msra.mxu0 0.0
        %7889 = vmatprep.subr.mxu0 0.0
        %7890 = vmatpush1.msra.mxu0 0.0
        %7891 = vmatprep.subr.mxu0 0.0
        %7892 = vmatpush1.msra.mxu0 0.0
        %7893 = vmatprep.mubr.f32.mxu0 0.0
        %7894 = vmatmul.mubr.f32.gmra.mrb[0].mxu0 %v7827
        %v7895 = vpop.f32.mrb[0].mxu0
        %v7896 = vadd.f32 0.0, %v7895
        %v7897 = vpop.f32.mrb[0].mxu0
        %7898 = vdwg.mxu0
        %vm7899 = vcmp.gt.f32.partialorder %v7896, 0.0
        %v7900 = vmin.f32 %v7896, 0.0
        %v7901 = vmul.f32 %v7900, 1.442695
        %v7902 = vpow.pop %v7901
        %v7903 = vsub.f32 %v7902, 1.0
        %v7904 = vsel %vm7899, %v7896, %v7903
        %s7905 = scalar_lea.vmem %s2067, 384 [#allocation38]
        %v7906 = vld [vmem:[%s7905] sm:$0xff]
        %v7907 = vld [vmem:[%s7905 + $0x8] sm:$0xff]
        %v7908 = vld [vmem:[%s7905 + $0x10] sm:$0xff]
        %v7909 = vld [vmem:[%s7905 + $0x18] sm:$0xff]
        %v7910 = vld [vmem:[%s7905 + $0x20] sm:$0xff]
        %v7911 = vld [vmem:[%s7905 + $0x28] sm:$0xff]
        %v7912 = vld [vmem:[%s7905 + $0x30] sm:$0xff]
        %v7913 = vld [vmem:[%s7905 + $0x38] sm:$0xff]
        %v7914 = vld [vmem:[%s7905 + $0x40] sm:$0xff]
        %v7915 = vld [vmem:[%s7905 + $0x48] sm:$0xff]
        %v7916 = vld [vmem:[%s7905 + $0x50] sm:$0xff]
        %v7917 = vld [vmem:[%s7905 + $0x58] sm:$0xff]
        %v7918 = vld [vmem:[%s7905 + $0x60] sm:$0xff]
        %v7919 = vld [vmem:[%s7905 + $0x68] sm:$0xff]
        %v7920 = vld [vmem:[%s7905 + $0x70] sm:$0xff]
        %v7921 = vld [vmem:[%s7905 + $0x78] sm:$0xff]
        %v7922 = vld [vmem:[%s7905 + $0x80] sm:$0xff]
        %v7923 = vld [vmem:[%s7905 + $0x88] sm:$0xff]
        %v7924 = vld [vmem:[%s7905 + $0x90] sm:$0xff]
        %v7925 = vld [vmem:[%s7905 + $0x98] sm:$0xff]
        %v7926 = vld [vmem:[%s7905 + $0xa0] sm:$0xff]
        %v7927 = vld [vmem:[%s7905 + $0xa8] sm:$0xff]
        %v7928 = vld [vmem:[%s7905 + $0xb0] sm:$0xff]
        %v7929 = vld [vmem:[%s7905 + $0xb8] sm:$0xff]
        %v7930 = vld [vmem:[%s7905 + $0xc0] sm:$0xff]
        %v7931 = vld [vmem:[%s7905 + $0xc8] sm:$0xff]
        %v7932 = vld [vmem:[%s7905 + $0xd0] sm:$0xff]
        %v7933 = vld [vmem:[%s7905 + $0xd8] sm:$0xff]
        %v7934 = vld [vmem:[%s7905 + $0xe0] sm:$0xff]
        %v7935 = vld [vmem:[%s7905 + $0xe8] sm:$0xff]
        %v7936 = vld [vmem:[%s7905 + $0xf0] sm:$0xff]
        %v7937 = vld [vmem:[%s7905 + $0xf8] sm:$0xff]
        %v7938 = vld [vmem:[%s7905 + $0x100] sm:$0xff]
        %v7939 = vld [vmem:[%s7905 + $0x108] sm:$0xff]
        %v7940 = vld [vmem:[%s7905 + $0x110] sm:$0xff]
        %v7941 = vld [vmem:[%s7905 + $0x118] sm:$0xff]
        %v7942 = vld [vmem:[%s7905 + $0x120] sm:$0xff]
        %v7943 = vld [vmem:[%s7905 + $0x128] sm:$0xff]
        %v7944 = vld [vmem:[%s7905 + $0x130] sm:$0xff]
        %v7945 = vld [vmem:[%s7905 + $0x138] sm:$0xff]
        %v7946 = vld [vmem:[%s7905 + $0x140] sm:$0xff]
        %v7947 = vld [vmem:[%s7905 + $0x148] sm:$0xff]
        %v7948 = vld [vmem:[%s7905 + $0x150] sm:$0xff]
        %v7949 = vld [vmem:[%s7905 + $0x158] sm:$0xff]
        %v7950 = vld [vmem:[%s7905 + $0x160] sm:$0xff]
        %v7951 = vld [vmem:[%s7905 + $0x168] sm:$0xff]
        %v7952 = vld [vmem:[%s7905 + $0x170] sm:$0xff]
        %v7953 = vld [vmem:[%s7905 + $0x178] sm:$0xff]
        %s7954 = scalar_lea.vmem %s2076, 384 [#allocation39]
        %v7955 = vld [vmem:[%s7954] sm:$0xff]
        %v7956 = vld [vmem:[%s7954 + $0x8] sm:$0xff]
        %v7957 = vld [vmem:[%s7954 + $0x10] sm:$0xff]
        %v7958 = vld [vmem:[%s7954 + $0x18] sm:$0xff]
        %v7959 = vld [vmem:[%s7954 + $0x20] sm:$0xff]
        %v7960 = vld [vmem:[%s7954 + $0x28] sm:$0xff]
        %v7961 = vld [vmem:[%s7954 + $0x30] sm:$0xff]
        %v7962 = vld [vmem:[%s7954 + $0x38] sm:$0xff]
        %v7963 = vld [vmem:[%s7954 + $0x40] sm:$0xff]
        %v7964 = vld [vmem:[%s7954 + $0x48] sm:$0xff]
        %v7965 = vld [vmem:[%s7954 + $0x50] sm:$0xff]
        %v7966 = vld [vmem:[%s7954 + $0x58] sm:$0xff]
        %v7967 = vld [vmem:[%s7954 + $0x60] sm:$0xff]
        %v7968 = vld [vmem:[%s7954 + $0x68] sm:$0xff]
        %v7969 = vld [vmem:[%s7954 + $0x70] sm:$0xff]
        %v7970 = vld [vmem:[%s7954 + $0x78] sm:$0xff]
        %v7971 = vld [vmem:[%s7954 + $0x80] sm:$0xff]
        %v7972 = vld [vmem:[%s7954 + $0x88] sm:$0xff]
        %v7973 = vld [vmem:[%s7954 + $0x90] sm:$0xff]
        %v7974 = vld [vmem:[%s7954 + $0x98] sm:$0xff]
        %v7975 = vld [vmem:[%s7954 + $0xa0] sm:$0xff]
        %v7976 = vld [vmem:[%s7954 + $0xa8] sm:$0xff]
        %v7977 = vld [vmem:[%s7954 + $0xb0] sm:$0xff]
        %v7978 = vld [vmem:[%s7954 + $0xb8] sm:$0xff]
        %v7979 = vld [vmem:[%s7954 + $0xc0] sm:$0xff]
        %v7980 = vld [vmem:[%s7954 + $0xc8] sm:$0xff]
        %v7981 = vld [vmem:[%s7954 + $0xd0] sm:$0xff]
        %v7982 = vld [vmem:[%s7954 + $0xd8] sm:$0xff]
        %v7983 = vld [vmem:[%s7954 + $0xe0] sm:$0xff]
        %v7984 = vld [vmem:[%s7954 + $0xe8] sm:$0xff]
        %v7985 = vld [vmem:[%s7954 + $0xf0] sm:$0xff]
        %v7986 = vld [vmem:[%s7954 + $0xf8] sm:$0xff]
        %v7987 = vld [vmem:[%s7954 + $0x100] sm:$0xff]
        %v7988 = vld [vmem:[%s7954 + $0x108] sm:$0xff]
        %v7989 = vld [vmem:[%s7954 + $0x110] sm:$0xff]
        %v7990 = vld [vmem:[%s7954 + $0x118] sm:$0xff]
        %v7991 = vld [vmem:[%s7954 + $0x120] sm:$0xff]
        %v7992 = vld [vmem:[%s7954 + $0x128] sm:$0xff]
        %v7993 = vld [vmem:[%s7954 + $0x130] sm:$0xff]
        %v7994 = vld [vmem:[%s7954 + $0x138] sm:$0xff]
        %v7995 = vld [vmem:[%s7954 + $0x140] sm:$0xff]
        %v7996 = vld [vmem:[%s7954 + $0x148] sm:$0xff]
        %v7997 = vld [vmem:[%s7954 + $0x150] sm:$0xff]
        %v7998 = vld [vmem:[%s7954 + $0x158] sm:$0xff]
        %v7999 = vld [vmem:[%s7954 + $0x160] sm:$0xff]
        %v8000 = vld [vmem:[%s7954 + $0x168] sm:$0xff]
        %v8001 = vld [vmem:[%s7954 + $0x170] sm:$0xff]
        %v8002 = vld [vmem:[%s7954 + $0x178] sm:$0xff]
        %s8003 = scalar_lea.vmem %s2085, 3 [#allocation40]
        %v8004 = vld [vmem:[%s8003] sm:$0x7]
        %s8005 = scalar_lea.vmem %s2094, 3 [#allocation41]
        %v8006 = vld [vmem:[%s8005] sm:$0x7]
        %v8008 = vlaneseq
        %v8009 = vshrl.u32 %v8008, 7
        %v8010 = vsub.s32 0, %v8009
        %v8011 = vrot.slane %v8004, %v8010
        %v8012 = vlaneseq
        %v8013 = vshrl.u32 %v8012, 7
        %v8014 = vsub.s32 1, %v8013
        %v8015 = vrot.slane %v8004, %v8014
        %v8016 = vlaneseq
        %v8017 = vshrl.u32 %v8016, 7
        %v8018 = vsub.s32 2, %v8017
        %v8019 = vrot.slane %v8004, %v8018
        %8023 = vmatprep.subr.mxu0 %v7907
        %8024 = vmatpush1.msra.mxu0 %v7906
        %8025 = vmatprep.subr.mxu0 %v7910
        %8026 = vmatpush1.msra.mxu0 %v7909
        %8027 = vmatprep.subr.mxu0 %v7913
        %8028 = vmatpush1.msra.mxu0 %v7912
        %8029 = vmatprep.subr.mxu0 %v7916
        %8030 = vmatpush1.msra.mxu0 %v7915
        %8031 = vmatprep.subr.mxu0 %v7919
        %8032 = vmatpush1.msra.mxu0 %v7918
        %8033 = vmatprep.subr.mxu0 %v7922
        %8034 = vmatpush1.msra.mxu0 %v7921
        %8035 = vmatprep.subr.mxu0 %v7925
        %8036 = vmatpush1.msra.mxu0 %v7924
        %8037 = vmatprep.subr.mxu0 %v7928
        %8038 = vmatpush1.msra.mxu0 %v7927
        %8039 = vmatprep.subr.mxu0 %v7931
        %8040 = vmatpush1.msra.mxu0 %v7930
        %8041 = vmatprep.subr.mxu0 %v7934
        %8042 = vmatpush1.msra.mxu0 %v7933
        %8043 = vmatprep.subr.mxu0 %v7937
        %8044 = vmatpush1.msra.mxu0 %v7936
        %8045 = vmatprep.subr.mxu0 %v7940
        %8046 = vmatpush1.msra.mxu0 %v7939
        %8047 = vmatprep.subr.mxu0 %v7943
        %8048 = vmatpush1.msra.mxu0 %v7942
        %8049 = vmatprep.subr.mxu0 %v7946
        %8050 = vmatpush1.msra.mxu0 %v7945
        %8051 = vmatprep.subr.mxu0 %v7949
        %8052 = vmatpush1.msra.mxu0 %v7948
        %8053 = vmatprep.subr.mxu0 %v7952
        %8054 = vmatpush1.msra.mxu0 %v7951
        %8055 = vmatprep.subr.mxu0 0.0
        %8056 = vmatpush1.msra.mxu0 0.0
        %8057 = vmatprep.subr.mxu0 0.0
        %8058 = vmatpush1.msra.mxu0 0.0
        %8059 = vmatprep.subr.mxu0 0.0
        %8060 = vmatpush1.msra.mxu0 0.0
        %8061 = vmatprep.subr.mxu0 0.0
        %8062 = vmatpush1.msra.mxu0 0.0
        %8063 = vmatprep.subr.mxu0 0.0
        %8064 = vmatpush1.msra.mxu0 0.0
        %8065 = vmatprep.subr.mxu0 0.0
        %8066 = vmatpush1.msra.mxu0 0.0
        %8067 = vmatprep.subr.mxu0 0.0
        %8068 = vmatpush1.msra.mxu0 0.0
        %8069 = vmatprep.subr.mxu0 0.0
        %8070 = vmatpush1.msra.mxu0 0.0
        %8071 = vmatprep.subr.mxu0 0.0
        %8072 = vmatpush1.msra.mxu0 0.0
        %8073 = vmatprep.subr.mxu0 0.0
        %8074 = vmatpush1.msra.mxu0 0.0
        %8075 = vmatprep.subr.mxu0 0.0
        %8076 = vmatpush1.msra.mxu0 0.0
        %8077 = vmatprep.subr.mxu0 0.0
        %8078 = vmatpush1.msra.mxu0 0.0
        %8079 = vmatprep.subr.mxu0 0.0
        %8080 = vmatpush1.msra.mxu0 0.0
        %8081 = vmatprep.subr.mxu0 0.0
        %8082 = vmatpush1.msra.mxu0 0.0
        %8083 = vmatprep.subr.mxu0 0.0
        %8084 = vmatpush1.msra.mxu0 0.0
        %8085 = vmatprep.subr.mxu0 0.0
        %8086 = vmatpush1.msra.mxu0 0.0
        %8087 = vmatprep.mubr.f32.mxu0 0.0
        %8088 = vmatmul.mubr.f32.gmra.mrb[0].mxu0 %v7904
        %v8089 = vpop.f32.mrb[0].mxu0
        %v8090 = vadd.f32 %v8011, %v8089
        %v8091 = vpop.f32.mrb[0].mxu0
        %v8092 = vadd.f32 %v8015, %v8091
        %8093 = vdwg.mxu0
        %8094 = vmatprep.subr.mxu0 0.0
        %8095 = vmatpush1.msra.mxu0 %v7908
        %8096 = vmatprep.subr.mxu0 0.0
        %8097 = vmatpush1.msra.mxu0 %v7911
        %8098 = vmatprep.subr.mxu0 0.0
        %8099 = vmatpush1.msra.mxu0 %v7914
        %8100 = vmatprep.subr.mxu0 0.0
        %8101 = vmatpush1.msra.mxu0 %v7917
        %8102 = vmatprep.subr.mxu0 0.0
        %8103 = vmatpush1.msra.mxu0 %v7920
        %8104 = vmatprep.subr.mxu0 0.0
        %8105 = vmatpush1.msra.mxu0 %v7923
        %8106 = vmatprep.subr.mxu0 0.0
        %8107 = vmatpush1.msra.mxu0 %v7926
        %8108 = vmatprep.subr.mxu0 0.0
        %8109 = vmatpush1.msra.mxu0 %v7929
        %8110 = vmatprep.subr.mxu0 0.0
        %8111 = vmatpush1.msra.mxu0 %v7932
        %8112 = vmatprep.subr.mxu0 0.0
        %8113 = vmatpush1.msra.mxu0 %v7935
        %8114 = vmatprep.subr.mxu0 0.0
        %8115 = vmatpush1.msra.mxu0 %v7938
        %8116 = vmatprep.subr.mxu0 0.0
        %8117 = vmatpush1.msra.mxu0 %v7941
        %8118 = vmatprep.subr.mxu0 0.0
        %8119 = vmatpush1.msra.mxu0 %v7944
        %8120 = vmatprep.subr.mxu0 0.0
        %8121 = vmatpush1.msra.mxu0 %v7947
        %8122 = vmatprep.subr.mxu0 0.0
        %8123 = vmatpush1.msra.mxu0 %v7950
        %8124 = vmatprep.subr.mxu0 0.0
        %8125 = vmatpush1.msra.mxu0 %v7953
        %8126 = vmatprep.subr.mxu0 0.0
        %8127 = vmatpush1.msra.mxu0 0.0
        %8128 = vmatprep.subr.mxu0 0.0
        %8129 = vmatpush1.msra.mxu0 0.0
        %8130 = vmatprep.subr.mxu0 0.0
        %8131 = vmatpush1.msra.mxu0 0.0
        %8132 = vmatprep.subr.mxu0 0.0
        %8133 = vmatpush1.msra.mxu0 0.0
        %8134 = vmatprep.subr.mxu0 0.0
        %8135 = vmatpush1.msra.mxu0 0.0
        %8136 = vmatprep.subr.mxu0 0.0
        %8137 = vmatpush1.msra.mxu0 0.0
        %8138 = vmatprep.subr.mxu0 0.0
        %8139 = vmatpush1.msra.mxu0 0.0
        %8140 = vmatprep.subr.mxu0 0.0
        %8141 = vmatpush1.msra.mxu0 0.0
        %8142 = vmatprep.subr.mxu0 0.0
        %8143 = vmatpush1.msra.mxu0 0.0
        %8144 = vmatprep.subr.mxu0 0.0
        %8145 = vmatpush1.msra.mxu0 0.0
        %8146 = vmatprep.subr.mxu0 0.0
        %8147 = vmatpush1.msra.mxu0 0.0
        %8148 = vmatprep.subr.mxu0 0.0
        %8149 = vmatpush1.msra.mxu0 0.0
        %8150 = vmatprep.subr.mxu0 0.0
        %8151 = vmatpush1.msra.mxu0 0.0
        %8152 = vmatprep.subr.mxu0 0.0
        %8153 = vmatpush1.msra.mxu0 0.0
        %8154 = vmatprep.subr.mxu0 0.0
        %8155 = vmatpush1.msra.mxu0 0.0
        %8156 = vmatprep.subr.mxu0 0.0
        %8157 = vmatpush1.msra.mxu0 0.0
        %8158 = vmatprep.mubr.f32.mxu0 0.0
        %8159 = vmatmul.mubr.f32.gmra.mrb[0].mxu0 %v7904
        %v8160 = vpop.f32.mrb[0].mxu0
        %v8161 = vadd.f32 %v8019, %v8160
        %v8162 = vpop.f32.mrb[0].mxu0
        %8163 = vdwg.mxu0
        %v8165 = vlaneseq
        %v8166 = vshrl.u32 %v8165, 7
        %v8167 = vsub.s32 0, %v8166
        %v8168 = vrot.slane %v8006, %v8167
        %v8169 = vlaneseq
        %v8170 = vshrl.u32 %v8169, 7
        %v8171 = vsub.s32 1, %v8170
        %v8172 = vrot.slane %v8006, %v8171
        %v8173 = vlaneseq
        %v8174 = vshrl.u32 %v8173, 7
        %v8175 = vsub.s32 2, %v8174
        %v8176 = vrot.slane %v8006, %v8175
        %8180 = vmatprep.subr.mxu0 %v7956
        %8181 = vmatpush1.msra.mxu0 %v7955
        %8182 = vmatprep.subr.mxu0 %v7959
        %8183 = vmatpush1.msra.mxu0 %v7958
        %8184 = vmatprep.subr.mxu0 %v7962
        %8185 = vmatpush1.msra.mxu0 %v7961
        %8186 = vmatprep.subr.mxu0 %v7965
        %8187 = vmatpush1.msra.mxu0 %v7964
        %8188 = vmatprep.subr.mxu0 %v7968
        %8189 = vmatpush1.msra.mxu0 %v7967
        %8190 = vmatprep.subr.mxu0 %v7971
        %8191 = vmatpush1.msra.mxu0 %v7970
        %8192 = vmatprep.subr.mxu0 %v7974
        %8193 = vmatpush1.msra.mxu0 %v7973
        %8194 = vmatprep.subr.mxu0 %v7977
        %8195 = vmatpush1.msra.mxu0 %v7976
        %8196 = vmatprep.subr.mxu0 %v7980
        %8197 = vmatpush1.msra.mxu0 %v7979
        %8198 = vmatprep.subr.mxu0 %v7983
        %8199 = vmatpush1.msra.mxu0 %v7982
        %8200 = vmatprep.subr.mxu0 %v7986
        %8201 = vmatpush1.msra.mxu0 %v7985
        %8202 = vmatprep.subr.mxu0 %v7989
        %8203 = vmatpush1.msra.mxu0 %v7988
        %8204 = vmatprep.subr.mxu0 %v7992
        %8205 = vmatpush1.msra.mxu0 %v7991
        %8206 = vmatprep.subr.mxu0 %v7995
        %8207 = vmatpush1.msra.mxu0 %v7994
        %8208 = vmatprep.subr.mxu0 %v7998
        %8209 = vmatpush1.msra.mxu0 %v7997
        %8210 = vmatprep.subr.mxu0 %v8001
        %8211 = vmatpush1.msra.mxu0 %v8000
        %8212 = vmatprep.subr.mxu0 0.0
        %8213 = vmatpush1.msra.mxu0 0.0
        %8214 = vmatprep.subr.mxu0 0.0
        %8215 = vmatpush1.msra.mxu0 0.0
        %8216 = vmatprep.subr.mxu0 0.0
        %8217 = vmatpush1.msra.mxu0 0.0
        %8218 = vmatprep.subr.mxu0 0.0
        %8219 = vmatpush1.msra.mxu0 0.0
        %8220 = vmatprep.subr.mxu0 0.0
        %8221 = vmatpush1.msra.mxu0 0.0
        %8222 = vmatprep.subr.mxu0 0.0
        %8223 = vmatpush1.msra.mxu0 0.0
        %8224 = vmatprep.subr.mxu0 0.0
        %8225 = vmatpush1.msra.mxu0 0.0
        %8226 = vmatprep.subr.mxu0 0.0
        %8227 = vmatpush1.msra.mxu0 0.0
        %8228 = vmatprep.subr.mxu0 0.0
        %8229 = vmatpush1.msra.mxu0 0.0
        %8230 = vmatprep.subr.mxu0 0.0
        %8231 = vmatpush1.msra.mxu0 0.0
        %8232 = vmatprep.subr.mxu0 0.0
        %8233 = vmatpush1.msra.mxu0 0.0
        %8234 = vmatprep.subr.mxu0 0.0
        %8235 = vmatpush1.msra.mxu0 0.0
        %8236 = vmatprep.subr.mxu0 0.0
        %8237 = vmatpush1.msra.mxu0 0.0
        %8238 = vmatprep.subr.mxu0 0.0
        %8239 = vmatpush1.msra.mxu0 0.0
        %8240 = vmatprep.subr.mxu0 0.0
        %8241 = vmatpush1.msra.mxu0 0.0
        %8242 = vmatprep.subr.mxu0 0.0
        %8243 = vmatpush1.msra.mxu0 0.0
        %8244 = vmatprep.mubr.f32.mxu0 0.0
        %8245 = vmatmul.mubr.f32.gmra.mrb[0].mxu0 %v7530
        %v8246 = vpop.f32.mrb[0].mxu0
        %v8247 = vadd.f32 %v8168, %v8246
        %v8248 = vpop.f32.mrb[0].mxu0
        %v8249 = vadd.f32 %v8172, %v8248
        %8250 = vdwg.mxu0
        %8251 = vmatprep.subr.mxu0 0.0
        %8252 = vmatpush1.msra.mxu0 %v7957
        %8253 = vmatprep.subr.mxu0 0.0
        %8254 = vmatpush1.msra.mxu0 %v7960
        %8255 = vmatprep.subr.mxu0 0.0
        %8256 = vmatpush1.msra.mxu0 %v7963
        %8257 = vmatprep.subr.mxu0 0.0
        %8258 = vmatpush1.msra.mxu0 %v7966
        %8259 = vmatprep.subr.mxu0 0.0
        %8260 = vmatpush1.msra.mxu0 %v7969
        %8261 = vmatprep.subr.mxu0 0.0
        %8262 = vmatpush1.msra.mxu0 %v7972
        %8263 = vmatprep.subr.mxu0 0.0
        %8264 = vmatpush1.msra.mxu0 %v7975
        %8265 = vmatprep.subr.mxu0 0.0
        %8266 = vmatpush1.msra.mxu0 %v7978
        %8267 = vmatprep.subr.mxu0 0.0
        %8268 = vmatpush1.msra.mxu0 %v7981
        %8269 = vmatprep.subr.mxu0 0.0
        %8270 = vmatpush1.msra.mxu0 %v7984
        %8271 = vmatprep.subr.mxu0 0.0
        %8272 = vmatpush1.msra.mxu0 %v7987
        %8273 = vmatprep.subr.mxu0 0.0
        %8274 = vmatpush1.msra.mxu0 %v7990
        %8275 = vmatprep.subr.mxu0 0.0
        %8276 = vmatpush1.msra.mxu0 %v7993
        %8277 = vmatprep.subr.mxu0 0.0
        %8278 = vmatpush1.msra.mxu0 %v7996
        %8279 = vmatprep.subr.mxu0 0.0
        %8280 = vmatpush1.msra.mxu0 %v7999
        %8281 = vmatprep.subr.mxu0 0.0
        %8282 = vmatpush1.msra.mxu0 %v8002
        %8283 = vmatprep.subr.mxu0 0.0
        %8284 = vmatpush1.msra.mxu0 0.0
        %8285 = vmatprep.subr.mxu0 0.0
        %8286 = vmatpush1.msra.mxu0 0.0
        %8287 = vmatprep.subr.mxu0 0.0
        %8288 = vmatpush1.msra.mxu0 0.0
        %8289 = vmatprep.subr.mxu0 0.0
        %8290 = vmatpush1.msra.mxu0 0.0
        %8291 = vmatprep.subr.mxu0 0.0
        %8292 = vmatpush1.msra.mxu0 0.0
        %8293 = vmatprep.subr.mxu0 0.0
        %8294 = vmatpush1.msra.mxu0 0.0
        %8295 = vmatprep.subr.mxu0 0.0
        %8296 = vmatpush1.msra.mxu0 0.0
        %8297 = vmatprep.subr.mxu0 0.0
        %8298 = vmatpush1.msra.mxu0 0.0
        %8299 = vmatprep.subr.mxu0 0.0
        %8300 = vmatpush1.msra.mxu0 0.0
        %8301 = vmatprep.subr.mxu0 0.0
        %8302 = vmatpush1.msra.mxu0 0.0
        %8303 = vmatprep.subr.mxu0 0.0
        %8304 = vmatpush1.msra.mxu0 0.0
        %8305 = vmatprep.subr.mxu0 0.0
        %8306 = vmatpush1.msra.mxu0 0.0
        %8307 = vmatprep.subr.mxu0 0.0
        %8308 = vmatpush1.msra.mxu0 0.0
        %8309 = vmatprep.subr.mxu0 0.0
        %8310 = vmatpush1.msra.mxu0 0.0
        %8311 = vmatprep.subr.mxu0 0.0
        %8312 = vmatpush1.msra.mxu0 0.0
        %8313 = vmatprep.subr.mxu0 0.0
        %8314 = vmatpush1.msra.mxu0 0.0
        %8315 = vmatprep.mubr.f32.mxu0 0.0
        %8316 = vmatmul.mubr.f32.gmra.mrb[0].mxu0 %v7530
        %v8317 = vpop.f32.mrb[0].mxu0
        %v8318 = vadd.f32 %v8176, %v8317
        %v8319 = vpop.f32.mrb[0].mxu0
        %8320 = vdwg.mxu0
        %v8321 = vadd.f32 %v8090, %v8247
        %v8322 = vsub.f32 0.0, %v8321
        %v8323 = vmul.f32 %v8322, 1.442695
        %v8324 = vpow.pop %v8323
        %v8325 = vadd.f32 %v8324, 1.0
        %v8326 = vrcp.pop %v8325
        %v8327 = vadd.f32 %v8092, %v8249
        %v8328 = vsub.f32 0.0, %v8327
        %v8329 = vmul.f32 %v8328, 1.442695
        %v8330 = vpow.pop %v8329
        %v8331 = vadd.f32 %v8330, 1.0
        %v8332 = vrcp.pop %v8331
        %v8333 = vmul.f32 %v8326, %v8318
        %v8334 = vadd.f32 %v8161, %v8333
        %v8335 = vtanh.pop %v8334
        %v8336 = vsub.f32 1.0, %v8332
        %v8337 = vmul.f32 %v8336, %v8335
        %v8338 = vmul.f32 %v8332, %v7530
        %v8339 = vadd.f32 %v8337, %v8338
        %v8340 = vmax.f32 %v8339, 0.0
        %8341 = vst [vmem:[%s2347] sm:$0x3] %v8340
        %s8342 = sand.u32 %s1033, 1
        %s8343 = scalar_lea.sflag [#allocation4], %s8342
        %s8344 = sand.u32 %s1033, 1
        %s8345 = smul.addr %s8344, 2
        %s8346 = scalar_lea.vmem [#allocation42], %s8345
        // Predicated region
        $region309: #{forward.1} parent=163 // pred_check
          %p8347 = pneg %p1043
        $region310: #{forward.1} parent=163 // pred_check_branch
          %8349 = sbr.rel (%p8347) target = $region312
        $region311: #{forward.1} parent=163 // pred_region
          %s8351 = ssub.s32 32, 32
          %8352 = vsyncadd %s8343, %s8351
          %s8353 = smul.addr %s94, 32
          %s8354 = scalar_lea.hbm %s73, %s8353
          %s8356 = sshll.u32 %s8346, 4
          %s8357 = int_to_ptr.vmem [resolvable:$true] %s8356
          %8359 = dma.vmem_to_hbm [thread:$0]  %s8357, 32, %s8354, %s8343
        $region312: #{forward.1} parent=163 // pred_fallthru
          _
      $region164: #{forward.1} parent=5 // pred_fallthru
        _
      %p8360 = scmp.le.s32.totalorder 2, %s89
      // Predicated region
      $region313: #{forward.1} parent=5 // pred_check
        %p8361 = pneg %p8360
      $region314: #{forward.1} parent=5 // pred_check_branch
        %8363 = sbr.rel (%p8361) target = $region316
      $region315: #{forward.1} parent=5 // pred_region
        %s8364 = ssub.s32 %s89, 2
        // Predicated region
        $region317: #{forward.1} parent=315 // pred_check
          %p8365 = pneg %p1049
        $region318: #{forward.1} parent=315 // pred_check_branch
          %8367 = sbr.rel (%p8365) target = $region320
        $region319: #{forward.1} parent=315 // pred_region
          %s8368 = sand.u32 %s1034, 1
          %s8369 = scalar_lea.sflag [#allocation4], %s8368
          %s8370 = sand.u32 %s1034, 1
          %s8371 = smul.addr %s8370, 2
          %s8372 = scalar_lea.vmem [#allocation42], %s8371
          %8373 = dma.done %s8369, 32
        $region320: #{forward.1} parent=315 // pred_fallthru
          _
      $region316: #{forward.1} parent=5 // pred_fallthru
        _
    $region6: #{forward.1} parent=1 // loop_footer
      %s93 = sadd.s32 1, %s89
    $region7: #{forward.1} parent=1 // loop_footer_branch
      %88 = sbr.rel target = $region3
    $region8: #{forward.1} parent=1 // loop_exit
      _
    %8374 = vsyncpa [#allocation3], 1
    %s8375 = scalar_lea.sflag [#allocation3], 1
    %8376 = vsyncpa %s8375, 1
    %8377 = vsyncpa [#allocation6], 1
    %s8378 = scalar_lea.sflag [#allocation6], 1
    %8379 = vsyncpa %s8378, 1
    %8380 = vsyncpa [#allocation9], 1
    %8381 = vsyncpa [#allocation4], 1
    %s8382 = scalar_lea.sflag [#allocation4], 1
    %8383 = vsyncpa %s8382, 1

</llo_original>
